<compile_context>
chip_gen: v7x
topology: tpu7x:2x2x1
jax: 0.10.0
libtpu: 0.0.40
codegen_flags: <defaults>
</compile_context>

<pallas_src>
import functools

import jax
import jax.numpy as jnp
from jax.experimental import pallas as pl
from jax.experimental.pallas import tpu as pltpu

_VMEM_LIMIT = 32 * 1024 * 1024  # safe on v5e/v6e/v7x (tiles here are far smaller)
_EXPANSION = 4
_BN_EPS = 1e-5


def _rup(x, m):
    return ((x + m - 1) // m) * m


def _pad_last(x, target):
    d = target - x.shape[-1]
    if d == 0:
        return x
    cfg = [(0, 0)] * (x.ndim - 1) + [(0, d)]
    return jnp.pad(x, cfg)


# --------------------------- tiled matmul kernel ---------------------------

def _mm_kernel(x_ref, w_ref, b_ref, *rest, relu, has_res):
    if has_res:
        r_ref, o_ref, acc_ref = rest
    else:
        o_ref, acc_ref = rest
    k = pl.program_id(2)

    @pl.when(k == 0)
    def _init():
        acc_ref[...] = jnp.zeros_like(acc_ref)

    acc_ref[...] += jnp.dot(x_ref[...], w_ref[...],
                            preferred_element_type=jnp.float32)

    @pl.when(k == pl.num_programs(2) - 1)
    def _finalize():
        out = acc_ref[...] + b_ref[...]          # folded-BN bias (f32)
        if has_res:
            out = out + r_ref[...].astype(jnp.float32)   # fused residual add
        if relu:
            out = jnp.maximum(out, 0.0)
        o_ref[...] = out.astype(o_ref.dtype)


def matmul_bias(x, w, b, *, residual=None, relu=False, out_dtype=jnp.float32):
    """(x @ w + b [+ residual])[relu].  x,w bf16; accumulate f32 on the MXU."""
    M, K = x.shape
    K2, N = w.shape
    assert K == K2 and K % 128 == 0 and N % 128 == 0

    Mp = _rup(M, 128)
    if Mp != M:
        x = jnp.pad(x, ((0, Mp - M), (0, 0)))
        if residual is not None:
            residual = jnp.pad(residual, ((0, Mp - M), (0, 0)))

    tm = 512 if Mp % 512 == 0 else (256 if Mp % 256 == 0 else 128)
    tn = 256 if N % 256 == 0 else 128
    tk = 256 if K % 256 == 0 else 128
    grid = (Mp // tm, N // tn, K // tk)

    in_specs = [
        pl.BlockSpec((tm, tk), lambda i, j, k: (i, k)),
        pl.BlockSpec((tk, tn), lambda i, j, k: (k, j)),
        pl.BlockSpec((1, tn), lambda i, j, k: (0, j)),
    ]
    operands = [x, w, b]
    if residual is not None:
        in_specs.append(pl.BlockSpec((tm, tn), lambda i, j, k: (i, j)))
        operands.append(residual)

    kern = functools.partial(_mm_kernel, relu=relu, has_res=residual is not None)
    out = pl.pallas_call(
        kern,
        out_shape=jax.ShapeDtypeStruct((Mp, N), out_dtype),
        grid=grid,
        in_specs=in_specs,
        out_specs=pl.BlockSpec((tm, tn), lambda i, j, k: (i, j)),
        scratch_shapes=[pltpu.VMEM((tm, tn), jnp.float32)],
        compiler_params=pltpu.CompilerParams(
            dimension_semantics=("parallel", "parallel", "arbitrary"),
            vmem_limit_bytes=_VMEM_LIMIT),
    )(*operands)
    return out[:M] if Mp != M else out


def conv1x1(x, w2d, b, *, relu, residual=None, out_dtype):
    """x: (N,H,W,Cp) bf16 ; w2d: (Cp,Coutp) bf16 ; b: (1,Coutp) f32."""
    n, h, w, cp = x.shape
    coutp = w2d.shape[-1]
    x2 = x.reshape(n * h * w, cp)
    r2 = residual.reshape(n * h * w, coutp) if residual is not None else None
    out = matmul_bias(x2, w2d, b, residual=r2, relu=relu, out_dtype=out_dtype)
    return out.reshape(n, h, w, coutp)


# ----------------------- direct 3x3 stride-1 conv kernel -----------------------

def _conv3x3_s1_kernel(x_ref, w_ref, b_ref, o_ref, *, relu):
    # x_ref: (1, H+2, W+2, Cp) bf16 ; w_ref: (9, Cp, tn) bf16 ; b_ref: (1, tn) f32
    _, hp2, wp2, cp = x_ref.shape
    h, w = hp2 - 2, wp2 - 2
    tn = o_ref.shape[-1]
    acc = jnp.zeros((h * w, tn), jnp.float32)
    for t in range(9):                       # statically unrolled taps
        di, dj = divmod(t, 3)
        patch = x_ref[0, di:di + h, dj:dj + w, :].reshape(h * w, cp)
        acc = acc + jnp.dot(patch, w_ref[t], preferred_element_type=jnp.float32)
    out = acc + b_ref[...]
    if relu:
        out = jnp.maximum(out, 0.0)
    o_ref[...] = out.reshape(1, h, w, tn).astype(o_ref.dtype)


def conv3x3_s1(x, w3, b, *, relu, out_dtype):
    """3x3, stride 1, pad 1.  x: (N,H,W,Cp) bf16 ; w3: (9,Cp,Coutp) bf16."""
    n, h, w, cp = x.shape
    coutp = w3.shape[-1]
    xpad = jnp.pad(x, ((0, 0), (1, 1), (1, 1), (0, 0)))
    tn = 128
    kern = functools.partial(_conv3x3_s1_kernel, relu=relu)
    # TODO(synk): at real resolutions tile H with halo'd input blocks instead of
    #             keeping the full (H+2, W+2) map in VMEM per batch element.
    return pl.pallas_call(
        kern,
        out_shape=jax.ShapeDtypeStruct((n, h, w, coutp), out_dtype),
        grid=(n, coutp // tn),
        in_specs=[pl.BlockSpec((1, h + 2, w + 2, cp), lambda i, j: (i, 0, 0, 0)),
                  pl.BlockSpec((9, cp, tn), lambda i, j: (0, 0, j)),
                  pl.BlockSpec((1, tn), lambda i, j: (0, j))],
        out_specs=pl.BlockSpec((1, h, w, tn), lambda i, j: (i, 0, 0, j)),
        compiler_params=pltpu.CompilerParams(
            dimension_semantics=("parallel", "parallel"),
            vmem_limit_bytes=_VMEM_LIMIT),
    )(xpad, w3, b)


def conv3x3_im2col(x, w2d, b, *, stride, relu, out_dtype):
    """Strided 3x3, pad 1, via bf16 im2col + tiled Pallas matmul."""
    n, h, w, cp = x.shape
    coutp = w2d.shape[-1]
    xp = jnp.pad(x, ((0, 0), (1, 1), (1, 1), (0, 0)))
    hout = (h + 2 - 3) // stride + 1
    wout = (w + 2 - 3) // stride + 1
    cols = []
    for di in range(3):
        for dj in range(3):
            cols.append(xp[:, di:di + (hout - 1) * stride + 1:stride,
                           dj:dj + (wout - 1) * stride + 1:stride, :])
    x2 = jnp.concatenate(cols, axis=-1).reshape(n * hout * wout, 9 * cp)
    out = matmul_bias(x2, w2d, b, relu=relu, out_dtype=out_dtype)
    return out.reshape(n, hout, wout, coutp)


# --------------------------- parameters (raw + prepared) ---------------------------

def init_raw_params(key, in_channel, out_channel, stride):
    ks = jax.random.split(key, 8)

    def winit(k, shape, fan_in):
        return jax.random.normal(k, shape, jnp.float32) / jnp.sqrt(float(fan_in))

    def bn_init(k, c):
        k1, k2, k3, k4 = jax.random.split(k, 4)
        return {"gamma": jax.random.uniform(k1, (c,), jnp.float32, 0.5, 1.5),
                "beta": jax.random.normal(k2, (c,), jnp.float32) * 0.1,
                "mean": jax.random.normal(k3, (c,), jnp.float32) * 0.1,
                "var": jax.random.uniform(k4, (c,), jnp.float32, 0.5, 1.5)}

    c3 = out_channel * _EXPANSION
    raw = {
        "conv1_w": winit(ks[0], (1, 1, in_channel, out_channel), in_channel),
        "bn1": bn_init(ks[1], out_channel),
        "conv2_w": winit(ks[2], (3, 3, out_channel, out_channel), 9 * out_channel),
        "bn2": bn_init(ks[3], out_channel),
        "conv3_w": winit(ks[4], (1, 1, out_channel, c3), out_channel),
        "bn3": bn_init(ks[5], c3),
    }
    if stride != 1 or in_channel != c3:
        raw["downsample"] = {"w": winit(ks[6], (1, 1, in_channel, c3), in_channel),
                             "bn": bn_init(ks[7], c3)}
    else:
        raw["downsample"] = None
    return raw


def prepare_params(raw, in_channel, out_channel, stride):
    """Fold eval-mode BN into conv weights, pad channels to x128, cast to bf16."""
    c1, c3 = out_channel, out_channel * _EXPANSION
    cin_p, c1_p, c3_p = _rup(in_channel, 128), _rup(c1, 128), _rup(c3, 128)

    def fold(w, bn):
        scale = bn["gamma"] / jnp.sqrt(bn["var"] + _BN_EPS)
        return w * scale, bn["beta"] - bn["mean"] * scale

    def pad2d(w2d, kp, np_):
        return jnp.pad(w2d, ((0, kp - w2d.shape[0]), (0, np_ - w2d.shape[1])))

    def padb(b, np_):
        return jnp.pad(b, (0, np_ - b.shape[0])).reshape(1, np_).astype(jnp.float32)

    w1, b1 = fold(raw["conv1_w"], raw["bn1"])
    w2, b2 = fold(raw["conv2_w"], raw["bn2"])
    w3, b3 = fold(raw["conv3_w"], raw["bn3"])

    params = {
        "w1": pad2d(w1[0, 0], cin_p, c1_p).astype(jnp.bfloat16),
        "b1": padb(b1, c1_p),
        "b2": padb(b2, c1_p),
        "w3": pad2d(w3[0, 0], c1_p, c3_p).astype(jnp.bfloat16),
        "b3": padb(b3, c3_p),
    }
    w2r = w2.reshape(9, c1, c1)
    w2p = jnp.pad(w2r, ((0, 0), (0, c1_p - c1), (0, c1_p - c1))).astype(jnp.bfloat16)
    params["w2"] = w2p if stride == 1 else w2p.reshape(9 * c1_p, c1_p)

    if raw["downsample"] is not None:
        wd, bd = fold(raw["downsample"]["w"], raw["downsample"]["bn"])
        params["downsample"] = {"w": pad2d(wd[0, 0], cin_p, c3_p).astype(jnp.bfloat16),
                                "b": padb(bd, c3_p)}
    else:
        params["downsample"] = None

    cfg = dict(stride=stride, cin_p=cin_p, c3_p=c3_p, c3=c3)
    return params, cfg


# --------------------------------- forward ---------------------------------

def resblock_forward(params, x_nchw, *, stride, cin_p, c3_p, c3):
    x = jnp.transpose(x_nchw, (0, 2, 3, 1))                   # NHWC, f32
    xin = _pad_last(x, cin_p).astype(jnp.bfloat16)

    # identity branch (optional downsample: 1x1 stride-s conv + folded BN)
    if params["downsample"] is not None:
        xi = xin[:, ::stride, ::stride, :] if stride > 1 else xin
        identity = conv1x1(xi, params["downsample"]["w"], params["downsample"]["b"],
                           relu=False, out_dtype=jnp.float32)
    else:
        identity = _pad_last(x, c3_p)                          # f32

    # conv1 (1x1) + bn1 + relu
    h = conv1x1(xin, params["w1"], params["b1"], relu=True, out_dtype=jnp.bfloat16)
    # conv2 (3x3, stride, pad=1) + bn2 + relu
    if stride == 1:
        h = conv3x3_s1(h, params["w2"], params["b2"], relu=True, out_dtype=jnp.bfloat16)
    else:
        h = conv3x3_im2col(h, params["w2"], params["b2"], stride=stride,
                           relu=True, out_dtype=jnp.bfloat16)
    # conv3 (1x1) + bn3 + fused residual add + relu
    out = conv1x1(h, params["w3"], params["b3"], relu=True,
                  residual=identity, out_dtype=jnp.float32)

    out = out[..., :c3]                                        # drop channel padding
    return jnp.transpose(out, (0, 3, 1, 2))                    # back to NCHW


# ------------------------------ pure-JAX reference ------------------------------

def resblock_reference(raw, x_nchw, stride):
    x = jnp.transpose(x_nchw, (0, 2, 3, 1))

    def bn(y, p):
        scale = p["gamma"] / jnp.sqrt(p["var"] + _BN_EPS)
        return y * scale + (p["beta"] - p["mean"] * scale)

    def conv(y, w, s, pad):
        return jax.lax.conv_general_dilated(
            y, w, (s, s), [(pad, pad), (pad, pad)],
            dimension_numbers=("NHWC", "HWIO", "NHWC"))

    identity = x
    if raw["downsample"] is not None:
        identity = bn(conv(x, raw["downsample"]["w"], stride, 0), raw["downsample"]["bn"])
    h = jax.nn.relu(bn(conv(x, raw["conv1_w"], 1, 0), raw["bn1"]))
    h = jax.nn.relu(bn(conv(h, raw["conv2_w"], stride, 1), raw["bn2"]))
    h = bn(conv(h, raw["conv3_w"], 1, 0), raw["bn3"])
    out = jax.nn.relu(h + identity)
    return jnp.transpose(out, (0, 3, 1, 2))


# ---------------------------------- main ----------------------------------

if __name__ == "__main__":
    key = jax.random.PRNGKey(0)
    kx1, kx2, kp1, kp2 = jax.random.split(key, 4)

    # Block A: stride 1 (direct 3x3 kernel path), channel-expanding downsample.
    N, Cin1, H, W = 2, 16, 16, 16
    out_ch1, stride1 = 16, 1
    x1 = jax.random.normal(kx1, (N, Cin1, H, W), jnp.float32)
    raw1 = init_raw_params(kp1, Cin1, out_ch1, stride1)
    p1, cfg1 = prepare_params(raw1, Cin1, out_ch1, stride1)
    fwd1 = jax.jit(functools.partial(resblock_forward, **cfg1))
    o1 = fwd1(p1, x1)
    jax.block_until_ready(o1)
    assert o1.shape == (N, out_ch1 * _EXPANSION, H, W), o1.shape
    assert o1.dtype == jnp.float32
    r1 = resblock_reference(raw1, x1, stride1)
    err1 = float(jnp.linalg.norm(o1 - r1) / (jnp.linalg.norm(r1) + 1e-8))
    assert err1 < 0.05, err1

    # Block B: stride 2 (im2col fallback path for the 3x3 conv) + strided downsample.
    Cin2, out_ch2, stride2 = 64, 32, 2
    x2 = jax.random.normal(kx2, (N, Cin2, H, W), jnp.float32)
    raw2 = init_raw_params(kp2, Cin2, out_ch2, stride2)
    p2, cfg2 = prepare_params(raw2, Cin2, out_ch2, stride2)
    fwd2 = jax.jit(functools.partial(resblock_forward, **cfg2))
    o2 = fwd2(p2, x2)
    jax.block_until_ready(o2)
    assert o2.shape == (N, out_ch2 * _EXPANSION, H // 2, W // 2), o2.shape
    assert o2.dtype == jnp.float32
    r2 = resblock_reference(raw2, x2, stride2)
    err2 = float(jnp.linalg.norm(o2 - r2) / (jnp.linalg.norm(r2) + 1e-8))
    assert err2 < 0.05, err2

    print("KERNEL_OK")
</pallas_src>

<mosaic_0001>
module attributes {stable_mosaic.version = 11 : i64} {
  func.func @_mm_kernel(%arg0: i32, %arg1: i32, %arg2: i32, %arg3: memref<512x128xbf16, #tpu.memory_space<vmem>>, %arg4: memref<128x128xbf16, #tpu.memory_space<vmem>>, %arg5: memref<1x128xf32, #tpu.memory_space<vmem>>, %arg6: memref<512x128xbf16, #tpu.memory_space<vmem>>, %arg7: memref<512x128xf32, #tpu.memory_space<vmem>>) attributes {dimension_semantics = [#tpu.dimension_semantics<parallel>, #tpu.dimension_semantics<parallel>, #tpu.dimension_semantics<arbitrary>], iteration_bounds = array<i64: 1, 1, 1>, scalar_prefetch = 0 : i64, scratch_operands = 1 : i64, tpu.core_type = #tpu.core_type<tc>, window_params = [{transform_indices = @transform_0, window_bounds = array<i64: 512, 128>}, {transform_indices = @transform_1, window_bounds = array<i64: 128, 128>}, {transform_indices = @transform_2, window_bounds = array<i64: 1, 128>}, {transform_indices = @transform_3, window_bounds = array<i64: 512, 128>}]} {
    %c0_i32 = arith.constant 0 : i32
    %0 = arith.cmpi eq, %arg2, %c0_i32 : i32
    %1 = arith.extui %0 : i1 to i32
    %c0_i32_0 = arith.constant 0 : i32
    %2 = arith.cmpi ne, %1, %c0_i32_0 : i32
    scf.if %2 {
      %cst_10 = arith.constant 0.000000e+00 : f32
      %12 = vector.broadcast %cst_10 : f32 to vector<512x128xf32>
      %c0_11 = arith.constant 0 : index
      %c0_12 = arith.constant 0 : index
      %13 = vector.load %arg7[%c0_11, %c0_12] : memref<512x128xf32, #tpu.memory_space<vmem>>, vector<512x128xf32>
      tpu.vector_store %arg7[%c0_11, %c0_12], %12 {strides = array<i32>} : memref<512x128xf32, #tpu.memory_space<vmem>>, vector<512x128xf32>,
    } else {
    }
    %c0 = arith.constant 0 : index
    %c0_1 = arith.constant 0 : index
    %3 = vector.load %arg7[%c0, %c0_1] : memref<512x128xf32, #tpu.memory_space<vmem>>, vector<512x128xf32>
    %c0_2 = arith.constant 0 : index
    %c0_3 = arith.constant 0 : index
    %4 = vector.load %arg3[%c0_2, %c0_3] : memref<512x128xbf16, #tpu.memory_space<vmem>>, vector<512x128xbf16>
    %c0_4 = arith.constant 0 : index
    %c0_5 = arith.constant 0 : index
    %5 = vector.load %arg4[%c0_4, %c0_5] : memref<128x128xbf16, #tpu.memory_space<vmem>>, vector<128x128xbf16>
    %cst = arith.constant dense<0.000000e+00> : vector<512x128xf32>
    %6 = tpu.matmul %4, %5, %cst {dimension_numbers = #tpu.dot_dimension_numbers<[1], [0], [0], [1], [0, 0, 1, 1], [], []>} : vector<512x128xbf16>, vector<128x128xbf16>, vector<512x128xf32> -> vector<512x128xf32>
    %7 = arith.addf %3, %6 : vector<512x128xf32>
    %c0_6 = arith.constant 0 : index
    %c0_7 = arith.constant 0 : index
    %8 = vector.load %arg7[%c0_6, %c0_7] : memref<512x128xf32, #tpu.memory_space<vmem>>, vector<512x128xf32>
    tpu.vector_store %arg7[%c0_6, %c0_7], %7 {strides = array<i32>} : memref<512x128xf32, #tpu.memory_space<vmem>>, vector<512x128xf32>,
    %c0_i32_8 = arith.constant 0 : i32
    %9 = arith.cmpi eq, %arg2, %c0_i32_8 : i32
    %10 = arith.extui %9 : i1 to i32
    %c0_i32_9 = arith.constant 0 : i32
    %11 = arith.cmpi ne, %10, %c0_i32_9 : i32
    scf.if %11 {
      %c0_10 = arith.constant 0 : index
      %c0_11 = arith.constant 0 : index
      %12 = vector.load %arg7[%c0_10, %c0_11] : memref<512x128xf32, #tpu.memory_space<vmem>>, vector<512x128xf32>
      %c0_12 = arith.constant 0 : index
      %c0_13 = arith.constant 0 : index
      %13 = vector.load %arg5[%c0_12, %c0_13] : memref<1x128xf32, #tpu.memory_space<vmem>>, vector<1x128xf32>
      %14 = vector.broadcast %13 : vector<1x128xf32> to vector<512x128xf32>
      %15 = arith.addf %12, %14 : vector<512x128xf32>
      %cst_14 = arith.constant 0.000000e+00 : f32
      %16 = vector.broadcast %cst_14 : f32 to vector<512x128xf32>
      %17 = arith.maximumf %15, %16 : vector<512x128xf32>
      %18 = arith.truncf %17 : vector<512x128xf32> to vector<512x128xbf16>
      %c0_15 = arith.constant 0 : index
      %c0_16 = arith.constant 0 : index
      %19 = vector.load %arg6[%c0_15, %c0_16] : memref<512x128xbf16, #tpu.memory_space<vmem>>, vector<512x128xbf16>
      tpu.vector_store %arg6[%c0_15, %c0_16], %18 {strides = array<i32>} : memref<512x128xbf16, #tpu.memory_space<vmem>>, vector<512x128xbf16>,
    } else {
    }
    return
  }
  func.func @transform_0(%arg0: i32, %arg1: i32, %arg2: i32) -> (i32, i32) {
    %c0_i32 = arith.constant 0 : i32
    return %arg0, %arg2 : i32, i32
  }
  func.func @transform_1(%arg0: i32, %arg1: i32, %arg2: i32) -> (i32, i32) {
    %c0_i32 = arith.constant 0 : i32
    return %arg2, %arg1 : i32, i32
  }
  func.func @transform_2(%arg0: i32, %arg1: i32, %arg2: i32) -> (i32, i32) {
    %c0_i32 = arith.constant 0 : i32
    %c0_i32_0 = arith.constant 0 : i32
    return %c0_i32, %arg1 : i32, i32
  }
  func.func @transform_3(%arg0: i32, %arg1: i32, %arg2: i32) -> (i32, i32) {
    %c0_i32 = arith.constant 0 : i32
    return %arg0, %arg1 : i32, i32
  }
}

module attributes {stable_mosaic.version = 11 : i64} {
  func.func @_conv3x3_s1_kernel(%arg0: i32, %arg1: i32, %arg2: memref<1x18x18x128xbf16, #tpu.memory_space<vmem>>, %arg3: memref<9x128x128xbf16, #tpu.memory_space<vmem>>, %arg4: memref<1x128xf32, #tpu.memory_space<vmem>>, %arg5: memref<1x16x16x128xbf16, #tpu.memory_space<vmem>>) attributes {dimension_semantics = [#tpu.dimension_semantics<parallel>, #tpu.dimension_semantics<parallel>], iteration_bounds = array<i64: 2, 1>, scalar_prefetch = 0 : i64, scratch_operands = 0 : i64, tpu.core_type = #tpu.core_type<tc>, window_params = [{transform_indices = @transform_0, window_bounds = array<i64: 1, 18, 18, 128>}, {transform_indices = @transform_1, window_bounds = array<i64: 9, 128, 128>}, {transform_indices = @transform_2, window_bounds = array<i64: 1, 128>}, {transform_indices = @transform_3, window_bounds = array<i64: 1, 16, 16, 128>}]} {
    %cst = arith.constant 0.000000e+00 : f32
    %0 = vector.broadcast %cst : f32 to vector<256x128xf32>
    %c0 = arith.constant 0 : index
    %c0_0 = arith.constant 0 : index
    %c0_1 = arith.constant 0 : index
    %c0_2 = arith.constant 0 : index
    %1 = vector.load %arg2[%c0, %c0_0, %c0_1, %c0_2] : memref<1x18x18x128xbf16, #tpu.memory_space<vmem>>, vector<1x16x16x128xbf16>
    %2 = vector.shape_cast %1 : vector<1x16x16x128xbf16> to vector<16x16x128xbf16>
    %3 = vector.shape_cast %2 : vector<16x16x128xbf16> to vector<256x128xbf16>
    %c0_3 = arith.constant 0 : index
    %c0_4 = arith.constant 0 : index
    %c0_5 = arith.constant 0 : index
    %4 = vector.load %arg3[%c0_3, %c0_4, %c0_5] : memref<9x128x128xbf16, #tpu.memory_space<vmem>>, vector<1x128x128xbf16>
    %5 = vector.shape_cast %4 : vector<1x128x128xbf16> to vector<128x128xbf16>
    %cst_6 = arith.constant dense<0.000000e+00> : vector<256x128xf32>
    %6 = tpu.matmul %3, %5, %cst_6 {dimension_numbers = #tpu.dot_dimension_numbers<[1], [0], [0], [1], [0, 0, 1, 1], [], []>} : vector<256x128xbf16>, vector<128x128xbf16>, vector<256x128xf32> -> vector<256x128xf32>
    %7 = arith.addf %0, %6 : vector<256x128xf32>
    %c0_7 = arith.constant 0 : index
    %c0_8 = arith.constant 0 : index
    %c1 = arith.constant 1 : index
    %c0_9 = arith.constant 0 : index
    %8 = vector.load %arg2[%c0_7, %c0_8, %c1, %c0_9] : memref<1x18x18x128xbf16, #tpu.memory_space<vmem>>, vector<1x16x16x128xbf16>
    %9 = vector.shape_cast %8 : vector<1x16x16x128xbf16> to vector<16x16x128xbf16>
    %10 = vector.shape_cast %9 : vector<16x16x128xbf16> to vector<256x128xbf16>
    %c1_10 = arith.constant 1 : index
    %c0_11 = arith.constant 0 : index
    %c0_12 = arith.constant 0 : index
    %11 = vector.load %arg3[%c1_10, %c0_11, %c0_12] : memref<9x128x128xbf16, #tpu.memory_space<vmem>>, vector<1x128x128xbf16>
    %12 = vector.shape_cast %11 : vector<1x128x128xbf16> to vector<128x128xbf16>
    %cst_13 = arith.constant dense<0.000000e+00> : vector<256x128xf32>
    %13 = tpu.matmul %10, %12, %cst_13 {dimension_numbers = #tpu.dot_dimension_numbers<[1], [0], [0], [1], [0, 0, 1, 1], [], []>} : vector<256x128xbf16>, vector<128x128xbf16>, vector<256x128xf32> -> vector<256x128xf32>
    %14 = arith.addf %7, %13 : vector<256x128xf32>
    %c0_14 = arith.constant 0 : index
    %c0_15 = arith.constant 0 : index
    %c2 = arith.constant 2 : index
    %c0_16 = arith.constant 0 : index
    %15 = vector.load %arg2[%c0_14, %c0_15, %c2, %c0_16] : memref<1x18x18x128xbf16, #tpu.memory_space<vmem>>, vector<1x16x16x128xbf16>
    %16 = vector.shape_cast %15 : vector<1x16x16x128xbf16> to vector<16x16x128xbf16>
    %17 = vector.shape_cast %16 : vector<16x16x128xbf16> to vector<256x128xbf16>
    %c2_17 = arith.constant 2 : index
    %c0_18 = arith.constant 0 : index
    %c0_19 = arith.constant 0 : index
    %18 = vector.load %arg3[%c2_17, %c0_18, %c0_19] : memref<9x128x128xbf16, #tpu.memory_space<vmem>>, vector<1x128x128xbf16>
    %19 = vector.shape_cast %18 : vector<1x128x128xbf16> to vector<128x128xbf16>
    %cst_20 = arith.constant dense<0.000000e+00> : vector<256x128xf32>
    %20 = tpu.matmul %17, %19, %cst_20 {dimension_numbers = #tpu.dot_dimension_numbers<[1], [0], [0], [1], [0, 0, 1, 1], [], []>} : vector<256x128xbf16>, vector<128x128xbf16>, vector<256x128xf32> -> vector<256x128xf32>
    %21 = arith.addf %14, %20 : vector<256x128xf32>
    %c0_21 = arith.constant 0 : index
    %c1_22 = arith.constant 1 : index
    %c0_23 = arith.constant 0 : index
    %c0_24 = arith.constant 0 : index
    %22 = vector.load %arg2[%c0_21, %c1_22, %c0_23, %c0_24] : memref<1x18x18x128xbf16, #tpu.memory_space<vmem>>, vector<1x16x16x128xbf16>
    %23 = vector.shape_cast %22 : vector<1x16x16x128xbf16> to vector<16x16x128xbf16>
    %24 = vector.shape_cast %23 : vector<16x16x128xbf16> to vector<256x128xbf16>
    %c3 = arith.constant 3 : index
    %c0_25 = arith.constant 0 : index
    %c0_26 = arith.constant 0 : index
    %25 = vector.load %arg3[%c3, %c0_25, %c0_26] : memref<9x128x128xbf16, #tpu.memory_space<vmem>>, vector<1x128x128xbf16>
    %26 = vector.shape_cast %25 : vector<1x128x128xbf16> to vector<128x128xbf16>
    %cst_27 = arith.constant dense<0.000000e+00> : vector<256x128xf32>
    %27 = tpu.matmul %24, %26, %cst_27 {dimension_numbers = #tpu.dot_dimension_numbers<[1], [0], [0], [1], [0, 0, 1, 1], [], []>} : vector<256x128xbf16>, vector<128x128xbf16>, vector<256x128xf32> -> vector<256x128xf32>
    %28 = arith.addf %21, %27 : vector<256x128xf32>
    %c0_28 = arith.constant 0 : index
    %c1_29 = arith.constant 1 : index
    %c1_30 = arith.constant 1 : index
    %c0_31 = arith.constant 0 : index
    %29 = vector.load %arg2[%c0_28, %c1_29, %c1_30, %c0_31] : memref<1x18x18x128xbf16, #tpu.memory_space<vmem>>, vector<1x16x16x128xbf16>
    %30 = vector.shape_cast %29 : vector<1x16x16x128xbf16> to vector<16x16x128xbf16>
    %31 = vector.shape_cast %30 : vector<16x16x128xbf16> to vector<256x128xbf16>
    %c4 = arith.constant 4 : index
    %c0_32 = arith.constant 0 : index
    %c0_33 = arith.constant 0 : index
    %32 = vector.load %arg3[%c4, %c0_32, %c0_33] : memref<9x128x128xbf16, #tpu.memory_space<vmem>>, vector<1x128x128xbf16>
    %33 = vector.shape_cast %32 : vector<1x128x128xbf16> to vector<128x128xbf16>
    %cst_34 = arith.constant dense<0.000000e+00> : vector<256x128xf32>
    %34 = tpu.matmul %31, %33, %cst_34 {dimension_numbers = #tpu.dot_dimension_numbers<[1], [0], [0], [1], [0, 0, 1, 1], [], []>} : vector<256x128xbf16>, vector<128x128xbf16>, vector<256x128xf32> -> vector<256x128xf32>
    %35 = arith.addf %28, %34 : vector<256x128xf32>
    %c0_35 = arith.constant 0 : index
    %c1_36 = arith.constant 1 : index
    %c2_37 = arith.constant 2 : index
    %c0_38 = arith.constant 0 : index
    %36 = vector.load %arg2[%c0_35, %c1_36, %c2_37, %c0_38] : memref<1x18x18x128xbf16, #tpu.memory_space<vmem>>, vector<1x16x16x128xbf16>
    %37 = vector.shape_cast %36 : vector<1x16x16x128xbf16> to vector<16x16x128xbf16>
    %38 = vector.shape_cast %37 : vector<16x16x128xbf16> to vector<256x128xbf16>
    %c5 = arith.constant 5 : index
    %c0_39 = arith.constant 0 : index
    %c0_40 = arith.constant 0 : index
    %39 = vector.load %arg3[%c5, %c0_39, %c0_40] : memref<9x128x128xbf16, #tpu.memory_space<vmem>>, vector<1x128x128xbf16>
    %40 = vector.shape_cast %39 : vector<1x128x128xbf16> to vector<128x128xbf16>
    %cst_41 = arith.constant dense<0.000000e+00> : vector<256x128xf32>
    %41 = tpu.matmul %38, %40, %cst_41 {dimension_numbers = #tpu.dot_dimension_numbers<[1], [0], [0], [1], [0, 0, 1, 1], [], []>} : vector<256x128xbf16>, vector<128x128xbf16>, vector<256x128xf32> -> vector<256x128xf32>
    %42 = arith.addf %35, %41 : vector<256x128xf32>
    %c0_42 = arith.constant 0 : index
    %c2_43 = arith.constant 2 : index
    %c0_44 = arith.constant 0 : index
    %c0_45 = arith.constant 0 : index
    %43 = vector.load %arg2[%c0_42, %c2_43, %c0_44, %c0_45] : memref<1x18x18x128xbf16, #tpu.memory_space<vmem>>, vector<1x16x16x128xbf16>
    %44 = vector.shape_cast %43 : vector<1x16x16x128xbf16> to vector<16x16x128xbf16>
    %45 = vector.shape_cast %44 : vector<16x16x128xbf16> to vector<256x128xbf16>
    %c6 = arith.constant 6 : index
    %c0_46 = arith.constant 0 : index
    %c0_47 = arith.constant 0 : index
    %46 = vector.load %arg3[%c6, %c0_46, %c0_47] : memref<9x128x128xbf16, #tpu.memory_space<vmem>>, vector<1x128x128xbf16>
    %47 = vector.shape_cast %46 : vector<1x128x128xbf16> to vector<128x128xbf16>
    %cst_48 = arith.constant dense<0.000000e+00> : vector<256x128xf32>
    %48 = tpu.matmul %45, %47, %cst_48 {dimension_numbers = #tpu.dot_dimension_numbers<[1], [0], [0], [1], [0, 0, 1, 1], [], []>} : vector<256x128xbf16>, vector<128x128xbf16>, vector<256x128xf32> -> vector<256x128xf32>
    %49 = arith.addf %42, %48 : vector<256x128xf32>
    %c0_49 = arith.constant 0 : index
    %c2_50 = arith.constant 2 : index
    %c1_51 = arith.constant 1 : index
    %c0_52 = arith.constant 0 : index
    %50 = vector.load %arg2[%c0_49, %c2_50, %c1_51, %c0_52] : memref<1x18x18x128xbf16, #tpu.memory_space<vmem>>, vector<1x16x16x128xbf16>
    %51 = vector.shape_cast %50 : vector<1x16x16x128xbf16> to vector<16x16x128xbf16>
    %52 = vector.shape_cast %51 : vector<16x16x128xbf16> to vector<256x128xbf16>
    %c7 = arith.constant 7 : index
    %c0_53 = arith.constant 0 : index
    %c0_54 = arith.constant 0 : index
    %53 = vector.load %arg3[%c7, %c0_53, %c0_54] : memref<9x128x128xbf16, #tpu.memory_space<vmem>>, vector<1x128x128xbf16>
    %54 = vector.shape_cast %53 : vector<1x128x128xbf16> to vector<128x128xbf16>
    %cst_55 = arith.constant dense<0.000000e+00> : vector<256x128xf32>
    %55 = tpu.matmul %52, %54, %cst_55 {dimension_numbers = #tpu.dot_dimension_numbers<[1], [0], [0], [1], [0, 0, 1, 1], [], []>} : vector<256x128xbf16>, vector<128x128xbf16>, vector<256x128xf32> -> vector<256x128xf32>
    %56 = arith.addf %49, %55 : vector<256x128xf32>
    %c0_56 = arith.constant 0 : index
    %c2_57 = arith.constant 2 : index
    %c2_58 = arith.constant 2 : index
    %c0_59 = arith.constant 0 : index
    %57 = vector.load %arg2[%c0_56, %c2_57, %c2_58, %c0_59] : memref<1x18x18x128xbf16, #tpu.memory_space<vmem>>, vector<1x16x16x128xbf16>
    %58 = vector.shape_cast %57 : vector<1x16x16x128xbf16> to vector<16x16x128xbf16>
    %59 = vector.shape_cast %58 : vector<16x16x128xbf16> to vector<256x128xbf16>
    %c8 = arith.constant 8 : index
    %c0_60 = arith.constant 0 : index
    %c0_61 = arith.constant 0 : index
    %60 = vector.load %arg3[%c8, %c0_60, %c0_61] : memref<9x128x128xbf16, #tpu.memory_space<vmem>>, vector<1x128x128xbf16>
    %61 = vector.shape_cast %60 : vector<1x128x128xbf16> to vector<128x128xbf16>
    %cst_62 = arith.constant dense<0.000000e+00> : vector<256x128xf32>
    %62 = tpu.matmul %59, %61, %cst_62 {dimension_numbers = #tpu.dot_dimension_numbers<[1], [0], [0], [1], [0, 0, 1, 1], [], []>} : vector<256x128xbf16>, vector<128x128xbf16>, vector<256x128xf32> -> vector<256x128xf32>
    %63 = arith.addf %56, %62 : vector<256x128xf32>
    %c0_63 = arith.constant 0 : index
    %c0_64 = arith.constant 0 : index
    %64 = vector.load %arg4[%c0_63, %c0_64] : memref<1x128xf32, #tpu.memory_space<vmem>>, vector<1x128xf32>
    %65 = vector.broadcast %64 : vector<1x128xf32> to vector<256x128xf32>
    %66 = arith.addf %63, %65 : vector<256x128xf32>
    %cst_65 = arith.constant 0.000000e+00 : f32
    %67 = vector.broadcast %cst_65 : f32 to vector<256x128xf32>
    %68 = arith.maximumf %66, %67 : vector<256x128xf32>
    %69 = vector.shape_cast %68 : vector<256x128xf32> to vector<1x16x16x128xf32>
    %70 = arith.truncf %69 : vector<1x16x16x128xf32> to vector<1x16x16x128xbf16>
    %c0_66 = arith.constant 0 : index
    %c0_67 = arith.constant 0 : index
    %c0_68 = arith.constant 0 : index
    %c0_69 = arith.constant 0 : index
    %71 = vector.load %arg5[%c0_66, %c0_67, %c0_68, %c0_69] : memref<1x16x16x128xbf16, #tpu.memory_space<vmem>>, vector<1x16x16x128xbf16>
    tpu.vector_store %arg5[%c0_66, %c0_67, %c0_68, %c0_69], %70 {strides = array<i32>} : memref<1x16x16x128xbf16, #tpu.memory_space<vmem>>, vector<1x16x16x128xbf16>,
    return
  }
  func.func @transform_0(%arg0: i32, %arg1: i32) -> (i32, i32, i32, i32) {
    %c0_i32 = arith.constant 0 : i32
    %c0_i32_0 = arith.constant 0 : i32
    %c0_i32_1 = arith.constant 0 : i32
    %c0_i32_2 = arith.constant 0 : i32
    return %arg0, %c0_i32, %c0_i32_0, %c0_i32_1 : i32, i32, i32, i32
  }
  func.func @transform_1(%arg0: i32, %arg1: i32) -> (i32, i32, i32) {
    %c0_i32 = arith.constant 0 : i32
    %c0_i32_0 = arith.constant 0 : i32
    %c0_i32_1 = arith.constant 0 : i32
    return %c0_i32, %c0_i32_0, %arg1 : i32, i32, i32
  }
  func.func @transform_2(%arg0: i32, %arg1: i32) -> (i32, i32) {
    %c0_i32 = arith.constant 0 : i32
    %c0_i32_0 = arith.constant 0 : i32
    return %c0_i32, %arg1 : i32, i32
  }
  func.func @transform_3(%arg0: i32, %arg1: i32) -> (i32, i32, i32, i32) {
    %c0_i32 = arith.constant 0 : i32
    %c0_i32_0 = arith.constant 0 : i32
    %c0_i32_1 = arith.constant 0 : i32
    return %arg0, %c0_i32, %c0_i32_0, %arg1 : i32, i32, i32, i32
  }
}

module attributes {stable_mosaic.version = 11 : i64} {
  func.func @_mm_kernel(%arg0: i32, %arg1: i32, %arg2: i32, %arg3: memref<512x128xbf16, #tpu.memory_space<vmem>>, %arg4: memref<128x128xbf16, #tpu.memory_space<vmem>>, %arg5: memref<1x128xf32, #tpu.memory_space<vmem>>, %arg6: memref<512x128xf32, #tpu.memory_space<vmem>>, %arg7: memref<512x128xf32, #tpu.memory_space<vmem>>) attributes {dimension_semantics = [#tpu.dimension_semantics<parallel>, #tpu.dimension_semantics<parallel>, #tpu.dimension_semantics<arbitrary>], iteration_bounds = array<i64: 1, 1, 1>, scalar_prefetch = 0 : i64, scratch_operands = 1 : i64, tpu.core_type = #tpu.core_type<tc>, window_params = [{transform_indices = @transform_0, window_bounds = array<i64: 512, 128>}, {transform_indices = @transform_1, window_bounds = array<i64: 128, 128>}, {transform_indices = @transform_2, window_bounds = array<i64: 1, 128>}, {transform_indices = @transform_3, window_bounds = array<i64: 512, 128>}]} {
    %c0_i32 = arith.constant 0 : i32
    %0 = arith.cmpi eq, %arg2, %c0_i32 : i32
    %1 = arith.extui %0 : i1 to i32
    %c0_i32_0 = arith.constant 0 : i32
    %2 = arith.cmpi ne, %1, %c0_i32_0 : i32
    scf.if %2 {
      %cst_10 = arith.constant 0.000000e+00 : f32
      %12 = vector.broadcast %cst_10 : f32 to vector<512x128xf32>
      %c0_11 = arith.constant 0 : index
      %c0_12 = arith.constant 0 : index
      %13 = vector.load %arg7[%c0_11, %c0_12] : memref<512x128xf32, #tpu.memory_space<vmem>>, vector<512x128xf32>
      tpu.vector_store %arg7[%c0_11, %c0_12], %12 {strides = array<i32>} : memref<512x128xf32, #tpu.memory_space<vmem>>, vector<512x128xf32>,
    } else {
    }
    %c0 = arith.constant 0 : index
    %c0_1 = arith.constant 0 : index
    %3 = vector.load %arg7[%c0, %c0_1] : memref<512x128xf32, #tpu.memory_space<vmem>>, vector<512x128xf32>
    %c0_2 = arith.constant 0 : index
    %c0_3 = arith.constant 0 : index
    %4 = vector.load %arg3[%c0_2, %c0_3] : memref<512x128xbf16, #tpu.memory_space<vmem>>, vector<512x128xbf16>
    %c0_4 = arith.constant 0 : index
    %c0_5 = arith.constant 0 : index
    %5 = vector.load %arg4[%c0_4, %c0_5] : memref<128x128xbf16, #tpu.memory_space<vmem>>, vector<128x128xbf16>
    %cst = arith.constant dense<0.000000e+00> : vector<512x128xf32>
    %6 = tpu.matmul %4, %5, %cst {dimension_numbers = #tpu.dot_dimension_numbers<[1], [0], [0], [1], [0, 0, 1, 1], [], []>} : vector<512x128xbf16>, vector<128x128xbf16>, vector<512x128xf32> -> vector<512x128xf32>
    %7 = arith.addf %3, %6 : vector<512x128xf32>
    %c0_6 = arith.constant 0 : index
    %c0_7 = arith.constant 0 : index
    %8 = vector.load %arg7[%c0_6, %c0_7] : memref<512x128xf32, #tpu.memory_space<vmem>>, vector<512x128xf32>
    tpu.vector_store %arg7[%c0_6, %c0_7], %7 {strides = array<i32>} : memref<512x128xf32, #tpu.memory_space<vmem>>, vector<512x128xf32>,
    %c0_i32_8 = arith.constant 0 : i32
    %9 = arith.cmpi eq, %arg2, %c0_i32_8 : i32
    %10 = arith.extui %9 : i1 to i32
    %c0_i32_9 = arith.constant 0 : i32
    %11 = arith.cmpi ne, %10, %c0_i32_9 : i32
    scf.if %11 {
      %c0_10 = arith.constant 0 : index
      %c0_11 = arith.constant 0 : index
      %12 = vector.load %arg7[%c0_10, %c0_11] : memref<512x128xf32, #tpu.memory_space<vmem>>, vector<512x128xf32>
      %c0_12 = arith.constant 0 : index
      %c0_13 = arith.constant 0 : index
      %13 = vector.load %arg5[%c0_12, %c0_13] : memref<1x128xf32, #tpu.memory_space<vmem>>, vector<1x128xf32>
      %14 = vector.broadcast %13 : vector<1x128xf32> to vector<512x128xf32>
      %15 = arith.addf %12, %14 : vector<512x128xf32>
      %c0_14 = arith.constant 0 : index
      %c0_15 = arith.constant 0 : index
      %16 = vector.load %arg6[%c0_14, %c0_15] : memref<512x128xf32, #tpu.memory_space<vmem>>, vector<512x128xf32>
      tpu.vector_store %arg6[%c0_14, %c0_15], %15 {strides = array<i32>} : memref<512x128xf32, #tpu.memory_space<vmem>>, vector<512x128xf32>,
    } else {
    }
    return
  }
  func.func @transform_0(%arg0: i32, %arg1: i32, %arg2: i32) -> (i32, i32) {
    %c0_i32 = arith.constant 0 : i32
    return %arg0, %arg2 : i32, i32
  }
  func.func @transform_1(%arg0: i32, %arg1: i32, %arg2: i32) -> (i32, i32) {
    %c0_i32 = arith.constant 0 : i32
    return %arg2, %arg1 : i32, i32
  }
  func.func @transform_2(%arg0: i32, %arg1: i32, %arg2: i32) -> (i32, i32) {
    %c0_i32 = arith.constant 0 : i32
    %c0_i32_0 = arith.constant 0 : i32
    return %c0_i32, %arg1 : i32, i32
  }
  func.func @transform_3(%arg0: i32, %arg1: i32, %arg2: i32) -> (i32, i32) {
    %c0_i32 = arith.constant 0 : i32
    return %arg0, %arg1 : i32, i32
  }
}

module attributes {stable_mosaic.version = 11 : i64} {
  func.func @_mm_kernel(%arg0: i32, %arg1: i32, %arg2: i32, %arg3: memref<512x128xbf16, #tpu.memory_space<vmem>>, %arg4: memref<128x128xbf16, #tpu.memory_space<vmem>>, %arg5: memref<1x128xf32, #tpu.memory_space<vmem>>, %arg6: memref<512x128xf32, #tpu.memory_space<vmem>>, %arg7: memref<512x128xf32, #tpu.memory_space<vmem>>, %arg8: memref<512x128xf32, #tpu.memory_space<vmem>>) attributes {dimension_semantics = [#tpu.dimension_semantics<parallel>, #tpu.dimension_semantics<parallel>, #tpu.dimension_semantics<arbitrary>], iteration_bounds = array<i64: 1, 1, 1>, scalar_prefetch = 0 : i64, scratch_operands = 1 : i64, tpu.core_type = #tpu.core_type<tc>, window_params = [{transform_indices = @transform_0, window_bounds = array<i64: 512, 128>}, {transform_indices = @transform_1, window_bounds = array<i64: 128, 128>}, {transform_indices = @transform_2, window_bounds = array<i64: 1, 128>}, {transform_indices = @transform_3, window_bounds = array<i64: 512, 128>}, {transform_indices = @transform_4, window_bounds = array<i64: 512, 128>}]} {
    %c0_i32 = arith.constant 0 : i32
    %0 = arith.cmpi eq, %arg2, %c0_i32 : i32
    %1 = arith.extui %0 : i1 to i32
    %c0_i32_0 = arith.constant 0 : i32
    %2 = arith.cmpi ne, %1, %c0_i32_0 : i32
    scf.if %2 {
      %cst_10 = arith.constant 0.000000e+00 : f32
      %12 = vector.broadcast %cst_10 : f32 to vector<512x128xf32>
      %c0_11 = arith.constant 0 : index
      %c0_12 = arith.constant 0 : index
      %13 = vector.load %arg8[%c0_11, %c0_12] : memref<512x128xf32, #tpu.memory_space<vmem>>, vector<512x128xf32>
      tpu.vector_store %arg8[%c0_11, %c0_12], %12 {strides = array<i32>} : memref<512x128xf32, #tpu.memory_space<vmem>>, vector<512x128xf32>,
    } else {
    }
    %c0 = arith.constant 0 : index
    %c0_1 = arith.constant 0 : index
    %3 = vector.load %arg8[%c0, %c0_1] : memref<512x128xf32, #tpu.memory_space<vmem>>, vector<512x128xf32>
    %c0_2 = arith.constant 0 : index
    %c0_3 = arith.constant 0 : index
    %4 = vector.load %arg3[%c0_2, %c0_3] : memref<512x128xbf16, #tpu.memory_space<vmem>>, vector<512x128xbf16>
    %c0_4 = arith.constant 0 : index
    %c0_5 = arith.constant 0 : index
    %5 = vector.load %arg4[%c0_4, %c0_5] : memref<128x128xbf16, #tpu.memory_space<vmem>>, vector<128x128xbf16>
    %cst = arith.constant dense<0.000000e+00> : vector<512x128xf32>
    %6 = tpu.matmul %4, %5, %cst {dimension_numbers = #tpu.dot_dimension_numbers<[1], [0], [0], [1], [0, 0, 1, 1], [], []>} : vector<512x128xbf16>, vector<128x128xbf16>, vector<512x128xf32> -> vector<512x128xf32>
    %7 = arith.addf %3, %6 : vector<512x128xf32>
    %c0_6 = arith.constant 0 : index
    %c0_7 = arith.constant 0 : index
    %8 = vector.load %arg8[%c0_6, %c0_7] : memref<512x128xf32, #tpu.memory_space<vmem>>, vector<512x128xf32>
    tpu.vector_store %arg8[%c0_6, %c0_7], %7 {strides = array<i32>} : memref<512x128xf32, #tpu.memory_space<vmem>>, vector<512x128xf32>,
    %c0_i32_8 = arith.constant 0 : i32
    %9 = arith.cmpi eq, %arg2, %c0_i32_8 : i32
    %10 = arith.extui %9 : i1 to i32
    %c0_i32_9 = arith.constant 0 : i32
    %11 = arith.cmpi ne, %10, %c0_i32_9 : i32
    scf.if %11 {
      %c0_10 = arith.constant 0 : index
      %c0_11 = arith.constant 0 : index
      %12 = vector.load %arg8[%c0_10, %c0_11] : memref<512x128xf32, #tpu.memory_space<vmem>>, vector<512x128xf32>
      %c0_12 = arith.constant 0 : index
      %c0_13 = arith.constant 0 : index
      %13 = vector.load %arg5[%c0_12, %c0_13] : memref<1x128xf32, #tpu.memory_space<vmem>>, vector<1x128xf32>
      %14 = vector.broadcast %13 : vector<1x128xf32> to vector<512x128xf32>
      %15 = arith.addf %12, %14 : vector<512x128xf32>
      %c0_14 = arith.constant 0 : index
      %c0_15 = arith.constant 0 : index
      %16 = vector.load %arg6[%c0_14, %c0_15] : memref<512x128xf32, #tpu.memory_space<vmem>>, vector<512x128xf32>
      %17 = arith.addf %15, %16 : vector<512x128xf32>
      %cst_16 = arith.constant 0.000000e+00 : f32
      %18 = vector.broadcast %cst_16 : f32 to vector<512x128xf32>
      %19 = arith.maximumf %17, %18 : vector<512x128xf32>
      %c0_17 = arith.constant 0 : index
      %c0_18 = arith.constant 0 : index
      %20 = vector.load %arg7[%c0_17, %c0_18] : memref<512x128xf32, #tpu.memory_space<vmem>>, vector<512x128xf32>
      tpu.vector_store %arg7[%c0_17, %c0_18], %19 {strides = array<i32>} : memref<512x128xf32, #tpu.memory_space<vmem>>, vector<512x128xf32>,
    } else {
    }
    return
  }
  func.func @transform_0(%arg0: i32, %arg1: i32, %arg2: i32) -> (i32, i32) {
    %c0_i32 = arith.constant 0 : i32
    return %arg0, %arg2 : i32, i32
  }
  func.func @transform_1(%arg0: i32, %arg1: i32, %arg2: i32) -> (i32, i32) {
    %c0_i32 = arith.constant 0 : i32
    return %arg2, %arg1 : i32, i32
  }
  func.func @transform_2(%arg0: i32, %arg1: i32, %arg2: i32) -> (i32, i32) {
    %c0_i32 = arith.constant 0 : i32
    %c0_i32_0 = arith.constant 0 : i32
    return %c0_i32, %arg1 : i32, i32
  }
  func.func @transform_3(%arg0: i32, %arg1: i32, %arg2: i32) -> (i32, i32) {
    %c0_i32 = arith.constant 0 : i32
    return %arg0, %arg1 : i32, i32
  }
  func.func @transform_4(%arg0: i32, %arg1: i32, %arg2: i32) -> (i32, i32) {
    %c0_i32 = arith.constant 0 : i32
    return %arg0, %arg1 : i32, i32
  }
}

</mosaic_0001>

<llo_original>
// kernel: resblock_forward.5
$region0: #{resblock_forward.5}
  #allocation0 [shape = 'u32[]', space=smem, size = 0x4, offset = 0x4, fixed_abs, tag = 'smem constant byte address 0x4 - core index']
  #allocation1 [shape = 'u32[144,128]{1,0:T(1,128)}', space=vmem, size = 0x12000, scoped, tag = 'internal scratch']
  #allocation2 [shape = 'f32[512,128]{1,0:T(8,128)}', space=vmem, size = 0x40000, scoped, tag = 'scratch operand']
  %s0 = inlined_call_operand.vmem [shape: bf16[512,128], index: 0, kind: input, shape index: {}]
  %s1 = inlined_call_operand.vmem [shape: bf16[128,128], index: 1, kind: input, shape index: {}]
  %s2 = inlined_call_operand.vmem [shape: f32[1,128], index: 2, kind: input, shape index: {}]
  %s3 = inlined_call_operand.vmem [shape: bf16[512,128], index: 3, kind: output, shape index: {}]
  %s4 = sld [smem:[#allocation0]]
  $region30: #{resblock_forward.5} parent=0
    _
  %s6 = ssub.s32 1, %s4
  %s7 = scalar_select 0, %s6, %s4
  // Predicated region
  $region2: #{resblock_forward.5} parent=0 // pred_check
    _
  $region3: #{resblock_forward.5} parent=0 // pred_check_branch
    %9 = sbr.rel (0) target = $region5
  $region4: #{resblock_forward.5} parent=0 // pred_region
    _
  $region5: #{resblock_forward.5} parent=0 // pred_fallthru
    _
  // Predicated region
  $region6: #{resblock_forward.5} parent=0 // pred_check
    _
  $region7: #{resblock_forward.5} parent=0 // pred_check_branch
    %11 = sbr.rel (0) target = $region9
  $region8: #{resblock_forward.5} parent=0 // pred_region
    _
  $region9: #{resblock_forward.5} parent=0 // pred_fallthru
    _
  // Predicated region
  $region10: #{resblock_forward.5} parent=0 // pred_check
    _
  $region11: #{resblock_forward.5} parent=0 // pred_check_branch
    %13 = sbr.rel (0) target = $region13
  $region12: #{resblock_forward.5} parent=0 // pred_region
    _
  $region13: #{resblock_forward.5} parent=0 // pred_fallthru
    _
  %p15 = scmp.eq.s32.totalorder 0, 0
  // Predicated region
  $region14: #{resblock_forward.5} parent=0 // pred_check
    %p16 = pneg %p15
  $region15: #{resblock_forward.5} parent=0 // pred_check_branch
    %18 = sbr.rel (%p16) target = $region17
  $region16: #{resblock_forward.5} parent=0 // pred_region
    %19 = vst [vmem:[#allocation2] sm:$0xff] 0.0
    %20 = vst [vmem:[#allocation2 + $0x8] sm:$0xff] 0.0
    %21 = vst [vmem:[#allocation2 + $0x10] sm:$0xff] 0.0
    %22 = vst [vmem:[#allocation2 + $0x18] sm:$0xff] 0.0
    %23 = vst [vmem:[#allocation2 + $0x20] sm:$0xff] 0.0
    %24 = vst [vmem:[#allocation2 + $0x28] sm:$0xff] 0.0
    %25 = vst [vmem:[#allocation2 + $0x30] sm:$0xff] 0.0
    %26 = vst [vmem:[#allocation2 + $0x38] sm:$0xff] 0.0
    %27 = vst [vmem:[#allocation2 + $0x40] sm:$0xff] 0.0
    %28 = vst [vmem:[#allocation2 + $0x48] sm:$0xff] 0.0
    %29 = vst [vmem:[#allocation2 + $0x50] sm:$0xff] 0.0
    %30 = vst [vmem:[#allocation2 + $0x58] sm:$0xff] 0.0
    %31 = vst [vmem:[#allocation2 + $0x60] sm:$0xff] 0.0
    %32 = vst [vmem:[#allocation2 + $0x68] sm:$0xff] 0.0
    %33 = vst [vmem:[#allocation2 + $0x70] sm:$0xff] 0.0
    %34 = vst [vmem:[#allocation2 + $0x78] sm:$0xff] 0.0
    %35 = vst [vmem:[#allocation2 + $0x80] sm:$0xff] 0.0
    %36 = vst [vmem:[#allocation2 + $0x88] sm:$0xff] 0.0
    %37 = vst [vmem:[#allocation2 + $0x90] sm:$0xff] 0.0
    %38 = vst [vmem:[#allocation2 + $0x98] sm:$0xff] 0.0
    %39 = vst [vmem:[#allocation2 + $0xa0] sm:$0xff] 0.0
    %40 = vst [vmem:[#allocation2 + $0xa8] sm:$0xff] 0.0
    %41 = vst [vmem:[#allocation2 + $0xb0] sm:$0xff] 0.0
    %42 = vst [vmem:[#allocation2 + $0xb8] sm:$0xff] 0.0
    %43 = vst [vmem:[#allocation2 + $0xc0] sm:$0xff] 0.0
    %44 = vst [vmem:[#allocation2 + $0xc8] sm:$0xff] 0.0
    %45 = vst [vmem:[#allocation2 + $0xd0] sm:$0xff] 0.0
    %46 = vst [vmem:[#allocation2 + $0xd8] sm:$0xff] 0.0
    %47 = vst [vmem:[#allocation2 + $0xe0] sm:$0xff] 0.0
    %48 = vst [vmem:[#allocation2 + $0xe8] sm:$0xff] 0.0
    %49 = vst [vmem:[#allocation2 + $0xf0] sm:$0xff] 0.0
    %50 = vst [vmem:[#allocation2 + $0xf8] sm:$0xff] 0.0
    %51 = vst [vmem:[#allocation2 + $0x100] sm:$0xff] 0.0
    %52 = vst [vmem:[#allocation2 + $0x108] sm:$0xff] 0.0
    %53 = vst [vmem:[#allocation2 + $0x110] sm:$0xff] 0.0
    %54 = vst [vmem:[#allocation2 + $0x118] sm:$0xff] 0.0
    %55 = vst [vmem:[#allocation2 + $0x120] sm:$0xff] 0.0
    %56 = vst [vmem:[#allocation2 + $0x128] sm:$0xff] 0.0
    %57 = vst [vmem:[#allocation2 + $0x130] sm:$0xff] 0.0
    %58 = vst [vmem:[#allocation2 + $0x138] sm:$0xff] 0.0
    %59 = vst [vmem:[#allocation2 + $0x140] sm:$0xff] 0.0
    %60 = vst [vmem:[#allocation2 + $0x148] sm:$0xff] 0.0
    %61 = vst [vmem:[#allocation2 + $0x150] sm:$0xff] 0.0
    %62 = vst [vmem:[#allocation2 + $0x158] sm:$0xff] 0.0
    %63 = vst [vmem:[#allocation2 + $0x160] sm:$0xff] 0.0
    %64 = vst [vmem:[#allocation2 + $0x168] sm:$0xff] 0.0
    %65 = vst [vmem:[#allocation2 + $0x170] sm:$0xff] 0.0
    %66 = vst [vmem:[#allocation2 + $0x178] sm:$0xff] 0.0
    %67 = vst [vmem:[#allocation2 + $0x180] sm:$0xff] 0.0
    %68 = vst [vmem:[#allocation2 + $0x188] sm:$0xff] 0.0
    %69 = vst [vmem:[#allocation2 + $0x190] sm:$0xff] 0.0
    %70 = vst [vmem:[#allocation2 + $0x198] sm:$0xff] 0.0
    %71 = vst [vmem:[#allocation2 + $0x1a0] sm:$0xff] 0.0
    %72 = vst [vmem:[#allocation2 + $0x1a8] sm:$0xff] 0.0
    %73 = vst [vmem:[#allocation2 + $0x1b0] sm:$0xff] 0.0
    %74 = vst [vmem:[#allocation2 + $0x1b8] sm:$0xff] 0.0
    %75 = vst [vmem:[#allocation2 + $0x1c0] sm:$0xff] 0.0
    %76 = vst [vmem:[#allocation2 + $0x1c8] sm:$0xff] 0.0
    %77 = vst [vmem:[#allocation2 + $0x1d0] sm:$0xff] 0.0
    %78 = vst [vmem:[#allocation2 + $0x1d8] sm:$0xff] 0.0
    %79 = vst [vmem:[#allocation2 + $0x1e0] sm:$0xff] 0.0
    %80 = vst [vmem:[#allocation2 + $0x1e8] sm:$0xff] 0.0
    %81 = vst [vmem:[#allocation2 + $0x1f0] sm:$0xff] 0.0
    %82 = vst [vmem:[#allocation2 + $0x1f8] sm:$0xff] 0.0
  $region17: #{resblock_forward.5} parent=0 // pred_fallthru
    _
  %v83 = vld [vmem:[#allocation2] sm:$0xff]
  %v84 = vld [vmem:[#allocation2 + $0x8] sm:$0xff]
  %v85 = vld [vmem:[#allocation2 + $0x10] sm:$0xff]
  %v86 = vld [vmem:[#allocation2 + $0x18] sm:$0xff]
  %v87 = vld [vmem:[#allocation2 + $0x20] sm:$0xff]
  %v88 = vld [vmem:[#allocation2 + $0x28] sm:$0xff]
  %v89 = vld [vmem:[#allocation2 + $0x30] sm:$0xff]
  %v90 = vld [vmem:[#allocation2 + $0x38] sm:$0xff]
  %v91 = vld [vmem:[#allocation2 + $0x40] sm:$0xff]
  %v92 = vld [vmem:[#allocation2 + $0x48] sm:$0xff]
  %v93 = vld [vmem:[#allocation2 + $0x50] sm:$0xff]
  %v94 = vld [vmem:[#allocation2 + $0x58] sm:$0xff]
  %v95 = vld [vmem:[#allocation2 + $0x60] sm:$0xff]
  %v96 = vld [vmem:[#allocation2 + $0x68] sm:$0xff]
  %v97 = vld [vmem:[#allocation2 + $0x70] sm:$0xff]
  %v98 = vld [vmem:[#allocation2 + $0x78] sm:$0xff]
  %v99 = vld [vmem:[#allocation2 + $0x80] sm:$0xff]
  %v100 = vld [vmem:[#allocation2 + $0x88] sm:$0xff]
  %v101 = vld [vmem:[#allocation2 + $0x90] sm:$0xff]
  %v102 = vld [vmem:[#allocation2 + $0x98] sm:$0xff]
  %v103 = vld [vmem:[#allocation2 + $0xa0] sm:$0xff]
  %v104 = vld [vmem:[#allocation2 + $0xa8] sm:$0xff]
  %v105 = vld [vmem:[#allocation2 + $0xb0] sm:$0xff]
  %v106 = vld [vmem:[#allocation2 + $0xb8] sm:$0xff]
  %v107 = vld [vmem:[#allocation2 + $0xc0] sm:$0xff]
  %v108 = vld [vmem:[#allocation2 + $0xc8] sm:$0xff]
  %v109 = vld [vmem:[#allocation2 + $0xd0] sm:$0xff]
  %v110 = vld [vmem:[#allocation2 + $0xd8] sm:$0xff]
  %v111 = vld [vmem:[#allocation2 + $0xe0] sm:$0xff]
  %v112 = vld [vmem:[#allocation2 + $0xe8] sm:$0xff]
  %v113 = vld [vmem:[#allocation2 + $0xf0] sm:$0xff]
  %v114 = vld [vmem:[#allocation2 + $0xf8] sm:$0xff]
  %v115 = vld [vmem:[#allocation2 + $0x100] sm:$0xff]
  %v116 = vld [vmem:[#allocation2 + $0x108] sm:$0xff]
  %v117 = vld [vmem:[#allocation2 + $0x110] sm:$0xff]
  %v118 = vld [vmem:[#allocation2 + $0x118] sm:$0xff]
  %v119 = vld [vmem:[#allocation2 + $0x120] sm:$0xff]
  %v120 = vld [vmem:[#allocation2 + $0x128] sm:$0xff]
  %v121 = vld [vmem:[#allocation2 + $0x130] sm:$0xff]
  %v122 = vld [vmem:[#allocation2 + $0x138] sm:$0xff]
  %v123 = vld [vmem:[#allocation2 + $0x140] sm:$0xff]
  %v124 = vld [vmem:[#allocation2 + $0x148] sm:$0xff]
  %v125 = vld [vmem:[#allocation2 + $0x150] sm:$0xff]
  %v126 = vld [vmem:[#allocation2 + $0x158] sm:$0xff]
  %v127 = vld [vmem:[#allocation2 + $0x160] sm:$0xff]
  %v128 = vld [vmem:[#allocation2 + $0x168] sm:$0xff]
  %v129 = vld [vmem:[#allocation2 + $0x170] sm:$0xff]
  %v130 = vld [vmem:[#allocation2 + $0x178] sm:$0xff]
  %v131 = vld [vmem:[#allocation2 + $0x180] sm:$0xff]
  %v132 = vld [vmem:[#allocation2 + $0x188] sm:$0xff]
  %v133 = vld [vmem:[#allocation2 + $0x190] sm:$0xff]
  %v134 = vld [vmem:[#allocation2 + $0x198] sm:$0xff]
  %v135 = vld [vmem:[#allocation2 + $0x1a0] sm:$0xff]
  %v136 = vld [vmem:[#allocation2 + $0x1a8] sm:$0xff]
  %v137 = vld [vmem:[#allocation2 + $0x1b0] sm:$0xff]
  %v138 = vld [vmem:[#allocation2 + $0x1b8] sm:$0xff]
  %v139 = vld [vmem:[#allocation2 + $0x1c0] sm:$0xff]
  %v140 = vld [vmem:[#allocation2 + $0x1c8] sm:$0xff]
  %v141 = vld [vmem:[#allocation2 + $0x1d0] sm:$0xff]
  %v142 = vld [vmem:[#allocation2 + $0x1d8] sm:$0xff]
  %v143 = vld [vmem:[#allocation2 + $0x1e0] sm:$0xff]
  %v144 = vld [vmem:[#allocation2 + $0x1e8] sm:$0xff]
  %v145 = vld [vmem:[#allocation2 + $0x1f0] sm:$0xff]
  %v146 = vld [vmem:[#allocation2 + $0x1f8] sm:$0xff]
  %v147 = vld [vmem:[%s0] sm:$0xf]
  %v148 = vld [vmem:[%s0 + $0x4] sm:$0xf]
  %v149 = vld [vmem:[%s0 + $0x8] sm:$0xf]
  %v150 = vld [vmem:[%s0 + $0xc] sm:$0xf]
  %v151 = vld [vmem:[%s0 + $0x10] sm:$0xf]
  %v152 = vld [vmem:[%s0 + $0x14] sm:$0xf]
  %v153 = vld [vmem:[%s0 + $0x18] sm:$0xf]
  %v154 = vld [vmem:[%s0 + $0x1c] sm:$0xf]
  %v155 = vld [vmem:[%s0 + $0x20] sm:$0xf]
  %v156 = vld [vmem:[%s0 + $0x24] sm:$0xf]
  %v157 = vld [vmem:[%s0 + $0x28] sm:$0xf]
  %v158 = vld [vmem:[%s0 + $0x2c] sm:$0xf]
  %v159 = vld [vmem:[%s0 + $0x30] sm:$0xf]
  %v160 = vld [vmem:[%s0 + $0x34] sm:$0xf]
  %v161 = vld [vmem:[%s0 + $0x38] sm:$0xf]
  %v162 = vld [vmem:[%s0 + $0x3c] sm:$0xf]
  %v163 = vld [vmem:[%s0 + $0x40] sm:$0xf]
  %v164 = vld [vmem:[%s0 + $0x44] sm:$0xf]
  %v165 = vld [vmem:[%s0 + $0x48] sm:$0xf]
  %v166 = vld [vmem:[%s0 + $0x4c] sm:$0xf]
  %v167 = vld [vmem:[%s0 + $0x50] sm:$0xf]
  %v168 = vld [vmem:[%s0 + $0x54] sm:$0xf]
  %v169 = vld [vmem:[%s0 + $0x58] sm:$0xf]
  %v170 = vld [vmem:[%s0 + $0x5c] sm:$0xf]
  %v171 = vld [vmem:[%s0 + $0x60] sm:$0xf]
  %v172 = vld [vmem:[%s0 + $0x64] sm:$0xf]
  %v173 = vld [vmem:[%s0 + $0x68] sm:$0xf]
  %v174 = vld [vmem:[%s0 + $0x6c] sm:$0xf]
  %v175 = vld [vmem:[%s0 + $0x70] sm:$0xf]
  %v176 = vld [vmem:[%s0 + $0x74] sm:$0xf]
  %v177 = vld [vmem:[%s0 + $0x78] sm:$0xf]
  %v178 = vld [vmem:[%s0 + $0x7c] sm:$0xf]
  %v179 = vld [vmem:[%s0 + $0x80] sm:$0xf]
  %v180 = vld [vmem:[%s0 + $0x84] sm:$0xf]
  %v181 = vld [vmem:[%s0 + $0x88] sm:$0xf]
  %v182 = vld [vmem:[%s0 + $0x8c] sm:$0xf]
  %v183 = vld [vmem:[%s0 + $0x90] sm:$0xf]
  %v184 = vld [vmem:[%s0 + $0x94] sm:$0xf]
  %v185 = vld [vmem:[%s0 + $0x98] sm:$0xf]
  %v186 = vld [vmem:[%s0 + $0x9c] sm:$0xf]
  %v187 = vld [vmem:[%s0 + $0xa0] sm:$0xf]
  %v188 = vld [vmem:[%s0 + $0xa4] sm:$0xf]
  %v189 = vld [vmem:[%s0 + $0xa8] sm:$0xf]
  %v190 = vld [vmem:[%s0 + $0xac] sm:$0xf]
  %v191 = vld [vmem:[%s0 + $0xb0] sm:$0xf]
  %v192 = vld [vmem:[%s0 + $0xb4] sm:$0xf]
  %v193 = vld [vmem:[%s0 + $0xb8] sm:$0xf]
  %v194 = vld [vmem:[%s0 + $0xbc] sm:$0xf]
  %v195 = vld [vmem:[%s0 + $0xc0] sm:$0xf]
  %v196 = vld [vmem:[%s0 + $0xc4] sm:$0xf]
  %v197 = vld [vmem:[%s0 + $0xc8] sm:$0xf]
  %v198 = vld [vmem:[%s0 + $0xcc] sm:$0xf]
  %v199 = vld [vmem:[%s0 + $0xd0] sm:$0xf]
  %v200 = vld [vmem:[%s0 + $0xd4] sm:$0xf]
  %v201 = vld [vmem:[%s0 + $0xd8] sm:$0xf]
  %v202 = vld [vmem:[%s0 + $0xdc] sm:$0xf]
  %v203 = vld [vmem:[%s0 + $0xe0] sm:$0xf]
  %v204 = vld [vmem:[%s0 + $0xe4] sm:$0xf]
  %v205 = vld [vmem:[%s0 + $0xe8] sm:$0xf]
  %v206 = vld [vmem:[%s0 + $0xec] sm:$0xf]
  %v207 = vld [vmem:[%s0 + $0xf0] sm:$0xf]
  %v208 = vld [vmem:[%s0 + $0xf4] sm:$0xf]
  %v209 = vld [vmem:[%s0 + $0xf8] sm:$0xf]
  %v210 = vld [vmem:[%s0 + $0xfc] sm:$0xf]
  %v211 = vld [vmem:[%s1] sm:$0xf]
  %v212 = vld [vmem:[%s1 + $0x4] sm:$0xf]
  %v213 = vld [vmem:[%s1 + $0x8] sm:$0xf]
  %v214 = vld [vmem:[%s1 + $0xc] sm:$0xf]
  %v215 = vld [vmem:[%s1 + $0x10] sm:$0xf]
  %v216 = vld [vmem:[%s1 + $0x14] sm:$0xf]
  %v217 = vld [vmem:[%s1 + $0x18] sm:$0xf]
  %v218 = vld [vmem:[%s1 + $0x1c] sm:$0xf]
  %v219 = vld [vmem:[%s1 + $0x20] sm:$0xf]
  %v220 = vld [vmem:[%s1 + $0x24] sm:$0xf]
  %v221 = vld [vmem:[%s1 + $0x28] sm:$0xf]
  %v222 = vld [vmem:[%s1 + $0x2c] sm:$0xf]
  %v223 = vld [vmem:[%s1 + $0x30] sm:$0xf]
  %v224 = vld [vmem:[%s1 + $0x34] sm:$0xf]
  %v225 = vld [vmem:[%s1 + $0x38] sm:$0xf]
  %v226 = vld [vmem:[%s1 + $0x3c] sm:$0xf]
  %v291 = vunpack.c.l.b16 %v147
  %v292 = vunpack.c.l.b16 %v148
  %v293 = vunpack.c.l.b16 %v149
  %v294 = vunpack.c.l.b16 %v150
  %v295 = vunpack.c.l.b16 %v151
  %v296 = vunpack.c.l.b16 %v152
  %v297 = vunpack.c.l.b16 %v153
  %v298 = vunpack.c.l.b16 %v154
  %v299 = vunpack.c.l.b16 %v155
  %v300 = vunpack.c.l.b16 %v156
  %v301 = vunpack.c.l.b16 %v157
  %v302 = vunpack.c.l.b16 %v158
  %v303 = vunpack.c.l.b16 %v159
  %v304 = vunpack.c.l.b16 %v160
  %v305 = vunpack.c.l.b16 %v161
  %v306 = vunpack.c.l.b16 %v162
  %v307 = vunpack.c.l.b16 %v163
  %v308 = vunpack.c.l.b16 %v164
  %v309 = vunpack.c.l.b16 %v165
  %v310 = vunpack.c.l.b16 %v166
  %v311 = vunpack.c.l.b16 %v167
  %v312 = vunpack.c.l.b16 %v168
  %v313 = vunpack.c.l.b16 %v169
  %v314 = vunpack.c.l.b16 %v170
  %v315 = vunpack.c.l.b16 %v171
  %v316 = vunpack.c.l.b16 %v172
  %v317 = vunpack.c.l.b16 %v173
  %v318 = vunpack.c.l.b16 %v174
  %v319 = vunpack.c.l.b16 %v175
  %v320 = vunpack.c.l.b16 %v176
  %v321 = vunpack.c.l.b16 %v177
  %v322 = vunpack.c.l.b16 %v178
  %v323 = vunpack.c.l.b16 %v179
  %v324 = vunpack.c.l.b16 %v180
  %v325 = vunpack.c.l.b16 %v181
  %v326 = vunpack.c.l.b16 %v182
  %v327 = vunpack.c.l.b16 %v183
  %v328 = vunpack.c.l.b16 %v184
  %v329 = vunpack.c.l.b16 %v185
  %v330 = vunpack.c.l.b16 %v186
  %v331 = vunpack.c.l.b16 %v187
  %v332 = vunpack.c.l.b16 %v188
  %v333 = vunpack.c.l.b16 %v189
  %v334 = vunpack.c.l.b16 %v190
  %v335 = vunpack.c.l.b16 %v191
  %v336 = vunpack.c.l.b16 %v192
  %v337 = vunpack.c.l.b16 %v193
  %v338 = vunpack.c.l.b16 %v194
  %v339 = vunpack.c.l.b16 %v195
  %v340 = vunpack.c.l.b16 %v196
  %v341 = vunpack.c.l.b16 %v197
  %v342 = vunpack.c.l.b16 %v198
  %v343 = vunpack.c.l.b16 %v199
  %v344 = vunpack.c.l.b16 %v200
  %v345 = vunpack.c.l.b16 %v201
  %v346 = vunpack.c.l.b16 %v202
  %v347 = vunpack.c.l.b16 %v203
  %v348 = vunpack.c.l.b16 %v204
  %v349 = vunpack.c.l.b16 %v205
  %v350 = vunpack.c.l.b16 %v206
  %v351 = vunpack.c.l.b16 %v207
  %v352 = vunpack.c.l.b16 %v208
  %v353 = vunpack.c.l.b16 %v209
  %v354 = vunpack.c.l.b16 %v210
  %v355 = vpack.c.b16 %v292, %v291
  %v356 = vpack.c.b16 %v294, %v293
  %v357 = vpack.c.b16 %v296, %v295
  %v358 = vpack.c.b16 %v298, %v297
  %v359 = vpack.c.b16 %v300, %v299
  %v360 = vpack.c.b16 %v302, %v301
  %v361 = vpack.c.b16 %v304, %v303
  %v362 = vpack.c.b16 %v306, %v305
  %v363 = vpack.c.b16 %v308, %v307
  %v364 = vpack.c.b16 %v310, %v309
  %v365 = vpack.c.b16 %v312, %v311
  %v366 = vpack.c.b16 %v314, %v313
  %v367 = vpack.c.b16 %v316, %v315
  %v368 = vpack.c.b16 %v318, %v317
  %v369 = vpack.c.b16 %v320, %v319
  %v370 = vpack.c.b16 %v322, %v321
  %v371 = vpack.c.b16 %v324, %v323
  %v372 = vpack.c.b16 %v326, %v325
  %v373 = vpack.c.b16 %v328, %v327
  %v374 = vpack.c.b16 %v330, %v329
  %v375 = vpack.c.b16 %v332, %v331
  %v376 = vpack.c.b16 %v334, %v333
  %v377 = vpack.c.b16 %v336, %v335
  %v378 = vpack.c.b16 %v338, %v337
  %v379 = vpack.c.b16 %v340, %v339
  %v380 = vpack.c.b16 %v342, %v341
  %v381 = vpack.c.b16 %v344, %v343
  %v382 = vpack.c.b16 %v346, %v345
  %v383 = vpack.c.b16 %v348, %v347
  %v384 = vpack.c.b16 %v350, %v349
  %v385 = vpack.c.b16 %v352, %v351
  %v386 = vpack.c.b16 %v354, %v353
  %v435 = vunpack.c.l.b16 %v211
  %v436 = vunpack.c.l.b16 %v212
  %v437 = vunpack.c.l.b16 %v213
  %v438 = vunpack.c.l.b16 %v214
  %v439 = vunpack.c.l.b16 %v215
  %v440 = vunpack.c.l.b16 %v216
  %v441 = vunpack.c.l.b16 %v217
  %v442 = vunpack.c.l.b16 %v218
  %v443 = vunpack.c.l.b16 %v219
  %v444 = vunpack.c.l.b16 %v220
  %v445 = vunpack.c.l.b16 %v221
  %v446 = vunpack.c.l.b16 %v222
  %v447 = vunpack.c.l.b16 %v223
  %v448 = vunpack.c.l.b16 %v224
  %v449 = vunpack.c.l.b16 %v225
  %v450 = vunpack.c.l.b16 %v226
  %v451 = vpack.c.b16 %v436, %v435
  %v452 = vpack.c.b16 %v438, %v437
  %v453 = vpack.c.b16 %v440, %v439
  %v454 = vpack.c.b16 %v442, %v441
  %v455 = vpack.c.b16 %v444, %v443
  %v456 = vpack.c.b16 %v446, %v445
  %v457 = vpack.c.b16 %v448, %v447
  %v458 = vpack.c.b16 %v450, %v449
  %467 = vmatprep.subr.bf16.mxu0 0
  %468 = vmatpush1.bf16.msra.mxu0 %v451
  %469 = vmatprep.subr.bf16.mxu0 0
  %470 = vmatpush1.bf16.msra.mxu0 %v452
  %471 = vmatprep.subr.bf16.mxu0 0
  %472 = vmatpush1.bf16.msra.mxu0 %v453
  %473 = vmatprep.subr.bf16.mxu0 0
  %474 = vmatpush1.bf16.msra.mxu0 %v454
  %475 = vmatprep.subr.bf16.mxu0 0
  %476 = vmatpush1.bf16.msra.mxu0 %v455
  %477 = vmatprep.subr.bf16.mxu0 0
  %478 = vmatpush1.bf16.msra.mxu0 %v456
  %479 = vmatprep.subr.bf16.mxu0 0
  %480 = vmatpush1.bf16.msra.mxu0 %v457
  %481 = vmatprep.subr.bf16.mxu0 0
  %482 = vmatpush1.bf16.msra.mxu0 %v458
  %483 = vmatprep.subr.bf16.mxu0 0
  %484 = vmatpush1.bf16.msra.mxu0 0
  %485 = vmatprep.subr.bf16.mxu0 0
  %486 = vmatpush1.bf16.msra.mxu0 0
  %487 = vmatprep.subr.bf16.mxu0 0
  %488 = vmatpush1.bf16.msra.mxu0 0
  %489 = vmatprep.subr.bf16.mxu0 0
  %490 = vmatpush1.bf16.msra.mxu0 0
  %491 = vmatprep.subr.bf16.mxu0 0
  %492 = vmatpush1.bf16.msra.mxu0 0
  %493 = vmatprep.subr.bf16.mxu0 0
  %494 = vmatpush1.bf16.msra.mxu0 0
  %495 = vmatprep.subr.bf16.mxu0 0
  %496 = vmatpush1.bf16.msra.mxu0 0
  %497 = vmatprep.subr.bf16.mxu0 0
  %498 = vmatpush1.bf16.msra.mxu0 0
  %499 = vmatprep.mubr.bf16.mxu0 0
  %500 = vmatmul.mubr.bf16.gmra.mrb[0].mxu0 %v355
  %v501 = vpop.f32.mrb[0].mxu0
  %v502 = vadd.f32 0.0, %v501
  %v503 = vpop.f32.mrb[0].mxu0
  %v504 = vpop.f32.mrb[0].mxu0
  %v505 = vadd.f32 0.0, %v504
  %v506 = vpop.f32.mrb[0].mxu0
  %507 = vmatprep.mubr.bf16.mxu0 0
  %508 = vmatmul.mubr.bf16.gmra.mrb[0].mxu0 %v356
  %v509 = vpop.f32.mrb[0].mxu0
  %v510 = vadd.f32 0.0, %v509
  %v511 = vpop.f32.mrb[0].mxu0
  %v512 = vpop.f32.mrb[0].mxu0
  %v513 = vadd.f32 0.0, %v512
  %v514 = vpop.f32.mrb[0].mxu0
  %515 = vmatprep.mubr.bf16.mxu0 0
  %516 = vmatmul.mubr.bf16.gmra.mrb[0].mxu0 %v357
  %v517 = vpop.f32.mrb[0].mxu0
  %v518 = vadd.f32 0.0, %v517
  %v519 = vpop.f32.mrb[0].mxu0
  %v520 = vpop.f32.mrb[0].mxu0
  %v521 = vadd.f32 0.0, %v520
  %v522 = vpop.f32.mrb[0].mxu0
  %523 = vmatprep.mubr.bf16.mxu0 0
  %524 = vmatmul.mubr.bf16.gmra.mrb[0].mxu0 %v358
  %v525 = vpop.f32.mrb[0].mxu0
  %v526 = vadd.f32 0.0, %v525
  %v527 = vpop.f32.mrb[0].mxu0
  %v528 = vpop.f32.mrb[0].mxu0
  %v529 = vadd.f32 0.0, %v528
  %v530 = vpop.f32.mrb[0].mxu0
  %531 = vmatprep.mubr.bf16.mxu0 0
  %532 = vmatmul.mubr.bf16.gmra.mrb[0].mxu0 %v359
  %v533 = vpop.f32.mrb[0].mxu0
  %v534 = vadd.f32 0.0, %v533
  %v535 = vpop.f32.mrb[0].mxu0
  %v536 = vpop.f32.mrb[0].mxu0
  %v537 = vadd.f32 0.0, %v536
  %v538 = vpop.f32.mrb[0].mxu0
  %539 = vmatprep.mubr.bf16.mxu0 0
  %540 = vmatmul.mubr.bf16.gmra.mrb[0].mxu0 %v360
  %v541 = vpop.f32.mrb[0].mxu0
  %v542 = vadd.f32 0.0, %v541
  %v543 = vpop.f32.mrb[0].mxu0
  %v544 = vpop.f32.mrb[0].mxu0
  %v545 = vadd.f32 0.0, %v544
  %v546 = vpop.f32.mrb[0].mxu0
  %547 = vmatprep.mubr.bf16.mxu0 0
  %548 = vmatmul.mubr.bf16.gmra.mrb[0].mxu0 %v361
  %v549 = vpop.f32.mrb[0].mxu0
  %v550 = vadd.f32 0.0, %v549
  %v551 = vpop.f32.mrb[0].mxu0
  %v552 = vpop.f32.mrb[0].mxu0
  %v553 = vadd.f32 0.0, %v552
  %v554 = vpop.f32.mrb[0].mxu0
  %555 = vmatprep.mubr.bf16.mxu0 0
  %556 = vmatmul.mubr.bf16.gmra.mrb[0].mxu0 %v362
  %v557 = vpop.f32.mrb[0].mxu0
  %v558 = vadd.f32 0.0, %v557
  %v559 = vpop.f32.mrb[0].mxu0
  %v560 = vpop.f32.mrb[0].mxu0
  %v561 = vadd.f32 0.0, %v560
  %v562 = vpop.f32.mrb[0].mxu0
  %563 = vmatprep.mubr.bf16.mxu0 0
  %564 = vmatmul.mubr.bf16.gmra.mrb[0].mxu0 %v363
  %v565 = vpop.f32.mrb[0].mxu0
  %v566 = vadd.f32 0.0, %v565
  %v567 = vpop.f32.mrb[0].mxu0
  %v568 = vpop.f32.mrb[0].mxu0
  %v569 = vadd.f32 0.0, %v568
  %v570 = vpop.f32.mrb[0].mxu0
  %571 = vmatprep.mubr.bf16.mxu0 0
  %572 = vmatmul.mubr.bf16.gmra.mrb[0].mxu0 %v364
  %v573 = vpop.f32.mrb[0].mxu0
  %v574 = vadd.f32 0.0, %v573
  %v575 = vpop.f32.mrb[0].mxu0
  %v576 = vpop.f32.mrb[0].mxu0
  %v577 = vadd.f32 0.0, %v576
  %v578 = vpop.f32.mrb[0].mxu0
  %579 = vmatprep.mubr.bf16.mxu0 0
  %580 = vmatmul.mubr.bf16.gmra.mrb[0].mxu0 %v365
  %v581 = vpop.f32.mrb[0].mxu0
  %v582 = vadd.f32 0.0, %v581
  %v583 = vpop.f32.mrb[0].mxu0
  %v584 = vpop.f32.mrb[0].mxu0
  %v585 = vadd.f32 0.0, %v584
  %v586 = vpop.f32.mrb[0].mxu0
  %587 = vmatprep.mubr.bf16.mxu0 0
  %588 = vmatmul.mubr.bf16.gmra.mrb[0].mxu0 %v366
  %v589 = vpop.f32.mrb[0].mxu0
  %v590 = vadd.f32 0.0, %v589
  %v591 = vpop.f32.mrb[0].mxu0
  %v592 = vpop.f32.mrb[0].mxu0
  %v593 = vadd.f32 0.0, %v592
  %v594 = vpop.f32.mrb[0].mxu0
  %595 = vmatprep.mubr.bf16.mxu0 0
  %596 = vmatmul.mubr.bf16.gmra.mrb[0].mxu0 %v367
  %v597 = vpop.f32.mrb[0].mxu0
  %v598 = vadd.f32 0.0, %v597
  %v599 = vpop.f32.mrb[0].mxu0
  %v600 = vpop.f32.mrb[0].mxu0
  %v601 = vadd.f32 0.0, %v600
  %v602 = vpop.f32.mrb[0].mxu0
  %603 = vmatprep.mubr.bf16.mxu0 0
  %604 = vmatmul.mubr.bf16.gmra.mrb[0].mxu0 %v368
  %v605 = vpop.f32.mrb[0].mxu0
  %v606 = vadd.f32 0.0, %v605
  %v607 = vpop.f32.mrb[0].mxu0
  %v608 = vpop.f32.mrb[0].mxu0
  %v609 = vadd.f32 0.0, %v608
  %v610 = vpop.f32.mrb[0].mxu0
  %611 = vmatprep.mubr.bf16.mxu0 0
  %612 = vmatmul.mubr.bf16.gmra.mrb[0].mxu0 %v369
  %v613 = vpop.f32.mrb[0].mxu0
  %v614 = vadd.f32 0.0, %v613
  %v615 = vpop.f32.mrb[0].mxu0
  %v616 = vpop.f32.mrb[0].mxu0
  %v617 = vadd.f32 0.0, %v616
  %v618 = vpop.f32.mrb[0].mxu0
  %619 = vmatprep.mubr.bf16.mxu0 0
  %620 = vmatmul.mubr.bf16.gmra.mrb[0].mxu0 %v370
  %v621 = vpop.f32.mrb[0].mxu0
  %v622 = vadd.f32 0.0, %v621
  %v623 = vpop.f32.mrb[0].mxu0
  %v624 = vpop.f32.mrb[0].mxu0
  %v625 = vadd.f32 0.0, %v624
  %v626 = vpop.f32.mrb[0].mxu0
  %627 = vmatprep.mubr.bf16.mxu0 0
  %628 = vmatmul.mubr.bf16.gmra.mrb[0].mxu0 %v371
  %v629 = vpop.f32.mrb[0].mxu0
  %v630 = vadd.f32 0.0, %v629
  %v631 = vpop.f32.mrb[0].mxu0
  %v632 = vpop.f32.mrb[0].mxu0
  %v633 = vadd.f32 0.0, %v632
  %v634 = vpop.f32.mrb[0].mxu0
  %635 = vmatprep.mubr.bf16.mxu0 0
  %636 = vmatmul.mubr.bf16.gmra.mrb[0].mxu0 %v372
  %v637 = vpop.f32.mrb[0].mxu0
  %v638 = vadd.f32 0.0, %v637
  %v639 = vpop.f32.mrb[0].mxu0
  %v640 = vpop.f32.mrb[0].mxu0
  %v641 = vadd.f32 0.0, %v640
  %v642 = vpop.f32.mrb[0].mxu0
  %643 = vmatprep.mubr.bf16.mxu0 0
  %644 = vmatmul.mubr.bf16.gmra.mrb[0].mxu0 %v373
  %v645 = vpop.f32.mrb[0].mxu0
  %v646 = vadd.f32 0.0, %v645
  %v647 = vpop.f32.mrb[0].mxu0
  %v648 = vpop.f32.mrb[0].mxu0
  %v649 = vadd.f32 0.0, %v648
  %v650 = vpop.f32.mrb[0].mxu0
  %651 = vmatprep.mubr.bf16.mxu0 0
  %652 = vmatmul.mubr.bf16.gmra.mrb[0].mxu0 %v374
  %v653 = vpop.f32.mrb[0].mxu0
  %v654 = vadd.f32 0.0, %v653
  %v655 = vpop.f32.mrb[0].mxu0
  %v656 = vpop.f32.mrb[0].mxu0
  %v657 = vadd.f32 0.0, %v656
  %v658 = vpop.f32.mrb[0].mxu0
  %659 = vmatprep.mubr.bf16.mxu0 0
  %660 = vmatmul.mubr.bf16.gmra.mrb[0].mxu0 %v375
  %v661 = vpop.f32.mrb[0].mxu0
  %v662 = vadd.f32 0.0, %v661
  %v663 = vpop.f32.mrb[0].mxu0
  %v664 = vpop.f32.mrb[0].mxu0
  %v665 = vadd.f32 0.0, %v664
  %v666 = vpop.f32.mrb[0].mxu0
  %667 = vmatprep.mubr.bf16.mxu0 0
  %668 = vmatmul.mubr.bf16.gmra.mrb[0].mxu0 %v376
  %v669 = vpop.f32.mrb[0].mxu0
  %v670 = vadd.f32 0.0, %v669
  %v671 = vpop.f32.mrb[0].mxu0
  %v672 = vpop.f32.mrb[0].mxu0
  %v673 = vadd.f32 0.0, %v672
  %v674 = vpop.f32.mrb[0].mxu0
  %675 = vmatprep.mubr.bf16.mxu0 0
  %676 = vmatmul.mubr.bf16.gmra.mrb[0].mxu0 %v377
  %v677 = vpop.f32.mrb[0].mxu0
  %v678 = vadd.f32 0.0, %v677
  %v679 = vpop.f32.mrb[0].mxu0
  %v680 = vpop.f32.mrb[0].mxu0
  %v681 = vadd.f32 0.0, %v680
  %v682 = vpop.f32.mrb[0].mxu0
  %683 = vmatprep.mubr.bf16.mxu0 0
  %684 = vmatmul.mubr.bf16.gmra.mrb[0].mxu0 %v378
  %v685 = vpop.f32.mrb[0].mxu0
  %v686 = vadd.f32 0.0, %v685
  %v687 = vpop.f32.mrb[0].mxu0
  %v688 = vpop.f32.mrb[0].mxu0
  %v689 = vadd.f32 0.0, %v688
  %v690 = vpop.f32.mrb[0].mxu0
  %691 = vmatprep.mubr.bf16.mxu0 0
  %692 = vmatmul.mubr.bf16.gmra.mrb[0].mxu0 %v379
  %v693 = vpop.f32.mrb[0].mxu0
  %v694 = vadd.f32 0.0, %v693
  %v695 = vpop.f32.mrb[0].mxu0
  %v696 = vpop.f32.mrb[0].mxu0
  %v697 = vadd.f32 0.0, %v696
  %v698 = vpop.f32.mrb[0].mxu0
  %699 = vmatprep.mubr.bf16.mxu0 0
  %700 = vmatmul.mubr.bf16.gmra.mrb[0].mxu0 %v380
  %v701 = vpop.f32.mrb[0].mxu0
  %v702 = vadd.f32 0.0, %v701
  %v703 = vpop.f32.mrb[0].mxu0
  %v704 = vpop.f32.mrb[0].mxu0
  %v705 = vadd.f32 0.0, %v704
  %v706 = vpop.f32.mrb[0].mxu0
  %707 = vmatprep.mubr.bf16.mxu0 0
  %708 = vmatmul.mubr.bf16.gmra.mrb[0].mxu0 %v381
  %v709 = vpop.f32.mrb[0].mxu0
  %v710 = vadd.f32 0.0, %v709
  %v711 = vpop.f32.mrb[0].mxu0
  %v712 = vpop.f32.mrb[0].mxu0
  %v713 = vadd.f32 0.0, %v712
  %v714 = vpop.f32.mrb[0].mxu0
  %715 = vmatprep.mubr.bf16.mxu0 0
  %716 = vmatmul.mubr.bf16.gmra.mrb[0].mxu0 %v382
  %v717 = vpop.f32.mrb[0].mxu0
  %v718 = vadd.f32 0.0, %v717
  %v719 = vpop.f32.mrb[0].mxu0
  %v720 = vpop.f32.mrb[0].mxu0
  %v721 = vadd.f32 0.0, %v720
  %v722 = vpop.f32.mrb[0].mxu0
  %723 = vmatprep.mubr.bf16.mxu0 0
  %724 = vmatmul.mubr.bf16.gmra.mrb[0].mxu0 %v383
  %v725 = vpop.f32.mrb[0].mxu0
  %v726 = vadd.f32 0.0, %v725
  %v727 = vpop.f32.mrb[0].mxu0
  %v728 = vpop.f32.mrb[0].mxu0
  %v729 = vadd.f32 0.0, %v728
  %v730 = vpop.f32.mrb[0].mxu0
  %731 = vmatprep.mubr.bf16.mxu0 0
  %732 = vmatmul.mubr.bf16.gmra.mrb[0].mxu0 %v384
  %v733 = vpop.f32.mrb[0].mxu0
  %v734 = vadd.f32 0.0, %v733
  %v735 = vpop.f32.mrb[0].mxu0
  %v736 = vpop.f32.mrb[0].mxu0
  %v737 = vadd.f32 0.0, %v736
  %v738 = vpop.f32.mrb[0].mxu0
  %739 = vmatprep.mubr.bf16.mxu0 0
  %740 = vmatmul.mubr.bf16.gmra.mrb[0].mxu0 %v385
  %v741 = vpop.f32.mrb[0].mxu0
  %v742 = vadd.f32 0.0, %v741
  %v743 = vpop.f32.mrb[0].mxu0
  %v744 = vpop.f32.mrb[0].mxu0
  %v745 = vadd.f32 0.0, %v744
  %v746 = vpop.f32.mrb[0].mxu0
  %747 = vmatprep.mubr.bf16.mxu0 0
  %748 = vmatmul.mubr.bf16.gmra.mrb[0].mxu0 %v386
  %v749 = vpop.f32.mrb[0].mxu0
  %v750 = vadd.f32 0.0, %v749
  %v751 = vpop.f32.mrb[0].mxu0
  %v752 = vpop.f32.mrb[0].mxu0
  %v753 = vadd.f32 0.0, %v752
  %v754 = vpop.f32.mrb[0].mxu0
  %755 = vdwg.mxu0
  %v756 = vadd.f32 %v83, %v502
  %v757 = vadd.f32 %v84, %v505
  %v758 = vadd.f32 %v85, %v510
  %v759 = vadd.f32 %v86, %v513
  %v760 = vadd.f32 %v87, %v518
  %v761 = vadd.f32 %v88, %v521
  %v762 = vadd.f32 %v89, %v526
  %v763 = vadd.f32 %v90, %v529
  %v764 = vadd.f32 %v91, %v534
  %v765 = vadd.f32 %v92, %v537
  %v766 = vadd.f32 %v93, %v542
  %v767 = vadd.f32 %v94, %v545
  %v768 = vadd.f32 %v95, %v550
  %v769 = vadd.f32 %v96, %v553
  %v770 = vadd.f32 %v97, %v558
  %v771 = vadd.f32 %v98, %v561
  %v772 = vadd.f32 %v99, %v566
  %v773 = vadd.f32 %v100, %v569
  %v774 = vadd.f32 %v101, %v574
  %v775 = vadd.f32 %v102, %v577
  %v776 = vadd.f32 %v103, %v582
  %v777 = vadd.f32 %v104, %v585
  %v778 = vadd.f32 %v105, %v590
  %v779 = vadd.f32 %v106, %v593
  %v780 = vadd.f32 %v107, %v598
  %v781 = vadd.f32 %v108, %v601
  %v782 = vadd.f32 %v109, %v606
  %v783 = vadd.f32 %v110, %v609
  %v784 = vadd.f32 %v111, %v614
  %v785 = vadd.f32 %v112, %v617
  %v786 = vadd.f32 %v113, %v622
  %v787 = vadd.f32 %v114, %v625
  %v788 = vadd.f32 %v115, %v630
  %v789 = vadd.f32 %v116, %v633
  %v790 = vadd.f32 %v117, %v638
  %v791 = vadd.f32 %v118, %v641
  %v792 = vadd.f32 %v119, %v646
  %v793 = vadd.f32 %v120, %v649
  %v794 = vadd.f32 %v121, %v654
  %v795 = vadd.f32 %v122, %v657
  %v796 = vadd.f32 %v123, %v662
  %v797 = vadd.f32 %v124, %v665
  %v798 = vadd.f32 %v125, %v670
  %v799 = vadd.f32 %v126, %v673
  %v800 = vadd.f32 %v127, %v678
  %v801 = vadd.f32 %v128, %v681
  %v802 = vadd.f32 %v129, %v686
  %v803 = vadd.f32 %v130, %v689
  %v804 = vadd.f32 %v131, %v694
  %v805 = vadd.f32 %v132, %v697
  %v806 = vadd.f32 %v133, %v702
  %v807 = vadd.f32 %v134, %v705
  %v808 = vadd.f32 %v135, %v710
  %v809 = vadd.f32 %v136, %v713
  %v810 = vadd.f32 %v137, %v718
  %v811 = vadd.f32 %v138, %v721
  %v812 = vadd.f32 %v139, %v726
  %v813 = vadd.f32 %v140, %v729
  %v814 = vadd.f32 %v141, %v734
  %v815 = vadd.f32 %v142, %v737
  %v816 = vadd.f32 %v143, %v742
  %v817 = vadd.f32 %v144, %v745
  %v818 = vadd.f32 %v145, %v750
  %v819 = vadd.f32 %v146, %v753
  %820 = vst [vmem:[#allocation2] sm:$0xff] %v756
  %821 = vst [vmem:[#allocation2 + $0x8] sm:$0xff] %v757
  %822 = vst [vmem:[#allocation2 + $0x10] sm:$0xff] %v758
  %823 = vst [vmem:[#allocation2 + $0x18] sm:$0xff] %v759
  %824 = vst [vmem:[#allocation2 + $0x20] sm:$0xff] %v760
  %825 = vst [vmem:[#allocation2 + $0x28] sm:$0xff] %v761
  %826 = vst [vmem:[#allocation2 + $0x30] sm:$0xff] %v762
  %827 = vst [vmem:[#allocation2 + $0x38] sm:$0xff] %v763
  %828 = vst [vmem:[#allocation2 + $0x40] sm:$0xff] %v764
  %829 = vst [vmem:[#allocation2 + $0x48] sm:$0xff] %v765
  %830 = vst [vmem:[#allocation2 + $0x50] sm:$0xff] %v766
  %831 = vst [vmem:[#allocation2 + $0x58] sm:$0xff] %v767
  %832 = vst [vmem:[#allocation2 + $0x60] sm:$0xff] %v768
  %833 = vst [vmem:[#allocation2 + $0x68] sm:$0xff] %v769
  %834 = vst [vmem:[#allocation2 + $0x70] sm:$0xff] %v770
  %835 = vst [vmem:[#allocation2 + $0x78] sm:$0xff] %v771
  %836 = vst [vmem:[#allocation2 + $0x80] sm:$0xff] %v772
  %837 = vst [vmem:[#allocation2 + $0x88] sm:$0xff] %v773
  %838 = vst [vmem:[#allocation2 + $0x90] sm:$0xff] %v774
  %839 = vst [vmem:[#allocation2 + $0x98] sm:$0xff] %v775
  %840 = vst [vmem:[#allocation2 + $0xa0] sm:$0xff] %v776
  %841 = vst [vmem:[#allocation2 + $0xa8] sm:$0xff] %v777
  %842 = vst [vmem:[#allocation2 + $0xb0] sm:$0xff] %v778
  %843 = vst [vmem:[#allocation2 + $0xb8] sm:$0xff] %v779
  %844 = vst [vmem:[#allocation2 + $0xc0] sm:$0xff] %v780
  %845 = vst [vmem:[#allocation2 + $0xc8] sm:$0xff] %v781
  %846 = vst [vmem:[#allocation2 + $0xd0] sm:$0xff] %v782
  %847 = vst [vmem:[#allocation2 + $0xd8] sm:$0xff] %v783
  %848 = vst [vmem:[#allocation2 + $0xe0] sm:$0xff] %v784
  %849 = vst [vmem:[#allocation2 + $0xe8] sm:$0xff] %v785
  %850 = vst [vmem:[#allocation2 + $0xf0] sm:$0xff] %v786
  %851 = vst [vmem:[#allocation2 + $0xf8] sm:$0xff] %v787
  %852 = vst [vmem:[#allocation2 + $0x100] sm:$0xff] %v788
  %853 = vst [vmem:[#allocation2 + $0x108] sm:$0xff] %v789
  %854 = vst [vmem:[#allocation2 + $0x110] sm:$0xff] %v790
  %855 = vst [vmem:[#allocation2 + $0x118] sm:$0xff] %v791
  %856 = vst [vmem:[#allocation2 + $0x120] sm:$0xff] %v792
  %857 = vst [vmem:[#allocation2 + $0x128] sm:$0xff] %v793
  %858 = vst [vmem:[#allocation2 + $0x130] sm:$0xff] %v794
  %859 = vst [vmem:[#allocation2 + $0x138] sm:$0xff] %v795
  %860 = vst [vmem:[#allocation2 + $0x140] sm:$0xff] %v796
  %861 = vst [vmem:[#allocation2 + $0x148] sm:$0xff] %v797
  %862 = vst [vmem:[#allocation2 + $0x150] sm:$0xff] %v798
  %863 = vst [vmem:[#allocation2 + $0x158] sm:$0xff] %v799
  %864 = vst [vmem:[#allocation2 + $0x160] sm:$0xff] %v800
  %865 = vst [vmem:[#allocation2 + $0x168] sm:$0xff] %v801
  %866 = vst [vmem:[#allocation2 + $0x170] sm:$0xff] %v802
  %867 = vst [vmem:[#allocation2 + $0x178] sm:$0xff] %v803
  %868 = vst [vmem:[#allocation2 + $0x180] sm:$0xff] %v804
  %869 = vst [vmem:[#allocation2 + $0x188] sm:$0xff] %v805
  %870 = vst [vmem:[#allocation2 + $0x190] sm:$0xff] %v806
  %871 = vst [vmem:[#allocation2 + $0x198] sm:$0xff] %v807
  %872 = vst [vmem:[#allocation2 + $0x1a0] sm:$0xff] %v808
  %873 = vst [vmem:[#allocation2 + $0x1a8] sm:$0xff] %v809
  %874 = vst [vmem:[#allocation2 + $0x1b0] sm:$0xff] %v810
  %875 = vst [vmem:[#allocation2 + $0x1b8] sm:$0xff] %v811
  %876 = vst [vmem:[#allocation2 + $0x1c0] sm:$0xff] %v812
  %877 = vst [vmem:[#allocation2 + $0x1c8] sm:$0xff] %v813
  %878 = vst [vmem:[#allocation2 + $0x1d0] sm:$0xff] %v814
  %879 = vst [vmem:[#allocation2 + $0x1d8] sm:$0xff] %v815
  %880 = vst [vmem:[#allocation2 + $0x1e0] sm:$0xff] %v816
  %881 = vst [vmem:[#allocation2 + $0x1e8] sm:$0xff] %v817
  %882 = vst [vmem:[#allocation2 + $0x1f0] sm:$0xff] %v818
  %883 = vst [vmem:[#allocation2 + $0x1f8] sm:$0xff] %v819
  // Predicated region
  $region18: #{resblock_forward.5} parent=0 // pred_check
    %p884 = pneg %p15
  $region19: #{resblock_forward.5} parent=0 // pred_check_branch
    %886 = sbr.rel (%p884) target = $region21
  $region20: #{resblock_forward.5} parent=0 // pred_region
    %v887 = vld [vmem:[#allocation2] sm:$0xff]
    %v888 = vld [vmem:[#allocation2 + $0x8] sm:$0xff]
    %v889 = vld [vmem:[#allocation2 + $0x10] sm:$0xff]
    %v890 = vld [vmem:[#allocation2 + $0x18] sm:$0xff]
    %v891 = vld [vmem:[#allocation2 + $0x20] sm:$0xff]
    %v892 = vld [vmem:[#allocation2 + $0x28] sm:$0xff]
    %v893 = vld [vmem:[#allocation2 + $0x30] sm:$0xff]
    %v894 = vld [vmem:[#allocation2 + $0x38] sm:$0xff]
    %v895 = vld [vmem:[#allocation2 + $0x40] sm:$0xff]
    %v896 = vld [vmem:[#allocation2 + $0x48] sm:$0xff]
    %v897 = vld [vmem:[#allocation2 + $0x50] sm:$0xff]
    %v898 = vld [vmem:[#allocation2 + $0x58] sm:$0xff]
    %v899 = vld [vmem:[#allocation2 + $0x60] sm:$0xff]
    %v900 = vld [vmem:[#allocation2 + $0x68] sm:$0xff]
    %v901 = vld [vmem:[#allocation2 + $0x70] sm:$0xff]
    %v902 = vld [vmem:[#allocation2 + $0x78] sm:$0xff]
    %v903 = vld [vmem:[#allocation2 + $0x80] sm:$0xff]
    %v904 = vld [vmem:[#allocation2 + $0x88] sm:$0xff]
    %v905 = vld [vmem:[#allocation2 + $0x90] sm:$0xff]
    %v906 = vld [vmem:[#allocation2 + $0x98] sm:$0xff]
    %v907 = vld [vmem:[#allocation2 + $0xa0] sm:$0xff]
    %v908 = vld [vmem:[#allocation2 + $0xa8] sm:$0xff]
    %v909 = vld [vmem:[#allocation2 + $0xb0] sm:$0xff]
    %v910 = vld [vmem:[#allocation2 + $0xb8] sm:$0xff]
    %v911 = vld [vmem:[#allocation2 + $0xc0] sm:$0xff]
    %v912 = vld [vmem:[#allocation2 + $0xc8] sm:$0xff]
    %v913 = vld [vmem:[#allocation2 + $0xd0] sm:$0xff]
    %v914 = vld [vmem:[#allocation2 + $0xd8] sm:$0xff]
    %v915 = vld [vmem:[#allocation2 + $0xe0] sm:$0xff]
    %v916 = vld [vmem:[#allocation2 + $0xe8] sm:$0xff]
    %v917 = vld [vmem:[#allocation2 + $0xf0] sm:$0xff]
    %v918 = vld [vmem:[#allocation2 + $0xf8] sm:$0xff]
    %v919 = vld [vmem:[#allocation2 + $0x100] sm:$0xff]
    %v920 = vld [vmem:[#allocation2 + $0x108] sm:$0xff]
    %v921 = vld [vmem:[#allocation2 + $0x110] sm:$0xff]
    %v922 = vld [vmem:[#allocation2 + $0x118] sm:$0xff]
    %v923 = vld [vmem:[#allocation2 + $0x120] sm:$0xff]
    %v924 = vld [vmem:[#allocation2 + $0x128] sm:$0xff]
    %v925 = vld [vmem:[#allocation2 + $0x130] sm:$0xff]
    %v926 = vld [vmem:[#allocation2 + $0x138] sm:$0xff]
    %v927 = vld [vmem:[#allocation2 + $0x140] sm:$0xff]
    %v928 = vld [vmem:[#allocation2 + $0x148] sm:$0xff]
    %v929 = vld [vmem:[#allocation2 + $0x150] sm:$0xff]
    %v930 = vld [vmem:[#allocation2 + $0x158] sm:$0xff]
    %v931 = vld [vmem:[#allocation2 + $0x160] sm:$0xff]
    %v932 = vld [vmem:[#allocation2 + $0x168] sm:$0xff]
    %v933 = vld [vmem:[#allocation2 + $0x170] sm:$0xff]
    %v934 = vld [vmem:[#allocation2 + $0x178] sm:$0xff]
    %v935 = vld [vmem:[#allocation2 + $0x180] sm:$0xff]
    %v936 = vld [vmem:[#allocation2 + $0x188] sm:$0xff]
    %v937 = vld [vmem:[#allocation2 + $0x190] sm:$0xff]
    %v938 = vld [vmem:[#allocation2 + $0x198] sm:$0xff]
    %v939 = vld [vmem:[#allocation2 + $0x1a0] sm:$0xff]
    %v940 = vld [vmem:[#allocation2 + $0x1a8] sm:$0xff]
    %v941 = vld [vmem:[#allocation2 + $0x1b0] sm:$0xff]
    %v942 = vld [vmem:[#allocation2 + $0x1b8] sm:$0xff]
    %v943 = vld [vmem:[#allocation2 + $0x1c0] sm:$0xff]
    %v944 = vld [vmem:[#allocation2 + $0x1c8] sm:$0xff]
    %v945 = vld [vmem:[#allocation2 + $0x1d0] sm:$0xff]
    %v946 = vld [vmem:[#allocation2 + $0x1d8] sm:$0xff]
    %v947 = vld [vmem:[#allocation2 + $0x1e0] sm:$0xff]
    %v948 = vld [vmem:[#allocation2 + $0x1e8] sm:$0xff]
    %v949 = vld [vmem:[#allocation2 + $0x1f0] sm:$0xff]
    %v950 = vld [vmem:[#allocation2 + $0x1f8] sm:$0xff]
    %v951 = vld [vmem:[%s2] sm:$0x1]
    %v953 = vlaneseq
    %v954 = vshrl.u32 %v953, 7
    %v955 = vsub.s32 0, %v954
    %v956 = vrot.slane %v951, %v955
    %v958 = vadd.f32 %v887, %v956
    %v959 = vadd.f32 %v888, %v956
    %v960 = vadd.f32 %v889, %v956
    %v961 = vadd.f32 %v890, %v956
    %v962 = vadd.f32 %v891, %v956
    %v963 = vadd.f32 %v892, %v956
    %v964 = vadd.f32 %v893, %v956
    %v965 = vadd.f32 %v894, %v956
    %v966 = vadd.f32 %v895, %v956
    %v967 = vadd.f32 %v896, %v956
    %v968 = vadd.f32 %v897, %v956
    %v969 = vadd.f32 %v898, %v956
    %v970 = vadd.f32 %v899, %v956
    %v971 = vadd.f32 %v900, %v956
    %v972 = vadd.f32 %v901, %v956
    %v973 = vadd.f32 %v902, %v956
    %v974 = vadd.f32 %v903, %v956
    %v975 = vadd.f32 %v904, %v956
    %v976 = vadd.f32 %v905, %v956
    %v977 = vadd.f32 %v906, %v956
    %v978 = vadd.f32 %v907, %v956
    %v979 = vadd.f32 %v908, %v956
    %v980 = vadd.f32 %v909, %v956
    %v981 = vadd.f32 %v910, %v956
    %v982 = vadd.f32 %v911, %v956
    %v983 = vadd.f32 %v912, %v956
    %v984 = vadd.f32 %v913, %v956
    %v985 = vadd.f32 %v914, %v956
    %v986 = vadd.f32 %v915, %v956
    %v987 = vadd.f32 %v916, %v956
    %v988 = vadd.f32 %v917, %v956
    %v989 = vadd.f32 %v918, %v956
    %v990 = vadd.f32 %v919, %v956
    %v991 = vadd.f32 %v920, %v956
    %v992 = vadd.f32 %v921, %v956
    %v993 = vadd.f32 %v922, %v956
    %v994 = vadd.f32 %v923, %v956
    %v995 = vadd.f32 %v924, %v956
    %v996 = vadd.f32 %v925, %v956
    %v997 = vadd.f32 %v926, %v956
    %v998 = vadd.f32 %v927, %v956
    %v999 = vadd.f32 %v928, %v956
    %v1000 = vadd.f32 %v929, %v956
    %v1001 = vadd.f32 %v930, %v956
    %v1002 = vadd.f32 %v931, %v956
    %v1003 = vadd.f32 %v932, %v956
    %v1004 = vadd.f32 %v933, %v956
    %v1005 = vadd.f32 %v934, %v956
    %v1006 = vadd.f32 %v935, %v956
    %v1007 = vadd.f32 %v936, %v956
    %v1008 = vadd.f32 %v937, %v956
    %v1009 = vadd.f32 %v938, %v956
    %v1010 = vadd.f32 %v939, %v956
    %v1011 = vadd.f32 %v940, %v956
    %v1012 = vadd.f32 %v941, %v956
    %v1013 = vadd.f32 %v942, %v956
    %v1014 = vadd.f32 %v943, %v956
    %v1015 = vadd.f32 %v944, %v956
    %v1016 = vadd.f32 %v945, %v956
    %v1017 = vadd.f32 %v946, %v956
    %v1018 = vadd.f32 %v947, %v956
    %v1019 = vadd.f32 %v948, %v956
    %v1020 = vadd.f32 %v949, %v956
    %v1021 = vadd.f32 %v950, %v956
    %v1022 = vmax.f32 %v958, 0.0
    %v1023 = vmax.f32 %v959, 0.0
    %v1024 = vmax.f32 %v960, 0.0
    %v1025 = vmax.f32 %v961, 0.0
    %v1026 = vmax.f32 %v962, 0.0
    %v1027 = vmax.f32 %v963, 0.0
    %v1028 = vmax.f32 %v964, 0.0
    %v1029 = vmax.f32 %v965, 0.0
    %v1030 = vmax.f32 %v966, 0.0
    %v1031 = vmax.f32 %v967, 0.0
    %v1032 = vmax.f32 %v968, 0.0
    %v1033 = vmax.f32 %v969, 0.0
    %v1034 = vmax.f32 %v970, 0.0
    %v1035 = vmax.f32 %v971, 0.0
    %v1036 = vmax.f32 %v972, 0.0
    %v1037 = vmax.f32 %v973, 0.0
    %v1038 = vmax.f32 %v974, 0.0
    %v1039 = vmax.f32 %v975, 0.0
    %v1040 = vmax.f32 %v976, 0.0
    %v1041 = vmax.f32 %v977, 0.0
    %v1042 = vmax.f32 %v978, 0.0
    %v1043 = vmax.f32 %v979, 0.0
    %v1044 = vmax.f32 %v980, 0.0
    %v1045 = vmax.f32 %v981, 0.0
    %v1046 = vmax.f32 %v982, 0.0
    %v1047 = vmax.f32 %v983, 0.0
    %v1048 = vmax.f32 %v984, 0.0
    %v1049 = vmax.f32 %v985, 0.0
    %v1050 = vmax.f32 %v986, 0.0
    %v1051 = vmax.f32 %v987, 0.0
    %v1052 = vmax.f32 %v988, 0.0
    %v1053 = vmax.f32 %v989, 0.0
    %v1054 = vmax.f32 %v990, 0.0
    %v1055 = vmax.f32 %v991, 0.0
    %v1056 = vmax.f32 %v992, 0.0
    %v1057 = vmax.f32 %v993, 0.0
    %v1058 = vmax.f32 %v994, 0.0
    %v1059 = vmax.f32 %v995, 0.0
    %v1060 = vmax.f32 %v996, 0.0
    %v1061 = vmax.f32 %v997, 0.0
    %v1062 = vmax.f32 %v998, 0.0
    %v1063 = vmax.f32 %v999, 0.0
    %v1064 = vmax.f32 %v1000, 0.0
    %v1065 = vmax.f32 %v1001, 0.0
    %v1066 = vmax.f32 %v1002, 0.0
    %v1067 = vmax.f32 %v1003, 0.0
    %v1068 = vmax.f32 %v1004, 0.0
    %v1069 = vmax.f32 %v1005, 0.0
    %v1070 = vmax.f32 %v1006, 0.0
    %v1071 = vmax.f32 %v1007, 0.0
    %v1072 = vmax.f32 %v1008, 0.0
    %v1073 = vmax.f32 %v1009, 0.0
    %v1074 = vmax.f32 %v1010, 0.0
    %v1075 = vmax.f32 %v1011, 0.0
    %v1076 = vmax.f32 %v1012, 0.0
    %v1077 = vmax.f32 %v1013, 0.0
    %v1078 = vmax.f32 %v1014, 0.0
    %v1079 = vmax.f32 %v1015, 0.0
    %v1080 = vmax.f32 %v1016, 0.0
    %v1081 = vmax.f32 %v1017, 0.0
    %v1082 = vmax.f32 %v1018, 0.0
    %v1083 = vmax.f32 %v1019, 0.0
    %v1084 = vmax.f32 %v1020, 0.0
    %v1085 = vmax.f32 %v1021, 0.0
    %v1086 = vpack.c.bf16 %v1023, %v1022
    %v1087 = vpack.c.bf16 %v1025, %v1024
    %v1088 = vpack.c.bf16 %v1027, %v1026
    %v1089 = vpack.c.bf16 %v1029, %v1028
    %v1090 = vpack.c.bf16 %v1031, %v1030
    %v1091 = vpack.c.bf16 %v1033, %v1032
    %v1092 = vpack.c.bf16 %v1035, %v1034
    %v1093 = vpack.c.bf16 %v1037, %v1036
    %v1094 = vpack.c.bf16 %v1039, %v1038
    %v1095 = vpack.c.bf16 %v1041, %v1040
    %v1096 = vpack.c.bf16 %v1043, %v1042
    %v1097 = vpack.c.bf16 %v1045, %v1044
    %v1098 = vpack.c.bf16 %v1047, %v1046
    %v1099 = vpack.c.bf16 %v1049, %v1048
    %v1100 = vpack.c.bf16 %v1051, %v1050
    %v1101 = vpack.c.bf16 %v1053, %v1052
    %v1102 = vpack.c.bf16 %v1055, %v1054
    %v1103 = vpack.c.bf16 %v1057, %v1056
    %v1104 = vpack.c.bf16 %v1059, %v1058
    %v1105 = vpack.c.bf16 %v1061, %v1060
    %v1106 = vpack.c.bf16 %v1063, %v1062
    %v1107 = vpack.c.bf16 %v1065, %v1064
    %v1108 = vpack.c.bf16 %v1067, %v1066
    %v1109 = vpack.c.bf16 %v1069, %v1068
    %v1110 = vpack.c.bf16 %v1071, %v1070
    %v1111 = vpack.c.bf16 %v1073, %v1072
    %v1112 = vpack.c.bf16 %v1075, %v1074
    %v1113 = vpack.c.bf16 %v1077, %v1076
    %v1114 = vpack.c.bf16 %v1079, %v1078
    %v1115 = vpack.c.bf16 %v1081, %v1080
    %v1116 = vpack.c.bf16 %v1083, %v1082
    %v1117 = vpack.c.bf16 %v1085, %v1084
    %v1150 = vunpack.c.l.b16 %v1086
    %v1151 = vunpack.c.h.b16 %v1086
    %v1152 = vunpack.c.l.b16 %v1087
    %v1153 = vunpack.c.h.b16 %v1087
    %v1154 = vunpack.c.l.b16 %v1088
    %v1155 = vunpack.c.h.b16 %v1088
    %v1156 = vunpack.c.l.b16 %v1089
    %v1157 = vunpack.c.h.b16 %v1089
    %v1158 = vunpack.c.l.b16 %v1090
    %v1159 = vunpack.c.h.b16 %v1090
    %v1160 = vunpack.c.l.b16 %v1091
    %v1161 = vunpack.c.h.b16 %v1091
    %v1162 = vunpack.c.l.b16 %v1092
    %v1163 = vunpack.c.h.b16 %v1092
    %v1164 = vunpack.c.l.b16 %v1093
    %v1165 = vunpack.c.h.b16 %v1093
    %v1166 = vunpack.c.l.b16 %v1094
    %v1167 = vunpack.c.h.b16 %v1094
    %v1168 = vunpack.c.l.b16 %v1095
    %v1169 = vunpack.c.h.b16 %v1095
    %v1170 = vunpack.c.l.b16 %v1096
    %v1171 = vunpack.c.h.b16 %v1096
    %v1172 = vunpack.c.l.b16 %v1097
    %v1173 = vunpack.c.h.b16 %v1097
    %v1174 = vunpack.c.l.b16 %v1098
    %v1175 = vunpack.c.h.b16 %v1098
    %v1176 = vunpack.c.l.b16 %v1099
    %v1177 = vunpack.c.h.b16 %v1099
    %v1178 = vunpack.c.l.b16 %v1100
    %v1179 = vunpack.c.h.b16 %v1100
    %v1180 = vunpack.c.l.b16 %v1101
    %v1181 = vunpack.c.h.b16 %v1101
    %v1182 = vunpack.c.l.b16 %v1102
    %v1183 = vunpack.c.h.b16 %v1102
    %v1184 = vunpack.c.l.b16 %v1103
    %v1185 = vunpack.c.h.b16 %v1103
    %v1186 = vunpack.c.l.b16 %v1104
    %v1187 = vunpack.c.h.b16 %v1104
    %v1188 = vunpack.c.l.b16 %v1105
    %v1189 = vunpack.c.h.b16 %v1105
    %v1190 = vunpack.c.l.b16 %v1106
    %v1191 = vunpack.c.h.b16 %v1106
    %v1192 = vunpack.c.l.b16 %v1107
    %v1193 = vunpack.c.h.b16 %v1107
    %v1194 = vunpack.c.l.b16 %v1108
    %v1195 = vunpack.c.h.b16 %v1108
    %v1196 = vunpack.c.l.b16 %v1109
    %v1197 = vunpack.c.h.b16 %v1109
    %v1198 = vunpack.c.l.b16 %v1110
    %v1199 = vunpack.c.h.b16 %v1110
    %v1200 = vunpack.c.l.b16 %v1111
    %v1201 = vunpack.c.h.b16 %v1111
    %v1202 = vunpack.c.l.b16 %v1112
    %v1203 = vunpack.c.h.b16 %v1112
    %v1204 = vunpack.c.l.b16 %v1113
    %v1205 = vunpack.c.h.b16 %v1113
    %v1206 = vunpack.c.l.b16 %v1114
    %v1207 = vunpack.c.h.b16 %v1114
    %v1208 = vunpack.c.l.b16 %v1115
    %v1209 = vunpack.c.h.b16 %v1115
    %v1210 = vunpack.c.l.b16 %v1116
    %v1211 = vunpack.c.h.b16 %v1116
    %v1212 = vunpack.c.l.b16 %v1117
    %v1213 = vunpack.c.h.b16 %v1117
    %v1214 = vpack.c.b16 %v1150, %v1150
    %v1215 = vpack.c.b16 %v1151, %v1151
    %v1216 = vpack.c.b16 %v1152, %v1152
    %v1217 = vpack.c.b16 %v1153, %v1153
    %v1218 = vpack.c.b16 %v1154, %v1154
    %v1219 = vpack.c.b16 %v1155, %v1155
    %v1220 = vpack.c.b16 %v1156, %v1156
    %v1221 = vpack.c.b16 %v1157, %v1157
    %v1222 = vpack.c.b16 %v1158, %v1158
    %v1223 = vpack.c.b16 %v1159, %v1159
    %v1224 = vpack.c.b16 %v1160, %v1160
    %v1225 = vpack.c.b16 %v1161, %v1161
    %v1226 = vpack.c.b16 %v1162, %v1162
    %v1227 = vpack.c.b16 %v1163, %v1163
    %v1228 = vpack.c.b16 %v1164, %v1164
    %v1229 = vpack.c.b16 %v1165, %v1165
    %v1230 = vpack.c.b16 %v1166, %v1166
    %v1231 = vpack.c.b16 %v1167, %v1167
    %v1232 = vpack.c.b16 %v1168, %v1168
    %v1233 = vpack.c.b16 %v1169, %v1169
    %v1234 = vpack.c.b16 %v1170, %v1170
    %v1235 = vpack.c.b16 %v1171, %v1171
    %v1236 = vpack.c.b16 %v1172, %v1172
    %v1237 = vpack.c.b16 %v1173, %v1173
    %v1238 = vpack.c.b16 %v1174, %v1174
    %v1239 = vpack.c.b16 %v1175, %v1175
    %v1240 = vpack.c.b16 %v1176, %v1176
    %v1241 = vpack.c.b16 %v1177, %v1177
    %v1242 = vpack.c.b16 %v1178, %v1178
    %v1243 = vpack.c.b16 %v1179, %v1179
    %v1244 = vpack.c.b16 %v1180, %v1180
    %v1245 = vpack.c.b16 %v1181, %v1181
    %v1246 = vpack.c.b16 %v1182, %v1182
    %v1247 = vpack.c.b16 %v1183, %v1183
    %v1248 = vpack.c.b16 %v1184, %v1184
    %v1249 = vpack.c.b16 %v1185, %v1185
    %v1250 = vpack.c.b16 %v1186, %v1186
    %v1251 = vpack.c.b16 %v1187, %v1187
    %v1252 = vpack.c.b16 %v1188, %v1188
    %v1253 = vpack.c.b16 %v1189, %v1189
    %v1254 = vpack.c.b16 %v1190, %v1190
    %v1255 = vpack.c.b16 %v1191, %v1191
    %v1256 = vpack.c.b16 %v1192, %v1192
    %v1257 = vpack.c.b16 %v1193, %v1193
    %v1258 = vpack.c.b16 %v1194, %v1194
    %v1259 = vpack.c.b16 %v1195, %v1195
    %v1260 = vpack.c.b16 %v1196, %v1196
    %v1261 = vpack.c.b16 %v1197, %v1197
    %v1262 = vpack.c.b16 %v1198, %v1198
    %v1263 = vpack.c.b16 %v1199, %v1199
    %v1264 = vpack.c.b16 %v1200, %v1200
    %v1265 = vpack.c.b16 %v1201, %v1201
    %v1266 = vpack.c.b16 %v1202, %v1202
    %v1267 = vpack.c.b16 %v1203, %v1203
    %v1268 = vpack.c.b16 %v1204, %v1204
    %v1269 = vpack.c.b16 %v1205, %v1205
    %v1270 = vpack.c.b16 %v1206, %v1206
    %v1271 = vpack.c.b16 %v1207, %v1207
    %v1272 = vpack.c.b16 %v1208, %v1208
    %v1273 = vpack.c.b16 %v1209, %v1209
    %v1274 = vpack.c.b16 %v1210, %v1210
    %v1275 = vpack.c.b16 %v1211, %v1211
    %v1276 = vpack.c.b16 %v1212, %v1212
    %v1277 = vpack.c.b16 %v1213, %v1213
    %1342 = vst [vmem:[%s3] sm:$0xf] %v1214
    %1343 = vst [vmem:[%s3 + $0x4] sm:$0xf] %v1215
    %1344 = vst [vmem:[%s3 + $0x8] sm:$0xf] %v1216
    %1345 = vst [vmem:[%s3 + $0xc] sm:$0xf] %v1217
    %1346 = vst [vmem:[%s3 + $0x10] sm:$0xf] %v1218
    %1347 = vst [vmem:[%s3 + $0x14] sm:$0xf] %v1219
    %1348 = vst [vmem:[%s3 + $0x18] sm:$0xf] %v1220
    %1349 = vst [vmem:[%s3 + $0x1c] sm:$0xf] %v1221
    %1350 = vst [vmem:[%s3 + $0x20] sm:$0xf] %v1222
    %1351 = vst [vmem:[%s3 + $0x24] sm:$0xf] %v1223
    %1352 = vst [vmem:[%s3 + $0x28] sm:$0xf] %v1224
    %1353 = vst [vmem:[%s3 + $0x2c] sm:$0xf] %v1225
    %1354 = vst [vmem:[%s3 + $0x30] sm:$0xf] %v1226
    %1355 = vst [vmem:[%s3 + $0x34] sm:$0xf] %v1227
    %1356 = vst [vmem:[%s3 + $0x38] sm:$0xf] %v1228
    %1357 = vst [vmem:[%s3 + $0x3c] sm:$0xf] %v1229
    %1358 = vst [vmem:[%s3 + $0x40] sm:$0xf] %v1230
    %1359 = vst [vmem:[%s3 + $0x44] sm:$0xf] %v1231
    %1360 = vst [vmem:[%s3 + $0x48] sm:$0xf] %v1232
    %1361 = vst [vmem:[%s3 + $0x4c] sm:$0xf] %v1233
    %1362 = vst [vmem:[%s3 + $0x50] sm:$0xf] %v1234
    %1363 = vst [vmem:[%s3 + $0x54] sm:$0xf] %v1235
    %1364 = vst [vmem:[%s3 + $0x58] sm:$0xf] %v1236
    %1365 = vst [vmem:[%s3 + $0x5c] sm:$0xf] %v1237
    %1366 = vst [vmem:[%s3 + $0x60] sm:$0xf] %v1238
    %1367 = vst [vmem:[%s3 + $0x64] sm:$0xf] %v1239
    %1368 = vst [vmem:[%s3 + $0x68] sm:$0xf] %v1240
    %1369 = vst [vmem:[%s3 + $0x6c] sm:$0xf] %v1241
    %1370 = vst [vmem:[%s3 + $0x70] sm:$0xf] %v1242
    %1371 = vst [vmem:[%s3 + $0x74] sm:$0xf] %v1243
    %1372 = vst [vmem:[%s3 + $0x78] sm:$0xf] %v1244
    %1373 = vst [vmem:[%s3 + $0x7c] sm:$0xf] %v1245
    %1374 = vst [vmem:[%s3 + $0x80] sm:$0xf] %v1246
    %1375 = vst [vmem:[%s3 + $0x84] sm:$0xf] %v1247
    %1376 = vst [vmem:[%s3 + $0x88] sm:$0xf] %v1248
    %1377 = vst [vmem:[%s3 + $0x8c] sm:$0xf] %v1249
    %1378 = vst [vmem:[%s3 + $0x90] sm:$0xf] %v1250
    %1379 = vst [vmem:[%s3 + $0x94] sm:$0xf] %v1251
    %1380 = vst [vmem:[%s3 + $0x98] sm:$0xf] %v1252
    %1381 = vst [vmem:[%s3 + $0x9c] sm:$0xf] %v1253
    %1382 = vst [vmem:[%s3 + $0xa0] sm:$0xf] %v1254
    %1383 = vst [vmem:[%s3 + $0xa4] sm:$0xf] %v1255
    %1384 = vst [vmem:[%s3 + $0xa8] sm:$0xf] %v1256
    %1385 = vst [vmem:[%s3 + $0xac] sm:$0xf] %v1257
    %1386 = vst [vmem:[%s3 + $0xb0] sm:$0xf] %v1258
    %1387 = vst [vmem:[%s3 + $0xb4] sm:$0xf] %v1259
    %1388 = vst [vmem:[%s3 + $0xb8] sm:$0xf] %v1260
    %1389 = vst [vmem:[%s3 + $0xbc] sm:$0xf] %v1261
    %1390 = vst [vmem:[%s3 + $0xc0] sm:$0xf] %v1262
    %1391 = vst [vmem:[%s3 + $0xc4] sm:$0xf] %v1263
    %1392 = vst [vmem:[%s3 + $0xc8] sm:$0xf] %v1264
    %1393 = vst [vmem:[%s3 + $0xcc] sm:$0xf] %v1265
    %1394 = vst [vmem:[%s3 + $0xd0] sm:$0xf] %v1266
    %1395 = vst [vmem:[%s3 + $0xd4] sm:$0xf] %v1267
    %1396 = vst [vmem:[%s3 + $0xd8] sm:$0xf] %v1268
    %1397 = vst [vmem:[%s3 + $0xdc] sm:$0xf] %v1269
    %1398 = vst [vmem:[%s3 + $0xe0] sm:$0xf] %v1270
    %1399 = vst [vmem:[%s3 + $0xe4] sm:$0xf] %v1271
    %1400 = vst [vmem:[%s3 + $0xe8] sm:$0xf] %v1272
    %1401 = vst [vmem:[%s3 + $0xec] sm:$0xf] %v1273
    %1402 = vst [vmem:[%s3 + $0xf0] sm:$0xf] %v1274
    %1403 = vst [vmem:[%s3 + $0xf4] sm:$0xf] %v1275
    %1404 = vst [vmem:[%s3 + $0xf8] sm:$0xf] %v1276
    %1405 = vst [vmem:[%s3 + $0xfc] sm:$0xf] %v1277
  $region21: #{resblock_forward.5} parent=0 // pred_fallthru
    _
  // Predicated region
  $region22: #{resblock_forward.5} parent=0 // pred_check
    _
  $region23: #{resblock_forward.5} parent=0 // pred_check_branch
    %1407 = sbr.rel (0) target = $region25
  $region24: #{resblock_forward.5} parent=0 // pred_region
    _
  $region25: #{resblock_forward.5} parent=0 // pred_fallthru
    _
  // Predicated region
  $region26: #{resblock_forward.5} parent=0 // pred_check
    _
  $region27: #{resblock_forward.5} parent=0 // pred_check_branch
    %1409 = sbr.rel (0) target = $region29
  $region28: #{resblock_forward.5} parent=0 // pred_region
    _
  $region29: #{resblock_forward.5} parent=0 // pred_fallthru
    _

// kernel: resblock_forward.4
$region0: #{resblock_forward.4}
  #allocation0 [shape = 'u32[]', space=smem, size = 0x4, offset = 0x4, fixed_abs, tag = 'smem constant byte address 0x4 - core index']
  #allocation1 [shape = 'u32[144,128]{1,0:T(1,128)}', space=vmem, size = 0x12000, scoped, tag = 'internal scratch']
  #allocation2 [shape = 'f32[512,128]{1,0:T(8,128)}', space=vmem, size = 0x40000, scoped, tag = 'scratch operand']
  %s0 = inlined_call_operand.vmem [shape: bf16[512,128], index: 0, kind: input, shape index: {}]
  %s1 = inlined_call_operand.vmem [shape: bf16[128,128], index: 1, kind: input, shape index: {}]
  %s2 = inlined_call_operand.vmem [shape: f32[1,128], index: 2, kind: input, shape index: {}]
  %s3 = inlined_call_operand.vmem [shape: f32[512,128], index: 3, kind: output, shape index: {}]
  %s4 = sld [smem:[#allocation0]]
  $region30: #{resblock_forward.4} parent=0
    _
  %s6 = ssub.s32 1, %s4
  %s7 = scalar_select 0, %s6, %s4
  // Predicated region
  $region2: #{resblock_forward.4} parent=0 // pred_check
    _
  $region3: #{resblock_forward.4} parent=0 // pred_check_branch
    %9 = sbr.rel (0) target = $region5
  $region4: #{resblock_forward.4} parent=0 // pred_region
    _
  $region5: #{resblock_forward.4} parent=0 // pred_fallthru
    _
  // Predicated region
  $region6: #{resblock_forward.4} parent=0 // pred_check
    _
  $region7: #{resblock_forward.4} parent=0 // pred_check_branch
    %11 = sbr.rel (0) target = $region9
  $region8: #{resblock_forward.4} parent=0 // pred_region
    _
  $region9: #{resblock_forward.4} parent=0 // pred_fallthru
    _
  // Predicated region
  $region10: #{resblock_forward.4} parent=0 // pred_check
    _
  $region11: #{resblock_forward.4} parent=0 // pred_check_branch
    %13 = sbr.rel (0) target = $region13
  $region12: #{resblock_forward.4} parent=0 // pred_region
    _
  $region13: #{resblock_forward.4} parent=0 // pred_fallthru
    _
  %p15 = scmp.eq.s32.totalorder 0, 0
  // Predicated region
  $region14: #{resblock_forward.4} parent=0 // pred_check
    %p16 = pneg %p15
  $region15: #{resblock_forward.4} parent=0 // pred_check_branch
    %18 = sbr.rel (%p16) target = $region17
  $region16: #{resblock_forward.4} parent=0 // pred_region
    %19 = vst [vmem:[#allocation2] sm:$0xff] 0.0
    %20 = vst [vmem:[#allocation2 + $0x8] sm:$0xff] 0.0
    %21 = vst [vmem:[#allocation2 + $0x10] sm:$0xff] 0.0
    %22 = vst [vmem:[#allocation2 + $0x18] sm:$0xff] 0.0
    %23 = vst [vmem:[#allocation2 + $0x20] sm:$0xff] 0.0
    %24 = vst [vmem:[#allocation2 + $0x28] sm:$0xff] 0.0
    %25 = vst [vmem:[#allocation2 + $0x30] sm:$0xff] 0.0
    %26 = vst [vmem:[#allocation2 + $0x38] sm:$0xff] 0.0
    %27 = vst [vmem:[#allocation2 + $0x40] sm:$0xff] 0.0
    %28 = vst [vmem:[#allocation2 + $0x48] sm:$0xff] 0.0
    %29 = vst [vmem:[#allocation2 + $0x50] sm:$0xff] 0.0
    %30 = vst [vmem:[#allocation2 + $0x58] sm:$0xff] 0.0
    %31 = vst [vmem:[#allocation2 + $0x60] sm:$0xff] 0.0
    %32 = vst [vmem:[#allocation2 + $0x68] sm:$0xff] 0.0
    %33 = vst [vmem:[#allocation2 + $0x70] sm:$0xff] 0.0
    %34 = vst [vmem:[#allocation2 + $0x78] sm:$0xff] 0.0
    %35 = vst [vmem:[#allocation2 + $0x80] sm:$0xff] 0.0
    %36 = vst [vmem:[#allocation2 + $0x88] sm:$0xff] 0.0
    %37 = vst [vmem:[#allocation2 + $0x90] sm:$0xff] 0.0
    %38 = vst [vmem:[#allocation2 + $0x98] sm:$0xff] 0.0
    %39 = vst [vmem:[#allocation2 + $0xa0] sm:$0xff] 0.0
    %40 = vst [vmem:[#allocation2 + $0xa8] sm:$0xff] 0.0
    %41 = vst [vmem:[#allocation2 + $0xb0] sm:$0xff] 0.0
    %42 = vst [vmem:[#allocation2 + $0xb8] sm:$0xff] 0.0
    %43 = vst [vmem:[#allocation2 + $0xc0] sm:$0xff] 0.0
    %44 = vst [vmem:[#allocation2 + $0xc8] sm:$0xff] 0.0
    %45 = vst [vmem:[#allocation2 + $0xd0] sm:$0xff] 0.0
    %46 = vst [vmem:[#allocation2 + $0xd8] sm:$0xff] 0.0
    %47 = vst [vmem:[#allocation2 + $0xe0] sm:$0xff] 0.0
    %48 = vst [vmem:[#allocation2 + $0xe8] sm:$0xff] 0.0
    %49 = vst [vmem:[#allocation2 + $0xf0] sm:$0xff] 0.0
    %50 = vst [vmem:[#allocation2 + $0xf8] sm:$0xff] 0.0
    %51 = vst [vmem:[#allocation2 + $0x100] sm:$0xff] 0.0
    %52 = vst [vmem:[#allocation2 + $0x108] sm:$0xff] 0.0
    %53 = vst [vmem:[#allocation2 + $0x110] sm:$0xff] 0.0
    %54 = vst [vmem:[#allocation2 + $0x118] sm:$0xff] 0.0
    %55 = vst [vmem:[#allocation2 + $0x120] sm:$0xff] 0.0
    %56 = vst [vmem:[#allocation2 + $0x128] sm:$0xff] 0.0
    %57 = vst [vmem:[#allocation2 + $0x130] sm:$0xff] 0.0
    %58 = vst [vmem:[#allocation2 + $0x138] sm:$0xff] 0.0
    %59 = vst [vmem:[#allocation2 + $0x140] sm:$0xff] 0.0
    %60 = vst [vmem:[#allocation2 + $0x148] sm:$0xff] 0.0
    %61 = vst [vmem:[#allocation2 + $0x150] sm:$0xff] 0.0
    %62 = vst [vmem:[#allocation2 + $0x158] sm:$0xff] 0.0
    %63 = vst [vmem:[#allocation2 + $0x160] sm:$0xff] 0.0
    %64 = vst [vmem:[#allocation2 + $0x168] sm:$0xff] 0.0
    %65 = vst [vmem:[#allocation2 + $0x170] sm:$0xff] 0.0
    %66 = vst [vmem:[#allocation2 + $0x178] sm:$0xff] 0.0
    %67 = vst [vmem:[#allocation2 + $0x180] sm:$0xff] 0.0
    %68 = vst [vmem:[#allocation2 + $0x188] sm:$0xff] 0.0
    %69 = vst [vmem:[#allocation2 + $0x190] sm:$0xff] 0.0
    %70 = vst [vmem:[#allocation2 + $0x198] sm:$0xff] 0.0
    %71 = vst [vmem:[#allocation2 + $0x1a0] sm:$0xff] 0.0
    %72 = vst [vmem:[#allocation2 + $0x1a8] sm:$0xff] 0.0
    %73 = vst [vmem:[#allocation2 + $0x1b0] sm:$0xff] 0.0
    %74 = vst [vmem:[#allocation2 + $0x1b8] sm:$0xff] 0.0
    %75 = vst [vmem:[#allocation2 + $0x1c0] sm:$0xff] 0.0
    %76 = vst [vmem:[#allocation2 + $0x1c8] sm:$0xff] 0.0
    %77 = vst [vmem:[#allocation2 + $0x1d0] sm:$0xff] 0.0
    %78 = vst [vmem:[#allocation2 + $0x1d8] sm:$0xff] 0.0
    %79 = vst [vmem:[#allocation2 + $0x1e0] sm:$0xff] 0.0
    %80 = vst [vmem:[#allocation2 + $0x1e8] sm:$0xff] 0.0
    %81 = vst [vmem:[#allocation2 + $0x1f0] sm:$0xff] 0.0
    %82 = vst [vmem:[#allocation2 + $0x1f8] sm:$0xff] 0.0
  $region17: #{resblock_forward.4} parent=0 // pred_fallthru
    _
  %v83 = vld [vmem:[#allocation2] sm:$0xff]
  %v84 = vld [vmem:[#allocation2 + $0x8] sm:$0xff]
  %v85 = vld [vmem:[#allocation2 + $0x10] sm:$0xff]
  %v86 = vld [vmem:[#allocation2 + $0x18] sm:$0xff]
  %v87 = vld [vmem:[#allocation2 + $0x20] sm:$0xff]
  %v88 = vld [vmem:[#allocation2 + $0x28] sm:$0xff]
  %v89 = vld [vmem:[#allocation2 + $0x30] sm:$0xff]
  %v90 = vld [vmem:[#allocation2 + $0x38] sm:$0xff]
  %v91 = vld [vmem:[#allocation2 + $0x40] sm:$0xff]
  %v92 = vld [vmem:[#allocation2 + $0x48] sm:$0xff]
  %v93 = vld [vmem:[#allocation2 + $0x50] sm:$0xff]
  %v94 = vld [vmem:[#allocation2 + $0x58] sm:$0xff]
  %v95 = vld [vmem:[#allocation2 + $0x60] sm:$0xff]
  %v96 = vld [vmem:[#allocation2 + $0x68] sm:$0xff]
  %v97 = vld [vmem:[#allocation2 + $0x70] sm:$0xff]
  %v98 = vld [vmem:[#allocation2 + $0x78] sm:$0xff]
  %v99 = vld [vmem:[#allocation2 + $0x80] sm:$0xff]
  %v100 = vld [vmem:[#allocation2 + $0x88] sm:$0xff]
  %v101 = vld [vmem:[#allocation2 + $0x90] sm:$0xff]
  %v102 = vld [vmem:[#allocation2 + $0x98] sm:$0xff]
  %v103 = vld [vmem:[#allocation2 + $0xa0] sm:$0xff]
  %v104 = vld [vmem:[#allocation2 + $0xa8] sm:$0xff]
  %v105 = vld [vmem:[#allocation2 + $0xb0] sm:$0xff]
  %v106 = vld [vmem:[#allocation2 + $0xb8] sm:$0xff]
  %v107 = vld [vmem:[#allocation2 + $0xc0] sm:$0xff]
  %v108 = vld [vmem:[#allocation2 + $0xc8] sm:$0xff]
  %v109 = vld [vmem:[#allocation2 + $0xd0] sm:$0xff]
  %v110 = vld [vmem:[#allocation2 + $0xd8] sm:$0xff]
  %v111 = vld [vmem:[#allocation2 + $0xe0] sm:$0xff]
  %v112 = vld [vmem:[#allocation2 + $0xe8] sm:$0xff]
  %v113 = vld [vmem:[#allocation2 + $0xf0] sm:$0xff]
  %v114 = vld [vmem:[#allocation2 + $0xf8] sm:$0xff]
  %v115 = vld [vmem:[#allocation2 + $0x100] sm:$0xff]
  %v116 = vld [vmem:[#allocation2 + $0x108] sm:$0xff]
  %v117 = vld [vmem:[#allocation2 + $0x110] sm:$0xff]
  %v118 = vld [vmem:[#allocation2 + $0x118] sm:$0xff]
  %v119 = vld [vmem:[#allocation2 + $0x120] sm:$0xff]
  %v120 = vld [vmem:[#allocation2 + $0x128] sm:$0xff]
  %v121 = vld [vmem:[#allocation2 + $0x130] sm:$0xff]
  %v122 = vld [vmem:[#allocation2 + $0x138] sm:$0xff]
  %v123 = vld [vmem:[#allocation2 + $0x140] sm:$0xff]
  %v124 = vld [vmem:[#allocation2 + $0x148] sm:$0xff]
  %v125 = vld [vmem:[#allocation2 + $0x150] sm:$0xff]
  %v126 = vld [vmem:[#allocation2 + $0x158] sm:$0xff]
  %v127 = vld [vmem:[#allocation2 + $0x160] sm:$0xff]
  %v128 = vld [vmem:[#allocation2 + $0x168] sm:$0xff]
  %v129 = vld [vmem:[#allocation2 + $0x170] sm:$0xff]
  %v130 = vld [vmem:[#allocation2 + $0x178] sm:$0xff]
  %v131 = vld [vmem:[#allocation2 + $0x180] sm:$0xff]
  %v132 = vld [vmem:[#allocation2 + $0x188] sm:$0xff]
  %v133 = vld [vmem:[#allocation2 + $0x190] sm:$0xff]
  %v134 = vld [vmem:[#allocation2 + $0x198] sm:$0xff]
  %v135 = vld [vmem:[#allocation2 + $0x1a0] sm:$0xff]
  %v136 = vld [vmem:[#allocation2 + $0x1a8] sm:$0xff]
  %v137 = vld [vmem:[#allocation2 + $0x1b0] sm:$0xff]
  %v138 = vld [vmem:[#allocation2 + $0x1b8] sm:$0xff]
  %v139 = vld [vmem:[#allocation2 + $0x1c0] sm:$0xff]
  %v140 = vld [vmem:[#allocation2 + $0x1c8] sm:$0xff]
  %v141 = vld [vmem:[#allocation2 + $0x1d0] sm:$0xff]
  %v142 = vld [vmem:[#allocation2 + $0x1d8] sm:$0xff]
  %v143 = vld [vmem:[#allocation2 + $0x1e0] sm:$0xff]
  %v144 = vld [vmem:[#allocation2 + $0x1e8] sm:$0xff]
  %v145 = vld [vmem:[#allocation2 + $0x1f0] sm:$0xff]
  %v146 = vld [vmem:[#allocation2 + $0x1f8] sm:$0xff]
  %v147 = vld [vmem:[%s0] sm:$0xf]
  %v148 = vld [vmem:[%s0 + $0x4] sm:$0xf]
  %v149 = vld [vmem:[%s0 + $0x8] sm:$0xf]
  %v150 = vld [vmem:[%s0 + $0xc] sm:$0xf]
  %v151 = vld [vmem:[%s0 + $0x10] sm:$0xf]
  %v152 = vld [vmem:[%s0 + $0x14] sm:$0xf]
  %v153 = vld [vmem:[%s0 + $0x18] sm:$0xf]
  %v154 = vld [vmem:[%s0 + $0x1c] sm:$0xf]
  %v155 = vld [vmem:[%s0 + $0x20] sm:$0xf]
  %v156 = vld [vmem:[%s0 + $0x24] sm:$0xf]
  %v157 = vld [vmem:[%s0 + $0x28] sm:$0xf]
  %v158 = vld [vmem:[%s0 + $0x2c] sm:$0xf]
  %v159 = vld [vmem:[%s0 + $0x30] sm:$0xf]
  %v160 = vld [vmem:[%s0 + $0x34] sm:$0xf]
  %v161 = vld [vmem:[%s0 + $0x38] sm:$0xf]
  %v162 = vld [vmem:[%s0 + $0x3c] sm:$0xf]
  %v163 = vld [vmem:[%s0 + $0x40] sm:$0xf]
  %v164 = vld [vmem:[%s0 + $0x44] sm:$0xf]
  %v165 = vld [vmem:[%s0 + $0x48] sm:$0xf]
  %v166 = vld [vmem:[%s0 + $0x4c] sm:$0xf]
  %v167 = vld [vmem:[%s0 + $0x50] sm:$0xf]
  %v168 = vld [vmem:[%s0 + $0x54] sm:$0xf]
  %v169 = vld [vmem:[%s0 + $0x58] sm:$0xf]
  %v170 = vld [vmem:[%s0 + $0x5c] sm:$0xf]
  %v171 = vld [vmem:[%s0 + $0x60] sm:$0xf]
  %v172 = vld [vmem:[%s0 + $0x64] sm:$0xf]
  %v173 = vld [vmem:[%s0 + $0x68] sm:$0xf]
  %v174 = vld [vmem:[%s0 + $0x6c] sm:$0xf]
  %v175 = vld [vmem:[%s0 + $0x70] sm:$0xf]
  %v176 = vld [vmem:[%s0 + $0x74] sm:$0xf]
  %v177 = vld [vmem:[%s0 + $0x78] sm:$0xf]
  %v178 = vld [vmem:[%s0 + $0x7c] sm:$0xf]
  %v179 = vld [vmem:[%s0 + $0x80] sm:$0xf]
  %v180 = vld [vmem:[%s0 + $0x84] sm:$0xf]
  %v181 = vld [vmem:[%s0 + $0x88] sm:$0xf]
  %v182 = vld [vmem:[%s0 + $0x8c] sm:$0xf]
  %v183 = vld [vmem:[%s0 + $0x90] sm:$0xf]
  %v184 = vld [vmem:[%s0 + $0x94] sm:$0xf]
  %v185 = vld [vmem:[%s0 + $0x98] sm:$0xf]
  %v186 = vld [vmem:[%s0 + $0x9c] sm:$0xf]
  %v187 = vld [vmem:[%s0 + $0xa0] sm:$0xf]
  %v188 = vld [vmem:[%s0 + $0xa4] sm:$0xf]
  %v189 = vld [vmem:[%s0 + $0xa8] sm:$0xf]
  %v190 = vld [vmem:[%s0 + $0xac] sm:$0xf]
  %v191 = vld [vmem:[%s0 + $0xb0] sm:$0xf]
  %v192 = vld [vmem:[%s0 + $0xb4] sm:$0xf]
  %v193 = vld [vmem:[%s0 + $0xb8] sm:$0xf]
  %v194 = vld [vmem:[%s0 + $0xbc] sm:$0xf]
  %v195 = vld [vmem:[%s0 + $0xc0] sm:$0xf]
  %v196 = vld [vmem:[%s0 + $0xc4] sm:$0xf]
  %v197 = vld [vmem:[%s0 + $0xc8] sm:$0xf]
  %v198 = vld [vmem:[%s0 + $0xcc] sm:$0xf]
  %v199 = vld [vmem:[%s0 + $0xd0] sm:$0xf]
  %v200 = vld [vmem:[%s0 + $0xd4] sm:$0xf]
  %v201 = vld [vmem:[%s0 + $0xd8] sm:$0xf]
  %v202 = vld [vmem:[%s0 + $0xdc] sm:$0xf]
  %v203 = vld [vmem:[%s0 + $0xe0] sm:$0xf]
  %v204 = vld [vmem:[%s0 + $0xe4] sm:$0xf]
  %v205 = vld [vmem:[%s0 + $0xe8] sm:$0xf]
  %v206 = vld [vmem:[%s0 + $0xec] sm:$0xf]
  %v207 = vld [vmem:[%s0 + $0xf0] sm:$0xf]
  %v208 = vld [vmem:[%s0 + $0xf4] sm:$0xf]
  %v209 = vld [vmem:[%s0 + $0xf8] sm:$0xf]
  %v210 = vld [vmem:[%s0 + $0xfc] sm:$0xf]
  %v211 = vld [vmem:[%s1] sm:$0xf]
  %v212 = vld [vmem:[%s1 + $0x4] sm:$0xf]
  %v213 = vld [vmem:[%s1 + $0x8] sm:$0xf]
  %v214 = vld [vmem:[%s1 + $0xc] sm:$0xf]
  %v215 = vld [vmem:[%s1 + $0x10] sm:$0xf]
  %v216 = vld [vmem:[%s1 + $0x14] sm:$0xf]
  %v217 = vld [vmem:[%s1 + $0x18] sm:$0xf]
  %v218 = vld [vmem:[%s1 + $0x1c] sm:$0xf]
  %v219 = vld [vmem:[%s1 + $0x20] sm:$0xf]
  %v220 = vld [vmem:[%s1 + $0x24] sm:$0xf]
  %v221 = vld [vmem:[%s1 + $0x28] sm:$0xf]
  %v222 = vld [vmem:[%s1 + $0x2c] sm:$0xf]
  %v223 = vld [vmem:[%s1 + $0x30] sm:$0xf]
  %v224 = vld [vmem:[%s1 + $0x34] sm:$0xf]
  %v225 = vld [vmem:[%s1 + $0x38] sm:$0xf]
  %v226 = vld [vmem:[%s1 + $0x3c] sm:$0xf]
  %v291 = vunpack.c.l.b16 %v147
  %v292 = vunpack.c.l.b16 %v148
  %v293 = vunpack.c.l.b16 %v149
  %v294 = vunpack.c.l.b16 %v150
  %v295 = vunpack.c.l.b16 %v151
  %v296 = vunpack.c.l.b16 %v152
  %v297 = vunpack.c.l.b16 %v153
  %v298 = vunpack.c.l.b16 %v154
  %v299 = vunpack.c.l.b16 %v155
  %v300 = vunpack.c.l.b16 %v156
  %v301 = vunpack.c.l.b16 %v157
  %v302 = vunpack.c.l.b16 %v158
  %v303 = vunpack.c.l.b16 %v159
  %v304 = vunpack.c.l.b16 %v160
  %v305 = vunpack.c.l.b16 %v161
  %v306 = vunpack.c.l.b16 %v162
  %v307 = vunpack.c.l.b16 %v163
  %v308 = vunpack.c.l.b16 %v164
  %v309 = vunpack.c.l.b16 %v165
  %v310 = vunpack.c.l.b16 %v166
  %v311 = vunpack.c.l.b16 %v167
  %v312 = vunpack.c.l.b16 %v168
  %v313 = vunpack.c.l.b16 %v169
  %v314 = vunpack.c.l.b16 %v170
  %v315 = vunpack.c.l.b16 %v171
  %v316 = vunpack.c.l.b16 %v172
  %v317 = vunpack.c.l.b16 %v173
  %v318 = vunpack.c.l.b16 %v174
  %v319 = vunpack.c.l.b16 %v175
  %v320 = vunpack.c.l.b16 %v176
  %v321 = vunpack.c.l.b16 %v177
  %v322 = vunpack.c.l.b16 %v178
  %v323 = vunpack.c.l.b16 %v179
  %v324 = vunpack.c.l.b16 %v180
  %v325 = vunpack.c.l.b16 %v181
  %v326 = vunpack.c.l.b16 %v182
  %v327 = vunpack.c.l.b16 %v183
  %v328 = vunpack.c.l.b16 %v184
  %v329 = vunpack.c.l.b16 %v185
  %v330 = vunpack.c.l.b16 %v186
  %v331 = vunpack.c.l.b16 %v187
  %v332 = vunpack.c.l.b16 %v188
  %v333 = vunpack.c.l.b16 %v189
  %v334 = vunpack.c.l.b16 %v190
  %v335 = vunpack.c.l.b16 %v191
  %v336 = vunpack.c.l.b16 %v192
  %v337 = vunpack.c.l.b16 %v193
  %v338 = vunpack.c.l.b16 %v194
  %v339 = vunpack.c.l.b16 %v195
  %v340 = vunpack.c.l.b16 %v196
  %v341 = vunpack.c.l.b16 %v197
  %v342 = vunpack.c.l.b16 %v198
  %v343 = vunpack.c.l.b16 %v199
  %v344 = vunpack.c.l.b16 %v200
  %v345 = vunpack.c.l.b16 %v201
  %v346 = vunpack.c.l.b16 %v202
  %v347 = vunpack.c.l.b16 %v203
  %v348 = vunpack.c.l.b16 %v204
  %v349 = vunpack.c.l.b16 %v205
  %v350 = vunpack.c.l.b16 %v206
  %v351 = vunpack.c.l.b16 %v207
  %v352 = vunpack.c.l.b16 %v208
  %v353 = vunpack.c.l.b16 %v209
  %v354 = vunpack.c.l.b16 %v210
  %v355 = vpack.c.b16 %v292, %v291
  %v356 = vpack.c.b16 %v294, %v293
  %v357 = vpack.c.b16 %v296, %v295
  %v358 = vpack.c.b16 %v298, %v297
  %v359 = vpack.c.b16 %v300, %v299
  %v360 = vpack.c.b16 %v302, %v301
  %v361 = vpack.c.b16 %v304, %v303
  %v362 = vpack.c.b16 %v306, %v305
  %v363 = vpack.c.b16 %v308, %v307
  %v364 = vpack.c.b16 %v310, %v309
  %v365 = vpack.c.b16 %v312, %v311
  %v366 = vpack.c.b16 %v314, %v313
  %v367 = vpack.c.b16 %v316, %v315
  %v368 = vpack.c.b16 %v318, %v317
  %v369 = vpack.c.b16 %v320, %v319
  %v370 = vpack.c.b16 %v322, %v321
  %v371 = vpack.c.b16 %v324, %v323
  %v372 = vpack.c.b16 %v326, %v325
  %v373 = vpack.c.b16 %v328, %v327
  %v374 = vpack.c.b16 %v330, %v329
  %v375 = vpack.c.b16 %v332, %v331
  %v376 = vpack.c.b16 %v334, %v333
  %v377 = vpack.c.b16 %v336, %v335
  %v378 = vpack.c.b16 %v338, %v337
  %v379 = vpack.c.b16 %v340, %v339
  %v380 = vpack.c.b16 %v342, %v341
  %v381 = vpack.c.b16 %v344, %v343
  %v382 = vpack.c.b16 %v346, %v345
  %v383 = vpack.c.b16 %v348, %v347
  %v384 = vpack.c.b16 %v350, %v349
  %v385 = vpack.c.b16 %v352, %v351
  %v386 = vpack.c.b16 %v354, %v353
  %v435 = vunpack.c.l.b16 %v211
  %v436 = vunpack.c.l.b16 %v212
  %v437 = vunpack.c.l.b16 %v213
  %v438 = vunpack.c.l.b16 %v214
  %v439 = vunpack.c.l.b16 %v215
  %v440 = vunpack.c.l.b16 %v216
  %v441 = vunpack.c.l.b16 %v217
  %v442 = vunpack.c.l.b16 %v218
  %v443 = vunpack.c.l.b16 %v219
  %v444 = vunpack.c.l.b16 %v220
  %v445 = vunpack.c.l.b16 %v221
  %v446 = vunpack.c.l.b16 %v222
  %v447 = vunpack.c.l.b16 %v223
  %v448 = vunpack.c.l.b16 %v224
  %v449 = vunpack.c.l.b16 %v225
  %v450 = vunpack.c.l.b16 %v226
  %v451 = vpack.c.b16 %v436, %v435
  %v452 = vpack.c.b16 %v438, %v437
  %v453 = vpack.c.b16 %v440, %v439
  %v454 = vpack.c.b16 %v442, %v441
  %v455 = vpack.c.b16 %v444, %v443
  %v456 = vpack.c.b16 %v446, %v445
  %v457 = vpack.c.b16 %v448, %v447
  %v458 = vpack.c.b16 %v450, %v449
  %467 = vmatprep.subr.bf16.mxu0 0
  %468 = vmatpush1.bf16.msra.mxu0 %v451
  %469 = vmatprep.subr.bf16.mxu0 0
  %470 = vmatpush1.bf16.msra.mxu0 %v452
  %471 = vmatprep.subr.bf16.mxu0 0
  %472 = vmatpush1.bf16.msra.mxu0 %v453
  %473 = vmatprep.subr.bf16.mxu0 0
  %474 = vmatpush1.bf16.msra.mxu0 %v454
  %475 = vmatprep.subr.bf16.mxu0 0
  %476 = vmatpush1.bf16.msra.mxu0 %v455
  %477 = vmatprep.subr.bf16.mxu0 0
  %478 = vmatpush1.bf16.msra.mxu0 %v456
  %479 = vmatprep.subr.bf16.mxu0 0
  %480 = vmatpush1.bf16.msra.mxu0 %v457
  %481 = vmatprep.subr.bf16.mxu0 0
  %482 = vmatpush1.bf16.msra.mxu0 %v458
  %483 = vmatprep.subr.bf16.mxu0 0
  %484 = vmatpush1.bf16.msra.mxu0 0
  %485 = vmatprep.subr.bf16.mxu0 0
  %486 = vmatpush1.bf16.msra.mxu0 0
  %487 = vmatprep.subr.bf16.mxu0 0
  %488 = vmatpush1.bf16.msra.mxu0 0
  %489 = vmatprep.subr.bf16.mxu0 0
  %490 = vmatpush1.bf16.msra.mxu0 0
  %491 = vmatprep.subr.bf16.mxu0 0
  %492 = vmatpush1.bf16.msra.mxu0 0
  %493 = vmatprep.subr.bf16.mxu0 0
  %494 = vmatpush1.bf16.msra.mxu0 0
  %495 = vmatprep.subr.bf16.mxu0 0
  %496 = vmatpush1.bf16.msra.mxu0 0
  %497 = vmatprep.subr.bf16.mxu0 0
  %498 = vmatpush1.bf16.msra.mxu0 0
  %499 = vmatprep.mubr.bf16.mxu0 0
  %500 = vmatmul.mubr.bf16.gmra.mrb[0].mxu0 %v355
  %v501 = vpop.f32.mrb[0].mxu0
  %v502 = vadd.f32 0.0, %v501
  %v503 = vpop.f32.mrb[0].mxu0
  %v504 = vpop.f32.mrb[0].mxu0
  %v505 = vadd.f32 0.0, %v504
  %v506 = vpop.f32.mrb[0].mxu0
  %507 = vmatprep.mubr.bf16.mxu0 0
  %508 = vmatmul.mubr.bf16.gmra.mrb[0].mxu0 %v356
  %v509 = vpop.f32.mrb[0].mxu0
  %v510 = vadd.f32 0.0, %v509
  %v511 = vpop.f32.mrb[0].mxu0
  %v512 = vpop.f32.mrb[0].mxu0
  %v513 = vadd.f32 0.0, %v512
  %v514 = vpop.f32.mrb[0].mxu0
  %515 = vmatprep.mubr.bf16.mxu0 0
  %516 = vmatmul.mubr.bf16.gmra.mrb[0].mxu0 %v357
  %v517 = vpop.f32.mrb[0].mxu0
  %v518 = vadd.f32 0.0, %v517
  %v519 = vpop.f32.mrb[0].mxu0
  %v520 = vpop.f32.mrb[0].mxu0
  %v521 = vadd.f32 0.0, %v520
  %v522 = vpop.f32.mrb[0].mxu0
  %523 = vmatprep.mubr.bf16.mxu0 0
  %524 = vmatmul.mubr.bf16.gmra.mrb[0].mxu0 %v358
  %v525 = vpop.f32.mrb[0].mxu0
  %v526 = vadd.f32 0.0, %v525
  %v527 = vpop.f32.mrb[0].mxu0
  %v528 = vpop.f32.mrb[0].mxu0
  %v529 = vadd.f32 0.0, %v528
  %v530 = vpop.f32.mrb[0].mxu0
  %531 = vmatprep.mubr.bf16.mxu0 0
  %532 = vmatmul.mubr.bf16.gmra.mrb[0].mxu0 %v359
  %v533 = vpop.f32.mrb[0].mxu0
  %v534 = vadd.f32 0.0, %v533
  %v535 = vpop.f32.mrb[0].mxu0
  %v536 = vpop.f32.mrb[0].mxu0
  %v537 = vadd.f32 0.0, %v536
  %v538 = vpop.f32.mrb[0].mxu0
  %539 = vmatprep.mubr.bf16.mxu0 0
  %540 = vmatmul.mubr.bf16.gmra.mrb[0].mxu0 %v360
  %v541 = vpop.f32.mrb[0].mxu0
  %v542 = vadd.f32 0.0, %v541
  %v543 = vpop.f32.mrb[0].mxu0
  %v544 = vpop.f32.mrb[0].mxu0
  %v545 = vadd.f32 0.0, %v544
  %v546 = vpop.f32.mrb[0].mxu0
  %547 = vmatprep.mubr.bf16.mxu0 0
  %548 = vmatmul.mubr.bf16.gmra.mrb[0].mxu0 %v361
  %v549 = vpop.f32.mrb[0].mxu0
  %v550 = vadd.f32 0.0, %v549
  %v551 = vpop.f32.mrb[0].mxu0
  %v552 = vpop.f32.mrb[0].mxu0
  %v553 = vadd.f32 0.0, %v552
  %v554 = vpop.f32.mrb[0].mxu0
  %555 = vmatprep.mubr.bf16.mxu0 0
  %556 = vmatmul.mubr.bf16.gmra.mrb[0].mxu0 %v362
  %v557 = vpop.f32.mrb[0].mxu0
  %v558 = vadd.f32 0.0, %v557
  %v559 = vpop.f32.mrb[0].mxu0
  %v560 = vpop.f32.mrb[0].mxu0
  %v561 = vadd.f32 0.0, %v560
  %v562 = vpop.f32.mrb[0].mxu0
  %563 = vmatprep.mubr.bf16.mxu0 0
  %564 = vmatmul.mubr.bf16.gmra.mrb[0].mxu0 %v363
  %v565 = vpop.f32.mrb[0].mxu0
  %v566 = vadd.f32 0.0, %v565
  %v567 = vpop.f32.mrb[0].mxu0
  %v568 = vpop.f32.mrb[0].mxu0
  %v569 = vadd.f32 0.0, %v568
  %v570 = vpop.f32.mrb[0].mxu0
  %571 = vmatprep.mubr.bf16.mxu0 0
  %572 = vmatmul.mubr.bf16.gmra.mrb[0].mxu0 %v364
  %v573 = vpop.f32.mrb[0].mxu0
  %v574 = vadd.f32 0.0, %v573
  %v575 = vpop.f32.mrb[0].mxu0
  %v576 = vpop.f32.mrb[0].mxu0
  %v577 = vadd.f32 0.0, %v576
  %v578 = vpop.f32.mrb[0].mxu0
  %579 = vmatprep.mubr.bf16.mxu0 0
  %580 = vmatmul.mubr.bf16.gmra.mrb[0].mxu0 %v365
  %v581 = vpop.f32.mrb[0].mxu0
  %v582 = vadd.f32 0.0, %v581
  %v583 = vpop.f32.mrb[0].mxu0
  %v584 = vpop.f32.mrb[0].mxu0
  %v585 = vadd.f32 0.0, %v584
  %v586 = vpop.f32.mrb[0].mxu0
  %587 = vmatprep.mubr.bf16.mxu0 0
  %588 = vmatmul.mubr.bf16.gmra.mrb[0].mxu0 %v366
  %v589 = vpop.f32.mrb[0].mxu0
  %v590 = vadd.f32 0.0, %v589
  %v591 = vpop.f32.mrb[0].mxu0
  %v592 = vpop.f32.mrb[0].mxu0
  %v593 = vadd.f32 0.0, %v592
  %v594 = vpop.f32.mrb[0].mxu0
  %595 = vmatprep.mubr.bf16.mxu0 0
  %596 = vmatmul.mubr.bf16.gmra.mrb[0].mxu0 %v367
  %v597 = vpop.f32.mrb[0].mxu0
  %v598 = vadd.f32 0.0, %v597
  %v599 = vpop.f32.mrb[0].mxu0
  %v600 = vpop.f32.mrb[0].mxu0
  %v601 = vadd.f32 0.0, %v600
  %v602 = vpop.f32.mrb[0].mxu0
  %603 = vmatprep.mubr.bf16.mxu0 0
  %604 = vmatmul.mubr.bf16.gmra.mrb[0].mxu0 %v368
  %v605 = vpop.f32.mrb[0].mxu0
  %v606 = vadd.f32 0.0, %v605
  %v607 = vpop.f32.mrb[0].mxu0
  %v608 = vpop.f32.mrb[0].mxu0
  %v609 = vadd.f32 0.0, %v608
  %v610 = vpop.f32.mrb[0].mxu0
  %611 = vmatprep.mubr.bf16.mxu0 0
  %612 = vmatmul.mubr.bf16.gmra.mrb[0].mxu0 %v369
  %v613 = vpop.f32.mrb[0].mxu0
  %v614 = vadd.f32 0.0, %v613
  %v615 = vpop.f32.mrb[0].mxu0
  %v616 = vpop.f32.mrb[0].mxu0
  %v617 = vadd.f32 0.0, %v616
  %v618 = vpop.f32.mrb[0].mxu0
  %619 = vmatprep.mubr.bf16.mxu0 0
  %620 = vmatmul.mubr.bf16.gmra.mrb[0].mxu0 %v370
  %v621 = vpop.f32.mrb[0].mxu0
  %v622 = vadd.f32 0.0, %v621
  %v623 = vpop.f32.mrb[0].mxu0
  %v624 = vpop.f32.mrb[0].mxu0
  %v625 = vadd.f32 0.0, %v624
  %v626 = vpop.f32.mrb[0].mxu0
  %627 = vmatprep.mubr.bf16.mxu0 0
  %628 = vmatmul.mubr.bf16.gmra.mrb[0].mxu0 %v371
  %v629 = vpop.f32.mrb[0].mxu0
  %v630 = vadd.f32 0.0, %v629
  %v631 = vpop.f32.mrb[0].mxu0
  %v632 = vpop.f32.mrb[0].mxu0
  %v633 = vadd.f32 0.0, %v632
  %v634 = vpop.f32.mrb[0].mxu0
  %635 = vmatprep.mubr.bf16.mxu0 0
  %636 = vmatmul.mubr.bf16.gmra.mrb[0].mxu0 %v372
  %v637 = vpop.f32.mrb[0].mxu0
  %v638 = vadd.f32 0.0, %v637
  %v639 = vpop.f32.mrb[0].mxu0
  %v640 = vpop.f32.mrb[0].mxu0
  %v641 = vadd.f32 0.0, %v640
  %v642 = vpop.f32.mrb[0].mxu0
  %643 = vmatprep.mubr.bf16.mxu0 0
  %644 = vmatmul.mubr.bf16.gmra.mrb[0].mxu0 %v373
  %v645 = vpop.f32.mrb[0].mxu0
  %v646 = vadd.f32 0.0, %v645
  %v647 = vpop.f32.mrb[0].mxu0
  %v648 = vpop.f32.mrb[0].mxu0
  %v649 = vadd.f32 0.0, %v648
  %v650 = vpop.f32.mrb[0].mxu0
  %651 = vmatprep.mubr.bf16.mxu0 0
  %652 = vmatmul.mubr.bf16.gmra.mrb[0].mxu0 %v374
  %v653 = vpop.f32.mrb[0].mxu0
  %v654 = vadd.f32 0.0, %v653
  %v655 = vpop.f32.mrb[0].mxu0
  %v656 = vpop.f32.mrb[0].mxu0
  %v657 = vadd.f32 0.0, %v656
  %v658 = vpop.f32.mrb[0].mxu0
  %659 = vmatprep.mubr.bf16.mxu0 0
  %660 = vmatmul.mubr.bf16.gmra.mrb[0].mxu0 %v375
  %v661 = vpop.f32.mrb[0].mxu0
  %v662 = vadd.f32 0.0, %v661
  %v663 = vpop.f32.mrb[0].mxu0
  %v664 = vpop.f32.mrb[0].mxu0
  %v665 = vadd.f32 0.0, %v664
  %v666 = vpop.f32.mrb[0].mxu0
  %667 = vmatprep.mubr.bf16.mxu0 0
  %668 = vmatmul.mubr.bf16.gmra.mrb[0].mxu0 %v376
  %v669 = vpop.f32.mrb[0].mxu0
  %v670 = vadd.f32 0.0, %v669
  %v671 = vpop.f32.mrb[0].mxu0
  %v672 = vpop.f32.mrb[0].mxu0
  %v673 = vadd.f32 0.0, %v672
  %v674 = vpop.f32.mrb[0].mxu0
  %675 = vmatprep.mubr.bf16.mxu0 0
  %676 = vmatmul.mubr.bf16.gmra.mrb[0].mxu0 %v377
  %v677 = vpop.f32.mrb[0].mxu0
  %v678 = vadd.f32 0.0, %v677
  %v679 = vpop.f32.mrb[0].mxu0
  %v680 = vpop.f32.mrb[0].mxu0
  %v681 = vadd.f32 0.0, %v680
  %v682 = vpop.f32.mrb[0].mxu0
  %683 = vmatprep.mubr.bf16.mxu0 0
  %684 = vmatmul.mubr.bf16.gmra.mrb[0].mxu0 %v378
  %v685 = vpop.f32.mrb[0].mxu0
  %v686 = vadd.f32 0.0, %v685
  %v687 = vpop.f32.mrb[0].mxu0
  %v688 = vpop.f32.mrb[0].mxu0
  %v689 = vadd.f32 0.0, %v688
  %v690 = vpop.f32.mrb[0].mxu0
  %691 = vmatprep.mubr.bf16.mxu0 0
  %692 = vmatmul.mubr.bf16.gmra.mrb[0].mxu0 %v379
  %v693 = vpop.f32.mrb[0].mxu0
  %v694 = vadd.f32 0.0, %v693
  %v695 = vpop.f32.mrb[0].mxu0
  %v696 = vpop.f32.mrb[0].mxu0
  %v697 = vadd.f32 0.0, %v696
  %v698 = vpop.f32.mrb[0].mxu0
  %699 = vmatprep.mubr.bf16.mxu0 0
  %700 = vmatmul.mubr.bf16.gmra.mrb[0].mxu0 %v380
  %v701 = vpop.f32.mrb[0].mxu0
  %v702 = vadd.f32 0.0, %v701
  %v703 = vpop.f32.mrb[0].mxu0
  %v704 = vpop.f32.mrb[0].mxu0
  %v705 = vadd.f32 0.0, %v704
  %v706 = vpop.f32.mrb[0].mxu0
  %707 = vmatprep.mubr.bf16.mxu0 0
  %708 = vmatmul.mubr.bf16.gmra.mrb[0].mxu0 %v381
  %v709 = vpop.f32.mrb[0].mxu0
  %v710 = vadd.f32 0.0, %v709
  %v711 = vpop.f32.mrb[0].mxu0
  %v712 = vpop.f32.mrb[0].mxu0
  %v713 = vadd.f32 0.0, %v712
  %v714 = vpop.f32.mrb[0].mxu0
  %715 = vmatprep.mubr.bf16.mxu0 0
  %716 = vmatmul.mubr.bf16.gmra.mrb[0].mxu0 %v382
  %v717 = vpop.f32.mrb[0].mxu0
  %v718 = vadd.f32 0.0, %v717
  %v719 = vpop.f32.mrb[0].mxu0
  %v720 = vpop.f32.mrb[0].mxu0
  %v721 = vadd.f32 0.0, %v720
  %v722 = vpop.f32.mrb[0].mxu0
  %723 = vmatprep.mubr.bf16.mxu0 0
  %724 = vmatmul.mubr.bf16.gmra.mrb[0].mxu0 %v383
  %v725 = vpop.f32.mrb[0].mxu0
  %v726 = vadd.f32 0.0, %v725
  %v727 = vpop.f32.mrb[0].mxu0
  %v728 = vpop.f32.mrb[0].mxu0
  %v729 = vadd.f32 0.0, %v728
  %v730 = vpop.f32.mrb[0].mxu0
  %731 = vmatprep.mubr.bf16.mxu0 0
  %732 = vmatmul.mubr.bf16.gmra.mrb[0].mxu0 %v384
  %v733 = vpop.f32.mrb[0].mxu0
  %v734 = vadd.f32 0.0, %v733
  %v735 = vpop.f32.mrb[0].mxu0
  %v736 = vpop.f32.mrb[0].mxu0
  %v737 = vadd.f32 0.0, %v736
  %v738 = vpop.f32.mrb[0].mxu0
  %739 = vmatprep.mubr.bf16.mxu0 0
  %740 = vmatmul.mubr.bf16.gmra.mrb[0].mxu0 %v385
  %v741 = vpop.f32.mrb[0].mxu0
  %v742 = vadd.f32 0.0, %v741
  %v743 = vpop.f32.mrb[0].mxu0
  %v744 = vpop.f32.mrb[0].mxu0
  %v745 = vadd.f32 0.0, %v744
  %v746 = vpop.f32.mrb[0].mxu0
  %747 = vmatprep.mubr.bf16.mxu0 0
  %748 = vmatmul.mubr.bf16.gmra.mrb[0].mxu0 %v386
  %v749 = vpop.f32.mrb[0].mxu0
  %v750 = vadd.f32 0.0, %v749
  %v751 = vpop.f32.mrb[0].mxu0
  %v752 = vpop.f32.mrb[0].mxu0
  %v753 = vadd.f32 0.0, %v752
  %v754 = vpop.f32.mrb[0].mxu0
  %755 = vdwg.mxu0
  %v756 = vadd.f32 %v83, %v502
  %v757 = vadd.f32 %v84, %v505
  %v758 = vadd.f32 %v85, %v510
  %v759 = vadd.f32 %v86, %v513
  %v760 = vadd.f32 %v87, %v518
  %v761 = vadd.f32 %v88, %v521
  %v762 = vadd.f32 %v89, %v526
  %v763 = vadd.f32 %v90, %v529
  %v764 = vadd.f32 %v91, %v534
  %v765 = vadd.f32 %v92, %v537
  %v766 = vadd.f32 %v93, %v542
  %v767 = vadd.f32 %v94, %v545
  %v768 = vadd.f32 %v95, %v550
  %v769 = vadd.f32 %v96, %v553
  %v770 = vadd.f32 %v97, %v558
  %v771 = vadd.f32 %v98, %v561
  %v772 = vadd.f32 %v99, %v566
  %v773 = vadd.f32 %v100, %v569
  %v774 = vadd.f32 %v101, %v574
  %v775 = vadd.f32 %v102, %v577
  %v776 = vadd.f32 %v103, %v582
  %v777 = vadd.f32 %v104, %v585
  %v778 = vadd.f32 %v105, %v590
  %v779 = vadd.f32 %v106, %v593
  %v780 = vadd.f32 %v107, %v598
  %v781 = vadd.f32 %v108, %v601
  %v782 = vadd.f32 %v109, %v606
  %v783 = vadd.f32 %v110, %v609
  %v784 = vadd.f32 %v111, %v614
  %v785 = vadd.f32 %v112, %v617
  %v786 = vadd.f32 %v113, %v622
  %v787 = vadd.f32 %v114, %v625
  %v788 = vadd.f32 %v115, %v630
  %v789 = vadd.f32 %v116, %v633
  %v790 = vadd.f32 %v117, %v638
  %v791 = vadd.f32 %v118, %v641
  %v792 = vadd.f32 %v119, %v646
  %v793 = vadd.f32 %v120, %v649
  %v794 = vadd.f32 %v121, %v654
  %v795 = vadd.f32 %v122, %v657
  %v796 = vadd.f32 %v123, %v662
  %v797 = vadd.f32 %v124, %v665
  %v798 = vadd.f32 %v125, %v670
  %v799 = vadd.f32 %v126, %v673
  %v800 = vadd.f32 %v127, %v678
  %v801 = vadd.f32 %v128, %v681
  %v802 = vadd.f32 %v129, %v686
  %v803 = vadd.f32 %v130, %v689
  %v804 = vadd.f32 %v131, %v694
  %v805 = vadd.f32 %v132, %v697
  %v806 = vadd.f32 %v133, %v702
  %v807 = vadd.f32 %v134, %v705
  %v808 = vadd.f32 %v135, %v710
  %v809 = vadd.f32 %v136, %v713
  %v810 = vadd.f32 %v137, %v718
  %v811 = vadd.f32 %v138, %v721
  %v812 = vadd.f32 %v139, %v726
  %v813 = vadd.f32 %v140, %v729
  %v814 = vadd.f32 %v141, %v734
  %v815 = vadd.f32 %v142, %v737
  %v816 = vadd.f32 %v143, %v742
  %v817 = vadd.f32 %v144, %v745
  %v818 = vadd.f32 %v145, %v750
  %v819 = vadd.f32 %v146, %v753
  %820 = vst [vmem:[#allocation2] sm:$0xff] %v756
  %821 = vst [vmem:[#allocation2 + $0x8] sm:$0xff] %v757
  %822 = vst [vmem:[#allocation2 + $0x10] sm:$0xff] %v758
  %823 = vst [vmem:[#allocation2 + $0x18] sm:$0xff] %v759
  %824 = vst [vmem:[#allocation2 + $0x20] sm:$0xff] %v760
  %825 = vst [vmem:[#allocation2 + $0x28] sm:$0xff] %v761
  %826 = vst [vmem:[#allocation2 + $0x30] sm:$0xff] %v762
  %827 = vst [vmem:[#allocation2 + $0x38] sm:$0xff] %v763
  %828 = vst [vmem:[#allocation2 + $0x40] sm:$0xff] %v764
  %829 = vst [vmem:[#allocation2 + $0x48] sm:$0xff] %v765
  %830 = vst [vmem:[#allocation2 + $0x50] sm:$0xff] %v766
  %831 = vst [vmem:[#allocation2 + $0x58] sm:$0xff] %v767
  %832 = vst [vmem:[#allocation2 + $0x60] sm:$0xff] %v768
  %833 = vst [vmem:[#allocation2 + $0x68] sm:$0xff] %v769
  %834 = vst [vmem:[#allocation2 + $0x70] sm:$0xff] %v770
  %835 = vst [vmem:[#allocation2 + $0x78] sm:$0xff] %v771
  %836 = vst [vmem:[#allocation2 + $0x80] sm:$0xff] %v772
  %837 = vst [vmem:[#allocation2 + $0x88] sm:$0xff] %v773
  %838 = vst [vmem:[#allocation2 + $0x90] sm:$0xff] %v774
  %839 = vst [vmem:[#allocation2 + $0x98] sm:$0xff] %v775
  %840 = vst [vmem:[#allocation2 + $0xa0] sm:$0xff] %v776
  %841 = vst [vmem:[#allocation2 + $0xa8] sm:$0xff] %v777
  %842 = vst [vmem:[#allocation2 + $0xb0] sm:$0xff] %v778
  %843 = vst [vmem:[#allocation2 + $0xb8] sm:$0xff] %v779
  %844 = vst [vmem:[#allocation2 + $0xc0] sm:$0xff] %v780
  %845 = vst [vmem:[#allocation2 + $0xc8] sm:$0xff] %v781
  %846 = vst [vmem:[#allocation2 + $0xd0] sm:$0xff] %v782
  %847 = vst [vmem:[#allocation2 + $0xd8] sm:$0xff] %v783
  %848 = vst [vmem:[#allocation2 + $0xe0] sm:$0xff] %v784
  %849 = vst [vmem:[#allocation2 + $0xe8] sm:$0xff] %v785
  %850 = vst [vmem:[#allocation2 + $0xf0] sm:$0xff] %v786
  %851 = vst [vmem:[#allocation2 + $0xf8] sm:$0xff] %v787
  %852 = vst [vmem:[#allocation2 + $0x100] sm:$0xff] %v788
  %853 = vst [vmem:[#allocation2 + $0x108] sm:$0xff] %v789
  %854 = vst [vmem:[#allocation2 + $0x110] sm:$0xff] %v790
  %855 = vst [vmem:[#allocation2 + $0x118] sm:$0xff] %v791
  %856 = vst [vmem:[#allocation2 + $0x120] sm:$0xff] %v792
  %857 = vst [vmem:[#allocation2 + $0x128] sm:$0xff] %v793
  %858 = vst [vmem:[#allocation2 + $0x130] sm:$0xff] %v794
  %859 = vst [vmem:[#allocation2 + $0x138] sm:$0xff] %v795
  %860 = vst [vmem:[#allocation2 + $0x140] sm:$0xff] %v796
  %861 = vst [vmem:[#allocation2 + $0x148] sm:$0xff] %v797
  %862 = vst [vmem:[#allocation2 + $0x150] sm:$0xff] %v798
  %863 = vst [vmem:[#allocation2 + $0x158] sm:$0xff] %v799
  %864 = vst [vmem:[#allocation2 + $0x160] sm:$0xff] %v800
  %865 = vst [vmem:[#allocation2 + $0x168] sm:$0xff] %v801
  %866 = vst [vmem:[#allocation2 + $0x170] sm:$0xff] %v802
  %867 = vst [vmem:[#allocation2 + $0x178] sm:$0xff] %v803
  %868 = vst [vmem:[#allocation2 + $0x180] sm:$0xff] %v804
  %869 = vst [vmem:[#allocation2 + $0x188] sm:$0xff] %v805
  %870 = vst [vmem:[#allocation2 + $0x190] sm:$0xff] %v806
  %871 = vst [vmem:[#allocation2 + $0x198] sm:$0xff] %v807
  %872 = vst [vmem:[#allocation2 + $0x1a0] sm:$0xff] %v808
  %873 = vst [vmem:[#allocation2 + $0x1a8] sm:$0xff] %v809
  %874 = vst [vmem:[#allocation2 + $0x1b0] sm:$0xff] %v810
  %875 = vst [vmem:[#allocation2 + $0x1b8] sm:$0xff] %v811
  %876 = vst [vmem:[#allocation2 + $0x1c0] sm:$0xff] %v812
  %877 = vst [vmem:[#allocation2 + $0x1c8] sm:$0xff] %v813
  %878 = vst [vmem:[#allocation2 + $0x1d0] sm:$0xff] %v814
  %879 = vst [vmem:[#allocation2 + $0x1d8] sm:$0xff] %v815
  %880 = vst [vmem:[#allocation2 + $0x1e0] sm:$0xff] %v816
  %881 = vst [vmem:[#allocation2 + $0x1e8] sm:$0xff] %v817
  %882 = vst [vmem:[#allocation2 + $0x1f0] sm:$0xff] %v818
  %883 = vst [vmem:[#allocation2 + $0x1f8] sm:$0xff] %v819
  // Predicated region
  $region18: #{resblock_forward.4} parent=0 // pred_check
    %p884 = pneg %p15
  $region19: #{resblock_forward.4} parent=0 // pred_check_branch
    %886 = sbr.rel (%p884) target = $region21
  $region20: #{resblock_forward.4} parent=0 // pred_region
    %v887 = vld [vmem:[#allocation2] sm:$0xff]
    %v888 = vld [vmem:[#allocation2 + $0x8] sm:$0xff]
    %v889 = vld [vmem:[#allocation2 + $0x10] sm:$0xff]
    %v890 = vld [vmem:[#allocation2 + $0x18] sm:$0xff]
    %v891 = vld [vmem:[#allocation2 + $0x20] sm:$0xff]
    %v892 = vld [vmem:[#allocation2 + $0x28] sm:$0xff]
    %v893 = vld [vmem:[#allocation2 + $0x30] sm:$0xff]
    %v894 = vld [vmem:[#allocation2 + $0x38] sm:$0xff]
    %v895 = vld [vmem:[#allocation2 + $0x40] sm:$0xff]
    %v896 = vld [vmem:[#allocation2 + $0x48] sm:$0xff]
    %v897 = vld [vmem:[#allocation2 + $0x50] sm:$0xff]
    %v898 = vld [vmem:[#allocation2 + $0x58] sm:$0xff]
    %v899 = vld [vmem:[#allocation2 + $0x60] sm:$0xff]
    %v900 = vld [vmem:[#allocation2 + $0x68] sm:$0xff]
    %v901 = vld [vmem:[#allocation2 + $0x70] sm:$0xff]
    %v902 = vld [vmem:[#allocation2 + $0x78] sm:$0xff]
    %v903 = vld [vmem:[#allocation2 + $0x80] sm:$0xff]
    %v904 = vld [vmem:[#allocation2 + $0x88] sm:$0xff]
    %v905 = vld [vmem:[#allocation2 + $0x90] sm:$0xff]
    %v906 = vld [vmem:[#allocation2 + $0x98] sm:$0xff]
    %v907 = vld [vmem:[#allocation2 + $0xa0] sm:$0xff]
    %v908 = vld [vmem:[#allocation2 + $0xa8] sm:$0xff]
    %v909 = vld [vmem:[#allocation2 + $0xb0] sm:$0xff]
    %v910 = vld [vmem:[#allocation2 + $0xb8] sm:$0xff]
    %v911 = vld [vmem:[#allocation2 + $0xc0] sm:$0xff]
    %v912 = vld [vmem:[#allocation2 + $0xc8] sm:$0xff]
    %v913 = vld [vmem:[#allocation2 + $0xd0] sm:$0xff]
    %v914 = vld [vmem:[#allocation2 + $0xd8] sm:$0xff]
    %v915 = vld [vmem:[#allocation2 + $0xe0] sm:$0xff]
    %v916 = vld [vmem:[#allocation2 + $0xe8] sm:$0xff]
    %v917 = vld [vmem:[#allocation2 + $0xf0] sm:$0xff]
    %v918 = vld [vmem:[#allocation2 + $0xf8] sm:$0xff]
    %v919 = vld [vmem:[#allocation2 + $0x100] sm:$0xff]
    %v920 = vld [vmem:[#allocation2 + $0x108] sm:$0xff]
    %v921 = vld [vmem:[#allocation2 + $0x110] sm:$0xff]
    %v922 = vld [vmem:[#allocation2 + $0x118] sm:$0xff]
    %v923 = vld [vmem:[#allocation2 + $0x120] sm:$0xff]
    %v924 = vld [vmem:[#allocation2 + $0x128] sm:$0xff]
    %v925 = vld [vmem:[#allocation2 + $0x130] sm:$0xff]
    %v926 = vld [vmem:[#allocation2 + $0x138] sm:$0xff]
    %v927 = vld [vmem:[#allocation2 + $0x140] sm:$0xff]
    %v928 = vld [vmem:[#allocation2 + $0x148] sm:$0xff]
    %v929 = vld [vmem:[#allocation2 + $0x150] sm:$0xff]
    %v930 = vld [vmem:[#allocation2 + $0x158] sm:$0xff]
    %v931 = vld [vmem:[#allocation2 + $0x160] sm:$0xff]
    %v932 = vld [vmem:[#allocation2 + $0x168] sm:$0xff]
    %v933 = vld [vmem:[#allocation2 + $0x170] sm:$0xff]
    %v934 = vld [vmem:[#allocation2 + $0x178] sm:$0xff]
    %v935 = vld [vmem:[#allocation2 + $0x180] sm:$0xff]
    %v936 = vld [vmem:[#allocation2 + $0x188] sm:$0xff]
    %v937 = vld [vmem:[#allocation2 + $0x190] sm:$0xff]
    %v938 = vld [vmem:[#allocation2 + $0x198] sm:$0xff]
    %v939 = vld [vmem:[#allocation2 + $0x1a0] sm:$0xff]
    %v940 = vld [vmem:[#allocation2 + $0x1a8] sm:$0xff]
    %v941 = vld [vmem:[#allocation2 + $0x1b0] sm:$0xff]
    %v942 = vld [vmem:[#allocation2 + $0x1b8] sm:$0xff]
    %v943 = vld [vmem:[#allocation2 + $0x1c0] sm:$0xff]
    %v944 = vld [vmem:[#allocation2 + $0x1c8] sm:$0xff]
    %v945 = vld [vmem:[#allocation2 + $0x1d0] sm:$0xff]
    %v946 = vld [vmem:[#allocation2 + $0x1d8] sm:$0xff]
    %v947 = vld [vmem:[#allocation2 + $0x1e0] sm:$0xff]
    %v948 = vld [vmem:[#allocation2 + $0x1e8] sm:$0xff]
    %v949 = vld [vmem:[#allocation2 + $0x1f0] sm:$0xff]
    %v950 = vld [vmem:[#allocation2 + $0x1f8] sm:$0xff]
    %v951 = vld [vmem:[%s2] sm:$0x1]
    %v953 = vlaneseq
    %v954 = vshrl.u32 %v953, 7
    %v955 = vsub.s32 0, %v954
    %v956 = vrot.slane %v951, %v955
    %v958 = vadd.f32 %v887, %v956
    %v959 = vadd.f32 %v888, %v956
    %v960 = vadd.f32 %v889, %v956
    %v961 = vadd.f32 %v890, %v956
    %v962 = vadd.f32 %v891, %v956
    %v963 = vadd.f32 %v892, %v956
    %v964 = vadd.f32 %v893, %v956
    %v965 = vadd.f32 %v894, %v956
    %v966 = vadd.f32 %v895, %v956
    %v967 = vadd.f32 %v896, %v956
    %v968 = vadd.f32 %v897, %v956
    %v969 = vadd.f32 %v898, %v956
    %v970 = vadd.f32 %v899, %v956
    %v971 = vadd.f32 %v900, %v956
    %v972 = vadd.f32 %v901, %v956
    %v973 = vadd.f32 %v902, %v956
    %v974 = vadd.f32 %v903, %v956
    %v975 = vadd.f32 %v904, %v956
    %v976 = vadd.f32 %v905, %v956
    %v977 = vadd.f32 %v906, %v956
    %v978 = vadd.f32 %v907, %v956
    %v979 = vadd.f32 %v908, %v956
    %v980 = vadd.f32 %v909, %v956
    %v981 = vadd.f32 %v910, %v956
    %v982 = vadd.f32 %v911, %v956
    %v983 = vadd.f32 %v912, %v956
    %v984 = vadd.f32 %v913, %v956
    %v985 = vadd.f32 %v914, %v956
    %v986 = vadd.f32 %v915, %v956
    %v987 = vadd.f32 %v916, %v956
    %v988 = vadd.f32 %v917, %v956
    %v989 = vadd.f32 %v918, %v956
    %v990 = vadd.f32 %v919, %v956
    %v991 = vadd.f32 %v920, %v956
    %v992 = vadd.f32 %v921, %v956
    %v993 = vadd.f32 %v922, %v956
    %v994 = vadd.f32 %v923, %v956
    %v995 = vadd.f32 %v924, %v956
    %v996 = vadd.f32 %v925, %v956
    %v997 = vadd.f32 %v926, %v956
    %v998 = vadd.f32 %v927, %v956
    %v999 = vadd.f32 %v928, %v956
    %v1000 = vadd.f32 %v929, %v956
    %v1001 = vadd.f32 %v930, %v956
    %v1002 = vadd.f32 %v931, %v956
    %v1003 = vadd.f32 %v932, %v956
    %v1004 = vadd.f32 %v933, %v956
    %v1005 = vadd.f32 %v934, %v956
    %v1006 = vadd.f32 %v935, %v956
    %v1007 = vadd.f32 %v936, %v956
    %v1008 = vadd.f32 %v937, %v956
    %v1009 = vadd.f32 %v938, %v956
    %v1010 = vadd.f32 %v939, %v956
    %v1011 = vadd.f32 %v940, %v956
    %v1012 = vadd.f32 %v941, %v956
    %v1013 = vadd.f32 %v942, %v956
    %v1014 = vadd.f32 %v943, %v956
    %v1015 = vadd.f32 %v944, %v956
    %v1016 = vadd.f32 %v945, %v956
    %v1017 = vadd.f32 %v946, %v956
    %v1018 = vadd.f32 %v947, %v956
    %v1019 = vadd.f32 %v948, %v956
    %v1020 = vadd.f32 %v949, %v956
    %v1021 = vadd.f32 %v950, %v956
    %1022 = vst [vmem:[%s3] sm:$0xff] %v958
    %1023 = vst [vmem:[%s3 + $0x8] sm:$0xff] %v959
    %1024 = vst [vmem:[%s3 + $0x10] sm:$0xff] %v960
    %1025 = vst [vmem:[%s3 + $0x18] sm:$0xff] %v961
    %1026 = vst [vmem:[%s3 + $0x20] sm:$0xff] %v962
    %1027 = vst [vmem:[%s3 + $0x28] sm:$0xff] %v963
    %1028 = vst [vmem:[%s3 + $0x30] sm:$0xff] %v964
    %1029 = vst [vmem:[%s3 + $0x38] sm:$0xff] %v965
    %1030 = vst [vmem:[%s3 + $0x40] sm:$0xff] %v966
    %1031 = vst [vmem:[%s3 + $0x48] sm:$0xff] %v967
    %1032 = vst [vmem:[%s3 + $0x50] sm:$0xff] %v968
    %1033 = vst [vmem:[%s3 + $0x58] sm:$0xff] %v969
    %1034 = vst [vmem:[%s3 + $0x60] sm:$0xff] %v970
    %1035 = vst [vmem:[%s3 + $0x68] sm:$0xff] %v971
    %1036 = vst [vmem:[%s3 + $0x70] sm:$0xff] %v972
    %1037 = vst [vmem:[%s3 + $0x78] sm:$0xff] %v973
    %1038 = vst [vmem:[%s3 + $0x80] sm:$0xff] %v974
    %1039 = vst [vmem:[%s3 + $0x88] sm:$0xff] %v975
    %1040 = vst [vmem:[%s3 + $0x90] sm:$0xff] %v976
    %1041 = vst [vmem:[%s3 + $0x98] sm:$0xff] %v977
    %1042 = vst [vmem:[%s3 + $0xa0] sm:$0xff] %v978
    %1043 = vst [vmem:[%s3 + $0xa8] sm:$0xff] %v979
    %1044 = vst [vmem:[%s3 + $0xb0] sm:$0xff] %v980
    %1045 = vst [vmem:[%s3 + $0xb8] sm:$0xff] %v981
    %1046 = vst [vmem:[%s3 + $0xc0] sm:$0xff] %v982
    %1047 = vst [vmem:[%s3 + $0xc8] sm:$0xff] %v983
    %1048 = vst [vmem:[%s3 + $0xd0] sm:$0xff] %v984
    %1049 = vst [vmem:[%s3 + $0xd8] sm:$0xff] %v985
    %1050 = vst [vmem:[%s3 + $0xe0] sm:$0xff] %v986
    %1051 = vst [vmem:[%s3 + $0xe8] sm:$0xff] %v987
    %1052 = vst [vmem:[%s3 + $0xf0] sm:$0xff] %v988
    %1053 = vst [vmem:[%s3 + $0xf8] sm:$0xff] %v989
    %1054 = vst [vmem:[%s3 + $0x100] sm:$0xff] %v990
    %1055 = vst [vmem:[%s3 + $0x108] sm:$0xff] %v991
    %1056 = vst [vmem:[%s3 + $0x110] sm:$0xff] %v992
    %1057 = vst [vmem:[%s3 + $0x118] sm:$0xff] %v993
    %1058 = vst [vmem:[%s3 + $0x120] sm:$0xff] %v994
    %1059 = vst [vmem:[%s3 + $0x128] sm:$0xff] %v995
    %1060 = vst [vmem:[%s3 + $0x130] sm:$0xff] %v996
    %1061 = vst [vmem:[%s3 + $0x138] sm:$0xff] %v997
    %1062 = vst [vmem:[%s3 + $0x140] sm:$0xff] %v998
    %1063 = vst [vmem:[%s3 + $0x148] sm:$0xff] %v999
    %1064 = vst [vmem:[%s3 + $0x150] sm:$0xff] %v1000
    %1065 = vst [vmem:[%s3 + $0x158] sm:$0xff] %v1001
    %1066 = vst [vmem:[%s3 + $0x160] sm:$0xff] %v1002
    %1067 = vst [vmem:[%s3 + $0x168] sm:$0xff] %v1003
    %1068 = vst [vmem:[%s3 + $0x170] sm:$0xff] %v1004
    %1069 = vst [vmem:[%s3 + $0x178] sm:$0xff] %v1005
    %1070 = vst [vmem:[%s3 + $0x180] sm:$0xff] %v1006
    %1071 = vst [vmem:[%s3 + $0x188] sm:$0xff] %v1007
    %1072 = vst [vmem:[%s3 + $0x190] sm:$0xff] %v1008
    %1073 = vst [vmem:[%s3 + $0x198] sm:$0xff] %v1009
    %1074 = vst [vmem:[%s3 + $0x1a0] sm:$0xff] %v1010
    %1075 = vst [vmem:[%s3 + $0x1a8] sm:$0xff] %v1011
    %1076 = vst [vmem:[%s3 + $0x1b0] sm:$0xff] %v1012
    %1077 = vst [vmem:[%s3 + $0x1b8] sm:$0xff] %v1013
    %1078 = vst [vmem:[%s3 + $0x1c0] sm:$0xff] %v1014
    %1079 = vst [vmem:[%s3 + $0x1c8] sm:$0xff] %v1015
    %1080 = vst [vmem:[%s3 + $0x1d0] sm:$0xff] %v1016
    %1081 = vst [vmem:[%s3 + $0x1d8] sm:$0xff] %v1017
    %1082 = vst [vmem:[%s3 + $0x1e0] sm:$0xff] %v1018
    %1083 = vst [vmem:[%s3 + $0x1e8] sm:$0xff] %v1019
    %1084 = vst [vmem:[%s3 + $0x1f0] sm:$0xff] %v1020
    %1085 = vst [vmem:[%s3 + $0x1f8] sm:$0xff] %v1021
  $region21: #{resblock_forward.4} parent=0 // pred_fallthru
    _
  // Predicated region
  $region22: #{resblock_forward.4} parent=0 // pred_check
    _
  $region23: #{resblock_forward.4} parent=0 // pred_check_branch
    %1087 = sbr.rel (0) target = $region25
  $region24: #{resblock_forward.4} parent=0 // pred_region
    _
  $region25: #{resblock_forward.4} parent=0 // pred_fallthru
    _
  // Predicated region
  $region26: #{resblock_forward.4} parent=0 // pred_check
    _
  $region27: #{resblock_forward.4} parent=0 // pred_check_branch
    %1089 = sbr.rel (0) target = $region29
  $region28: #{resblock_forward.4} parent=0 // pred_region
    _
  $region29: #{resblock_forward.4} parent=0 // pred_fallthru
    _

// kernel: resblock_forward.7
$region0: #{resblock_forward.7}
  #allocation0 [shape = 'u32[]', space=smem, size = 0x4, offset = 0x4, fixed_abs, tag = 'smem constant byte address 0x4 - core index']
  #allocation1 [shape = 'u32[144,128]{1,0:T(1,128)}', space=vmem, size = 0x12000, scoped, tag = 'internal scratch']
  #allocation2 [shape = 'f32[512,128]{1,0:T(8,128)}', space=vmem, size = 0x40000, scoped, tag = 'scratch operand']
  %s0 = inlined_call_operand.vmem [shape: bf16[512,128], index: 0, kind: input, shape index: {}]
  %s1 = inlined_call_operand.vmem [shape: bf16[128,128], index: 1, kind: input, shape index: {}]
  %s2 = inlined_call_operand.vmem [shape: f32[1,128], index: 2, kind: input, shape index: {}]
  %s3 = inlined_call_operand.vmem [shape: f32[512,128], index: 3, kind: input, shape index: {}]
  %s4 = inlined_call_operand.vmem [shape: f32[512,128], index: 4, kind: output, shape index: {}]
  %s5 = sld [smem:[#allocation0]]
  $region34: #{resblock_forward.7} parent=0
    _
  %s7 = ssub.s32 1, %s5
  %s8 = scalar_select 0, %s7, %s5
  // Predicated region
  $region2: #{resblock_forward.7} parent=0 // pred_check
    _
  $region3: #{resblock_forward.7} parent=0 // pred_check_branch
    %10 = sbr.rel (0) target = $region5
  $region4: #{resblock_forward.7} parent=0 // pred_region
    _
  $region5: #{resblock_forward.7} parent=0 // pred_fallthru
    _
  // Predicated region
  $region6: #{resblock_forward.7} parent=0 // pred_check
    _
  $region7: #{resblock_forward.7} parent=0 // pred_check_branch
    %12 = sbr.rel (0) target = $region9
  $region8: #{resblock_forward.7} parent=0 // pred_region
    _
  $region9: #{resblock_forward.7} parent=0 // pred_fallthru
    _
  // Predicated region
  $region10: #{resblock_forward.7} parent=0 // pred_check
    _
  $region11: #{resblock_forward.7} parent=0 // pred_check_branch
    %14 = sbr.rel (0) target = $region13
  $region12: #{resblock_forward.7} parent=0 // pred_region
    _
  $region13: #{resblock_forward.7} parent=0 // pred_fallthru
    _
  // Predicated region
  $region14: #{resblock_forward.7} parent=0 // pred_check
    _
  $region15: #{resblock_forward.7} parent=0 // pred_check_branch
    %16 = sbr.rel (0) target = $region17
  $region16: #{resblock_forward.7} parent=0 // pred_region
    _
  $region17: #{resblock_forward.7} parent=0 // pred_fallthru
    _
  %p18 = scmp.eq.s32.totalorder 0, 0
  // Predicated region
  $region18: #{resblock_forward.7} parent=0 // pred_check
    %p19 = pneg %p18
  $region19: #{resblock_forward.7} parent=0 // pred_check_branch
    %21 = sbr.rel (%p19) target = $region21
  $region20: #{resblock_forward.7} parent=0 // pred_region
    %22 = vst [vmem:[#allocation2] sm:$0xff] 0.0
    %23 = vst [vmem:[#allocation2 + $0x8] sm:$0xff] 0.0
    %24 = vst [vmem:[#allocation2 + $0x10] sm:$0xff] 0.0
    %25 = vst [vmem:[#allocation2 + $0x18] sm:$0xff] 0.0
    %26 = vst [vmem:[#allocation2 + $0x20] sm:$0xff] 0.0
    %27 = vst [vmem:[#allocation2 + $0x28] sm:$0xff] 0.0
    %28 = vst [vmem:[#allocation2 + $0x30] sm:$0xff] 0.0
    %29 = vst [vmem:[#allocation2 + $0x38] sm:$0xff] 0.0
    %30 = vst [vmem:[#allocation2 + $0x40] sm:$0xff] 0.0
    %31 = vst [vmem:[#allocation2 + $0x48] sm:$0xff] 0.0
    %32 = vst [vmem:[#allocation2 + $0x50] sm:$0xff] 0.0
    %33 = vst [vmem:[#allocation2 + $0x58] sm:$0xff] 0.0
    %34 = vst [vmem:[#allocation2 + $0x60] sm:$0xff] 0.0
    %35 = vst [vmem:[#allocation2 + $0x68] sm:$0xff] 0.0
    %36 = vst [vmem:[#allocation2 + $0x70] sm:$0xff] 0.0
    %37 = vst [vmem:[#allocation2 + $0x78] sm:$0xff] 0.0
    %38 = vst [vmem:[#allocation2 + $0x80] sm:$0xff] 0.0
    %39 = vst [vmem:[#allocation2 + $0x88] sm:$0xff] 0.0
    %40 = vst [vmem:[#allocation2 + $0x90] sm:$0xff] 0.0
    %41 = vst [vmem:[#allocation2 + $0x98] sm:$0xff] 0.0
    %42 = vst [vmem:[#allocation2 + $0xa0] sm:$0xff] 0.0
    %43 = vst [vmem:[#allocation2 + $0xa8] sm:$0xff] 0.0
    %44 = vst [vmem:[#allocation2 + $0xb0] sm:$0xff] 0.0
    %45 = vst [vmem:[#allocation2 + $0xb8] sm:$0xff] 0.0
    %46 = vst [vmem:[#allocation2 + $0xc0] sm:$0xff] 0.0
    %47 = vst [vmem:[#allocation2 + $0xc8] sm:$0xff] 0.0
    %48 = vst [vmem:[#allocation2 + $0xd0] sm:$0xff] 0.0
    %49 = vst [vmem:[#allocation2 + $0xd8] sm:$0xff] 0.0
    %50 = vst [vmem:[#allocation2 + $0xe0] sm:$0xff] 0.0
    %51 = vst [vmem:[#allocation2 + $0xe8] sm:$0xff] 0.0
    %52 = vst [vmem:[#allocation2 + $0xf0] sm:$0xff] 0.0
    %53 = vst [vmem:[#allocation2 + $0xf8] sm:$0xff] 0.0
    %54 = vst [vmem:[#allocation2 + $0x100] sm:$0xff] 0.0
    %55 = vst [vmem:[#allocation2 + $0x108] sm:$0xff] 0.0
    %56 = vst [vmem:[#allocation2 + $0x110] sm:$0xff] 0.0
    %57 = vst [vmem:[#allocation2 + $0x118] sm:$0xff] 0.0
    %58 = vst [vmem:[#allocation2 + $0x120] sm:$0xff] 0.0
    %59 = vst [vmem:[#allocation2 + $0x128] sm:$0xff] 0.0
    %60 = vst [vmem:[#allocation2 + $0x130] sm:$0xff] 0.0
    %61 = vst [vmem:[#allocation2 + $0x138] sm:$0xff] 0.0
    %62 = vst [vmem:[#allocation2 + $0x140] sm:$0xff] 0.0
    %63 = vst [vmem:[#allocation2 + $0x148] sm:$0xff] 0.0
    %64 = vst [vmem:[#allocation2 + $0x150] sm:$0xff] 0.0
    %65 = vst [vmem:[#allocation2 + $0x158] sm:$0xff] 0.0
    %66 = vst [vmem:[#allocation2 + $0x160] sm:$0xff] 0.0
    %67 = vst [vmem:[#allocation2 + $0x168] sm:$0xff] 0.0
    %68 = vst [vmem:[#allocation2 + $0x170] sm:$0xff] 0.0
    %69 = vst [vmem:[#allocation2 + $0x178] sm:$0xff] 0.0
    %70 = vst [vmem:[#allocation2 + $0x180] sm:$0xff] 0.0
    %71 = vst [vmem:[#allocation2 + $0x188] sm:$0xff] 0.0
    %72 = vst [vmem:[#allocation2 + $0x190] sm:$0xff] 0.0
    %73 = vst [vmem:[#allocation2 + $0x198] sm:$0xff] 0.0
    %74 = vst [vmem:[#allocation2 + $0x1a0] sm:$0xff] 0.0
    %75 = vst [vmem:[#allocation2 + $0x1a8] sm:$0xff] 0.0
    %76 = vst [vmem:[#allocation2 + $0x1b0] sm:$0xff] 0.0
    %77 = vst [vmem:[#allocation2 + $0x1b8] sm:$0xff] 0.0
    %78 = vst [vmem:[#allocation2 + $0x1c0] sm:$0xff] 0.0
    %79 = vst [vmem:[#allocation2 + $0x1c8] sm:$0xff] 0.0
    %80 = vst [vmem:[#allocation2 + $0x1d0] sm:$0xff] 0.0
    %81 = vst [vmem:[#allocation2 + $0x1d8] sm:$0xff] 0.0
    %82 = vst [vmem:[#allocation2 + $0x1e0] sm:$0xff] 0.0
    %83 = vst [vmem:[#allocation2 + $0x1e8] sm:$0xff] 0.0
    %84 = vst [vmem:[#allocation2 + $0x1f0] sm:$0xff] 0.0
    %85 = vst [vmem:[#allocation2 + $0x1f8] sm:$0xff] 0.0
  $region21: #{resblock_forward.7} parent=0 // pred_fallthru
    _
  %v86 = vld [vmem:[#allocation2] sm:$0xff]
  %v87 = vld [vmem:[#allocation2 + $0x8] sm:$0xff]
  %v88 = vld [vmem:[#allocation2 + $0x10] sm:$0xff]
  %v89 = vld [vmem:[#allocation2 + $0x18] sm:$0xff]
  %v90 = vld [vmem:[#allocation2 + $0x20] sm:$0xff]
  %v91 = vld [vmem:[#allocation2 + $0x28] sm:$0xff]
  %v92 = vld [vmem:[#allocation2 + $0x30] sm:$0xff]
  %v93 = vld [vmem:[#allocation2 + $0x38] sm:$0xff]
  %v94 = vld [vmem:[#allocation2 + $0x40] sm:$0xff]
  %v95 = vld [vmem:[#allocation2 + $0x48] sm:$0xff]
  %v96 = vld [vmem:[#allocation2 + $0x50] sm:$0xff]
  %v97 = vld [vmem:[#allocation2 + $0x58] sm:$0xff]
  %v98 = vld [vmem:[#allocation2 + $0x60] sm:$0xff]
  %v99 = vld [vmem:[#allocation2 + $0x68] sm:$0xff]
  %v100 = vld [vmem:[#allocation2 + $0x70] sm:$0xff]
  %v101 = vld [vmem:[#allocation2 + $0x78] sm:$0xff]
  %v102 = vld [vmem:[#allocation2 + $0x80] sm:$0xff]
  %v103 = vld [vmem:[#allocation2 + $0x88] sm:$0xff]
  %v104 = vld [vmem:[#allocation2 + $0x90] sm:$0xff]
  %v105 = vld [vmem:[#allocation2 + $0x98] sm:$0xff]
  %v106 = vld [vmem:[#allocation2 + $0xa0] sm:$0xff]
  %v107 = vld [vmem:[#allocation2 + $0xa8] sm:$0xff]
  %v108 = vld [vmem:[#allocation2 + $0xb0] sm:$0xff]
  %v109 = vld [vmem:[#allocation2 + $0xb8] sm:$0xff]
  %v110 = vld [vmem:[#allocation2 + $0xc0] sm:$0xff]
  %v111 = vld [vmem:[#allocation2 + $0xc8] sm:$0xff]
  %v112 = vld [vmem:[#allocation2 + $0xd0] sm:$0xff]
  %v113 = vld [vmem:[#allocation2 + $0xd8] sm:$0xff]
  %v114 = vld [vmem:[#allocation2 + $0xe0] sm:$0xff]
  %v115 = vld [vmem:[#allocation2 + $0xe8] sm:$0xff]
  %v116 = vld [vmem:[#allocation2 + $0xf0] sm:$0xff]
  %v117 = vld [vmem:[#allocation2 + $0xf8] sm:$0xff]
  %v118 = vld [vmem:[#allocation2 + $0x100] sm:$0xff]
  %v119 = vld [vmem:[#allocation2 + $0x108] sm:$0xff]
  %v120 = vld [vmem:[#allocation2 + $0x110] sm:$0xff]
  %v121 = vld [vmem:[#allocation2 + $0x118] sm:$0xff]
  %v122 = vld [vmem:[#allocation2 + $0x120] sm:$0xff]
  %v123 = vld [vmem:[#allocation2 + $0x128] sm:$0xff]
  %v124 = vld [vmem:[#allocation2 + $0x130] sm:$0xff]
  %v125 = vld [vmem:[#allocation2 + $0x138] sm:$0xff]
  %v126 = vld [vmem:[#allocation2 + $0x140] sm:$0xff]
  %v127 = vld [vmem:[#allocation2 + $0x148] sm:$0xff]
  %v128 = vld [vmem:[#allocation2 + $0x150] sm:$0xff]
  %v129 = vld [vmem:[#allocation2 + $0x158] sm:$0xff]
  %v130 = vld [vmem:[#allocation2 + $0x160] sm:$0xff]
  %v131 = vld [vmem:[#allocation2 + $0x168] sm:$0xff]
  %v132 = vld [vmem:[#allocation2 + $0x170] sm:$0xff]
  %v133 = vld [vmem:[#allocation2 + $0x178] sm:$0xff]
  %v134 = vld [vmem:[#allocation2 + $0x180] sm:$0xff]
  %v135 = vld [vmem:[#allocation2 + $0x188] sm:$0xff]
  %v136 = vld [vmem:[#allocation2 + $0x190] sm:$0xff]
  %v137 = vld [vmem:[#allocation2 + $0x198] sm:$0xff]
  %v138 = vld [vmem:[#allocation2 + $0x1a0] sm:$0xff]
  %v139 = vld [vmem:[#allocation2 + $0x1a8] sm:$0xff]
  %v140 = vld [vmem:[#allocation2 + $0x1b0] sm:$0xff]
  %v141 = vld [vmem:[#allocation2 + $0x1b8] sm:$0xff]
  %v142 = vld [vmem:[#allocation2 + $0x1c0] sm:$0xff]
  %v143 = vld [vmem:[#allocation2 + $0x1c8] sm:$0xff]
  %v144 = vld [vmem:[#allocation2 + $0x1d0] sm:$0xff]
  %v145 = vld [vmem:[#allocation2 + $0x1d8] sm:$0xff]
  %v146 = vld [vmem:[#allocation2 + $0x1e0] sm:$0xff]
  %v147 = vld [vmem:[#allocation2 + $0x1e8] sm:$0xff]
  %v148 = vld [vmem:[#allocation2 + $0x1f0] sm:$0xff]
  %v149 = vld [vmem:[#allocation2 + $0x1f8] sm:$0xff]
  %v150 = vld [vmem:[%s0] sm:$0xf]
  %v151 = vld [vmem:[%s0 + $0x4] sm:$0xf]
  %v152 = vld [vmem:[%s0 + $0x8] sm:$0xf]
  %v153 = vld [vmem:[%s0 + $0xc] sm:$0xf]
  %v154 = vld [vmem:[%s0 + $0x10] sm:$0xf]
  %v155 = vld [vmem:[%s0 + $0x14] sm:$0xf]
  %v156 = vld [vmem:[%s0 + $0x18] sm:$0xf]
  %v157 = vld [vmem:[%s0 + $0x1c] sm:$0xf]
  %v158 = vld [vmem:[%s0 + $0x20] sm:$0xf]
  %v159 = vld [vmem:[%s0 + $0x24] sm:$0xf]
  %v160 = vld [vmem:[%s0 + $0x28] sm:$0xf]
  %v161 = vld [vmem:[%s0 + $0x2c] sm:$0xf]
  %v162 = vld [vmem:[%s0 + $0x30] sm:$0xf]
  %v163 = vld [vmem:[%s0 + $0x34] sm:$0xf]
  %v164 = vld [vmem:[%s0 + $0x38] sm:$0xf]
  %v165 = vld [vmem:[%s0 + $0x3c] sm:$0xf]
  %v166 = vld [vmem:[%s0 + $0x40] sm:$0xf]
  %v167 = vld [vmem:[%s0 + $0x44] sm:$0xf]
  %v168 = vld [vmem:[%s0 + $0x48] sm:$0xf]
  %v169 = vld [vmem:[%s0 + $0x4c] sm:$0xf]
  %v170 = vld [vmem:[%s0 + $0x50] sm:$0xf]
  %v171 = vld [vmem:[%s0 + $0x54] sm:$0xf]
  %v172 = vld [vmem:[%s0 + $0x58] sm:$0xf]
  %v173 = vld [vmem:[%s0 + $0x5c] sm:$0xf]
  %v174 = vld [vmem:[%s0 + $0x60] sm:$0xf]
  %v175 = vld [vmem:[%s0 + $0x64] sm:$0xf]
  %v176 = vld [vmem:[%s0 + $0x68] sm:$0xf]
  %v177 = vld [vmem:[%s0 + $0x6c] sm:$0xf]
  %v178 = vld [vmem:[%s0 + $0x70] sm:$0xf]
  %v179 = vld [vmem:[%s0 + $0x74] sm:$0xf]
  %v180 = vld [vmem:[%s0 + $0x78] sm:$0xf]
  %v181 = vld [vmem:[%s0 + $0x7c] sm:$0xf]
  %v182 = vld [vmem:[%s0 + $0x80] sm:$0xf]
  %v183 = vld [vmem:[%s0 + $0x84] sm:$0xf]
  %v184 = vld [vmem:[%s0 + $0x88] sm:$0xf]
  %v185 = vld [vmem:[%s0 + $0x8c] sm:$0xf]
  %v186 = vld [vmem:[%s0 + $0x90] sm:$0xf]
  %v187 = vld [vmem:[%s0 + $0x94] sm:$0xf]
  %v188 = vld [vmem:[%s0 + $0x98] sm:$0xf]
  %v189 = vld [vmem:[%s0 + $0x9c] sm:$0xf]
  %v190 = vld [vmem:[%s0 + $0xa0] sm:$0xf]
  %v191 = vld [vmem:[%s0 + $0xa4] sm:$0xf]
  %v192 = vld [vmem:[%s0 + $0xa8] sm:$0xf]
  %v193 = vld [vmem:[%s0 + $0xac] sm:$0xf]
  %v194 = vld [vmem:[%s0 + $0xb0] sm:$0xf]
  %v195 = vld [vmem:[%s0 + $0xb4] sm:$0xf]
  %v196 = vld [vmem:[%s0 + $0xb8] sm:$0xf]
  %v197 = vld [vmem:[%s0 + $0xbc] sm:$0xf]
  %v198 = vld [vmem:[%s0 + $0xc0] sm:$0xf]
  %v199 = vld [vmem:[%s0 + $0xc4] sm:$0xf]
  %v200 = vld [vmem:[%s0 + $0xc8] sm:$0xf]
  %v201 = vld [vmem:[%s0 + $0xcc] sm:$0xf]
  %v202 = vld [vmem:[%s0 + $0xd0] sm:$0xf]
  %v203 = vld [vmem:[%s0 + $0xd4] sm:$0xf]
  %v204 = vld [vmem:[%s0 + $0xd8] sm:$0xf]
  %v205 = vld [vmem:[%s0 + $0xdc] sm:$0xf]
  %v206 = vld [vmem:[%s0 + $0xe0] sm:$0xf]
  %v207 = vld [vmem:[%s0 + $0xe4] sm:$0xf]
  %v208 = vld [vmem:[%s0 + $0xe8] sm:$0xf]
  %v209 = vld [vmem:[%s0 + $0xec] sm:$0xf]
  %v210 = vld [vmem:[%s0 + $0xf0] sm:$0xf]
  %v211 = vld [vmem:[%s0 + $0xf4] sm:$0xf]
  %v212 = vld [vmem:[%s0 + $0xf8] sm:$0xf]
  %v213 = vld [vmem:[%s0 + $0xfc] sm:$0xf]
  %v214 = vld [vmem:[%s1] sm:$0xf]
  %v215 = vld [vmem:[%s1 + $0x4] sm:$0xf]
  %v216 = vld [vmem:[%s1 + $0x8] sm:$0xf]
  %v217 = vld [vmem:[%s1 + $0xc] sm:$0xf]
  %v218 = vld [vmem:[%s1 + $0x10] sm:$0xf]
  %v219 = vld [vmem:[%s1 + $0x14] sm:$0xf]
  %v220 = vld [vmem:[%s1 + $0x18] sm:$0xf]
  %v221 = vld [vmem:[%s1 + $0x1c] sm:$0xf]
  %v222 = vld [vmem:[%s1 + $0x20] sm:$0xf]
  %v223 = vld [vmem:[%s1 + $0x24] sm:$0xf]
  %v224 = vld [vmem:[%s1 + $0x28] sm:$0xf]
  %v225 = vld [vmem:[%s1 + $0x2c] sm:$0xf]
  %v226 = vld [vmem:[%s1 + $0x30] sm:$0xf]
  %v227 = vld [vmem:[%s1 + $0x34] sm:$0xf]
  %v228 = vld [vmem:[%s1 + $0x38] sm:$0xf]
  %v229 = vld [vmem:[%s1 + $0x3c] sm:$0xf]
  %v294 = vunpack.c.l.b16 %v150
  %v295 = vunpack.c.l.b16 %v151
  %v296 = vunpack.c.l.b16 %v152
  %v297 = vunpack.c.l.b16 %v153
  %v298 = vunpack.c.l.b16 %v154
  %v299 = vunpack.c.l.b16 %v155
  %v300 = vunpack.c.l.b16 %v156
  %v301 = vunpack.c.l.b16 %v157
  %v302 = vunpack.c.l.b16 %v158
  %v303 = vunpack.c.l.b16 %v159
  %v304 = vunpack.c.l.b16 %v160
  %v305 = vunpack.c.l.b16 %v161
  %v306 = vunpack.c.l.b16 %v162
  %v307 = vunpack.c.l.b16 %v163
  %v308 = vunpack.c.l.b16 %v164
  %v309 = vunpack.c.l.b16 %v165
  %v310 = vunpack.c.l.b16 %v166
  %v311 = vunpack.c.l.b16 %v167
  %v312 = vunpack.c.l.b16 %v168
  %v313 = vunpack.c.l.b16 %v169
  %v314 = vunpack.c.l.b16 %v170
  %v315 = vunpack.c.l.b16 %v171
  %v316 = vunpack.c.l.b16 %v172
  %v317 = vunpack.c.l.b16 %v173
  %v318 = vunpack.c.l.b16 %v174
  %v319 = vunpack.c.l.b16 %v175
  %v320 = vunpack.c.l.b16 %v176
  %v321 = vunpack.c.l.b16 %v177
  %v322 = vunpack.c.l.b16 %v178
  %v323 = vunpack.c.l.b16 %v179
  %v324 = vunpack.c.l.b16 %v180
  %v325 = vunpack.c.l.b16 %v181
  %v326 = vunpack.c.l.b16 %v182
  %v327 = vunpack.c.l.b16 %v183
  %v328 = vunpack.c.l.b16 %v184
  %v329 = vunpack.c.l.b16 %v185
  %v330 = vunpack.c.l.b16 %v186
  %v331 = vunpack.c.l.b16 %v187
  %v332 = vunpack.c.l.b16 %v188
  %v333 = vunpack.c.l.b16 %v189
  %v334 = vunpack.c.l.b16 %v190
  %v335 = vunpack.c.l.b16 %v191
  %v336 = vunpack.c.l.b16 %v192
  %v337 = vunpack.c.l.b16 %v193
  %v338 = vunpack.c.l.b16 %v194
  %v339 = vunpack.c.l.b16 %v195
  %v340 = vunpack.c.l.b16 %v196
  %v341 = vunpack.c.l.b16 %v197
  %v342 = vunpack.c.l.b16 %v198
  %v343 = vunpack.c.l.b16 %v199
  %v344 = vunpack.c.l.b16 %v200
  %v345 = vunpack.c.l.b16 %v201
  %v346 = vunpack.c.l.b16 %v202
  %v347 = vunpack.c.l.b16 %v203
  %v348 = vunpack.c.l.b16 %v204
  %v349 = vunpack.c.l.b16 %v205
  %v350 = vunpack.c.l.b16 %v206
  %v351 = vunpack.c.l.b16 %v207
  %v352 = vunpack.c.l.b16 %v208
  %v353 = vunpack.c.l.b16 %v209
  %v354 = vunpack.c.l.b16 %v210
  %v355 = vunpack.c.l.b16 %v211
  %v356 = vunpack.c.l.b16 %v212
  %v357 = vunpack.c.l.b16 %v213
  %v358 = vpack.c.b16 %v295, %v294
  %v359 = vpack.c.b16 %v297, %v296
  %v360 = vpack.c.b16 %v299, %v298
  %v361 = vpack.c.b16 %v301, %v300
  %v362 = vpack.c.b16 %v303, %v302
  %v363 = vpack.c.b16 %v305, %v304
  %v364 = vpack.c.b16 %v307, %v306
  %v365 = vpack.c.b16 %v309, %v308
  %v366 = vpack.c.b16 %v311, %v310
  %v367 = vpack.c.b16 %v313, %v312
  %v368 = vpack.c.b16 %v315, %v314
  %v369 = vpack.c.b16 %v317, %v316
  %v370 = vpack.c.b16 %v319, %v318
  %v371 = vpack.c.b16 %v321, %v320
  %v372 = vpack.c.b16 %v323, %v322
  %v373 = vpack.c.b16 %v325, %v324
  %v374 = vpack.c.b16 %v327, %v326
  %v375 = vpack.c.b16 %v329, %v328
  %v376 = vpack.c.b16 %v331, %v330
  %v377 = vpack.c.b16 %v333, %v332
  %v378 = vpack.c.b16 %v335, %v334
  %v379 = vpack.c.b16 %v337, %v336
  %v380 = vpack.c.b16 %v339, %v338
  %v381 = vpack.c.b16 %v341, %v340
  %v382 = vpack.c.b16 %v343, %v342
  %v383 = vpack.c.b16 %v345, %v344
  %v384 = vpack.c.b16 %v347, %v346
  %v385 = vpack.c.b16 %v349, %v348
  %v386 = vpack.c.b16 %v351, %v350
  %v387 = vpack.c.b16 %v353, %v352
  %v388 = vpack.c.b16 %v355, %v354
  %v389 = vpack.c.b16 %v357, %v356
  %v438 = vunpack.c.l.b16 %v214
  %v439 = vunpack.c.l.b16 %v215
  %v440 = vunpack.c.l.b16 %v216
  %v441 = vunpack.c.l.b16 %v217
  %v442 = vunpack.c.l.b16 %v218
  %v443 = vunpack.c.l.b16 %v219
  %v444 = vunpack.c.l.b16 %v220
  %v445 = vunpack.c.l.b16 %v221
  %v446 = vunpack.c.l.b16 %v222
  %v447 = vunpack.c.l.b16 %v223
  %v448 = vunpack.c.l.b16 %v224
  %v449 = vunpack.c.l.b16 %v225
  %v450 = vunpack.c.l.b16 %v226
  %v451 = vunpack.c.l.b16 %v227
  %v452 = vunpack.c.l.b16 %v228
  %v453 = vunpack.c.l.b16 %v229
  %v454 = vpack.c.b16 %v439, %v438
  %v455 = vpack.c.b16 %v441, %v440
  %v456 = vpack.c.b16 %v443, %v442
  %v457 = vpack.c.b16 %v445, %v444
  %v458 = vpack.c.b16 %v447, %v446
  %v459 = vpack.c.b16 %v449, %v448
  %v460 = vpack.c.b16 %v451, %v450
  %v461 = vpack.c.b16 %v453, %v452
  %470 = vmatprep.subr.bf16.mxu0 0
  %471 = vmatpush1.bf16.msra.mxu0 %v454
  %472 = vmatprep.subr.bf16.mxu0 0
  %473 = vmatpush1.bf16.msra.mxu0 %v455
  %474 = vmatprep.subr.bf16.mxu0 0
  %475 = vmatpush1.bf16.msra.mxu0 %v456
  %476 = vmatprep.subr.bf16.mxu0 0
  %477 = vmatpush1.bf16.msra.mxu0 %v457
  %478 = vmatprep.subr.bf16.mxu0 0
  %479 = vmatpush1.bf16.msra.mxu0 %v458
  %480 = vmatprep.subr.bf16.mxu0 0
  %481 = vmatpush1.bf16.msra.mxu0 %v459
  %482 = vmatprep.subr.bf16.mxu0 0
  %483 = vmatpush1.bf16.msra.mxu0 %v460
  %484 = vmatprep.subr.bf16.mxu0 0
  %485 = vmatpush1.bf16.msra.mxu0 %v461
  %486 = vmatprep.subr.bf16.mxu0 0
  %487 = vmatpush1.bf16.msra.mxu0 0
  %488 = vmatprep.subr.bf16.mxu0 0
  %489 = vmatpush1.bf16.msra.mxu0 0
  %490 = vmatprep.subr.bf16.mxu0 0
  %491 = vmatpush1.bf16.msra.mxu0 0
  %492 = vmatprep.subr.bf16.mxu0 0
  %493 = vmatpush1.bf16.msra.mxu0 0
  %494 = vmatprep.subr.bf16.mxu0 0
  %495 = vmatpush1.bf16.msra.mxu0 0
  %496 = vmatprep.subr.bf16.mxu0 0
  %497 = vmatpush1.bf16.msra.mxu0 0
  %498 = vmatprep.subr.bf16.mxu0 0
  %499 = vmatpush1.bf16.msra.mxu0 0
  %500 = vmatprep.subr.bf16.mxu0 0
  %501 = vmatpush1.bf16.msra.mxu0 0
  %502 = vmatprep.mubr.bf16.mxu0 0
  %503 = vmatmul.mubr.bf16.gmra.mrb[0].mxu0 %v358
  %v504 = vpop.f32.mrb[0].mxu0
  %v505 = vadd.f32 0.0, %v504
  %v506 = vpop.f32.mrb[0].mxu0
  %v507 = vpop.f32.mrb[0].mxu0
  %v508 = vadd.f32 0.0, %v507
  %v509 = vpop.f32.mrb[0].mxu0
  %510 = vmatprep.mubr.bf16.mxu0 0
  %511 = vmatmul.mubr.bf16.gmra.mrb[0].mxu0 %v359
  %v512 = vpop.f32.mrb[0].mxu0
  %v513 = vadd.f32 0.0, %v512
  %v514 = vpop.f32.mrb[0].mxu0
  %v515 = vpop.f32.mrb[0].mxu0
  %v516 = vadd.f32 0.0, %v515
  %v517 = vpop.f32.mrb[0].mxu0
  %518 = vmatprep.mubr.bf16.mxu0 0
  %519 = vmatmul.mubr.bf16.gmra.mrb[0].mxu0 %v360
  %v520 = vpop.f32.mrb[0].mxu0
  %v521 = vadd.f32 0.0, %v520
  %v522 = vpop.f32.mrb[0].mxu0
  %v523 = vpop.f32.mrb[0].mxu0
  %v524 = vadd.f32 0.0, %v523
  %v525 = vpop.f32.mrb[0].mxu0
  %526 = vmatprep.mubr.bf16.mxu0 0
  %527 = vmatmul.mubr.bf16.gmra.mrb[0].mxu0 %v361
  %v528 = vpop.f32.mrb[0].mxu0
  %v529 = vadd.f32 0.0, %v528
  %v530 = vpop.f32.mrb[0].mxu0
  %v531 = vpop.f32.mrb[0].mxu0
  %v532 = vadd.f32 0.0, %v531
  %v533 = vpop.f32.mrb[0].mxu0
  %534 = vmatprep.mubr.bf16.mxu0 0
  %535 = vmatmul.mubr.bf16.gmra.mrb[0].mxu0 %v362
  %v536 = vpop.f32.mrb[0].mxu0
  %v537 = vadd.f32 0.0, %v536
  %v538 = vpop.f32.mrb[0].mxu0
  %v539 = vpop.f32.mrb[0].mxu0
  %v540 = vadd.f32 0.0, %v539
  %v541 = vpop.f32.mrb[0].mxu0
  %542 = vmatprep.mubr.bf16.mxu0 0
  %543 = vmatmul.mubr.bf16.gmra.mrb[0].mxu0 %v363
  %v544 = vpop.f32.mrb[0].mxu0
  %v545 = vadd.f32 0.0, %v544
  %v546 = vpop.f32.mrb[0].mxu0
  %v547 = vpop.f32.mrb[0].mxu0
  %v548 = vadd.f32 0.0, %v547
  %v549 = vpop.f32.mrb[0].mxu0
  %550 = vmatprep.mubr.bf16.mxu0 0
  %551 = vmatmul.mubr.bf16.gmra.mrb[0].mxu0 %v364
  %v552 = vpop.f32.mrb[0].mxu0
  %v553 = vadd.f32 0.0, %v552
  %v554 = vpop.f32.mrb[0].mxu0
  %v555 = vpop.f32.mrb[0].mxu0
  %v556 = vadd.f32 0.0, %v555
  %v557 = vpop.f32.mrb[0].mxu0
  %558 = vmatprep.mubr.bf16.mxu0 0
  %559 = vmatmul.mubr.bf16.gmra.mrb[0].mxu0 %v365
  %v560 = vpop.f32.mrb[0].mxu0
  %v561 = vadd.f32 0.0, %v560
  %v562 = vpop.f32.mrb[0].mxu0
  %v563 = vpop.f32.mrb[0].mxu0
  %v564 = vadd.f32 0.0, %v563
  %v565 = vpop.f32.mrb[0].mxu0
  %566 = vmatprep.mubr.bf16.mxu0 0
  %567 = vmatmul.mubr.bf16.gmra.mrb[0].mxu0 %v366
  %v568 = vpop.f32.mrb[0].mxu0
  %v569 = vadd.f32 0.0, %v568
  %v570 = vpop.f32.mrb[0].mxu0
  %v571 = vpop.f32.mrb[0].mxu0
  %v572 = vadd.f32 0.0, %v571
  %v573 = vpop.f32.mrb[0].mxu0
  %574 = vmatprep.mubr.bf16.mxu0 0
  %575 = vmatmul.mubr.bf16.gmra.mrb[0].mxu0 %v367
  %v576 = vpop.f32.mrb[0].mxu0
  %v577 = vadd.f32 0.0, %v576
  %v578 = vpop.f32.mrb[0].mxu0
  %v579 = vpop.f32.mrb[0].mxu0
  %v580 = vadd.f32 0.0, %v579
  %v581 = vpop.f32.mrb[0].mxu0
  %582 = vmatprep.mubr.bf16.mxu0 0
  %583 = vmatmul.mubr.bf16.gmra.mrb[0].mxu0 %v368
  %v584 = vpop.f32.mrb[0].mxu0
  %v585 = vadd.f32 0.0, %v584
  %v586 = vpop.f32.mrb[0].mxu0
  %v587 = vpop.f32.mrb[0].mxu0
  %v588 = vadd.f32 0.0, %v587
  %v589 = vpop.f32.mrb[0].mxu0
  %590 = vmatprep.mubr.bf16.mxu0 0
  %591 = vmatmul.mubr.bf16.gmra.mrb[0].mxu0 %v369
  %v592 = vpop.f32.mrb[0].mxu0
  %v593 = vadd.f32 0.0, %v592
  %v594 = vpop.f32.mrb[0].mxu0
  %v595 = vpop.f32.mrb[0].mxu0
  %v596 = vadd.f32 0.0, %v595
  %v597 = vpop.f32.mrb[0].mxu0
  %598 = vmatprep.mubr.bf16.mxu0 0
  %599 = vmatmul.mubr.bf16.gmra.mrb[0].mxu0 %v370
  %v600 = vpop.f32.mrb[0].mxu0
  %v601 = vadd.f32 0.0, %v600
  %v602 = vpop.f32.mrb[0].mxu0
  %v603 = vpop.f32.mrb[0].mxu0
  %v604 = vadd.f32 0.0, %v603
  %v605 = vpop.f32.mrb[0].mxu0
  %606 = vmatprep.mubr.bf16.mxu0 0
  %607 = vmatmul.mubr.bf16.gmra.mrb[0].mxu0 %v371
  %v608 = vpop.f32.mrb[0].mxu0
  %v609 = vadd.f32 0.0, %v608
  %v610 = vpop.f32.mrb[0].mxu0
  %v611 = vpop.f32.mrb[0].mxu0
  %v612 = vadd.f32 0.0, %v611
  %v613 = vpop.f32.mrb[0].mxu0
  %614 = vmatprep.mubr.bf16.mxu0 0
  %615 = vmatmul.mubr.bf16.gmra.mrb[0].mxu0 %v372
  %v616 = vpop.f32.mrb[0].mxu0
  %v617 = vadd.f32 0.0, %v616
  %v618 = vpop.f32.mrb[0].mxu0
  %v619 = vpop.f32.mrb[0].mxu0
  %v620 = vadd.f32 0.0, %v619
  %v621 = vpop.f32.mrb[0].mxu0
  %622 = vmatprep.mubr.bf16.mxu0 0
  %623 = vmatmul.mubr.bf16.gmra.mrb[0].mxu0 %v373
  %v624 = vpop.f32.mrb[0].mxu0
  %v625 = vadd.f32 0.0, %v624
  %v626 = vpop.f32.mrb[0].mxu0
  %v627 = vpop.f32.mrb[0].mxu0
  %v628 = vadd.f32 0.0, %v627
  %v629 = vpop.f32.mrb[0].mxu0
  %630 = vmatprep.mubr.bf16.mxu0 0
  %631 = vmatmul.mubr.bf16.gmra.mrb[0].mxu0 %v374
  %v632 = vpop.f32.mrb[0].mxu0
  %v633 = vadd.f32 0.0, %v632
  %v634 = vpop.f32.mrb[0].mxu0
  %v635 = vpop.f32.mrb[0].mxu0
  %v636 = vadd.f32 0.0, %v635
  %v637 = vpop.f32.mrb[0].mxu0
  %638 = vmatprep.mubr.bf16.mxu0 0
  %639 = vmatmul.mubr.bf16.gmra.mrb[0].mxu0 %v375
  %v640 = vpop.f32.mrb[0].mxu0
  %v641 = vadd.f32 0.0, %v640
  %v642 = vpop.f32.mrb[0].mxu0
  %v643 = vpop.f32.mrb[0].mxu0
  %v644 = vadd.f32 0.0, %v643
  %v645 = vpop.f32.mrb[0].mxu0
  %646 = vmatprep.mubr.bf16.mxu0 0
  %647 = vmatmul.mubr.bf16.gmra.mrb[0].mxu0 %v376
  %v648 = vpop.f32.mrb[0].mxu0
  %v649 = vadd.f32 0.0, %v648
  %v650 = vpop.f32.mrb[0].mxu0
  %v651 = vpop.f32.mrb[0].mxu0
  %v652 = vadd.f32 0.0, %v651
  %v653 = vpop.f32.mrb[0].mxu0
  %654 = vmatprep.mubr.bf16.mxu0 0
  %655 = vmatmul.mubr.bf16.gmra.mrb[0].mxu0 %v377
  %v656 = vpop.f32.mrb[0].mxu0
  %v657 = vadd.f32 0.0, %v656
  %v658 = vpop.f32.mrb[0].mxu0
  %v659 = vpop.f32.mrb[0].mxu0
  %v660 = vadd.f32 0.0, %v659
  %v661 = vpop.f32.mrb[0].mxu0
  %662 = vmatprep.mubr.bf16.mxu0 0
  %663 = vmatmul.mubr.bf16.gmra.mrb[0].mxu0 %v378
  %v664 = vpop.f32.mrb[0].mxu0
  %v665 = vadd.f32 0.0, %v664
  %v666 = vpop.f32.mrb[0].mxu0
  %v667 = vpop.f32.mrb[0].mxu0
  %v668 = vadd.f32 0.0, %v667
  %v669 = vpop.f32.mrb[0].mxu0
  %670 = vmatprep.mubr.bf16.mxu0 0
  %671 = vmatmul.mubr.bf16.gmra.mrb[0].mxu0 %v379
  %v672 = vpop.f32.mrb[0].mxu0
  %v673 = vadd.f32 0.0, %v672
  %v674 = vpop.f32.mrb[0].mxu0
  %v675 = vpop.f32.mrb[0].mxu0
  %v676 = vadd.f32 0.0, %v675
  %v677 = vpop.f32.mrb[0].mxu0
  %678 = vmatprep.mubr.bf16.mxu0 0
  %679 = vmatmul.mubr.bf16.gmra.mrb[0].mxu0 %v380
  %v680 = vpop.f32.mrb[0].mxu0
  %v681 = vadd.f32 0.0, %v680
  %v682 = vpop.f32.mrb[0].mxu0
  %v683 = vpop.f32.mrb[0].mxu0
  %v684 = vadd.f32 0.0, %v683
  %v685 = vpop.f32.mrb[0].mxu0
  %686 = vmatprep.mubr.bf16.mxu0 0
  %687 = vmatmul.mubr.bf16.gmra.mrb[0].mxu0 %v381
  %v688 = vpop.f32.mrb[0].mxu0
  %v689 = vadd.f32 0.0, %v688
  %v690 = vpop.f32.mrb[0].mxu0
  %v691 = vpop.f32.mrb[0].mxu0
  %v692 = vadd.f32 0.0, %v691
  %v693 = vpop.f32.mrb[0].mxu0
  %694 = vmatprep.mubr.bf16.mxu0 0
  %695 = vmatmul.mubr.bf16.gmra.mrb[0].mxu0 %v382
  %v696 = vpop.f32.mrb[0].mxu0
  %v697 = vadd.f32 0.0, %v696
  %v698 = vpop.f32.mrb[0].mxu0
  %v699 = vpop.f32.mrb[0].mxu0
  %v700 = vadd.f32 0.0, %v699
  %v701 = vpop.f32.mrb[0].mxu0
  %702 = vmatprep.mubr.bf16.mxu0 0
  %703 = vmatmul.mubr.bf16.gmra.mrb[0].mxu0 %v383
  %v704 = vpop.f32.mrb[0].mxu0
  %v705 = vadd.f32 0.0, %v704
  %v706 = vpop.f32.mrb[0].mxu0
  %v707 = vpop.f32.mrb[0].mxu0
  %v708 = vadd.f32 0.0, %v707
  %v709 = vpop.f32.mrb[0].mxu0
  %710 = vmatprep.mubr.bf16.mxu0 0
  %711 = vmatmul.mubr.bf16.gmra.mrb[0].mxu0 %v384
  %v712 = vpop.f32.mrb[0].mxu0
  %v713 = vadd.f32 0.0, %v712
  %v714 = vpop.f32.mrb[0].mxu0
  %v715 = vpop.f32.mrb[0].mxu0
  %v716 = vadd.f32 0.0, %v715
  %v717 = vpop.f32.mrb[0].mxu0
  %718 = vmatprep.mubr.bf16.mxu0 0
  %719 = vmatmul.mubr.bf16.gmra.mrb[0].mxu0 %v385
  %v720 = vpop.f32.mrb[0].mxu0
  %v721 = vadd.f32 0.0, %v720
  %v722 = vpop.f32.mrb[0].mxu0
  %v723 = vpop.f32.mrb[0].mxu0
  %v724 = vadd.f32 0.0, %v723
  %v725 = vpop.f32.mrb[0].mxu0
  %726 = vmatprep.mubr.bf16.mxu0 0
  %727 = vmatmul.mubr.bf16.gmra.mrb[0].mxu0 %v386
  %v728 = vpop.f32.mrb[0].mxu0
  %v729 = vadd.f32 0.0, %v728
  %v730 = vpop.f32.mrb[0].mxu0
  %v731 = vpop.f32.mrb[0].mxu0
  %v732 = vadd.f32 0.0, %v731
  %v733 = vpop.f32.mrb[0].mxu0
  %734 = vmatprep.mubr.bf16.mxu0 0
  %735 = vmatmul.mubr.bf16.gmra.mrb[0].mxu0 %v387
  %v736 = vpop.f32.mrb[0].mxu0
  %v737 = vadd.f32 0.0, %v736
  %v738 = vpop.f32.mrb[0].mxu0
  %v739 = vpop.f32.mrb[0].mxu0
  %v740 = vadd.f32 0.0, %v739
  %v741 = vpop.f32.mrb[0].mxu0
  %742 = vmatprep.mubr.bf16.mxu0 0
  %743 = vmatmul.mubr.bf16.gmra.mrb[0].mxu0 %v388
  %v744 = vpop.f32.mrb[0].mxu0
  %v745 = vadd.f32 0.0, %v744
  %v746 = vpop.f32.mrb[0].mxu0
  %v747 = vpop.f32.mrb[0].mxu0
  %v748 = vadd.f32 0.0, %v747
  %v749 = vpop.f32.mrb[0].mxu0
  %750 = vmatprep.mubr.bf16.mxu0 0
  %751 = vmatmul.mubr.bf16.gmra.mrb[0].mxu0 %v389
  %v752 = vpop.f32.mrb[0].mxu0
  %v753 = vadd.f32 0.0, %v752
  %v754 = vpop.f32.mrb[0].mxu0
  %v755 = vpop.f32.mrb[0].mxu0
  %v756 = vadd.f32 0.0, %v755
  %v757 = vpop.f32.mrb[0].mxu0
  %758 = vdwg.mxu0
  %v759 = vadd.f32 %v86, %v505
  %v760 = vadd.f32 %v87, %v508
  %v761 = vadd.f32 %v88, %v513
  %v762 = vadd.f32 %v89, %v516
  %v763 = vadd.f32 %v90, %v521
  %v764 = vadd.f32 %v91, %v524
  %v765 = vadd.f32 %v92, %v529
  %v766 = vadd.f32 %v93, %v532
  %v767 = vadd.f32 %v94, %v537
  %v768 = vadd.f32 %v95, %v540
  %v769 = vadd.f32 %v96, %v545
  %v770 = vadd.f32 %v97, %v548
  %v771 = vadd.f32 %v98, %v553
  %v772 = vadd.f32 %v99, %v556
  %v773 = vadd.f32 %v100, %v561
  %v774 = vadd.f32 %v101, %v564
  %v775 = vadd.f32 %v102, %v569
  %v776 = vadd.f32 %v103, %v572
  %v777 = vadd.f32 %v104, %v577
  %v778 = vadd.f32 %v105, %v580
  %v779 = vadd.f32 %v106, %v585
  %v780 = vadd.f32 %v107, %v588
  %v781 = vadd.f32 %v108, %v593
  %v782 = vadd.f32 %v109, %v596
  %v783 = vadd.f32 %v110, %v601
  %v784 = vadd.f32 %v111, %v604
  %v785 = vadd.f32 %v112, %v609
  %v786 = vadd.f32 %v113, %v612
  %v787 = vadd.f32 %v114, %v617
  %v788 = vadd.f32 %v115, %v620
  %v789 = vadd.f32 %v116, %v625
  %v790 = vadd.f32 %v117, %v628
  %v791 = vadd.f32 %v118, %v633
  %v792 = vadd.f32 %v119, %v636
  %v793 = vadd.f32 %v120, %v641
  %v794 = vadd.f32 %v121, %v644
  %v795 = vadd.f32 %v122, %v649
  %v796 = vadd.f32 %v123, %v652
  %v797 = vadd.f32 %v124, %v657
  %v798 = vadd.f32 %v125, %v660
  %v799 = vadd.f32 %v126, %v665
  %v800 = vadd.f32 %v127, %v668
  %v801 = vadd.f32 %v128, %v673
  %v802 = vadd.f32 %v129, %v676
  %v803 = vadd.f32 %v130, %v681
  %v804 = vadd.f32 %v131, %v684
  %v805 = vadd.f32 %v132, %v689
  %v806 = vadd.f32 %v133, %v692
  %v807 = vadd.f32 %v134, %v697
  %v808 = vadd.f32 %v135, %v700
  %v809 = vadd.f32 %v136, %v705
  %v810 = vadd.f32 %v137, %v708
  %v811 = vadd.f32 %v138, %v713
  %v812 = vadd.f32 %v139, %v716
  %v813 = vadd.f32 %v140, %v721
  %v814 = vadd.f32 %v141, %v724
  %v815 = vadd.f32 %v142, %v729
  %v816 = vadd.f32 %v143, %v732
  %v817 = vadd.f32 %v144, %v737
  %v818 = vadd.f32 %v145, %v740
  %v819 = vadd.f32 %v146, %v745
  %v820 = vadd.f32 %v147, %v748
  %v821 = vadd.f32 %v148, %v753
  %v822 = vadd.f32 %v149, %v756
  %823 = vst [vmem:[#allocation2] sm:$0xff] %v759
  %824 = vst [vmem:[#allocation2 + $0x8] sm:$0xff] %v760
  %825 = vst [vmem:[#allocation2 + $0x10] sm:$0xff] %v761
  %826 = vst [vmem:[#allocation2 + $0x18] sm:$0xff] %v762
  %827 = vst [vmem:[#allocation2 + $0x20] sm:$0xff] %v763
  %828 = vst [vmem:[#allocation2 + $0x28] sm:$0xff] %v764
  %829 = vst [vmem:[#allocation2 + $0x30] sm:$0xff] %v765
  %830 = vst [vmem:[#allocation2 + $0x38] sm:$0xff] %v766
  %831 = vst [vmem:[#allocation2 + $0x40] sm:$0xff] %v767
  %832 = vst [vmem:[#allocation2 + $0x48] sm:$0xff] %v768
  %833 = vst [vmem:[#allocation2 + $0x50] sm:$0xff] %v769
  %834 = vst [vmem:[#allocation2 + $0x58] sm:$0xff] %v770
  %835 = vst [vmem:[#allocation2 + $0x60] sm:$0xff] %v771
  %836 = vst [vmem:[#allocation2 + $0x68] sm:$0xff] %v772
  %837 = vst [vmem:[#allocation2 + $0x70] sm:$0xff] %v773
  %838 = vst [vmem:[#allocation2 + $0x78] sm:$0xff] %v774
  %839 = vst [vmem:[#allocation2 + $0x80] sm:$0xff] %v775
  %840 = vst [vmem:[#allocation2 + $0x88] sm:$0xff] %v776
  %841 = vst [vmem:[#allocation2 + $0x90] sm:$0xff] %v777
  %842 = vst [vmem:[#allocation2 + $0x98] sm:$0xff] %v778
  %843 = vst [vmem:[#allocation2 + $0xa0] sm:$0xff] %v779
  %844 = vst [vmem:[#allocation2 + $0xa8] sm:$0xff] %v780
  %845 = vst [vmem:[#allocation2 + $0xb0] sm:$0xff] %v781
  %846 = vst [vmem:[#allocation2 + $0xb8] sm:$0xff] %v782
  %847 = vst [vmem:[#allocation2 + $0xc0] sm:$0xff] %v783
  %848 = vst [vmem:[#allocation2 + $0xc8] sm:$0xff] %v784
  %849 = vst [vmem:[#allocation2 + $0xd0] sm:$0xff] %v785
  %850 = vst [vmem:[#allocation2 + $0xd8] sm:$0xff] %v786
  %851 = vst [vmem:[#allocation2 + $0xe0] sm:$0xff] %v787
  %852 = vst [vmem:[#allocation2 + $0xe8] sm:$0xff] %v788
  %853 = vst [vmem:[#allocation2 + $0xf0] sm:$0xff] %v789
  %854 = vst [vmem:[#allocation2 + $0xf8] sm:$0xff] %v790
  %855 = vst [vmem:[#allocation2 + $0x100] sm:$0xff] %v791
  %856 = vst [vmem:[#allocation2 + $0x108] sm:$0xff] %v792
  %857 = vst [vmem:[#allocation2 + $0x110] sm:$0xff] %v793
  %858 = vst [vmem:[#allocation2 + $0x118] sm:$0xff] %v794
  %859 = vst [vmem:[#allocation2 + $0x120] sm:$0xff] %v795
  %860 = vst [vmem:[#allocation2 + $0x128] sm:$0xff] %v796
  %861 = vst [vmem:[#allocation2 + $0x130] sm:$0xff] %v797
  %862 = vst [vmem:[#allocation2 + $0x138] sm:$0xff] %v798
  %863 = vst [vmem:[#allocation2 + $0x140] sm:$0xff] %v799
  %864 = vst [vmem:[#allocation2 + $0x148] sm:$0xff] %v800
  %865 = vst [vmem:[#allocation2 + $0x150] sm:$0xff] %v801
  %866 = vst [vmem:[#allocation2 + $0x158] sm:$0xff] %v802
  %867 = vst [vmem:[#allocation2 + $0x160] sm:$0xff] %v803
  %868 = vst [vmem:[#allocation2 + $0x168] sm:$0xff] %v804
  %869 = vst [vmem:[#allocation2 + $0x170] sm:$0xff] %v805
  %870 = vst [vmem:[#allocation2 + $0x178] sm:$0xff] %v806
  %871 = vst [vmem:[#allocation2 + $0x180] sm:$0xff] %v807
  %872 = vst [vmem:[#allocation2 + $0x188] sm:$0xff] %v808
  %873 = vst [vmem:[#allocation2 + $0x190] sm:$0xff] %v809
  %874 = vst [vmem:[#allocation2 + $0x198] sm:$0xff] %v810
  %875 = vst [vmem:[#allocation2 + $0x1a0] sm:$0xff] %v811
  %876 = vst [vmem:[#allocation2 + $0x1a8] sm:$0xff] %v812
  %877 = vst [vmem:[#allocation2 + $0x1b0] sm:$0xff] %v813
  %878 = vst [vmem:[#allocation2 + $0x1b8] sm:$0xff] %v814
  %879 = vst [vmem:[#allocation2 + $0x1c0] sm:$0xff] %v815
  %880 = vst [vmem:[#allocation2 + $0x1c8] sm:$0xff] %v816
  %881 = vst [vmem:[#allocation2 + $0x1d0] sm:$0xff] %v817
  %882 = vst [vmem:[#allocation2 + $0x1d8] sm:$0xff] %v818
  %883 = vst [vmem:[#allocation2 + $0x1e0] sm:$0xff] %v819
  %884 = vst [vmem:[#allocation2 + $0x1e8] sm:$0xff] %v820
  %885 = vst [vmem:[#allocation2 + $0x1f0] sm:$0xff] %v821
  %886 = vst [vmem:[#allocation2 + $0x1f8] sm:$0xff] %v822
  // Predicated region
  $region22: #{resblock_forward.7} parent=0 // pred_check
    %p887 = pneg %p18
  $region23: #{resblock_forward.7} parent=0 // pred_check_branch
    %889 = sbr.rel (%p887) target = $region25
  $region24: #{resblock_forward.7} parent=0 // pred_region
    %v890 = vld [vmem:[#allocation2] sm:$0xff]
    %v891 = vld [vmem:[#allocation2 + $0x8] sm:$0xff]
    %v892 = vld [vmem:[#allocation2 + $0x10] sm:$0xff]
    %v893 = vld [vmem:[#allocation2 + $0x18] sm:$0xff]
    %v894 = vld [vmem:[#allocation2 + $0x20] sm:$0xff]
    %v895 = vld [vmem:[#allocation2 + $0x28] sm:$0xff]
    %v896 = vld [vmem:[#allocation2 + $0x30] sm:$0xff]
    %v897 = vld [vmem:[#allocation2 + $0x38] sm:$0xff]
    %v898 = vld [vmem:[#allocation2 + $0x40] sm:$0xff]
    %v899 = vld [vmem:[#allocation2 + $0x48] sm:$0xff]
    %v900 = vld [vmem:[#allocation2 + $0x50] sm:$0xff]
    %v901 = vld [vmem:[#allocation2 + $0x58] sm:$0xff]
    %v902 = vld [vmem:[#allocation2 + $0x60] sm:$0xff]
    %v903 = vld [vmem:[#allocation2 + $0x68] sm:$0xff]
    %v904 = vld [vmem:[#allocation2 + $0x70] sm:$0xff]
    %v905 = vld [vmem:[#allocation2 + $0x78] sm:$0xff]
    %v906 = vld [vmem:[#allocation2 + $0x80] sm:$0xff]
    %v907 = vld [vmem:[#allocation2 + $0x88] sm:$0xff]
    %v908 = vld [vmem:[#allocation2 + $0x90] sm:$0xff]
    %v909 = vld [vmem:[#allocation2 + $0x98] sm:$0xff]
    %v910 = vld [vmem:[#allocation2 + $0xa0] sm:$0xff]
    %v911 = vld [vmem:[#allocation2 + $0xa8] sm:$0xff]
    %v912 = vld [vmem:[#allocation2 + $0xb0] sm:$0xff]
    %v913 = vld [vmem:[#allocation2 + $0xb8] sm:$0xff]
    %v914 = vld [vmem:[#allocation2 + $0xc0] sm:$0xff]
    %v915 = vld [vmem:[#allocation2 + $0xc8] sm:$0xff]
    %v916 = vld [vmem:[#allocation2 + $0xd0] sm:$0xff]
    %v917 = vld [vmem:[#allocation2 + $0xd8] sm:$0xff]
    %v918 = vld [vmem:[#allocation2 + $0xe0] sm:$0xff]
    %v919 = vld [vmem:[#allocation2 + $0xe8] sm:$0xff]
    %v920 = vld [vmem:[#allocation2 + $0xf0] sm:$0xff]
    %v921 = vld [vmem:[#allocation2 + $0xf8] sm:$0xff]
    %v922 = vld [vmem:[#allocation2 + $0x100] sm:$0xff]
    %v923 = vld [vmem:[#allocation2 + $0x108] sm:$0xff]
    %v924 = vld [vmem:[#allocation2 + $0x110] sm:$0xff]
    %v925 = vld [vmem:[#allocation2 + $0x118] sm:$0xff]
    %v926 = vld [vmem:[#allocation2 + $0x120] sm:$0xff]
    %v927 = vld [vmem:[#allocation2 + $0x128] sm:$0xff]
    %v928 = vld [vmem:[#allocation2 + $0x130] sm:$0xff]
    %v929 = vld [vmem:[#allocation2 + $0x138] sm:$0xff]
    %v930 = vld [vmem:[#allocation2 + $0x140] sm:$0xff]
    %v931 = vld [vmem:[#allocation2 + $0x148] sm:$0xff]
    %v932 = vld [vmem:[#allocation2 + $0x150] sm:$0xff]
    %v933 = vld [vmem:[#allocation2 + $0x158] sm:$0xff]
    %v934 = vld [vmem:[#allocation2 + $0x160] sm:$0xff]
    %v935 = vld [vmem:[#allocation2 + $0x168] sm:$0xff]
    %v936 = vld [vmem:[#allocation2 + $0x170] sm:$0xff]
    %v937 = vld [vmem:[#allocation2 + $0x178] sm:$0xff]
    %v938 = vld [vmem:[#allocation2 + $0x180] sm:$0xff]
    %v939 = vld [vmem:[#allocation2 + $0x188] sm:$0xff]
    %v940 = vld [vmem:[#allocation2 + $0x190] sm:$0xff]
    %v941 = vld [vmem:[#allocation2 + $0x198] sm:$0xff]
    %v942 = vld [vmem:[#allocation2 + $0x1a0] sm:$0xff]
    %v943 = vld [vmem:[#allocation2 + $0x1a8] sm:$0xff]
    %v944 = vld [vmem:[#allocation2 + $0x1b0] sm:$0xff]
    %v945 = vld [vmem:[#allocation2 + $0x1b8] sm:$0xff]
    %v946 = vld [vmem:[#allocation2 + $0x1c0] sm:$0xff]
    %v947 = vld [vmem:[#allocation2 + $0x1c8] sm:$0xff]
    %v948 = vld [vmem:[#allocation2 + $0x1d0] sm:$0xff]
    %v949 = vld [vmem:[#allocation2 + $0x1d8] sm:$0xff]
    %v950 = vld [vmem:[#allocation2 + $0x1e0] sm:$0xff]
    %v951 = vld [vmem:[#allocation2 + $0x1e8] sm:$0xff]
    %v952 = vld [vmem:[#allocation2 + $0x1f0] sm:$0xff]
    %v953 = vld [vmem:[#allocation2 + $0x1f8] sm:$0xff]
    %v954 = vld [vmem:[%s2] sm:$0x1]
    %v956 = vlaneseq
    %v957 = vshrl.u32 %v956, 7
    %v958 = vsub.s32 0, %v957
    %v959 = vrot.slane %v954, %v958
    %v961 = vadd.f32 %v890, %v959
    %v962 = vadd.f32 %v891, %v959
    %v963 = vadd.f32 %v892, %v959
    %v964 = vadd.f32 %v893, %v959
    %v965 = vadd.f32 %v894, %v959
    %v966 = vadd.f32 %v895, %v959
    %v967 = vadd.f32 %v896, %v959
    %v968 = vadd.f32 %v897, %v959
    %v969 = vadd.f32 %v898, %v959
    %v970 = vadd.f32 %v899, %v959
    %v971 = vadd.f32 %v900, %v959
    %v972 = vadd.f32 %v901, %v959
    %v973 = vadd.f32 %v902, %v959
    %v974 = vadd.f32 %v903, %v959
    %v975 = vadd.f32 %v904, %v959
    %v976 = vadd.f32 %v905, %v959
    %v977 = vadd.f32 %v906, %v959
    %v978 = vadd.f32 %v907, %v959
    %v979 = vadd.f32 %v908, %v959
    %v980 = vadd.f32 %v909, %v959
    %v981 = vadd.f32 %v910, %v959
    %v982 = vadd.f32 %v911, %v959
    %v983 = vadd.f32 %v912, %v959
    %v984 = vadd.f32 %v913, %v959
    %v985 = vadd.f32 %v914, %v959
    %v986 = vadd.f32 %v915, %v959
    %v987 = vadd.f32 %v916, %v959
    %v988 = vadd.f32 %v917, %v959
    %v989 = vadd.f32 %v918, %v959
    %v990 = vadd.f32 %v919, %v959
    %v991 = vadd.f32 %v920, %v959
    %v992 = vadd.f32 %v921, %v959
    %v993 = vadd.f32 %v922, %v959
    %v994 = vadd.f32 %v923, %v959
    %v995 = vadd.f32 %v924, %v959
    %v996 = vadd.f32 %v925, %v959
    %v997 = vadd.f32 %v926, %v959
    %v998 = vadd.f32 %v927, %v959
    %v999 = vadd.f32 %v928, %v959
    %v1000 = vadd.f32 %v929, %v959
    %v1001 = vadd.f32 %v930, %v959
    %v1002 = vadd.f32 %v931, %v959
    %v1003 = vadd.f32 %v932, %v959
    %v1004 = vadd.f32 %v933, %v959
    %v1005 = vadd.f32 %v934, %v959
    %v1006 = vadd.f32 %v935, %v959
    %v1007 = vadd.f32 %v936, %v959
    %v1008 = vadd.f32 %v937, %v959
    %v1009 = vadd.f32 %v938, %v959
    %v1010 = vadd.f32 %v939, %v959
    %v1011 = vadd.f32 %v940, %v959
    %v1012 = vadd.f32 %v941, %v959
    %v1013 = vadd.f32 %v942, %v959
    %v1014 = vadd.f32 %v943, %v959
    %v1015 = vadd.f32 %v944, %v959
    %v1016 = vadd.f32 %v945, %v959
    %v1017 = vadd.f32 %v946, %v959
    %v1018 = vadd.f32 %v947, %v959
    %v1019 = vadd.f32 %v948, %v959
    %v1020 = vadd.f32 %v949, %v959
    %v1021 = vadd.f32 %v950, %v959
    %v1022 = vadd.f32 %v951, %v959
    %v1023 = vadd.f32 %v952, %v959
    %v1024 = vadd.f32 %v953, %v959
    %v1025 = vld [vmem:[%s3] sm:$0xff]
    %v1026 = vld [vmem:[%s3 + $0x8] sm:$0xff]
    %v1027 = vld [vmem:[%s3 + $0x10] sm:$0xff]
    %v1028 = vld [vmem:[%s3 + $0x18] sm:$0xff]
    %v1029 = vld [vmem:[%s3 + $0x20] sm:$0xff]
    %v1030 = vld [vmem:[%s3 + $0x28] sm:$0xff]
    %v1031 = vld [vmem:[%s3 + $0x30] sm:$0xff]
    %v1032 = vld [vmem:[%s3 + $0x38] sm:$0xff]
    %v1033 = vld [vmem:[%s3 + $0x40] sm:$0xff]
    %v1034 = vld [vmem:[%s3 + $0x48] sm:$0xff]
    %v1035 = vld [vmem:[%s3 + $0x50] sm:$0xff]
    %v1036 = vld [vmem:[%s3 + $0x58] sm:$0xff]
    %v1037 = vld [vmem:[%s3 + $0x60] sm:$0xff]
    %v1038 = vld [vmem:[%s3 + $0x68] sm:$0xff]
    %v1039 = vld [vmem:[%s3 + $0x70] sm:$0xff]
    %v1040 = vld [vmem:[%s3 + $0x78] sm:$0xff]
    %v1041 = vld [vmem:[%s3 + $0x80] sm:$0xff]
    %v1042 = vld [vmem:[%s3 + $0x88] sm:$0xff]
    %v1043 = vld [vmem:[%s3 + $0x90] sm:$0xff]
    %v1044 = vld [vmem:[%s3 + $0x98] sm:$0xff]
    %v1045 = vld [vmem:[%s3 + $0xa0] sm:$0xff]
    %v1046 = vld [vmem:[%s3 + $0xa8] sm:$0xff]
    %v1047 = vld [vmem:[%s3 + $0xb0] sm:$0xff]
    %v1048 = vld [vmem:[%s3 + $0xb8] sm:$0xff]
    %v1049 = vld [vmem:[%s3 + $0xc0] sm:$0xff]
    %v1050 = vld [vmem:[%s3 + $0xc8] sm:$0xff]
    %v1051 = vld [vmem:[%s3 + $0xd0] sm:$0xff]
    %v1052 = vld [vmem:[%s3 + $0xd8] sm:$0xff]
    %v1053 = vld [vmem:[%s3 + $0xe0] sm:$0xff]
    %v1054 = vld [vmem:[%s3 + $0xe8] sm:$0xff]
    %v1055 = vld [vmem:[%s3 + $0xf0] sm:$0xff]
    %v1056 = vld [vmem:[%s3 + $0xf8] sm:$0xff]
    %v1057 = vld [vmem:[%s3 + $0x100] sm:$0xff]
    %v1058 = vld [vmem:[%s3 + $0x108] sm:$0xff]
    %v1059 = vld [vmem:[%s3 + $0x110] sm:$0xff]
    %v1060 = vld [vmem:[%s3 + $0x118] sm:$0xff]
    %v1061 = vld [vmem:[%s3 + $0x120] sm:$0xff]
    %v1062 = vld [vmem:[%s3 + $0x128] sm:$0xff]
    %v1063 = vld [vmem:[%s3 + $0x130] sm:$0xff]
    %v1064 = vld [vmem:[%s3 + $0x138] sm:$0xff]
    %v1065 = vld [vmem:[%s3 + $0x140] sm:$0xff]
    %v1066 = vld [vmem:[%s3 + $0x148] sm:$0xff]
    %v1067 = vld [vmem:[%s3 + $0x150] sm:$0xff]
    %v1068 = vld [vmem:[%s3 + $0x158] sm:$0xff]
    %v1069 = vld [vmem:[%s3 + $0x160] sm:$0xff]
    %v1070 = vld [vmem:[%s3 + $0x168] sm:$0xff]
    %v1071 = vld [vmem:[%s3 + $0x170] sm:$0xff]
    %v1072 = vld [vmem:[%s3 + $0x178] sm:$0xff]
    %v1073 = vld [vmem:[%s3 + $0x180] sm:$0xff]
    %v1074 = vld [vmem:[%s3 + $0x188] sm:$0xff]
    %v1075 = vld [vmem:[%s3 + $0x190] sm:$0xff]
    %v1076 = vld [vmem:[%s3 + $0x198] sm:$0xff]
    %v1077 = vld [vmem:[%s3 + $0x1a0] sm:$0xff]
    %v1078 = vld [vmem:[%s3 + $0x1a8] sm:$0xff]
    %v1079 = vld [vmem:[%s3 + $0x1b0] sm:$0xff]
    %v1080 = vld [vmem:[%s3 + $0x1b8] sm:$0xff]
    %v1081 = vld [vmem:[%s3 + $0x1c0] sm:$0xff]
    %v1082 = vld [vmem:[%s3 + $0x1c8] sm:$0xff]
    %v1083 = vld [vmem:[%s3 + $0x1d0] sm:$0xff]
    %v1084 = vld [vmem:[%s3 + $0x1d8] sm:$0xff]
    %v1085 = vld [vmem:[%s3 + $0x1e0] sm:$0xff]
    %v1086 = vld [vmem:[%s3 + $0x1e8] sm:$0xff]
    %v1087 = vld [vmem:[%s3 + $0x1f0] sm:$0xff]
    %v1088 = vld [vmem:[%s3 + $0x1f8] sm:$0xff]
    %v1089 = vadd.f32 %v961, %v1025
    %v1090 = vadd.f32 %v962, %v1026
    %v1091 = vadd.f32 %v963, %v1027
    %v1092 = vadd.f32 %v964, %v1028
    %v1093 = vadd.f32 %v965, %v1029
    %v1094 = vadd.f32 %v966, %v1030
    %v1095 = vadd.f32 %v967, %v1031
    %v1096 = vadd.f32 %v968, %v1032
    %v1097 = vadd.f32 %v969, %v1033
    %v1098 = vadd.f32 %v970, %v1034
    %v1099 = vadd.f32 %v971, %v1035
    %v1100 = vadd.f32 %v972, %v1036
    %v1101 = vadd.f32 %v973, %v1037
    %v1102 = vadd.f32 %v974, %v1038
    %v1103 = vadd.f32 %v975, %v1039
    %v1104 = vadd.f32 %v976, %v1040
    %v1105 = vadd.f32 %v977, %v1041
    %v1106 = vadd.f32 %v978, %v1042
    %v1107 = vadd.f32 %v979, %v1043
    %v1108 = vadd.f32 %v980, %v1044
    %v1109 = vadd.f32 %v981, %v1045
    %v1110 = vadd.f32 %v982, %v1046
    %v1111 = vadd.f32 %v983, %v1047
    %v1112 = vadd.f32 %v984, %v1048
    %v1113 = vadd.f32 %v985, %v1049
    %v1114 = vadd.f32 %v986, %v1050
    %v1115 = vadd.f32 %v987, %v1051
    %v1116 = vadd.f32 %v988, %v1052
    %v1117 = vadd.f32 %v989, %v1053
    %v1118 = vadd.f32 %v990, %v1054
    %v1119 = vadd.f32 %v991, %v1055
    %v1120 = vadd.f32 %v992, %v1056
    %v1121 = vadd.f32 %v993, %v1057
    %v1122 = vadd.f32 %v994, %v1058
    %v1123 = vadd.f32 %v995, %v1059
    %v1124 = vadd.f32 %v996, %v1060
    %v1125 = vadd.f32 %v997, %v1061
    %v1126 = vadd.f32 %v998, %v1062
    %v1127 = vadd.f32 %v999, %v1063
    %v1128 = vadd.f32 %v1000, %v1064
    %v1129 = vadd.f32 %v1001, %v1065
    %v1130 = vadd.f32 %v1002, %v1066
    %v1131 = vadd.f32 %v1003, %v1067
    %v1132 = vadd.f32 %v1004, %v1068
    %v1133 = vadd.f32 %v1005, %v1069
    %v1134 = vadd.f32 %v1006, %v1070
    %v1135 = vadd.f32 %v1007, %v1071
    %v1136 = vadd.f32 %v1008, %v1072
    %v1137 = vadd.f32 %v1009, %v1073
    %v1138 = vadd.f32 %v1010, %v1074
    %v1139 = vadd.f32 %v1011, %v1075
    %v1140 = vadd.f32 %v1012, %v1076
    %v1141 = vadd.f32 %v1013, %v1077
    %v1142 = vadd.f32 %v1014, %v1078
    %v1143 = vadd.f32 %v1015, %v1079
    %v1144 = vadd.f32 %v1016, %v1080
    %v1145 = vadd.f32 %v1017, %v1081
    %v1146 = vadd.f32 %v1018, %v1082
    %v1147 = vadd.f32 %v1019, %v1083
    %v1148 = vadd.f32 %v1020, %v1084
    %v1149 = vadd.f32 %v1021, %v1085
    %v1150 = vadd.f32 %v1022, %v1086
    %v1151 = vadd.f32 %v1023, %v1087
    %v1152 = vadd.f32 %v1024, %v1088
    %v1153 = vmax.f32 %v1089, 0.0
    %v1154 = vmax.f32 %v1090, 0.0
    %v1155 = vmax.f32 %v1091, 0.0
    %v1156 = vmax.f32 %v1092, 0.0
    %v1157 = vmax.f32 %v1093, 0.0
    %v1158 = vmax.f32 %v1094, 0.0
    %v1159 = vmax.f32 %v1095, 0.0
    %v1160 = vmax.f32 %v1096, 0.0
    %v1161 = vmax.f32 %v1097, 0.0
    %v1162 = vmax.f32 %v1098, 0.0
    %v1163 = vmax.f32 %v1099, 0.0
    %v1164 = vmax.f32 %v1100, 0.0
    %v1165 = vmax.f32 %v1101, 0.0
    %v1166 = vmax.f32 %v1102, 0.0
    %v1167 = vmax.f32 %v1103, 0.0
    %v1168 = vmax.f32 %v1104, 0.0
    %v1169 = vmax.f32 %v1105, 0.0
    %v1170 = vmax.f32 %v1106, 0.0
    %v1171 = vmax.f32 %v1107, 0.0
    %v1172 = vmax.f32 %v1108, 0.0
    %v1173 = vmax.f32 %v1109, 0.0
    %v1174 = vmax.f32 %v1110, 0.0
    %v1175 = vmax.f32 %v1111, 0.0
    %v1176 = vmax.f32 %v1112, 0.0
    %v1177 = vmax.f32 %v1113, 0.0
    %v1178 = vmax.f32 %v1114, 0.0
    %v1179 = vmax.f32 %v1115, 0.0
    %v1180 = vmax.f32 %v1116, 0.0
    %v1181 = vmax.f32 %v1117, 0.0
    %v1182 = vmax.f32 %v1118, 0.0
    %v1183 = vmax.f32 %v1119, 0.0
    %v1184 = vmax.f32 %v1120, 0.0
    %v1185 = vmax.f32 %v1121, 0.0
    %v1186 = vmax.f32 %v1122, 0.0
    %v1187 = vmax.f32 %v1123, 0.0
    %v1188 = vmax.f32 %v1124, 0.0
    %v1189 = vmax.f32 %v1125, 0.0
    %v1190 = vmax.f32 %v1126, 0.0
    %v1191 = vmax.f32 %v1127, 0.0
    %v1192 = vmax.f32 %v1128, 0.0
    %v1193 = vmax.f32 %v1129, 0.0
    %v1194 = vmax.f32 %v1130, 0.0
    %v1195 = vmax.f32 %v1131, 0.0
    %v1196 = vmax.f32 %v1132, 0.0
    %v1197 = vmax.f32 %v1133, 0.0
    %v1198 = vmax.f32 %v1134, 0.0
    %v1199 = vmax.f32 %v1135, 0.0
    %v1200 = vmax.f32 %v1136, 0.0
    %v1201 = vmax.f32 %v1137, 0.0
    %v1202 = vmax.f32 %v1138, 0.0
    %v1203 = vmax.f32 %v1139, 0.0
    %v1204 = vmax.f32 %v1140, 0.0
    %v1205 = vmax.f32 %v1141, 0.0
    %v1206 = vmax.f32 %v1142, 0.0
    %v1207 = vmax.f32 %v1143, 0.0
    %v1208 = vmax.f32 %v1144, 0.0
    %v1209 = vmax.f32 %v1145, 0.0
    %v1210 = vmax.f32 %v1146, 0.0
    %v1211 = vmax.f32 %v1147, 0.0
    %v1212 = vmax.f32 %v1148, 0.0
    %v1213 = vmax.f32 %v1149, 0.0
    %v1214 = vmax.f32 %v1150, 0.0
    %v1215 = vmax.f32 %v1151, 0.0
    %v1216 = vmax.f32 %v1152, 0.0
    %1217 = vst [vmem:[%s4] sm:$0xff] %v1153
    %1218 = vst [vmem:[%s4 + $0x8] sm:$0xff] %v1154
    %1219 = vst [vmem:[%s4 + $0x10] sm:$0xff] %v1155
    %1220 = vst [vmem:[%s4 + $0x18] sm:$0xff] %v1156
    %1221 = vst [vmem:[%s4 + $0x20] sm:$0xff] %v1157
    %1222 = vst [vmem:[%s4 + $0x28] sm:$0xff] %v1158
    %1223 = vst [vmem:[%s4 + $0x30] sm:$0xff] %v1159
    %1224 = vst [vmem:[%s4 + $0x38] sm:$0xff] %v1160
    %1225 = vst [vmem:[%s4 + $0x40] sm:$0xff] %v1161
    %1226 = vst [vmem:[%s4 + $0x48] sm:$0xff] %v1162
    %1227 = vst [vmem:[%s4 + $0x50] sm:$0xff] %v1163
    %1228 = vst [vmem:[%s4 + $0x58] sm:$0xff] %v1164
    %1229 = vst [vmem:[%s4 + $0x60] sm:$0xff] %v1165
    %1230 = vst [vmem:[%s4 + $0x68] sm:$0xff] %v1166
    %1231 = vst [vmem:[%s4 + $0x70] sm:$0xff] %v1167
    %1232 = vst [vmem:[%s4 + $0x78] sm:$0xff] %v1168
    %1233 = vst [vmem:[%s4 + $0x80] sm:$0xff] %v1169
    %1234 = vst [vmem:[%s4 + $0x88] sm:$0xff] %v1170
    %1235 = vst [vmem:[%s4 + $0x90] sm:$0xff] %v1171
    %1236 = vst [vmem:[%s4 + $0x98] sm:$0xff] %v1172
    %1237 = vst [vmem:[%s4 + $0xa0] sm:$0xff] %v1173
    %1238 = vst [vmem:[%s4 + $0xa8] sm:$0xff] %v1174
    %1239 = vst [vmem:[%s4 + $0xb0] sm:$0xff] %v1175
    %1240 = vst [vmem:[%s4 + $0xb8] sm:$0xff] %v1176
    %1241 = vst [vmem:[%s4 + $0xc0] sm:$0xff] %v1177
    %1242 = vst [vmem:[%s4 + $0xc8] sm:$0xff] %v1178
    %1243 = vst [vmem:[%s4 + $0xd0] sm:$0xff] %v1179
    %1244 = vst [vmem:[%s4 + $0xd8] sm:$0xff] %v1180
    %1245 = vst [vmem:[%s4 + $0xe0] sm:$0xff] %v1181
    %1246 = vst [vmem:[%s4 + $0xe8] sm:$0xff] %v1182
    %1247 = vst [vmem:[%s4 + $0xf0] sm:$0xff] %v1183
    %1248 = vst [vmem:[%s4 + $0xf8] sm:$0xff] %v1184
    %1249 = vst [vmem:[%s4 + $0x100] sm:$0xff] %v1185
    %1250 = vst [vmem:[%s4 + $0x108] sm:$0xff] %v1186
    %1251 = vst [vmem:[%s4 + $0x110] sm:$0xff] %v1187
    %1252 = vst [vmem:[%s4 + $0x118] sm:$0xff] %v1188
    %1253 = vst [vmem:[%s4 + $0x120] sm:$0xff] %v1189
    %1254 = vst [vmem:[%s4 + $0x128] sm:$0xff] %v1190
    %1255 = vst [vmem:[%s4 + $0x130] sm:$0xff] %v1191
    %1256 = vst [vmem:[%s4 + $0x138] sm:$0xff] %v1192
    %1257 = vst [vmem:[%s4 + $0x140] sm:$0xff] %v1193
    %1258 = vst [vmem:[%s4 + $0x148] sm:$0xff] %v1194
    %1259 = vst [vmem:[%s4 + $0x150] sm:$0xff] %v1195
    %1260 = vst [vmem:[%s4 + $0x158] sm:$0xff] %v1196
    %1261 = vst [vmem:[%s4 + $0x160] sm:$0xff] %v1197
    %1262 = vst [vmem:[%s4 + $0x168] sm:$0xff] %v1198
    %1263 = vst [vmem:[%s4 + $0x170] sm:$0xff] %v1199
    %1264 = vst [vmem:[%s4 + $0x178] sm:$0xff] %v1200
    %1265 = vst [vmem:[%s4 + $0x180] sm:$0xff] %v1201
    %1266 = vst [vmem:[%s4 + $0x188] sm:$0xff] %v1202
    %1267 = vst [vmem:[%s4 + $0x190] sm:$0xff] %v1203
    %1268 = vst [vmem:[%s4 + $0x198] sm:$0xff] %v1204
    %1269 = vst [vmem:[%s4 + $0x1a0] sm:$0xff] %v1205
    %1270 = vst [vmem:[%s4 + $0x1a8] sm:$0xff] %v1206
    %1271 = vst [vmem:[%s4 + $0x1b0] sm:$0xff] %v1207
    %1272 = vst [vmem:[%s4 + $0x1b8] sm:$0xff] %v1208
    %1273 = vst [vmem:[%s4 + $0x1c0] sm:$0xff] %v1209
    %1274 = vst [vmem:[%s4 + $0x1c8] sm:$0xff] %v1210
    %1275 = vst [vmem:[%s4 + $0x1d0] sm:$0xff] %v1211
    %1276 = vst [vmem:[%s4 + $0x1d8] sm:$0xff] %v1212
    %1277 = vst [vmem:[%s4 + $0x1e0] sm:$0xff] %v1213
    %1278 = vst [vmem:[%s4 + $0x1e8] sm:$0xff] %v1214
    %1279 = vst [vmem:[%s4 + $0x1f0] sm:$0xff] %v1215
    %1280 = vst [vmem:[%s4 + $0x1f8] sm:$0xff] %v1216
  $region25: #{resblock_forward.7} parent=0 // pred_fallthru
    _
  // Predicated region
  $region26: #{resblock_forward.7} parent=0 // pred_check
    _
  $region27: #{resblock_forward.7} parent=0 // pred_check_branch
    %1282 = sbr.rel (0) target = $region29
  $region28: #{resblock_forward.7} parent=0 // pred_region
    _
  $region29: #{resblock_forward.7} parent=0 // pred_fallthru
    _
  // Predicated region
  $region30: #{resblock_forward.7} parent=0 // pred_check
    _
  $region31: #{resblock_forward.7} parent=0 // pred_check_branch
    %1284 = sbr.rel (0) target = $region33
  $region32: #{resblock_forward.7} parent=0 // pred_region
    _
  $region33: #{resblock_forward.7} parent=0 // pred_fallthru
    _

// kernel: resblock_forward.6
$region0: #{resblock_forward.6}
  #allocation0 [shape = 'u32[]', space=smem, size = 0x4, offset = 0x4, fixed_abs, tag = 'smem constant byte address 0x4 - core index']
  #allocation1 [shape = 'u32[144,128]{1,0:T(1,128)}', space=vmem, size = 0x12000, scoped, tag = 'internal scratch']
  %s0 = inlined_call_operand.vmem [shape: bf16[2,18,18,128], index: 0, kind: input, shape index: {}]
  %s1 = inlined_call_operand.vmem [shape: bf16[9,128,128], index: 1, kind: input, shape index: {}]
  %s2 = inlined_call_operand.vmem [shape: f32[1,128], index: 2, kind: input, shape index: {}]
  %s3 = inlined_call_operand.vmem [shape: bf16[2,16,16,128], index: 3, kind: output, shape index: {}]
  %s4 = sld [smem:[#allocation0]]
  $region45: #{resblock_forward.6} parent=0
    _
  %s6 = ssub.s32 1, %s4
  %s7 = scalar_select 0, %s6, %s4
  loop: start=0, step=1, limit=4
  $region2: #{resblock_forward.6} parent=0 // loop_pre_header
    _
  $region3: #{resblock_forward.6} parent=0 // loop_header
    %s9 = sphi 0, %s13
    %p10 = scmp.ge.s32.totalorder %s9, 4
    %s16 = sphi 0, %s28
    %s17 = sphi 0, %s24
    %s18 = sphi 0, %s16
    %s19 = sphi 0, %s17
    %s20 = sphi 0, %s18
    %s21 = sphi 0, %s19
    %s31 = sphi 0, %s33
    %s34 = sphi 0, %s31
    %s35 = sphi 0, %s34
    %s51 = sphi 0, %s35
    %s57 = sphi 0, %s59
    %s60 = sphi 0, %s57
    %s61 = sphi 0, %s60
    %s77 = sphi 0, %s61
    %s83 = sphi 0, %s85
    %s86 = sphi 0, %s83
    %s87 = sphi 0, %s86
    %s103 = sphi 0, %s87
    %s111 = sphi 0, %s113
    %s114 = sphi 0, %s111
    %s115 = sphi 0, %s114
    %s131 = sphi 0, %s115
  $region4: #{resblock_forward.6} parent=0 // loop_header_branch
    %12 = sbr.rel (%p10) target = $region8
  $region5: #{resblock_forward.6} parent=0 // loop_body
    %s14 = ssub.s32 %s9, 1
    %s15 = ssub.s32 %s9, 2
    %s22 = sadd.s32 1, %s17
    %p23 = scmp.ge.s32.totalorder %s22, 1
    %s24 = scalar_select %p23, 0, %s22
    %s25 = sadd.s32 1, %s16
    %s26 = scalar_select %p23, %s25, %s16
    %p27 = scmp.ge.s32.totalorder %s26, 2
    %s28 = scalar_select %p27, 0, %s26
    %s29 = ssub.s32 %s16, %s28
    %p30 = scmp.eq.s32.totalorder %s29, 0
    %s32 = sadd.s32 %s31, 1
    %s33 = scalar_select %p30, %s31, %s32
    %p36 = pneg %p30
    %p37 = scmp.eq.s32.totalorder %s9, 1
    %p38 = por %p36, %p37
    %p39 = scmp.ne.s32.totalorder %s31, %s34
    %p40 = scmp.eq.s32.totalorder %s9, 0
    %p41 = por %p39, %p40
    %p42 = scmp.ne.s32.totalorder %s31, %s34
    %p43 = scmp.eq.s32.totalorder %s14, 1
    %p44 = por %p42, %p43
    %p45 = scmp.ne.s32.totalorder %s34, %s35
    %p46 = scmp.eq.s32.totalorder %s14, 0
    %p47 = por %p45, %p46
    %p48 = scmp.ne.s32.totalorder %s34, %s35
    %p49 = scmp.eq.s32.totalorder %s15, 1
    %p50 = por %p48, %p49
    %p52 = scmp.ne.s32.totalorder %s35, %s51
    %p53 = scmp.eq.s32.totalorder %s15, 0
    %p54 = por %p52, %p53
    %s55 = ssub.s32 %s17, %s24
    %p56 = scmp.eq.s32.totalorder %s55, 0
    %s58 = sadd.s32 %s57, 1
    %s59 = scalar_select %p56, %s57, %s58
    %p62 = pneg %p56
    %p63 = scmp.eq.s32.totalorder %s9, 1
    %p64 = por %p62, %p63
    %p65 = scmp.ne.s32.totalorder %s57, %s60
    %p66 = scmp.eq.s32.totalorder %s9, 0
    %p67 = por %p65, %p66
    %p68 = scmp.ne.s32.totalorder %s57, %s60
    %p69 = scmp.eq.s32.totalorder %s14, 1
    %p70 = por %p68, %p69
    %p71 = scmp.ne.s32.totalorder %s60, %s61
    %p72 = scmp.eq.s32.totalorder %s14, 0
    %p73 = por %p71, %p72
    %p74 = scmp.ne.s32.totalorder %s60, %s61
    %p75 = scmp.eq.s32.totalorder %s15, 1
    %p76 = por %p74, %p75
    %p78 = scmp.ne.s32.totalorder %s61, %s77
    %p79 = scmp.eq.s32.totalorder %s15, 0
    %p80 = por %p78, %p79
    %s81 = ssub.s32 %s17, %s24
    %p82 = scmp.eq.s32.totalorder %s81, 0
    %s84 = sadd.s32 %s83, 1
    %s85 = scalar_select %p82, %s83, %s84
    %p88 = pneg %p82
    %p89 = scmp.eq.s32.totalorder %s9, 1
    %p90 = por %p88, %p89
    %p91 = scmp.ne.s32.totalorder %s83, %s86
    %p92 = scmp.eq.s32.totalorder %s9, 0
    %p93 = por %p91, %p92
    %p94 = scmp.ne.s32.totalorder %s83, %s86
    %p95 = scmp.eq.s32.totalorder %s14, 1
    %p96 = por %p94, %p95
    %p97 = scmp.ne.s32.totalorder %s86, %s87
    %p98 = scmp.eq.s32.totalorder %s14, 0
    %p99 = por %p97, %p98
    %p100 = scmp.ne.s32.totalorder %s86, %s87
    %p101 = scmp.eq.s32.totalorder %s15, 1
    %p102 = por %p100, %p101
    %p104 = scmp.ne.s32.totalorder %s87, %s103
    %p105 = scmp.eq.s32.totalorder %s15, 0
    %p106 = por %p104, %p105
    %s107 = ssub.s32 %s16, %s28
    %s108 = ssub.s32 %s17, %s24
    %s109 = sor.u32 %s107, %s108
    %p110 = scmp.eq.s32.totalorder %s109, 0
    %s112 = sadd.s32 %s111, 1
    %s113 = scalar_select %p110, %s111, %s112
    %p116 = pneg %p110
    %p117 = scmp.eq.s32.totalorder %s9, 1
    %p118 = por %p116, %p117
    %p119 = scmp.ne.s32.totalorder %s111, %s114
    %p120 = scmp.eq.s32.totalorder %s9, 0
    %p121 = por %p119, %p120
    %p122 = scmp.ne.s32.totalorder %s111, %s114
    %p123 = scmp.eq.s32.totalorder %s14, 1
    %p124 = por %p122, %p123
    %p125 = scmp.ne.s32.totalorder %s114, %s115
    %p126 = scmp.eq.s32.totalorder %s14, 0
    %p127 = por %p125, %p126
    %p128 = scmp.ne.s32.totalorder %s114, %s115
    %p129 = scmp.eq.s32.totalorder %s15, 1
    %p130 = por %p128, %p129
    %p132 = scmp.ne.s32.totalorder %s115, %s131
    %p133 = scmp.eq.s32.totalorder %s15, 0
    %p134 = por %p132, %p133
    %p135 = scmp.le.s32.totalorder 1, %s9
    %p136 = scmp.lt.s32.totalorder %s9, 3
    %p137 = pnand %p135, %p136
    %p138 = pneg %p137
    // Predicated region
    $region9: #{resblock_forward.6} parent=5 // pred_check
      _
    $region10: #{resblock_forward.6} parent=5 // pred_check_branch
      %140 = sbr.rel (%p137) target = $region12
    $region11: #{resblock_forward.6} parent=5 // pred_region
      %s141 = ssub.s32 %s9, 1
      // Predicated region
      $region13: #{resblock_forward.6} parent=11 // pred_check
        %p142 = pneg %p73
      $region14: #{resblock_forward.6} parent=11 // pred_check_branch
        %144 = sbr.rel (%p142) target = $region16
      $region15: #{resblock_forward.6} parent=11 // pred_region
        %p145 = scmp.lt.s32.totalorder %s19, 0
        %s146 = scalar_select %p145, %s19, 0
        %s147 = smul.addr %s146, 4
        %s148 = scalar_lea.vmem %s1, %s147
      $region16: #{resblock_forward.6} parent=11 // pred_fallthru
        _
      // Predicated region
      $region17: #{resblock_forward.6} parent=11 // pred_check
        %p149 = pneg %p99
      $region18: #{resblock_forward.6} parent=11 // pred_check_branch
        %151 = sbr.rel (%p149) target = $region20
      $region19: #{resblock_forward.6} parent=11 // pred_region
        %p152 = scmp.lt.s32.totalorder %s19, 0
        %s153 = scalar_select %p152, %s19, 0
        %s154 = scalar_lea.vmem %s2, %s153
      $region20: #{resblock_forward.6} parent=11 // pred_fallthru
        _
    $region12: #{resblock_forward.6} parent=5 // pred_fallthru
      _
    %p155 = scmp.lt.s32.totalorder %s9, 2
    // Predicated region
    $region21: #{resblock_forward.6} parent=5 // pred_check
      %p156 = pneg %p155
    $region22: #{resblock_forward.6} parent=5 // pred_check_branch
      %158 = sbr.rel (%p156) target = $region24
    $region23: #{resblock_forward.6} parent=5 // pred_region
      // Predicated region
      $region25: #{resblock_forward.6} parent=23 // pred_check
        %p159 = pneg %p41
      $region26: #{resblock_forward.6} parent=23 // pred_check_branch
        %161 = sbr.rel (%p159) target = $region28
      $region27: #{resblock_forward.6} parent=23 // pred_region
        %p162 = scmp.lt.s32.totalorder %s16, 1
        %s163 = scalar_select %p162, %s16, 1
        %s164 = smul.addr %s163, 54
        %s165 = smul.addr %s164, 4
        %s166 = scalar_lea.vmem %s0, %s165
      $region28: #{resblock_forward.6} parent=23 // pred_fallthru
        _
    $region24: #{resblock_forward.6} parent=5 // pred_fallthru
      _
    %p167 = scmp.le.s32.totalorder 1, %s9
    %p168 = scmp.lt.s32.totalorder %s9, 3
    %p169 = pnand %p167, %p168
    %p170 = pneg %p169
    // Predicated region
    $region29: #{resblock_forward.6} parent=5 // pred_check
      _
    $region30: #{resblock_forward.6} parent=5 // pred_check_branch
      %172 = sbr.rel (%p169) target = $region32
    $region31: #{resblock_forward.6} parent=5 // pred_region
      %s173 = ssub.s32 %s9, 1
      %p174 = scmp.lt.s32.totalorder %s18, 1
      %s175 = scalar_select %p174, %s18, 1
      %s176 = smul.addr %s175, 54
      %s177 = smul.addr %s176, 4
      %s178 = scalar_lea.vmem %s0, %s177
      %p179 = pneg %p47
      %p180 = pneg %p44
      %p181 = scmp.lt.s32.totalorder %s19, 0
      %s182 = scalar_select %p181, %s19, 0
      %s183 = smul.addr %s182, 4
      %s184 = scalar_lea.vmem %s1, %s183
      %p185 = pneg %p73
      %p186 = pneg %p70
      %p187 = scmp.lt.s32.totalorder %s19, 0
      %s188 = scalar_select %p187, %s19, 0
      %s189 = scalar_lea.vmem %s2, %s188
      %p190 = pneg %p99
      %p191 = pneg %p96
      %p192 = pneg %p127
      %p193 = pneg %p124
      %p194 = scmp.lt.s32.totalorder %s18, 1
      %s195 = scalar_select %p194, %s18, 1
      %p196 = scmp.lt.s32.totalorder %s19, 0
      %s197 = scalar_select %p196, %s19, 0
      %s198 = smul.addr %s195, 32
      %s199 = sadd.s32 %s197, %s198
      %s200 = smul.addr %s199, 4
      %s201 = scalar_lea.vmem %s3, %s200
      %p202 = scmp.lt.s32.totalorder %s18, 1
      %s203 = scalar_select %p202, %s18, 1
      %s204 = smul.addr %s203, 54
      %s205 = smul.addr %s204, 4
      %s206 = scalar_lea.vmem %s0, %s205
      %p207 = scmp.lt.s32.totalorder %s19, 0
      %s208 = scalar_select %p207, %s19, 0
      %s209 = smul.addr %s208, 4
      %s210 = scalar_lea.vmem %s1, %s209
      %p211 = scmp.lt.s32.totalorder %s19, 0
      %s212 = scalar_select %p211, %s19, 0
      %s213 = scalar_lea.vmem %s2, %s212
      %p214 = scmp.lt.s32.totalorder %s18, 1
      %s215 = scalar_select %p214, %s18, 1
      %p216 = scmp.lt.s32.totalorder %s19, 0
      %s217 = scalar_select %p216, %s19, 0
      %s218 = smul.addr %s215, 32
      %s219 = sadd.s32 %s217, %s218
      %s220 = smul.addr %s219, 4
      %s221 = scalar_lea.vmem %s3, %s220
      %v223 = vld [vmem:[%s206] sm:$0xf]
      %v224 = vld [vmem:[%s206 + $0x4] sm:$0xf]
      %v225 = vld [vmem:[%s206 + $0xc] sm:$0xf]
      %v226 = vld [vmem:[%s206 + $0x10] sm:$0xf]
      %v227 = vld [vmem:[%s206 + $0x18] sm:$0xf]
      %v228 = vld [vmem:[%s206 + $0x1c] sm:$0xf]
      %v229 = vld [vmem:[%s206 + $0x24] sm:$0xf]
      %v230 = vld [vmem:[%s206 + $0x28] sm:$0xf]
      %v231 = vld [vmem:[%s206 + $0x30] sm:$0xf]
      %v232 = vld [vmem:[%s206 + $0x34] sm:$0xf]
      %v233 = vld [vmem:[%s206 + $0x3c] sm:$0xf]
      %v234 = vld [vmem:[%s206 + $0x40] sm:$0xf]
      %v235 = vld [vmem:[%s206 + $0x48] sm:$0xf]
      %v236 = vld [vmem:[%s206 + $0x4c] sm:$0xf]
      %v237 = vld [vmem:[%s206 + $0x54] sm:$0xf]
      %v238 = vld [vmem:[%s206 + $0x58] sm:$0xf]
      %v239 = vld [vmem:[%s206 + $0x60] sm:$0xf]
      %v240 = vld [vmem:[%s206 + $0x64] sm:$0xf]
      %v241 = vld [vmem:[%s206 + $0x6c] sm:$0xf]
      %v242 = vld [vmem:[%s206 + $0x70] sm:$0xf]
      %v243 = vld [vmem:[%s206 + $0x78] sm:$0xf]
      %v244 = vld [vmem:[%s206 + $0x7c] sm:$0xf]
      %v245 = vld [vmem:[%s206 + $0x84] sm:$0xf]
      %v246 = vld [vmem:[%s206 + $0x88] sm:$0xf]
      %v247 = vld [vmem:[%s206 + $0x90] sm:$0xf]
      %v248 = vld [vmem:[%s206 + $0x94] sm:$0xf]
      %v249 = vld [vmem:[%s206 + $0x9c] sm:$0xf]
      %v250 = vld [vmem:[%s206 + $0xa0] sm:$0xf]
      %v251 = vld [vmem:[%s206 + $0xa8] sm:$0xf]
      %v252 = vld [vmem:[%s206 + $0xac] sm:$0xf]
      %v253 = vld [vmem:[%s206 + $0xb4] sm:$0xf]
      %v254 = vld [vmem:[%s206 + $0xb8] sm:$0xf]
      %v255 = vld [vmem:[%s210] sm:$0xf]
      %v256 = vld [vmem:[%s210 + $0x4] sm:$0xf]
      %v257 = vld [vmem:[%s210 + $0x8] sm:$0xf]
      %v258 = vld [vmem:[%s210 + $0xc] sm:$0xf]
      %v259 = vld [vmem:[%s210 + $0x10] sm:$0xf]
      %v260 = vld [vmem:[%s210 + $0x14] sm:$0xf]
      %v261 = vld [vmem:[%s210 + $0x18] sm:$0xf]
      %v262 = vld [vmem:[%s210 + $0x1c] sm:$0xf]
      %v263 = vld [vmem:[%s210 + $0x20] sm:$0xf]
      %v264 = vld [vmem:[%s210 + $0x24] sm:$0xf]
      %v265 = vld [vmem:[%s210 + $0x28] sm:$0xf]
      %v266 = vld [vmem:[%s210 + $0x2c] sm:$0xf]
      %v267 = vld [vmem:[%s210 + $0x30] sm:$0xf]
      %v268 = vld [vmem:[%s210 + $0x34] sm:$0xf]
      %v269 = vld [vmem:[%s210 + $0x38] sm:$0xf]
      %v270 = vld [vmem:[%s210 + $0x3c] sm:$0xf]
      %v271 = vld [vmem:[%s206 + $0x8] sm:$0x1]
      %v272 = vld [vmem:[%s206 + $0x14] sm:$0x1]
      %v273 = vld [vmem:[%s206 + $0x20] sm:$0x1]
      %v274 = vld [vmem:[%s206 + $0x2c] sm:$0x1]
      %v275 = vld [vmem:[%s206 + $0x38] sm:$0x1]
      %v276 = vld [vmem:[%s206 + $0x44] sm:$0x1]
      %v277 = vld [vmem:[%s206 + $0x50] sm:$0x1]
      %v278 = vld [vmem:[%s206 + $0x5c] sm:$0x1]
      %v279 = vld [vmem:[%s206 + $0x68] sm:$0x1]
      %v280 = vld [vmem:[%s206 + $0x74] sm:$0x1]
      %v281 = vld [vmem:[%s206 + $0x80] sm:$0x1]
      %v282 = vld [vmem:[%s206 + $0x8c] sm:$0x1]
      %v283 = vld [vmem:[%s206 + $0x98] sm:$0x1]
      %v284 = vld [vmem:[%s206 + $0xa4] sm:$0x1]
      %v285 = vld [vmem:[%s206 + $0xb0] sm:$0x1]
      %v286 = vld [vmem:[%s206 + $0xbc] sm:$0x1]
      %vm287 = vsmask.f32 3328
      %vm288 = vsmask.f32 7440
      %vm289 = vmor %vm287, %vm288
      %v291 = vshrl.u32 %v223, 16
      %v293 = vrot.slane %v291, 4
      %v294 = vshll.u32 %v223, 16
      %v296 = vrot.slane %v294, 5
      %v297 = vor.u32 %v293, %v296
      %v298 = vrot.slane %v297, 4
      %v300 = vshll.u32 %v224, 16
      %v302 = vrot.slane %v300, 5
      %v303 = vsel %vm289, %v298, %v302
      %v304 = vshrl.u32 %v224, 16
      %v306 = vrot.slane %v304, 4
      %v307 = vor.u32 %v306, %v302
      %v308 = vrot.slane %v307, 4
      %v310 = vshll.u32 %v271, 16
      %v312 = vrot.slane %v310, 5
      %v313 = vsel %vm289, %v308, %v312
      %v315 = vshrl.u32 %v225, 16
      %v317 = vrot.slane %v315, 4
      %v318 = vshll.u32 %v225, 16
      %v320 = vrot.slane %v318, 5
      %v321 = vor.u32 %v317, %v320
      %v322 = vrot.slane %v321, 4
      %v324 = vshll.u32 %v226, 16
      %v326 = vrot.slane %v324, 5
      %v327 = vsel %vm289, %v322, %v326
      %v328 = vshrl.u32 %v226, 16
      %v330 = vrot.slane %v328, 4
      %v331 = vor.u32 %v330, %v326
      %v332 = vrot.slane %v331, 4
      %v334 = vshll.u32 %v272, 16
      %v336 = vrot.slane %v334, 5
      %v337 = vsel %vm289, %v332, %v336
      %v339 = vshrl.u32 %v227, 16
      %v341 = vrot.slane %v339, 4
      %v342 = vshll.u32 %v227, 16
      %v344 = vrot.slane %v342, 5
      %v345 = vor.u32 %v341, %v344
      %v346 = vrot.slane %v345, 4
      %v348 = vshll.u32 %v228, 16
      %v350 = vrot.slane %v348, 5
      %v351 = vsel %vm289, %v346, %v350
      %v352 = vshrl.u32 %v228, 16
      %v354 = vrot.slane %v352, 4
      %v355 = vor.u32 %v354, %v350
      %v356 = vrot.slane %v355, 4
      %v358 = vshll.u32 %v273, 16
      %v360 = vrot.slane %v358, 5
      %v361 = vsel %vm289, %v356, %v360
      %v363 = vshrl.u32 %v229, 16
      %v365 = vrot.slane %v363, 4
      %v366 = vshll.u32 %v229, 16
      %v368 = vrot.slane %v366, 5
      %v369 = vor.u32 %v365, %v368
      %v370 = vrot.slane %v369, 4
      %v372 = vshll.u32 %v230, 16
      %v374 = vrot.slane %v372, 5
      %v375 = vsel %vm289, %v370, %v374
      %v376 = vshrl.u32 %v230, 16
      %v378 = vrot.slane %v376, 4
      %v379 = vor.u32 %v378, %v374
      %v380 = vrot.slane %v379, 4
      %v382 = vshll.u32 %v274, 16
      %v384 = vrot.slane %v382, 5
      %v385 = vsel %vm289, %v380, %v384
      %v387 = vshrl.u32 %v231, 16
      %v389 = vrot.slane %v387, 4
      %v390 = vshll.u32 %v231, 16
      %v392 = vrot.slane %v390, 5
      %v393 = vor.u32 %v389, %v392
      %v394 = vrot.slane %v393, 4
      %v396 = vshll.u32 %v232, 16
      %v398 = vrot.slane %v396, 5
      %v399 = vsel %vm289, %v394, %v398
      %v400 = vshrl.u32 %v232, 16
      %v402 = vrot.slane %v400, 4
      %v403 = vor.u32 %v402, %v398
      %v404 = vrot.slane %v403, 4
      %v406 = vshll.u32 %v275, 16
      %v408 = vrot.slane %v406, 5
      %v409 = vsel %vm289, %v404, %v408
      %v411 = vshrl.u32 %v233, 16
      %v413 = vrot.slane %v411, 4
      %v414 = vshll.u32 %v233, 16
      %v416 = vrot.slane %v414, 5
      %v417 = vor.u32 %v413, %v416
      %v418 = vrot.slane %v417, 4
      %v420 = vshll.u32 %v234, 16
      %v422 = vrot.slane %v420, 5
      %v423 = vsel %vm289, %v418, %v422
      %v424 = vshrl.u32 %v234, 16
      %v426 = vrot.slane %v424, 4
      %v427 = vor.u32 %v426, %v422
      %v428 = vrot.slane %v427, 4
      %v430 = vshll.u32 %v276, 16
      %v432 = vrot.slane %v430, 5
      %v433 = vsel %vm289, %v428, %v432
      %v435 = vshrl.u32 %v235, 16
      %v437 = vrot.slane %v435, 4
      %v438 = vshll.u32 %v235, 16
      %v440 = vrot.slane %v438, 5
      %v441 = vor.u32 %v437, %v440
      %v442 = vrot.slane %v441, 4
      %v444 = vshll.u32 %v236, 16
      %v446 = vrot.slane %v444, 5
      %v447 = vsel %vm289, %v442, %v446
      %v448 = vshrl.u32 %v236, 16
      %v450 = vrot.slane %v448, 4
      %v451 = vor.u32 %v450, %v446
      %v452 = vrot.slane %v451, 4
      %v454 = vshll.u32 %v277, 16
      %v456 = vrot.slane %v454, 5
      %v457 = vsel %vm289, %v452, %v456
      %v459 = vshrl.u32 %v237, 16
      %v461 = vrot.slane %v459, 4
      %v462 = vshll.u32 %v237, 16
      %v464 = vrot.slane %v462, 5
      %v465 = vor.u32 %v461, %v464
      %v466 = vrot.slane %v465, 4
      %v468 = vshll.u32 %v238, 16
      %v470 = vrot.slane %v468, 5
      %v471 = vsel %vm289, %v466, %v470
      %v472 = vshrl.u32 %v238, 16
      %v474 = vrot.slane %v472, 4
      %v475 = vor.u32 %v474, %v470
      %v476 = vrot.slane %v475, 4
      %v478 = vshll.u32 %v278, 16
      %v480 = vrot.slane %v478, 5
      %v481 = vsel %vm289, %v476, %v480
      %v483 = vshrl.u32 %v239, 16
      %v485 = vrot.slane %v483, 4
      %v486 = vshll.u32 %v239, 16
      %v488 = vrot.slane %v486, 5
      %v489 = vor.u32 %v485, %v488
      %v490 = vrot.slane %v489, 4
      %v492 = vshll.u32 %v240, 16
      %v494 = vrot.slane %v492, 5
      %v495 = vsel %vm289, %v490, %v494
      %v496 = vshrl.u32 %v240, 16
      %v498 = vrot.slane %v496, 4
      %v499 = vor.u32 %v498, %v494
      %v500 = vrot.slane %v499, 4
      %v502 = vshll.u32 %v279, 16
      %v504 = vrot.slane %v502, 5
      %v505 = vsel %vm289, %v500, %v504
      %v507 = vshrl.u32 %v241, 16
      %v509 = vrot.slane %v507, 4
      %v510 = vshll.u32 %v241, 16
      %v512 = vrot.slane %v510, 5
      %v513 = vor.u32 %v509, %v512
      %v514 = vrot.slane %v513, 4
      %v516 = vshll.u32 %v242, 16
      %v518 = vrot.slane %v516, 5
      %v519 = vsel %vm289, %v514, %v518
      %v520 = vshrl.u32 %v242, 16
      %v522 = vrot.slane %v520, 4
      %v523 = vor.u32 %v522, %v518
      %v524 = vrot.slane %v523, 4
      %v526 = vshll.u32 %v280, 16
      %v528 = vrot.slane %v526, 5
      %v529 = vsel %vm289, %v524, %v528
      %v531 = vshrl.u32 %v243, 16
      %v533 = vrot.slane %v531, 4
      %v534 = vshll.u32 %v243, 16
      %v536 = vrot.slane %v534, 5
      %v537 = vor.u32 %v533, %v536
      %v538 = vrot.slane %v537, 4
      %v540 = vshll.u32 %v244, 16
      %v542 = vrot.slane %v540, 5
      %v543 = vsel %vm289, %v538, %v542
      %v544 = vshrl.u32 %v244, 16
      %v546 = vrot.slane %v544, 4
      %v547 = vor.u32 %v546, %v542
      %v548 = vrot.slane %v547, 4
      %v550 = vshll.u32 %v281, 16
      %v552 = vrot.slane %v550, 5
      %v553 = vsel %vm289, %v548, %v552
      %v555 = vshrl.u32 %v245, 16
      %v557 = vrot.slane %v555, 4
      %v558 = vshll.u32 %v245, 16
      %v560 = vrot.slane %v558, 5
      %v561 = vor.u32 %v557, %v560
      %v562 = vrot.slane %v561, 4
      %v564 = vshll.u32 %v246, 16
      %v566 = vrot.slane %v564, 5
      %v567 = vsel %vm289, %v562, %v566
      %v568 = vshrl.u32 %v246, 16
      %v570 = vrot.slane %v568, 4
      %v571 = vor.u32 %v570, %v566
      %v572 = vrot.slane %v571, 4
      %v574 = vshll.u32 %v282, 16
      %v576 = vrot.slane %v574, 5
      %v577 = vsel %vm289, %v572, %v576
      %v579 = vshrl.u32 %v247, 16
      %v581 = vrot.slane %v579, 4
      %v582 = vshll.u32 %v247, 16
      %v584 = vrot.slane %v582, 5
      %v585 = vor.u32 %v581, %v584
      %v586 = vrot.slane %v585, 4
      %v588 = vshll.u32 %v248, 16
      %v590 = vrot.slane %v588, 5
      %v591 = vsel %vm289, %v586, %v590
      %v592 = vshrl.u32 %v248, 16
      %v594 = vrot.slane %v592, 4
      %v595 = vor.u32 %v594, %v590
      %v596 = vrot.slane %v595, 4
      %v598 = vshll.u32 %v283, 16
      %v600 = vrot.slane %v598, 5
      %v601 = vsel %vm289, %v596, %v600
      %v603 = vshrl.u32 %v249, 16
      %v605 = vrot.slane %v603, 4
      %v606 = vshll.u32 %v249, 16
      %v608 = vrot.slane %v606, 5
      %v609 = vor.u32 %v605, %v608
      %v610 = vrot.slane %v609, 4
      %v612 = vshll.u32 %v250, 16
      %v614 = vrot.slane %v612, 5
      %v615 = vsel %vm289, %v610, %v614
      %v616 = vshrl.u32 %v250, 16
      %v618 = vrot.slane %v616, 4
      %v619 = vor.u32 %v618, %v614
      %v620 = vrot.slane %v619, 4
      %v622 = vshll.u32 %v284, 16
      %v624 = vrot.slane %v622, 5
      %v625 = vsel %vm289, %v620, %v624
      %v627 = vshrl.u32 %v251, 16
      %v629 = vrot.slane %v627, 4
      %v630 = vshll.u32 %v251, 16
      %v632 = vrot.slane %v630, 5
      %v633 = vor.u32 %v629, %v632
      %v634 = vrot.slane %v633, 4
      %v636 = vshll.u32 %v252, 16
      %v638 = vrot.slane %v636, 5
      %v639 = vsel %vm289, %v634, %v638
      %v640 = vshrl.u32 %v252, 16
      %v642 = vrot.slane %v640, 4
      %v643 = vor.u32 %v642, %v638
      %v644 = vrot.slane %v643, 4
      %v646 = vshll.u32 %v285, 16
      %v648 = vrot.slane %v646, 5
      %v649 = vsel %vm289, %v644, %v648
      %v651 = vshrl.u32 %v253, 16
      %v653 = vrot.slane %v651, 4
      %v654 = vshll.u32 %v253, 16
      %v656 = vrot.slane %v654, 5
      %v657 = vor.u32 %v653, %v656
      %v658 = vrot.slane %v657, 4
      %v660 = vshll.u32 %v254, 16
      %v662 = vrot.slane %v660, 5
      %v663 = vsel %vm289, %v658, %v662
      %v664 = vshrl.u32 %v254, 16
      %v666 = vrot.slane %v664, 4
      %v667 = vor.u32 %v666, %v662
      %v668 = vrot.slane %v667, 4
      %v670 = vshll.u32 %v286, 16
      %v672 = vrot.slane %v670, 5
      %v673 = vsel %vm289, %v668, %v672
      %s674 = scalar_lea.vmem %s210, 64
      %v675 = vld [vmem:[%s674] sm:$0xf]
      %v676 = vld [vmem:[%s674 + $0x4] sm:$0xf]
      %v677 = vld [vmem:[%s674 + $0x8] sm:$0xf]
      %v678 = vld [vmem:[%s674 + $0xc] sm:$0xf]
      %v679 = vld [vmem:[%s674 + $0x10] sm:$0xf]
      %v680 = vld [vmem:[%s674 + $0x14] sm:$0xf]
      %v681 = vld [vmem:[%s674 + $0x18] sm:$0xf]
      %v682 = vld [vmem:[%s674 + $0x1c] sm:$0xf]
      %v683 = vld [vmem:[%s674 + $0x20] sm:$0xf]
      %v684 = vld [vmem:[%s674 + $0x24] sm:$0xf]
      %v685 = vld [vmem:[%s674 + $0x28] sm:$0xf]
      %v686 = vld [vmem:[%s674 + $0x2c] sm:$0xf]
      %v687 = vld [vmem:[%s674 + $0x30] sm:$0xf]
      %v688 = vld [vmem:[%s674 + $0x34] sm:$0xf]
      %v689 = vld [vmem:[%s674 + $0x38] sm:$0xf]
      %v690 = vld [vmem:[%s674 + $0x3c] sm:$0xf]
      %v691 = vunpack.c.l.b16 %v303
      %v692 = vunpack.c.l.b16 %v313
      %v693 = vunpack.c.l.b16 %v327
      %v694 = vunpack.c.l.b16 %v337
      %v695 = vunpack.c.l.b16 %v351
      %v696 = vunpack.c.l.b16 %v361
      %v697 = vunpack.c.l.b16 %v375
      %v698 = vunpack.c.l.b16 %v385
      %v699 = vunpack.c.l.b16 %v399
      %v700 = vunpack.c.l.b16 %v409
      %v701 = vunpack.c.l.b16 %v423
      %v702 = vunpack.c.l.b16 %v433
      %v703 = vunpack.c.l.b16 %v447
      %v704 = vunpack.c.l.b16 %v457
      %v705 = vunpack.c.l.b16 %v471
      %v706 = vunpack.c.l.b16 %v481
      %v707 = vunpack.c.l.b16 %v495
      %v708 = vunpack.c.l.b16 %v505
      %v709 = vunpack.c.l.b16 %v519
      %v710 = vunpack.c.l.b16 %v529
      %v711 = vunpack.c.l.b16 %v543
      %v712 = vunpack.c.l.b16 %v553
      %v713 = vunpack.c.l.b16 %v567
      %v714 = vunpack.c.l.b16 %v577
      %v715 = vunpack.c.l.b16 %v591
      %v716 = vunpack.c.l.b16 %v601
      %v717 = vunpack.c.l.b16 %v615
      %v718 = vunpack.c.l.b16 %v625
      %v719 = vunpack.c.l.b16 %v639
      %v720 = vunpack.c.l.b16 %v649
      %v721 = vunpack.c.l.b16 %v663
      %v722 = vunpack.c.l.b16 %v673
      %v723 = vpack.c.b16 %v692, %v691
      %v724 = vpack.c.b16 %v694, %v693
      %v725 = vpack.c.b16 %v696, %v695
      %v726 = vpack.c.b16 %v698, %v697
      %v727 = vpack.c.b16 %v700, %v699
      %v728 = vpack.c.b16 %v702, %v701
      %v729 = vpack.c.b16 %v704, %v703
      %v730 = vpack.c.b16 %v706, %v705
      %v731 = vpack.c.b16 %v708, %v707
      %v732 = vpack.c.b16 %v710, %v709
      %v733 = vpack.c.b16 %v712, %v711
      %v734 = vpack.c.b16 %v714, %v713
      %v735 = vpack.c.b16 %v716, %v715
      %v736 = vpack.c.b16 %v718, %v717
      %v737 = vpack.c.b16 %v720, %v719
      %v738 = vpack.c.b16 %v722, %v721
      %v771 = vunpack.c.l.b16 %v675
      %v772 = vunpack.c.l.b16 %v676
      %v773 = vunpack.c.l.b16 %v677
      %v774 = vunpack.c.l.b16 %v678
      %v775 = vunpack.c.l.b16 %v679
      %v776 = vunpack.c.l.b16 %v680
      %v777 = vunpack.c.l.b16 %v681
      %v778 = vunpack.c.l.b16 %v682
      %v779 = vunpack.c.l.b16 %v683
      %v780 = vunpack.c.l.b16 %v684
      %v781 = vunpack.c.l.b16 %v685
      %v782 = vunpack.c.l.b16 %v686
      %v783 = vunpack.c.l.b16 %v687
      %v784 = vunpack.c.l.b16 %v688
      %v785 = vunpack.c.l.b16 %v689
      %v786 = vunpack.c.l.b16 %v690
      %v787 = vpack.c.b16 %v772, %v771
      %v788 = vpack.c.b16 %v774, %v773
      %v789 = vpack.c.b16 %v776, %v775
      %v790 = vpack.c.b16 %v778, %v777
      %v791 = vpack.c.b16 %v780, %v779
      %v792 = vpack.c.b16 %v782, %v781
      %v793 = vpack.c.b16 %v784, %v783
      %v794 = vpack.c.b16 %v786, %v785
      %803 = vmatprep.subr.bf16.mxu0 0
      %804 = vmatpush1.bf16.msra.mxu0 %v787
      %805 = vmatprep.subr.bf16.mxu0 0
      %806 = vmatpush1.bf16.msra.mxu0 %v788
      %807 = vmatprep.subr.bf16.mxu0 0
      %808 = vmatpush1.bf16.msra.mxu0 %v789
      %809 = vmatprep.subr.bf16.mxu0 0
      %810 = vmatpush1.bf16.msra.mxu0 %v790
      %811 = vmatprep.subr.bf16.mxu0 0
      %812 = vmatpush1.bf16.msra.mxu0 %v791
      %813 = vmatprep.subr.bf16.mxu0 0
      %814 = vmatpush1.bf16.msra.mxu0 %v792
      %815 = vmatprep.subr.bf16.mxu0 0
      %816 = vmatpush1.bf16.msra.mxu0 %v793
      %817 = vmatprep.subr.bf16.mxu0 0
      %818 = vmatpush1.bf16.msra.mxu0 %v794
      %819 = vmatprep.subr.bf16.mxu0 0
      %820 = vmatpush1.bf16.msra.mxu0 0
      %821 = vmatprep.subr.bf16.mxu0 0
      %822 = vmatpush1.bf16.msra.mxu0 0
      %823 = vmatprep.subr.bf16.mxu0 0
      %824 = vmatpush1.bf16.msra.mxu0 0
      %825 = vmatprep.subr.bf16.mxu0 0
      %826 = vmatpush1.bf16.msra.mxu0 0
      %827 = vmatprep.subr.bf16.mxu0 0
      %828 = vmatpush1.bf16.msra.mxu0 0
      %829 = vmatprep.subr.bf16.mxu0 0
      %830 = vmatpush1.bf16.msra.mxu0 0
      %831 = vmatprep.subr.bf16.mxu0 0
      %832 = vmatpush1.bf16.msra.mxu0 0
      %833 = vmatprep.subr.bf16.mxu0 0
      %834 = vmatpush1.bf16.msra.mxu0 0
      %835 = vmatprep.mubr.bf16.mxu0 0
      %836 = vmatmul.mubr.bf16.gmra.mrb[0].mxu0 %v723
      %v837 = vpop.f32.mrb[0].mxu0
      %v838 = vadd.f32 0.0, %v837
      %v839 = vpop.f32.mrb[0].mxu0
      %v840 = vpop.f32.mrb[0].mxu0
      %v841 = vadd.f32 0.0, %v840
      %v842 = vpop.f32.mrb[0].mxu0
      %843 = vmatprep.mubr.bf16.mxu0 0
      %844 = vmatmul.mubr.bf16.gmra.mrb[0].mxu0 %v724
      %v845 = vpop.f32.mrb[0].mxu0
      %v846 = vadd.f32 0.0, %v845
      %v847 = vpop.f32.mrb[0].mxu0
      %v848 = vpop.f32.mrb[0].mxu0
      %v849 = vadd.f32 0.0, %v848
      %v850 = vpop.f32.mrb[0].mxu0
      %851 = vmatprep.mubr.bf16.mxu0 0
      %852 = vmatmul.mubr.bf16.gmra.mrb[0].mxu0 %v725
      %v853 = vpop.f32.mrb[0].mxu0
      %v854 = vadd.f32 0.0, %v853
      %v855 = vpop.f32.mrb[0].mxu0
      %v856 = vpop.f32.mrb[0].mxu0
      %v857 = vadd.f32 0.0, %v856
      %v858 = vpop.f32.mrb[0].mxu0
      %859 = vmatprep.mubr.bf16.mxu0 0
      %860 = vmatmul.mubr.bf16.gmra.mrb[0].mxu0 %v726
      %v861 = vpop.f32.mrb[0].mxu0
      %v862 = vadd.f32 0.0, %v861
      %v863 = vpop.f32.mrb[0].mxu0
      %v864 = vpop.f32.mrb[0].mxu0
      %v865 = vadd.f32 0.0, %v864
      %v866 = vpop.f32.mrb[0].mxu0
      %867 = vmatprep.mubr.bf16.mxu0 0
      %868 = vmatmul.mubr.bf16.gmra.mrb[0].mxu0 %v727
      %v869 = vpop.f32.mrb[0].mxu0
      %v870 = vadd.f32 0.0, %v869
      %v871 = vpop.f32.mrb[0].mxu0
      %v872 = vpop.f32.mrb[0].mxu0
      %v873 = vadd.f32 0.0, %v872
      %v874 = vpop.f32.mrb[0].mxu0
      %875 = vmatprep.mubr.bf16.mxu0 0
      %876 = vmatmul.mubr.bf16.gmra.mrb[0].mxu0 %v728
      %v877 = vpop.f32.mrb[0].mxu0
      %v878 = vadd.f32 0.0, %v877
      %v879 = vpop.f32.mrb[0].mxu0
      %v880 = vpop.f32.mrb[0].mxu0
      %v881 = vadd.f32 0.0, %v880
      %v882 = vpop.f32.mrb[0].mxu0
      %883 = vmatprep.mubr.bf16.mxu0 0
      %884 = vmatmul.mubr.bf16.gmra.mrb[0].mxu0 %v729
      %v885 = vpop.f32.mrb[0].mxu0
      %v886 = vadd.f32 0.0, %v885
      %v887 = vpop.f32.mrb[0].mxu0
      %v888 = vpop.f32.mrb[0].mxu0
      %v889 = vadd.f32 0.0, %v888
      %v890 = vpop.f32.mrb[0].mxu0
      %891 = vmatprep.mubr.bf16.mxu0 0
      %892 = vmatmul.mubr.bf16.gmra.mrb[0].mxu0 %v730
      %v893 = vpop.f32.mrb[0].mxu0
      %v894 = vadd.f32 0.0, %v893
      %v895 = vpop.f32.mrb[0].mxu0
      %v896 = vpop.f32.mrb[0].mxu0
      %v897 = vadd.f32 0.0, %v896
      %v898 = vpop.f32.mrb[0].mxu0
      %899 = vmatprep.mubr.bf16.mxu0 0
      %900 = vmatmul.mubr.bf16.gmra.mrb[0].mxu0 %v731
      %v901 = vpop.f32.mrb[0].mxu0
      %v902 = vadd.f32 0.0, %v901
      %v903 = vpop.f32.mrb[0].mxu0
      %v904 = vpop.f32.mrb[0].mxu0
      %v905 = vadd.f32 0.0, %v904
      %v906 = vpop.f32.mrb[0].mxu0
      %907 = vmatprep.mubr.bf16.mxu0 0
      %908 = vmatmul.mubr.bf16.gmra.mrb[0].mxu0 %v732
      %v909 = vpop.f32.mrb[0].mxu0
      %v910 = vadd.f32 0.0, %v909
      %v911 = vpop.f32.mrb[0].mxu0
      %v912 = vpop.f32.mrb[0].mxu0
      %v913 = vadd.f32 0.0, %v912
      %v914 = vpop.f32.mrb[0].mxu0
      %915 = vmatprep.mubr.bf16.mxu0 0
      %916 = vmatmul.mubr.bf16.gmra.mrb[0].mxu0 %v733
      %v917 = vpop.f32.mrb[0].mxu0
      %v918 = vadd.f32 0.0, %v917
      %v919 = vpop.f32.mrb[0].mxu0
      %v920 = vpop.f32.mrb[0].mxu0
      %v921 = vadd.f32 0.0, %v920
      %v922 = vpop.f32.mrb[0].mxu0
      %923 = vmatprep.mubr.bf16.mxu0 0
      %924 = vmatmul.mubr.bf16.gmra.mrb[0].mxu0 %v734
      %v925 = vpop.f32.mrb[0].mxu0
      %v926 = vadd.f32 0.0, %v925
      %v927 = vpop.f32.mrb[0].mxu0
      %v928 = vpop.f32.mrb[0].mxu0
      %v929 = vadd.f32 0.0, %v928
      %v930 = vpop.f32.mrb[0].mxu0
      %931 = vmatprep.mubr.bf16.mxu0 0
      %932 = vmatmul.mubr.bf16.gmra.mrb[0].mxu0 %v735
      %v933 = vpop.f32.mrb[0].mxu0
      %v934 = vadd.f32 0.0, %v933
      %v935 = vpop.f32.mrb[0].mxu0
      %v936 = vpop.f32.mrb[0].mxu0
      %v937 = vadd.f32 0.0, %v936
      %v938 = vpop.f32.mrb[0].mxu0
      %939 = vmatprep.mubr.bf16.mxu0 0
      %940 = vmatmul.mubr.bf16.gmra.mrb[0].mxu0 %v736
      %v941 = vpop.f32.mrb[0].mxu0
      %v942 = vadd.f32 0.0, %v941
      %v943 = vpop.f32.mrb[0].mxu0
      %v944 = vpop.f32.mrb[0].mxu0
      %v945 = vadd.f32 0.0, %v944
      %v946 = vpop.f32.mrb[0].mxu0
      %947 = vmatprep.mubr.bf16.mxu0 0
      %948 = vmatmul.mubr.bf16.gmra.mrb[0].mxu0 %v737
      %v949 = vpop.f32.mrb[0].mxu0
      %v950 = vadd.f32 0.0, %v949
      %v951 = vpop.f32.mrb[0].mxu0
      %v952 = vpop.f32.mrb[0].mxu0
      %v953 = vadd.f32 0.0, %v952
      %v954 = vpop.f32.mrb[0].mxu0
      %955 = vmatprep.mubr.bf16.mxu0 0
      %956 = vmatmul.mubr.bf16.gmra.mrb[0].mxu0 %v738
      %v957 = vpop.f32.mrb[0].mxu0
      %v958 = vadd.f32 0.0, %v957
      %v959 = vpop.f32.mrb[0].mxu0
      %v960 = vpop.f32.mrb[0].mxu0
      %v961 = vadd.f32 0.0, %v960
      %v962 = vpop.f32.mrb[0].mxu0
      %963 = vdwg.mxu0
      %v996 = vunpack.c.l.b16 %v223
      %v997 = vunpack.c.l.b16 %v224
      %v998 = vunpack.c.l.b16 %v225
      %v999 = vunpack.c.l.b16 %v226
      %v1000 = vunpack.c.l.b16 %v227
      %v1001 = vunpack.c.l.b16 %v228
      %v1002 = vunpack.c.l.b16 %v229
      %v1003 = vunpack.c.l.b16 %v230
      %v1004 = vunpack.c.l.b16 %v231
      %v1005 = vunpack.c.l.b16 %v232
      %v1006 = vunpack.c.l.b16 %v233
      %v1007 = vunpack.c.l.b16 %v234
      %v1008 = vunpack.c.l.b16 %v235
      %v1009 = vunpack.c.l.b16 %v236
      %v1010 = vunpack.c.l.b16 %v237
      %v1011 = vunpack.c.l.b16 %v238
      %v1012 = vunpack.c.l.b16 %v239
      %v1013 = vunpack.c.l.b16 %v240
      %v1014 = vunpack.c.l.b16 %v241
      %v1015 = vunpack.c.l.b16 %v242
      %v1016 = vunpack.c.l.b16 %v243
      %v1017 = vunpack.c.l.b16 %v244
      %v1018 = vunpack.c.l.b16 %v245
      %v1019 = vunpack.c.l.b16 %v246
      %v1020 = vunpack.c.l.b16 %v247
      %v1021 = vunpack.c.l.b16 %v248
      %v1022 = vunpack.c.l.b16 %v249
      %v1023 = vunpack.c.l.b16 %v250
      %v1024 = vunpack.c.l.b16 %v251
      %v1025 = vunpack.c.l.b16 %v252
      %v1026 = vunpack.c.l.b16 %v253
      %v1027 = vunpack.c.l.b16 %v254
      %v1028 = vpack.c.b16 %v997, %v996
      %v1029 = vpack.c.b16 %v999, %v998
      %v1030 = vpack.c.b16 %v1001, %v1000
      %v1031 = vpack.c.b16 %v1003, %v1002
      %v1032 = vpack.c.b16 %v1005, %v1004
      %v1033 = vpack.c.b16 %v1007, %v1006
      %v1034 = vpack.c.b16 %v1009, %v1008
      %v1035 = vpack.c.b16 %v1011, %v1010
      %v1036 = vpack.c.b16 %v1013, %v1012
      %v1037 = vpack.c.b16 %v1015, %v1014
      %v1038 = vpack.c.b16 %v1017, %v1016
      %v1039 = vpack.c.b16 %v1019, %v1018
      %v1040 = vpack.c.b16 %v1021, %v1020
      %v1041 = vpack.c.b16 %v1023, %v1022
      %v1042 = vpack.c.b16 %v1025, %v1024
      %v1043 = vpack.c.b16 %v1027, %v1026
      %v1076 = vunpack.c.l.b16 %v255
      %v1077 = vunpack.c.l.b16 %v256
      %v1078 = vunpack.c.l.b16 %v257
      %v1079 = vunpack.c.l.b16 %v258
      %v1080 = vunpack.c.l.b16 %v259
      %v1081 = vunpack.c.l.b16 %v260
      %v1082 = vunpack.c.l.b16 %v261
      %v1083 = vunpack.c.l.b16 %v262
      %v1084 = vunpack.c.l.b16 %v263
      %v1085 = vunpack.c.l.b16 %v264
      %v1086 = vunpack.c.l.b16 %v265
      %v1087 = vunpack.c.l.b16 %v266
      %v1088 = vunpack.c.l.b16 %v267
      %v1089 = vunpack.c.l.b16 %v268
      %v1090 = vunpack.c.l.b16 %v269
      %v1091 = vunpack.c.l.b16 %v270
      %v1092 = vpack.c.b16 %v1077, %v1076
      %v1093 = vpack.c.b16 %v1079, %v1078
      %v1094 = vpack.c.b16 %v1081, %v1080
      %v1095 = vpack.c.b16 %v1083, %v1082
      %v1096 = vpack.c.b16 %v1085, %v1084
      %v1097 = vpack.c.b16 %v1087, %v1086
      %v1098 = vpack.c.b16 %v1089, %v1088
      %v1099 = vpack.c.b16 %v1091, %v1090
      %1108 = vmatprep.subr.bf16.mxu0 0
      %1109 = vmatpush1.bf16.msra.mxu0 %v1092
      %1110 = vmatprep.subr.bf16.mxu0 0
      %1111 = vmatpush1.bf16.msra.mxu0 %v1093
      %1112 = vmatprep.subr.bf16.mxu0 0
      %1113 = vmatpush1.bf16.msra.mxu0 %v1094
      %1114 = vmatprep.subr.bf16.mxu0 0
      %1115 = vmatpush1.bf16.msra.mxu0 %v1095
      %1116 = vmatprep.subr.bf16.mxu0 0
      %1117 = vmatpush1.bf16.msra.mxu0 %v1096
      %1118 = vmatprep.subr.bf16.mxu0 0
      %1119 = vmatpush1.bf16.msra.mxu0 %v1097
      %1120 = vmatprep.subr.bf16.mxu0 0
      %1121 = vmatpush1.bf16.msra.mxu0 %v1098
      %1122 = vmatprep.subr.bf16.mxu0 0
      %1123 = vmatpush1.bf16.msra.mxu0 %v1099
      %1124 = vmatprep.subr.bf16.mxu0 0
      %1125 = vmatpush1.bf16.msra.mxu0 0
      %1126 = vmatprep.subr.bf16.mxu0 0
      %1127 = vmatpush1.bf16.msra.mxu0 0
      %1128 = vmatprep.subr.bf16.mxu0 0
      %1129 = vmatpush1.bf16.msra.mxu0 0
      %1130 = vmatprep.subr.bf16.mxu0 0
      %1131 = vmatpush1.bf16.msra.mxu0 0
      %1132 = vmatprep.subr.bf16.mxu0 0
      %1133 = vmatpush1.bf16.msra.mxu0 0
      %1134 = vmatprep.subr.bf16.mxu0 0
      %1135 = vmatpush1.bf16.msra.mxu0 0
      %1136 = vmatprep.subr.bf16.mxu0 0
      %1137 = vmatpush1.bf16.msra.mxu0 0
      %1138 = vmatprep.subr.bf16.mxu0 0
      %1139 = vmatpush1.bf16.msra.mxu0 0
      %1140 = vmatprep.mubr.bf16.mxu0 0
      %1141 = vmatmul.mubr.bf16.gmra.mrb[0].mxu0 %v1028
      %v1142 = vpop.f32.mrb[0].mxu0
      %v1143 = vadd.f32 %v838, %v1142
      %v1144 = vpop.f32.mrb[0].mxu0
      %v1145 = vpop.f32.mrb[0].mxu0
      %v1146 = vadd.f32 %v841, %v1145
      %v1147 = vpop.f32.mrb[0].mxu0
      %1148 = vmatprep.mubr.bf16.mxu0 0
      %1149 = vmatmul.mubr.bf16.gmra.mrb[0].mxu0 %v1029
      %v1150 = vpop.f32.mrb[0].mxu0
      %v1151 = vadd.f32 %v846, %v1150
      %v1152 = vpop.f32.mrb[0].mxu0
      %v1153 = vpop.f32.mrb[0].mxu0
      %v1154 = vadd.f32 %v849, %v1153
      %v1155 = vpop.f32.mrb[0].mxu0
      %1156 = vmatprep.mubr.bf16.mxu0 0
      %1157 = vmatmul.mubr.bf16.gmra.mrb[0].mxu0 %v1030
      %v1158 = vpop.f32.mrb[0].mxu0
      %v1159 = vadd.f32 %v854, %v1158
      %v1160 = vpop.f32.mrb[0].mxu0
      %v1161 = vpop.f32.mrb[0].mxu0
      %v1162 = vadd.f32 %v857, %v1161
      %v1163 = vpop.f32.mrb[0].mxu0
      %1164 = vmatprep.mubr.bf16.mxu0 0
      %1165 = vmatmul.mubr.bf16.gmra.mrb[0].mxu0 %v1031
      %v1166 = vpop.f32.mrb[0].mxu0
      %v1167 = vadd.f32 %v862, %v1166
      %v1168 = vpop.f32.mrb[0].mxu0
      %v1169 = vpop.f32.mrb[0].mxu0
      %v1170 = vadd.f32 %v865, %v1169
      %v1171 = vpop.f32.mrb[0].mxu0
      %1172 = vmatprep.mubr.bf16.mxu0 0
      %1173 = vmatmul.mubr.bf16.gmra.mrb[0].mxu0 %v1032
      %v1174 = vpop.f32.mrb[0].mxu0
      %v1175 = vadd.f32 %v870, %v1174
      %v1176 = vpop.f32.mrb[0].mxu0
      %v1177 = vpop.f32.mrb[0].mxu0
      %v1178 = vadd.f32 %v873, %v1177
      %v1179 = vpop.f32.mrb[0].mxu0
      %1180 = vmatprep.mubr.bf16.mxu0 0
      %1181 = vmatmul.mubr.bf16.gmra.mrb[0].mxu0 %v1033
      %v1182 = vpop.f32.mrb[0].mxu0
      %v1183 = vadd.f32 %v878, %v1182
      %v1184 = vpop.f32.mrb[0].mxu0
      %v1185 = vpop.f32.mrb[0].mxu0
      %v1186 = vadd.f32 %v881, %v1185
      %v1187 = vpop.f32.mrb[0].mxu0
      %1188 = vmatprep.mubr.bf16.mxu0 0
      %1189 = vmatmul.mubr.bf16.gmra.mrb[0].mxu0 %v1034
      %v1190 = vpop.f32.mrb[0].mxu0
      %v1191 = vadd.f32 %v886, %v1190
      %v1192 = vpop.f32.mrb[0].mxu0
      %v1193 = vpop.f32.mrb[0].mxu0
      %v1194 = vadd.f32 %v889, %v1193
      %v1195 = vpop.f32.mrb[0].mxu0
      %1196 = vmatprep.mubr.bf16.mxu0 0
      %1197 = vmatmul.mubr.bf16.gmra.mrb[0].mxu0 %v1035
      %v1198 = vpop.f32.mrb[0].mxu0
      %v1199 = vadd.f32 %v894, %v1198
      %v1200 = vpop.f32.mrb[0].mxu0
      %v1201 = vpop.f32.mrb[0].mxu0
      %v1202 = vadd.f32 %v897, %v1201
      %v1203 = vpop.f32.mrb[0].mxu0
      %1204 = vmatprep.mubr.bf16.mxu0 0
      %1205 = vmatmul.mubr.bf16.gmra.mrb[0].mxu0 %v1036
      %v1206 = vpop.f32.mrb[0].mxu0
      %v1207 = vadd.f32 %v902, %v1206
      %v1208 = vpop.f32.mrb[0].mxu0
      %v1209 = vpop.f32.mrb[0].mxu0
      %v1210 = vadd.f32 %v905, %v1209
      %v1211 = vpop.f32.mrb[0].mxu0
      %1212 = vmatprep.mubr.bf16.mxu0 0
      %1213 = vmatmul.mubr.bf16.gmra.mrb[0].mxu0 %v1037
      %v1214 = vpop.f32.mrb[0].mxu0
      %v1215 = vadd.f32 %v910, %v1214
      %v1216 = vpop.f32.mrb[0].mxu0
      %v1217 = vpop.f32.mrb[0].mxu0
      %v1218 = vadd.f32 %v913, %v1217
      %v1219 = vpop.f32.mrb[0].mxu0
      %1220 = vmatprep.mubr.bf16.mxu0 0
      %1221 = vmatmul.mubr.bf16.gmra.mrb[0].mxu0 %v1038
      %v1222 = vpop.f32.mrb[0].mxu0
      %v1223 = vadd.f32 %v918, %v1222
      %v1224 = vpop.f32.mrb[0].mxu0
      %v1225 = vpop.f32.mrb[0].mxu0
      %v1226 = vadd.f32 %v921, %v1225
      %v1227 = vpop.f32.mrb[0].mxu0
      %1228 = vmatprep.mubr.bf16.mxu0 0
      %1229 = vmatmul.mubr.bf16.gmra.mrb[0].mxu0 %v1039
      %v1230 = vpop.f32.mrb[0].mxu0
      %v1231 = vadd.f32 %v926, %v1230
      %v1232 = vpop.f32.mrb[0].mxu0
      %v1233 = vpop.f32.mrb[0].mxu0
      %v1234 = vadd.f32 %v929, %v1233
      %v1235 = vpop.f32.mrb[0].mxu0
      %1236 = vmatprep.mubr.bf16.mxu0 0
      %1237 = vmatmul.mubr.bf16.gmra.mrb[0].mxu0 %v1040
      %v1238 = vpop.f32.mrb[0].mxu0
      %v1239 = vadd.f32 %v934, %v1238
      %v1240 = vpop.f32.mrb[0].mxu0
      %v1241 = vpop.f32.mrb[0].mxu0
      %v1242 = vadd.f32 %v937, %v1241
      %v1243 = vpop.f32.mrb[0].mxu0
      %1244 = vmatprep.mubr.bf16.mxu0 0
      %1245 = vmatmul.mubr.bf16.gmra.mrb[0].mxu0 %v1041
      %v1246 = vpop.f32.mrb[0].mxu0
      %v1247 = vadd.f32 %v942, %v1246
      %v1248 = vpop.f32.mrb[0].mxu0
      %v1249 = vpop.f32.mrb[0].mxu0
      %v1250 = vadd.f32 %v945, %v1249
      %v1251 = vpop.f32.mrb[0].mxu0
      %1252 = vmatprep.mubr.bf16.mxu0 0
      %1253 = vmatmul.mubr.bf16.gmra.mrb[0].mxu0 %v1042
      %v1254 = vpop.f32.mrb[0].mxu0
      %v1255 = vadd.f32 %v950, %v1254
      %v1256 = vpop.f32.mrb[0].mxu0
      %v1257 = vpop.f32.mrb[0].mxu0
      %v1258 = vadd.f32 %v953, %v1257
      %v1259 = vpop.f32.mrb[0].mxu0
      %1260 = vmatprep.mubr.bf16.mxu0 0
      %1261 = vmatmul.mubr.bf16.gmra.mrb[0].mxu0 %v1043
      %v1262 = vpop.f32.mrb[0].mxu0
      %v1263 = vadd.f32 %v958, %v1262
      %v1264 = vpop.f32.mrb[0].mxu0
      %v1265 = vpop.f32.mrb[0].mxu0
      %v1266 = vadd.f32 %v961, %v1265
      %v1267 = vpop.f32.mrb[0].mxu0
      %1268 = vdwg.mxu0
      %v1269 = vld [vmem:[%s206] sm:$0xe]
      %v1270 = vld [vmem:[%s206 + $0xc] sm:$0xe]
      %v1271 = vld [vmem:[%s206 + $0x18] sm:$0xe]
      %v1272 = vld [vmem:[%s206 + $0x24] sm:$0xe]
      %v1273 = vld [vmem:[%s206 + $0x30] sm:$0xe]
      %v1274 = vld [vmem:[%s206 + $0x3c] sm:$0xe]
      %v1275 = vld [vmem:[%s206 + $0x48] sm:$0xe]
      %v1276 = vld [vmem:[%s206 + $0x54] sm:$0xe]
      %v1277 = vld [vmem:[%s206 + $0x60] sm:$0xe]
      %v1278 = vld [vmem:[%s206 + $0x6c] sm:$0xe]
      %v1279 = vld [vmem:[%s206 + $0x78] sm:$0xe]
      %v1280 = vld [vmem:[%s206 + $0x84] sm:$0xe]
      %v1281 = vld [vmem:[%s206 + $0x90] sm:$0xe]
      %v1282 = vld [vmem:[%s206 + $0x9c] sm:$0xe]
      %v1283 = vld [vmem:[%s206 + $0xa8] sm:$0xe]
      %v1284 = vld [vmem:[%s206 + $0xb4] sm:$0xe]
      %vm1317 = vcmask 1042432
      %vm1318 = vcmask 1046532
      %vm1319 = vmor %vm1317, %vm1318
      %v1320 = vrot.slane %v1269, 5
      %v1321 = vrot.slane %v1320, 4
      %v1322 = vrot.slane %v224, 5
      %v1323 = vsel %vm1319, %v1321, %v1322
      %v1324 = vrot.slane %v1322, 4
      %v1325 = vrot.slane %v271, 5
      %v1326 = vsel %vm1319, %v1324, %v1325
      %v1327 = vrot.slane %v1270, 5
      %v1328 = vrot.slane %v1327, 4
      %v1329 = vrot.slane %v226, 5
      %v1330 = vsel %vm1319, %v1328, %v1329
      %v1331 = vrot.slane %v1329, 4
      %v1332 = vrot.slane %v272, 5
      %v1333 = vsel %vm1319, %v1331, %v1332
      %v1334 = vrot.slane %v1271, 5
      %v1335 = vrot.slane %v1334, 4
      %v1336 = vrot.slane %v228, 5
      %v1337 = vsel %vm1319, %v1335, %v1336
      %v1338 = vrot.slane %v1336, 4
      %v1339 = vrot.slane %v273, 5
      %v1340 = vsel %vm1319, %v1338, %v1339
      %v1341 = vrot.slane %v1272, 5
      %v1342 = vrot.slane %v1341, 4
      %v1343 = vrot.slane %v230, 5
      %v1344 = vsel %vm1319, %v1342, %v1343
      %v1345 = vrot.slane %v1343, 4
      %v1346 = vrot.slane %v274, 5
      %v1347 = vsel %vm1319, %v1345, %v1346
      %v1348 = vrot.slane %v1273, 5
      %v1349 = vrot.slane %v1348, 4
      %v1350 = vrot.slane %v232, 5
      %v1351 = vsel %vm1319, %v1349, %v1350
      %v1352 = vrot.slane %v1350, 4
      %v1353 = vrot.slane %v275, 5
      %v1354 = vsel %vm1319, %v1352, %v1353
      %v1355 = vrot.slane %v1274, 5
      %v1356 = vrot.slane %v1355, 4
      %v1357 = vrot.slane %v234, 5
      %v1358 = vsel %vm1319, %v1356, %v1357
      %v1359 = vrot.slane %v1357, 4
      %v1360 = vrot.slane %v276, 5
      %v1361 = vsel %vm1319, %v1359, %v1360
      %v1362 = vrot.slane %v1275, 5
      %v1363 = vrot.slane %v1362, 4
      %v1364 = vrot.slane %v236, 5
      %v1365 = vsel %vm1319, %v1363, %v1364
      %v1366 = vrot.slane %v1364, 4
      %v1367 = vrot.slane %v277, 5
      %v1368 = vsel %vm1319, %v1366, %v1367
      %v1369 = vrot.slane %v1276, 5
      %v1370 = vrot.slane %v1369, 4
      %v1371 = vrot.slane %v238, 5
      %v1372 = vsel %vm1319, %v1370, %v1371
      %v1373 = vrot.slane %v1371, 4
      %v1374 = vrot.slane %v278, 5
      %v1375 = vsel %vm1319, %v1373, %v1374
      %v1376 = vrot.slane %v1277, 5
      %v1377 = vrot.slane %v1376, 4
      %v1378 = vrot.slane %v240, 5
      %v1379 = vsel %vm1319, %v1377, %v1378
      %v1380 = vrot.slane %v1378, 4
      %v1381 = vrot.slane %v279, 5
      %v1382 = vsel %vm1319, %v1380, %v1381
      %v1383 = vrot.slane %v1278, 5
      %v1384 = vrot.slane %v1383, 4
      %v1385 = vrot.slane %v242, 5
      %v1386 = vsel %vm1319, %v1384, %v1385
      %v1387 = vrot.slane %v1385, 4
      %v1388 = vrot.slane %v280, 5
      %v1389 = vsel %vm1319, %v1387, %v1388
      %v1390 = vrot.slane %v1279, 5
      %v1391 = vrot.slane %v1390, 4
      %v1392 = vrot.slane %v244, 5
      %v1393 = vsel %vm1319, %v1391, %v1392
      %v1394 = vrot.slane %v1392, 4
      %v1395 = vrot.slane %v281, 5
      %v1396 = vsel %vm1319, %v1394, %v1395
      %v1397 = vrot.slane %v1280, 5
      %v1398 = vrot.slane %v1397, 4
      %v1399 = vrot.slane %v246, 5
      %v1400 = vsel %vm1319, %v1398, %v1399
      %v1401 = vrot.slane %v1399, 4
      %v1402 = vrot.slane %v282, 5
      %v1403 = vsel %vm1319, %v1401, %v1402
      %v1404 = vrot.slane %v1281, 5
      %v1405 = vrot.slane %v1404, 4
      %v1406 = vrot.slane %v248, 5
      %v1407 = vsel %vm1319, %v1405, %v1406
      %v1408 = vrot.slane %v1406, 4
      %v1409 = vrot.slane %v283, 5
      %v1410 = vsel %vm1319, %v1408, %v1409
      %v1411 = vrot.slane %v1282, 5
      %v1412 = vrot.slane %v1411, 4
      %v1413 = vrot.slane %v250, 5
      %v1414 = vsel %vm1319, %v1412, %v1413
      %v1415 = vrot.slane %v1413, 4
      %v1416 = vrot.slane %v284, 5
      %v1417 = vsel %vm1319, %v1415, %v1416
      %v1418 = vrot.slane %v1283, 5
      %v1419 = vrot.slane %v1418, 4
      %v1420 = vrot.slane %v252, 5
      %v1421 = vsel %vm1319, %v1419, %v1420
      %v1422 = vrot.slane %v1420, 4
      %v1423 = vrot.slane %v285, 5
      %v1424 = vsel %vm1319, %v1422, %v1423
      %v1425 = vrot.slane %v1284, 5
      %v1426 = vrot.slane %v1425, 4
      %v1427 = vrot.slane %v254, 5
      %v1428 = vsel %vm1319, %v1426, %v1427
      %v1429 = vrot.slane %v1427, 4
      %v1430 = vrot.slane %v286, 5
      %v1431 = vsel %vm1319, %v1429, %v1430
      %s1432 = scalar_lea.vmem %s210, 128
      %v1433 = vld [vmem:[%s1432] sm:$0xf]
      %v1434 = vld [vmem:[%s1432 + $0x4] sm:$0xf]
      %v1435 = vld [vmem:[%s1432 + $0x8] sm:$0xf]
      %v1436 = vld [vmem:[%s1432 + $0xc] sm:$0xf]
      %v1437 = vld [vmem:[%s1432 + $0x10] sm:$0xf]
      %v1438 = vld [vmem:[%s1432 + $0x14] sm:$0xf]
      %v1439 = vld [vmem:[%s1432 + $0x18] sm:$0xf]
      %v1440 = vld [vmem:[%s1432 + $0x1c] sm:$0xf]
      %v1441 = vld [vmem:[%s1432 + $0x20] sm:$0xf]
      %v1442 = vld [vmem:[%s1432 + $0x24] sm:$0xf]
      %v1443 = vld [vmem:[%s1432 + $0x28] sm:$0xf]
      %v1444 = vld [vmem:[%s1432 + $0x2c] sm:$0xf]
      %v1445 = vld [vmem:[%s1432 + $0x30] sm:$0xf]
      %v1446 = vld [vmem:[%s1432 + $0x34] sm:$0xf]
      %v1447 = vld [vmem:[%s1432 + $0x38] sm:$0xf]
      %v1448 = vld [vmem:[%s1432 + $0x3c] sm:$0xf]
      %v1449 = vunpack.c.l.b16 %v1323
      %v1450 = vunpack.c.l.b16 %v1326
      %v1451 = vunpack.c.l.b16 %v1330
      %v1452 = vunpack.c.l.b16 %v1333
      %v1453 = vunpack.c.l.b16 %v1337
      %v1454 = vunpack.c.l.b16 %v1340
      %v1455 = vunpack.c.l.b16 %v1344
      %v1456 = vunpack.c.l.b16 %v1347
      %v1457 = vunpack.c.l.b16 %v1351
      %v1458 = vunpack.c.l.b16 %v1354
      %v1459 = vunpack.c.l.b16 %v1358
      %v1460 = vunpack.c.l.b16 %v1361
      %v1461 = vunpack.c.l.b16 %v1365
      %v1462 = vunpack.c.l.b16 %v1368
      %v1463 = vunpack.c.l.b16 %v1372
      %v1464 = vunpack.c.l.b16 %v1375
      %v1465 = vunpack.c.l.b16 %v1379
      %v1466 = vunpack.c.l.b16 %v1382
      %v1467 = vunpack.c.l.b16 %v1386
      %v1468 = vunpack.c.l.b16 %v1389
      %v1469 = vunpack.c.l.b16 %v1393
      %v1470 = vunpack.c.l.b16 %v1396
      %v1471 = vunpack.c.l.b16 %v1400
      %v1472 = vunpack.c.l.b16 %v1403
      %v1473 = vunpack.c.l.b16 %v1407
      %v1474 = vunpack.c.l.b16 %v1410
      %v1475 = vunpack.c.l.b16 %v1414
      %v1476 = vunpack.c.l.b16 %v1417
      %v1477 = vunpack.c.l.b16 %v1421
      %v1478 = vunpack.c.l.b16 %v1424
      %v1479 = vunpack.c.l.b16 %v1428
      %v1480 = vunpack.c.l.b16 %v1431
      %v1481 = vpack.c.b16 %v1450, %v1449
      %v1482 = vpack.c.b16 %v1452, %v1451
      %v1483 = vpack.c.b16 %v1454, %v1453
      %v1484 = vpack.c.b16 %v1456, %v1455
      %v1485 = vpack.c.b16 %v1458, %v1457
      %v1486 = vpack.c.b16 %v1460, %v1459
      %v1487 = vpack.c.b16 %v1462, %v1461
      %v1488 = vpack.c.b16 %v1464, %v1463
      %v1489 = vpack.c.b16 %v1466, %v1465
      %v1490 = vpack.c.b16 %v1468, %v1467
      %v1491 = vpack.c.b16 %v1470, %v1469
      %v1492 = vpack.c.b16 %v1472, %v1471
      %v1493 = vpack.c.b16 %v1474, %v1473
      %v1494 = vpack.c.b16 %v1476, %v1475
      %v1495 = vpack.c.b16 %v1478, %v1477
      %v1496 = vpack.c.b16 %v1480, %v1479
      %v1529 = vunpack.c.l.b16 %v1433
      %v1530 = vunpack.c.l.b16 %v1434
      %v1531 = vunpack.c.l.b16 %v1435
      %v1532 = vunpack.c.l.b16 %v1436
      %v1533 = vunpack.c.l.b16 %v1437
      %v1534 = vunpack.c.l.b16 %v1438
      %v1535 = vunpack.c.l.b16 %v1439
      %v1536 = vunpack.c.l.b16 %v1440
      %v1537 = vunpack.c.l.b16 %v1441
      %v1538 = vunpack.c.l.b16 %v1442
      %v1539 = vunpack.c.l.b16 %v1443
      %v1540 = vunpack.c.l.b16 %v1444
      %v1541 = vunpack.c.l.b16 %v1445
      %v1542 = vunpack.c.l.b16 %v1446
      %v1543 = vunpack.c.l.b16 %v1447
      %v1544 = vunpack.c.l.b16 %v1448
      %v1545 = vpack.c.b16 %v1530, %v1529
      %v1546 = vpack.c.b16 %v1532, %v1531
      %v1547 = vpack.c.b16 %v1534, %v1533
      %v1548 = vpack.c.b16 %v1536, %v1535
      %v1549 = vpack.c.b16 %v1538, %v1537
      %v1550 = vpack.c.b16 %v1540, %v1539
      %v1551 = vpack.c.b16 %v1542, %v1541
      %v1552 = vpack.c.b16 %v1544, %v1543
      %1561 = vmatprep.subr.bf16.mxu0 0
      %1562 = vmatpush1.bf16.msra.mxu0 %v1545
      %1563 = vmatprep.subr.bf16.mxu0 0
      %1564 = vmatpush1.bf16.msra.mxu0 %v1546
      %1565 = vmatprep.subr.bf16.mxu0 0
      %1566 = vmatpush1.bf16.msra.mxu0 %v1547
      %1567 = vmatprep.subr.bf16.mxu0 0
      %1568 = vmatpush1.bf16.msra.mxu0 %v1548
      %1569 = vmatprep.subr.bf16.mxu0 0
      %1570 = vmatpush1.bf16.msra.mxu0 %v1549
      %1571 = vmatprep.subr.bf16.mxu0 0
      %1572 = vmatpush1.bf16.msra.mxu0 %v1550
      %1573 = vmatprep.subr.bf16.mxu0 0
      %1574 = vmatpush1.bf16.msra.mxu0 %v1551
      %1575 = vmatprep.subr.bf16.mxu0 0
      %1576 = vmatpush1.bf16.msra.mxu0 %v1552
      %1577 = vmatprep.subr.bf16.mxu0 0
      %1578 = vmatpush1.bf16.msra.mxu0 0
      %1579 = vmatprep.subr.bf16.mxu0 0
      %1580 = vmatpush1.bf16.msra.mxu0 0
      %1581 = vmatprep.subr.bf16.mxu0 0
      %1582 = vmatpush1.bf16.msra.mxu0 0
      %1583 = vmatprep.subr.bf16.mxu0 0
      %1584 = vmatpush1.bf16.msra.mxu0 0
      %1585 = vmatprep.subr.bf16.mxu0 0
      %1586 = vmatpush1.bf16.msra.mxu0 0
      %1587 = vmatprep.subr.bf16.mxu0 0
      %1588 = vmatpush1.bf16.msra.mxu0 0
      %1589 = vmatprep.subr.bf16.mxu0 0
      %1590 = vmatpush1.bf16.msra.mxu0 0
      %1591 = vmatprep.subr.bf16.mxu0 0
      %1592 = vmatpush1.bf16.msra.mxu0 0
      %1593 = vmatprep.mubr.bf16.mxu0 0
      %1594 = vmatmul.mubr.bf16.gmra.mrb[0].mxu0 %v1481
      %v1595 = vpop.f32.mrb[0].mxu0
      %v1596 = vadd.f32 0.0, %v1595
      %v1597 = vpop.f32.mrb[0].mxu0
      %v1598 = vpop.f32.mrb[0].mxu0
      %v1599 = vadd.f32 0.0, %v1598
      %v1600 = vpop.f32.mrb[0].mxu0
      %1601 = vmatprep.mubr.bf16.mxu0 0
      %1602 = vmatmul.mubr.bf16.gmra.mrb[0].mxu0 %v1482
      %v1603 = vpop.f32.mrb[0].mxu0
      %v1604 = vadd.f32 0.0, %v1603
      %v1605 = vpop.f32.mrb[0].mxu0
      %v1606 = vpop.f32.mrb[0].mxu0
      %v1607 = vadd.f32 0.0, %v1606
      %v1608 = vpop.f32.mrb[0].mxu0
      %1609 = vmatprep.mubr.bf16.mxu0 0
      %1610 = vmatmul.mubr.bf16.gmra.mrb[0].mxu0 %v1483
      %v1611 = vpop.f32.mrb[0].mxu0
      %v1612 = vadd.f32 0.0, %v1611
      %v1613 = vpop.f32.mrb[0].mxu0
      %v1614 = vpop.f32.mrb[0].mxu0
      %v1615 = vadd.f32 0.0, %v1614
      %v1616 = vpop.f32.mrb[0].mxu0
      %1617 = vmatprep.mubr.bf16.mxu0 0
      %1618 = vmatmul.mubr.bf16.gmra.mrb[0].mxu0 %v1484
      %v1619 = vpop.f32.mrb[0].mxu0
      %v1620 = vadd.f32 0.0, %v1619
      %v1621 = vpop.f32.mrb[0].mxu0
      %v1622 = vpop.f32.mrb[0].mxu0
      %v1623 = vadd.f32 0.0, %v1622
      %v1624 = vpop.f32.mrb[0].mxu0
      %1625 = vmatprep.mubr.bf16.mxu0 0
      %1626 = vmatmul.mubr.bf16.gmra.mrb[0].mxu0 %v1485
      %v1627 = vpop.f32.mrb[0].mxu0
      %v1628 = vadd.f32 0.0, %v1627
      %v1629 = vpop.f32.mrb[0].mxu0
      %v1630 = vpop.f32.mrb[0].mxu0
      %v1631 = vadd.f32 0.0, %v1630
      %v1632 = vpop.f32.mrb[0].mxu0
      %1633 = vmatprep.mubr.bf16.mxu0 0
      %1634 = vmatmul.mubr.bf16.gmra.mrb[0].mxu0 %v1486
      %v1635 = vpop.f32.mrb[0].mxu0
      %v1636 = vadd.f32 0.0, %v1635
      %v1637 = vpop.f32.mrb[0].mxu0
      %v1638 = vpop.f32.mrb[0].mxu0
      %v1639 = vadd.f32 0.0, %v1638
      %v1640 = vpop.f32.mrb[0].mxu0
      %1641 = vmatprep.mubr.bf16.mxu0 0
      %1642 = vmatmul.mubr.bf16.gmra.mrb[0].mxu0 %v1487
      %v1643 = vpop.f32.mrb[0].mxu0
      %v1644 = vadd.f32 0.0, %v1643
      %v1645 = vpop.f32.mrb[0].mxu0
      %v1646 = vpop.f32.mrb[0].mxu0
      %v1647 = vadd.f32 0.0, %v1646
      %v1648 = vpop.f32.mrb[0].mxu0
      %1649 = vmatprep.mubr.bf16.mxu0 0
      %1650 = vmatmul.mubr.bf16.gmra.mrb[0].mxu0 %v1488
      %v1651 = vpop.f32.mrb[0].mxu0
      %v1652 = vadd.f32 0.0, %v1651
      %v1653 = vpop.f32.mrb[0].mxu0
      %v1654 = vpop.f32.mrb[0].mxu0
      %v1655 = vadd.f32 0.0, %v1654
      %v1656 = vpop.f32.mrb[0].mxu0
      %1657 = vmatprep.mubr.bf16.mxu0 0
      %1658 = vmatmul.mubr.bf16.gmra.mrb[0].mxu0 %v1489
      %v1659 = vpop.f32.mrb[0].mxu0
      %v1660 = vadd.f32 0.0, %v1659
      %v1661 = vpop.f32.mrb[0].mxu0
      %v1662 = vpop.f32.mrb[0].mxu0
      %v1663 = vadd.f32 0.0, %v1662
      %v1664 = vpop.f32.mrb[0].mxu0
      %1665 = vmatprep.mubr.bf16.mxu0 0
      %1666 = vmatmul.mubr.bf16.gmra.mrb[0].mxu0 %v1490
      %v1667 = vpop.f32.mrb[0].mxu0
      %v1668 = vadd.f32 0.0, %v1667
      %v1669 = vpop.f32.mrb[0].mxu0
      %v1670 = vpop.f32.mrb[0].mxu0
      %v1671 = vadd.f32 0.0, %v1670
      %v1672 = vpop.f32.mrb[0].mxu0
      %1673 = vmatprep.mubr.bf16.mxu0 0
      %1674 = vmatmul.mubr.bf16.gmra.mrb[0].mxu0 %v1491
      %v1675 = vpop.f32.mrb[0].mxu0
      %v1676 = vadd.f32 0.0, %v1675
      %v1677 = vpop.f32.mrb[0].mxu0
      %v1678 = vpop.f32.mrb[0].mxu0
      %v1679 = vadd.f32 0.0, %v1678
      %v1680 = vpop.f32.mrb[0].mxu0
      %1681 = vmatprep.mubr.bf16.mxu0 0
      %1682 = vmatmul.mubr.bf16.gmra.mrb[0].mxu0 %v1492
      %v1683 = vpop.f32.mrb[0].mxu0
      %v1684 = vadd.f32 0.0, %v1683
      %v1685 = vpop.f32.mrb[0].mxu0
      %v1686 = vpop.f32.mrb[0].mxu0
      %v1687 = vadd.f32 0.0, %v1686
      %v1688 = vpop.f32.mrb[0].mxu0
      %1689 = vmatprep.mubr.bf16.mxu0 0
      %1690 = vmatmul.mubr.bf16.gmra.mrb[0].mxu0 %v1493
      %v1691 = vpop.f32.mrb[0].mxu0
      %v1692 = vadd.f32 0.0, %v1691
      %v1693 = vpop.f32.mrb[0].mxu0
      %v1694 = vpop.f32.mrb[0].mxu0
      %v1695 = vadd.f32 0.0, %v1694
      %v1696 = vpop.f32.mrb[0].mxu0
      %1697 = vmatprep.mubr.bf16.mxu0 0
      %1698 = vmatmul.mubr.bf16.gmra.mrb[0].mxu0 %v1494
      %v1699 = vpop.f32.mrb[0].mxu0
      %v1700 = vadd.f32 0.0, %v1699
      %v1701 = vpop.f32.mrb[0].mxu0
      %v1702 = vpop.f32.mrb[0].mxu0
      %v1703 = vadd.f32 0.0, %v1702
      %v1704 = vpop.f32.mrb[0].mxu0
      %1705 = vmatprep.mubr.bf16.mxu0 0
      %1706 = vmatmul.mubr.bf16.gmra.mrb[0].mxu0 %v1495
      %v1707 = vpop.f32.mrb[0].mxu0
      %v1708 = vadd.f32 0.0, %v1707
      %v1709 = vpop.f32.mrb[0].mxu0
      %v1710 = vpop.f32.mrb[0].mxu0
      %v1711 = vadd.f32 0.0, %v1710
      %v1712 = vpop.f32.mrb[0].mxu0
      %1713 = vmatprep.mubr.bf16.mxu0 0
      %1714 = vmatmul.mubr.bf16.gmra.mrb[0].mxu0 %v1496
      %v1715 = vpop.f32.mrb[0].mxu0
      %v1716 = vadd.f32 0.0, %v1715
      %v1717 = vpop.f32.mrb[0].mxu0
      %v1718 = vpop.f32.mrb[0].mxu0
      %v1719 = vadd.f32 0.0, %v1718
      %v1720 = vpop.f32.mrb[0].mxu0
      %1721 = vdwg.mxu0
      %v1722 = vadd.f32 %v1143, %v1596
      %v1723 = vadd.f32 %v1146, %v1599
      %v1724 = vadd.f32 %v1151, %v1604
      %v1725 = vadd.f32 %v1154, %v1607
      %v1726 = vadd.f32 %v1159, %v1612
      %v1727 = vadd.f32 %v1162, %v1615
      %v1728 = vadd.f32 %v1167, %v1620
      %v1729 = vadd.f32 %v1170, %v1623
      %v1730 = vadd.f32 %v1175, %v1628
      %v1731 = vadd.f32 %v1178, %v1631
      %v1732 = vadd.f32 %v1183, %v1636
      %v1733 = vadd.f32 %v1186, %v1639
      %v1734 = vadd.f32 %v1191, %v1644
      %v1735 = vadd.f32 %v1194, %v1647
      %v1736 = vadd.f32 %v1199, %v1652
      %v1737 = vadd.f32 %v1202, %v1655
      %v1738 = vadd.f32 %v1207, %v1660
      %v1739 = vadd.f32 %v1210, %v1663
      %v1740 = vadd.f32 %v1215, %v1668
      %v1741 = vadd.f32 %v1218, %v1671
      %v1742 = vadd.f32 %v1223, %v1676
      %v1743 = vadd.f32 %v1226, %v1679
      %v1744 = vadd.f32 %v1231, %v1684
      %v1745 = vadd.f32 %v1234, %v1687
      %v1746 = vadd.f32 %v1239, %v1692
      %v1747 = vadd.f32 %v1242, %v1695
      %v1748 = vadd.f32 %v1247, %v1700
      %v1749 = vadd.f32 %v1250, %v1703
      %v1750 = vadd.f32 %v1255, %v1708
      %v1751 = vadd.f32 %v1258, %v1711
      %v1752 = vadd.f32 %v1263, %v1716
      %v1753 = vadd.f32 %v1266, %v1719
      %s1754 = scalar_lea.vmem %s206, 12
      %v1755 = vld [vmem:[%s1754] sm:$0xf]
      %v1756 = vld [vmem:[%s1754 + $0x4] sm:$0xf]
      %v1757 = vld [vmem:[%s1754 + $0xc] sm:$0xf]
      %v1758 = vld [vmem:[%s1754 + $0x10] sm:$0xf]
      %v1759 = vld [vmem:[%s1754 + $0x18] sm:$0xf]
      %v1760 = vld [vmem:[%s1754 + $0x1c] sm:$0xf]
      %v1761 = vld [vmem:[%s1754 + $0x24] sm:$0xf]
      %v1762 = vld [vmem:[%s1754 + $0x28] sm:$0xf]
      %v1763 = vld [vmem:[%s1754 + $0x30] sm:$0xf]
      %v1764 = vld [vmem:[%s1754 + $0x34] sm:$0xf]
      %v1765 = vld [vmem:[%s1754 + $0x3c] sm:$0xf]
      %v1766 = vld [vmem:[%s1754 + $0x40] sm:$0xf]
      %v1767 = vld [vmem:[%s1754 + $0x48] sm:$0xf]
      %v1768 = vld [vmem:[%s1754 + $0x4c] sm:$0xf]
      %v1769 = vld [vmem:[%s1754 + $0x54] sm:$0xf]
      %v1770 = vld [vmem:[%s1754 + $0x58] sm:$0xf]
      %v1771 = vld [vmem:[%s1754 + $0x60] sm:$0xf]
      %v1772 = vld [vmem:[%s1754 + $0x64] sm:$0xf]
      %v1773 = vld [vmem:[%s1754 + $0x6c] sm:$0xf]
      %v1774 = vld [vmem:[%s1754 + $0x70] sm:$0xf]
      %v1775 = vld [vmem:[%s1754 + $0x78] sm:$0xf]
      %v1776 = vld [vmem:[%s1754 + $0x7c] sm:$0xf]
      %v1777 = vld [vmem:[%s1754 + $0x84] sm:$0xf]
      %v1778 = vld [vmem:[%s1754 + $0x88] sm:$0xf]
      %v1779 = vld [vmem:[%s1754 + $0x90] sm:$0xf]
      %v1780 = vld [vmem:[%s1754 + $0x94] sm:$0xf]
      %v1781 = vld [vmem:[%s1754 + $0x9c] sm:$0xf]
      %v1782 = vld [vmem:[%s1754 + $0xa0] sm:$0xf]
      %v1783 = vld [vmem:[%s1754 + $0xa8] sm:$0xf]
      %v1784 = vld [vmem:[%s1754 + $0xac] sm:$0xf]
      %v1785 = vld [vmem:[%s1754 + $0xb4] sm:$0xf]
      %v1786 = vld [vmem:[%s1754 + $0xb8] sm:$0xf]
      %s1787 = scalar_lea.vmem %s210, 192
      %v1788 = vld [vmem:[%s1787] sm:$0xf]
      %v1789 = vld [vmem:[%s1787 + $0x4] sm:$0xf]
      %v1790 = vld [vmem:[%s1787 + $0x8] sm:$0xf]
      %v1791 = vld [vmem:[%s1787 + $0xc] sm:$0xf]
      %v1792 = vld [vmem:[%s1787 + $0x10] sm:$0xf]
      %v1793 = vld [vmem:[%s1787 + $0x14] sm:$0xf]
      %v1794 = vld [vmem:[%s1787 + $0x18] sm:$0xf]
      %v1795 = vld [vmem:[%s1787 + $0x1c] sm:$0xf]
      %v1796 = vld [vmem:[%s1787 + $0x20] sm:$0xf]
      %v1797 = vld [vmem:[%s1787 + $0x24] sm:$0xf]
      %v1798 = vld [vmem:[%s1787 + $0x28] sm:$0xf]
      %v1799 = vld [vmem:[%s1787 + $0x2c] sm:$0xf]
      %v1800 = vld [vmem:[%s1787 + $0x30] sm:$0xf]
      %v1801 = vld [vmem:[%s1787 + $0x34] sm:$0xf]
      %v1802 = vld [vmem:[%s1787 + $0x38] sm:$0xf]
      %v1803 = vld [vmem:[%s1787 + $0x3c] sm:$0xf]
      %v1836 = vunpack.c.l.b16 %v1755
      %v1837 = vunpack.c.l.b16 %v1756
      %v1838 = vunpack.c.l.b16 %v1757
      %v1839 = vunpack.c.l.b16 %v1758
      %v1840 = vunpack.c.l.b16 %v1759
      %v1841 = vunpack.c.l.b16 %v1760
      %v1842 = vunpack.c.l.b16 %v1761
      %v1843 = vunpack.c.l.b16 %v1762
      %v1844 = vunpack.c.l.b16 %v1763
      %v1845 = vunpack.c.l.b16 %v1764
      %v1846 = vunpack.c.l.b16 %v1765
      %v1847 = vunpack.c.l.b16 %v1766
      %v1848 = vunpack.c.l.b16 %v1767
      %v1849 = vunpack.c.l.b16 %v1768
      %v1850 = vunpack.c.l.b16 %v1769
      %v1851 = vunpack.c.l.b16 %v1770
      %v1852 = vunpack.c.l.b16 %v1771
      %v1853 = vunpack.c.l.b16 %v1772
      %v1854 = vunpack.c.l.b16 %v1773
      %v1855 = vunpack.c.l.b16 %v1774
      %v1856 = vunpack.c.l.b16 %v1775
      %v1857 = vunpack.c.l.b16 %v1776
      %v1858 = vunpack.c.l.b16 %v1777
      %v1859 = vunpack.c.l.b16 %v1778
      %v1860 = vunpack.c.l.b16 %v1779
      %v1861 = vunpack.c.l.b16 %v1780
      %v1862 = vunpack.c.l.b16 %v1781
      %v1863 = vunpack.c.l.b16 %v1782
      %v1864 = vunpack.c.l.b16 %v1783
      %v1865 = vunpack.c.l.b16 %v1784
      %v1866 = vunpack.c.l.b16 %v1785
      %v1867 = vunpack.c.l.b16 %v1786
      %v1868 = vpack.c.b16 %v1837, %v1836
      %v1869 = vpack.c.b16 %v1839, %v1838
      %v1870 = vpack.c.b16 %v1841, %v1840
      %v1871 = vpack.c.b16 %v1843, %v1842
      %v1872 = vpack.c.b16 %v1845, %v1844
      %v1873 = vpack.c.b16 %v1847, %v1846
      %v1874 = vpack.c.b16 %v1849, %v1848
      %v1875 = vpack.c.b16 %v1851, %v1850
      %v1876 = vpack.c.b16 %v1853, %v1852
      %v1877 = vpack.c.b16 %v1855, %v1854
      %v1878 = vpack.c.b16 %v1857, %v1856
      %v1879 = vpack.c.b16 %v1859, %v1858
      %v1880 = vpack.c.b16 %v1861, %v1860
      %v1881 = vpack.c.b16 %v1863, %v1862
      %v1882 = vpack.c.b16 %v1865, %v1864
      %v1883 = vpack.c.b16 %v1867, %v1866
      %v1916 = vunpack.c.l.b16 %v1788
      %v1917 = vunpack.c.l.b16 %v1789
      %v1918 = vunpack.c.l.b16 %v1790
      %v1919 = vunpack.c.l.b16 %v1791
      %v1920 = vunpack.c.l.b16 %v1792
      %v1921 = vunpack.c.l.b16 %v1793
      %v1922 = vunpack.c.l.b16 %v1794
      %v1923 = vunpack.c.l.b16 %v1795
      %v1924 = vunpack.c.l.b16 %v1796
      %v1925 = vunpack.c.l.b16 %v1797
      %v1926 = vunpack.c.l.b16 %v1798
      %v1927 = vunpack.c.l.b16 %v1799
      %v1928 = vunpack.c.l.b16 %v1800
      %v1929 = vunpack.c.l.b16 %v1801
      %v1930 = vunpack.c.l.b16 %v1802
      %v1931 = vunpack.c.l.b16 %v1803
      %v1932 = vpack.c.b16 %v1917, %v1916
      %v1933 = vpack.c.b16 %v1919, %v1918
      %v1934 = vpack.c.b16 %v1921, %v1920
      %v1935 = vpack.c.b16 %v1923, %v1922
      %v1936 = vpack.c.b16 %v1925, %v1924
      %v1937 = vpack.c.b16 %v1927, %v1926
      %v1938 = vpack.c.b16 %v1929, %v1928
      %v1939 = vpack.c.b16 %v1931, %v1930
      %1948 = vmatprep.subr.bf16.mxu0 0
      %1949 = vmatpush1.bf16.msra.mxu0 %v1932
      %1950 = vmatprep.subr.bf16.mxu0 0
      %1951 = vmatpush1.bf16.msra.mxu0 %v1933
      %1952 = vmatprep.subr.bf16.mxu0 0
      %1953 = vmatpush1.bf16.msra.mxu0 %v1934
      %1954 = vmatprep.subr.bf16.mxu0 0
      %1955 = vmatpush1.bf16.msra.mxu0 %v1935
      %1956 = vmatprep.subr.bf16.mxu0 0
      %1957 = vmatpush1.bf16.msra.mxu0 %v1936
      %1958 = vmatprep.subr.bf16.mxu0 0
      %1959 = vmatpush1.bf16.msra.mxu0 %v1937
      %1960 = vmatprep.subr.bf16.mxu0 0
      %1961 = vmatpush1.bf16.msra.mxu0 %v1938
      %1962 = vmatprep.subr.bf16.mxu0 0
      %1963 = vmatpush1.bf16.msra.mxu0 %v1939
      %1964 = vmatprep.subr.bf16.mxu0 0
      %1965 = vmatpush1.bf16.msra.mxu0 0
      %1966 = vmatprep.subr.bf16.mxu0 0
      %1967 = vmatpush1.bf16.msra.mxu0 0
      %1968 = vmatprep.subr.bf16.mxu0 0
      %1969 = vmatpush1.bf16.msra.mxu0 0
      %1970 = vmatprep.subr.bf16.mxu0 0
      %1971 = vmatpush1.bf16.msra.mxu0 0
      %1972 = vmatprep.subr.bf16.mxu0 0
      %1973 = vmatpush1.bf16.msra.mxu0 0
      %1974 = vmatprep.subr.bf16.mxu0 0
      %1975 = vmatpush1.bf16.msra.mxu0 0
      %1976 = vmatprep.subr.bf16.mxu0 0
      %1977 = vmatpush1.bf16.msra.mxu0 0
      %1978 = vmatprep.subr.bf16.mxu0 0
      %1979 = vmatpush1.bf16.msra.mxu0 0
      %1980 = vmatprep.mubr.bf16.mxu0 0
      %1981 = vmatmul.mubr.bf16.gmra.mrb[0].mxu0 %v1868
      %v1982 = vpop.f32.mrb[0].mxu0
      %v1983 = vadd.f32 0.0, %v1982
      %v1984 = vpop.f32.mrb[0].mxu0
      %v1985 = vpop.f32.mrb[0].mxu0
      %v1986 = vadd.f32 0.0, %v1985
      %v1987 = vpop.f32.mrb[0].mxu0
      %1988 = vmatprep.mubr.bf16.mxu0 0
      %1989 = vmatmul.mubr.bf16.gmra.mrb[0].mxu0 %v1869
      %v1990 = vpop.f32.mrb[0].mxu0
      %v1991 = vadd.f32 0.0, %v1990
      %v1992 = vpop.f32.mrb[0].mxu0
      %v1993 = vpop.f32.mrb[0].mxu0
      %v1994 = vadd.f32 0.0, %v1993
      %v1995 = vpop.f32.mrb[0].mxu0
      %1996 = vmatprep.mubr.bf16.mxu0 0
      %1997 = vmatmul.mubr.bf16.gmra.mrb[0].mxu0 %v1870
      %v1998 = vpop.f32.mrb[0].mxu0
      %v1999 = vadd.f32 0.0, %v1998
      %v2000 = vpop.f32.mrb[0].mxu0
      %v2001 = vpop.f32.mrb[0].mxu0
      %v2002 = vadd.f32 0.0, %v2001
      %v2003 = vpop.f32.mrb[0].mxu0
      %2004 = vmatprep.mubr.bf16.mxu0 0
      %2005 = vmatmul.mubr.bf16.gmra.mrb[0].mxu0 %v1871
      %v2006 = vpop.f32.mrb[0].mxu0
      %v2007 = vadd.f32 0.0, %v2006
      %v2008 = vpop.f32.mrb[0].mxu0
      %v2009 = vpop.f32.mrb[0].mxu0
      %v2010 = vadd.f32 0.0, %v2009
      %v2011 = vpop.f32.mrb[0].mxu0
      %2012 = vmatprep.mubr.bf16.mxu0 0
      %2013 = vmatmul.mubr.bf16.gmra.mrb[0].mxu0 %v1872
      %v2014 = vpop.f32.mrb[0].mxu0
      %v2015 = vadd.f32 0.0, %v2014
      %v2016 = vpop.f32.mrb[0].mxu0
      %v2017 = vpop.f32.mrb[0].mxu0
      %v2018 = vadd.f32 0.0, %v2017
      %v2019 = vpop.f32.mrb[0].mxu0
      %2020 = vmatprep.mubr.bf16.mxu0 0
      %2021 = vmatmul.mubr.bf16.gmra.mrb[0].mxu0 %v1873
      %v2022 = vpop.f32.mrb[0].mxu0
      %v2023 = vadd.f32 0.0, %v2022
      %v2024 = vpop.f32.mrb[0].mxu0
      %v2025 = vpop.f32.mrb[0].mxu0
      %v2026 = vadd.f32 0.0, %v2025
      %v2027 = vpop.f32.mrb[0].mxu0
      %2028 = vmatprep.mubr.bf16.mxu0 0
      %2029 = vmatmul.mubr.bf16.gmra.mrb[0].mxu0 %v1874
      %v2030 = vpop.f32.mrb[0].mxu0
      %v2031 = vadd.f32 0.0, %v2030
      %v2032 = vpop.f32.mrb[0].mxu0
      %v2033 = vpop.f32.mrb[0].mxu0
      %v2034 = vadd.f32 0.0, %v2033
      %v2035 = vpop.f32.mrb[0].mxu0
      %2036 = vmatprep.mubr.bf16.mxu0 0
      %2037 = vmatmul.mubr.bf16.gmra.mrb[0].mxu0 %v1875
      %v2038 = vpop.f32.mrb[0].mxu0
      %v2039 = vadd.f32 0.0, %v2038
      %v2040 = vpop.f32.mrb[0].mxu0
      %v2041 = vpop.f32.mrb[0].mxu0
      %v2042 = vadd.f32 0.0, %v2041
      %v2043 = vpop.f32.mrb[0].mxu0
      %2044 = vmatprep.mubr.bf16.mxu0 0
      %2045 = vmatmul.mubr.bf16.gmra.mrb[0].mxu0 %v1876
      %v2046 = vpop.f32.mrb[0].mxu0
      %v2047 = vadd.f32 0.0, %v2046
      %v2048 = vpop.f32.mrb[0].mxu0
      %v2049 = vpop.f32.mrb[0].mxu0
      %v2050 = vadd.f32 0.0, %v2049
      %v2051 = vpop.f32.mrb[0].mxu0
      %2052 = vmatprep.mubr.bf16.mxu0 0
      %2053 = vmatmul.mubr.bf16.gmra.mrb[0].mxu0 %v1877
      %v2054 = vpop.f32.mrb[0].mxu0
      %v2055 = vadd.f32 0.0, %v2054
      %v2056 = vpop.f32.mrb[0].mxu0
      %v2057 = vpop.f32.mrb[0].mxu0
      %v2058 = vadd.f32 0.0, %v2057
      %v2059 = vpop.f32.mrb[0].mxu0
      %2060 = vmatprep.mubr.bf16.mxu0 0
      %2061 = vmatmul.mubr.bf16.gmra.mrb[0].mxu0 %v1878
      %v2062 = vpop.f32.mrb[0].mxu0
      %v2063 = vadd.f32 0.0, %v2062
      %v2064 = vpop.f32.mrb[0].mxu0
      %v2065 = vpop.f32.mrb[0].mxu0
      %v2066 = vadd.f32 0.0, %v2065
      %v2067 = vpop.f32.mrb[0].mxu0
      %2068 = vmatprep.mubr.bf16.mxu0 0
      %2069 = vmatmul.mubr.bf16.gmra.mrb[0].mxu0 %v1879
      %v2070 = vpop.f32.mrb[0].mxu0
      %v2071 = vadd.f32 0.0, %v2070
      %v2072 = vpop.f32.mrb[0].mxu0
      %v2073 = vpop.f32.mrb[0].mxu0
      %v2074 = vadd.f32 0.0, %v2073
      %v2075 = vpop.f32.mrb[0].mxu0
      %2076 = vmatprep.mubr.bf16.mxu0 0
      %2077 = vmatmul.mubr.bf16.gmra.mrb[0].mxu0 %v1880
      %v2078 = vpop.f32.mrb[0].mxu0
      %v2079 = vadd.f32 0.0, %v2078
      %v2080 = vpop.f32.mrb[0].mxu0
      %v2081 = vpop.f32.mrb[0].mxu0
      %v2082 = vadd.f32 0.0, %v2081
      %v2083 = vpop.f32.mrb[0].mxu0
      %2084 = vmatprep.mubr.bf16.mxu0 0
      %2085 = vmatmul.mubr.bf16.gmra.mrb[0].mxu0 %v1881
      %v2086 = vpop.f32.mrb[0].mxu0
      %v2087 = vadd.f32 0.0, %v2086
      %v2088 = vpop.f32.mrb[0].mxu0
      %v2089 = vpop.f32.mrb[0].mxu0
      %v2090 = vadd.f32 0.0, %v2089
      %v2091 = vpop.f32.mrb[0].mxu0
      %2092 = vmatprep.mubr.bf16.mxu0 0
      %2093 = vmatmul.mubr.bf16.gmra.mrb[0].mxu0 %v1882
      %v2094 = vpop.f32.mrb[0].mxu0
      %v2095 = vadd.f32 0.0, %v2094
      %v2096 = vpop.f32.mrb[0].mxu0
      %v2097 = vpop.f32.mrb[0].mxu0
      %v2098 = vadd.f32 0.0, %v2097
      %v2099 = vpop.f32.mrb[0].mxu0
      %2100 = vmatprep.mubr.bf16.mxu0 0
      %2101 = vmatmul.mubr.bf16.gmra.mrb[0].mxu0 %v1883
      %v2102 = vpop.f32.mrb[0].mxu0
      %v2103 = vadd.f32 0.0, %v2102
      %v2104 = vpop.f32.mrb[0].mxu0
      %v2105 = vpop.f32.mrb[0].mxu0
      %v2106 = vadd.f32 0.0, %v2105
      %v2107 = vpop.f32.mrb[0].mxu0
      %2108 = vdwg.mxu0
      %v2109 = vadd.f32 %v1722, %v1983
      %v2110 = vadd.f32 %v1723, %v1986
      %v2111 = vadd.f32 %v1724, %v1991
      %v2112 = vadd.f32 %v1725, %v1994
      %v2113 = vadd.f32 %v1726, %v1999
      %v2114 = vadd.f32 %v1727, %v2002
      %v2115 = vadd.f32 %v1728, %v2007
      %v2116 = vadd.f32 %v1729, %v2010
      %v2117 = vadd.f32 %v1730, %v2015
      %v2118 = vadd.f32 %v1731, %v2018
      %v2119 = vadd.f32 %v1732, %v2023
      %v2120 = vadd.f32 %v1733, %v2026
      %v2121 = vadd.f32 %v1734, %v2031
      %v2122 = vadd.f32 %v1735, %v2034
      %v2123 = vadd.f32 %v1736, %v2039
      %v2124 = vadd.f32 %v1737, %v2042
      %v2125 = vadd.f32 %v1738, %v2047
      %v2126 = vadd.f32 %v1739, %v2050
      %v2127 = vadd.f32 %v1740, %v2055
      %v2128 = vadd.f32 %v1741, %v2058
      %v2129 = vadd.f32 %v1742, %v2063
      %v2130 = vadd.f32 %v1743, %v2066
      %v2131 = vadd.f32 %v1744, %v2071
      %v2132 = vadd.f32 %v1745, %v2074
      %v2133 = vadd.f32 %v1746, %v2079
      %v2134 = vadd.f32 %v1747, %v2082
      %v2135 = vadd.f32 %v1748, %v2087
      %v2136 = vadd.f32 %v1749, %v2090
      %v2137 = vadd.f32 %v1750, %v2095
      %v2138 = vadd.f32 %v1751, %v2098
      %v2139 = vadd.f32 %v1752, %v2103
      %v2140 = vadd.f32 %v1753, %v2106
      %v2141 = vld [vmem:[%s1754] sm:$0xf]
      %v2142 = vld [vmem:[%s1754 + $0x4] sm:$0xf]
      %v2143 = vld [vmem:[%s1754 + $0x8] sm:$0x1]
      %v2144 = vld [vmem:[%s1754 + $0xc] sm:$0xf]
      %v2145 = vld [vmem:[%s1754 + $0x10] sm:$0xf]
      %v2146 = vld [vmem:[%s1754 + $0x14] sm:$0x1]
      %v2147 = vld [vmem:[%s1754 + $0x18] sm:$0xf]
      %v2148 = vld [vmem:[%s1754 + $0x1c] sm:$0xf]
      %v2149 = vld [vmem:[%s1754 + $0x20] sm:$0x1]
      %v2150 = vld [vmem:[%s1754 + $0x24] sm:$0xf]
      %v2151 = vld [vmem:[%s1754 + $0x28] sm:$0xf]
      %v2152 = vld [vmem:[%s1754 + $0x2c] sm:$0x1]
      %v2153 = vld [vmem:[%s1754 + $0x30] sm:$0xf]
      %v2154 = vld [vmem:[%s1754 + $0x34] sm:$0xf]
      %v2155 = vld [vmem:[%s1754 + $0x38] sm:$0x1]
      %v2156 = vld [vmem:[%s1754 + $0x3c] sm:$0xf]
      %v2157 = vld [vmem:[%s1754 + $0x40] sm:$0xf]
      %v2158 = vld [vmem:[%s1754 + $0x44] sm:$0x1]
      %v2159 = vld [vmem:[%s1754 + $0x48] sm:$0xf]
      %v2160 = vld [vmem:[%s1754 + $0x4c] sm:$0xf]
      %v2161 = vld [vmem:[%s1754 + $0x50] sm:$0x1]
      %v2162 = vld [vmem:[%s1754 + $0x54] sm:$0xf]
      %v2163 = vld [vmem:[%s1754 + $0x58] sm:$0xf]
      %v2164 = vld [vmem:[%s1754 + $0x5c] sm:$0x1]
      %v2165 = vld [vmem:[%s1754 + $0x60] sm:$0xf]
      %v2166 = vld [vmem:[%s1754 + $0x64] sm:$0xf]
      %v2167 = vld [vmem:[%s1754 + $0x68] sm:$0x1]
      %v2168 = vld [vmem:[%s1754 + $0x6c] sm:$0xf]
      %v2169 = vld [vmem:[%s1754 + $0x70] sm:$0xf]
      %v2170 = vld [vmem:[%s1754 + $0x74] sm:$0x1]
      %v2171 = vld [vmem:[%s1754 + $0x78] sm:$0xf]
      %v2172 = vld [vmem:[%s1754 + $0x7c] sm:$0xf]
      %v2173 = vld [vmem:[%s1754 + $0x80] sm:$0x1]
      %v2174 = vld [vmem:[%s1754 + $0x84] sm:$0xf]
      %v2175 = vld [vmem:[%s1754 + $0x88] sm:$0xf]
      %v2176 = vld [vmem:[%s1754 + $0x8c] sm:$0x1]
      %v2177 = vld [vmem:[%s1754 + $0x90] sm:$0xf]
      %v2178 = vld [vmem:[%s1754 + $0x94] sm:$0xf]
      %v2179 = vld [vmem:[%s1754 + $0x98] sm:$0x1]
      %v2180 = vld [vmem:[%s1754 + $0x9c] sm:$0xf]
      %v2181 = vld [vmem:[%s1754 + $0xa0] sm:$0xf]
      %v2182 = vld [vmem:[%s1754 + $0xa4] sm:$0x1]
      %v2183 = vld [vmem:[%s1754 + $0xa8] sm:$0xf]
      %v2184 = vld [vmem:[%s1754 + $0xac] sm:$0xf]
      %v2185 = vld [vmem:[%s1754 + $0xb0] sm:$0x1]
      %v2186 = vld [vmem:[%s1754 + $0xb4] sm:$0xf]
      %v2187 = vld [vmem:[%s1754 + $0xb8] sm:$0xf]
      %v2188 = vld [vmem:[%s1754 + $0xbc] sm:$0x1]
      %v2190 = vshrl.u32 %v2141, 16
      %v2192 = vrot.slane %v2190, 4
      %v2193 = vshll.u32 %v2141, 16
      %v2195 = vrot.slane %v2193, 5
      %v2196 = vor.u32 %v2192, %v2195
      %v2197 = vrot.slane %v2196, 4
      %v2199 = vshll.u32 %v2142, 16
      %v2201 = vrot.slane %v2199, 5
      %v2202 = vsel %vm289, %v2197, %v2201
      %v2203 = vshrl.u32 %v2142, 16
      %v2205 = vrot.slane %v2203, 4
      %v2206 = vor.u32 %v2205, %v2201
      %v2207 = vrot.slane %v2206, 4
      %v2209 = vshll.u32 %v2143, 16
      %v2211 = vrot.slane %v2209, 5
      %v2212 = vsel %vm289, %v2207, %v2211
      %v2214 = vshrl.u32 %v2144, 16
      %v2216 = vrot.slane %v2214, 4
      %v2217 = vshll.u32 %v2144, 16
      %v2219 = vrot.slane %v2217, 5
      %v2220 = vor.u32 %v2216, %v2219
      %v2221 = vrot.slane %v2220, 4
      %v2223 = vshll.u32 %v2145, 16
      %v2225 = vrot.slane %v2223, 5
      %v2226 = vsel %vm289, %v2221, %v2225
      %v2227 = vshrl.u32 %v2145, 16
      %v2229 = vrot.slane %v2227, 4
      %v2230 = vor.u32 %v2229, %v2225
      %v2231 = vrot.slane %v2230, 4
      %v2233 = vshll.u32 %v2146, 16
      %v2235 = vrot.slane %v2233, 5
      %v2236 = vsel %vm289, %v2231, %v2235
      %v2238 = vshrl.u32 %v2147, 16
      %v2240 = vrot.slane %v2238, 4
      %v2241 = vshll.u32 %v2147, 16
      %v2243 = vrot.slane %v2241, 5
      %v2244 = vor.u32 %v2240, %v2243
      %v2245 = vrot.slane %v2244, 4
      %v2247 = vshll.u32 %v2148, 16
      %v2249 = vrot.slane %v2247, 5
      %v2250 = vsel %vm289, %v2245, %v2249
      %v2251 = vshrl.u32 %v2148, 16
      %v2253 = vrot.slane %v2251, 4
      %v2254 = vor.u32 %v2253, %v2249
      %v2255 = vrot.slane %v2254, 4
      %v2257 = vshll.u32 %v2149, 16
      %v2259 = vrot.slane %v2257, 5
      %v2260 = vsel %vm289, %v2255, %v2259
      %v2262 = vshrl.u32 %v2150, 16
      %v2264 = vrot.slane %v2262, 4
      %v2265 = vshll.u32 %v2150, 16
      %v2267 = vrot.slane %v2265, 5
      %v2268 = vor.u32 %v2264, %v2267
      %v2269 = vrot.slane %v2268, 4
      %v2271 = vshll.u32 %v2151, 16
      %v2273 = vrot.slane %v2271, 5
      %v2274 = vsel %vm289, %v2269, %v2273
      %v2275 = vshrl.u32 %v2151, 16
      %v2277 = vrot.slane %v2275, 4
      %v2278 = vor.u32 %v2277, %v2273
      %v2279 = vrot.slane %v2278, 4
      %v2281 = vshll.u32 %v2152, 16
      %v2283 = vrot.slane %v2281, 5
      %v2284 = vsel %vm289, %v2279, %v2283
      %v2286 = vshrl.u32 %v2153, 16
      %v2288 = vrot.slane %v2286, 4
      %v2289 = vshll.u32 %v2153, 16
      %v2291 = vrot.slane %v2289, 5
      %v2292 = vor.u32 %v2288, %v2291
      %v2293 = vrot.slane %v2292, 4
      %v2295 = vshll.u32 %v2154, 16
      %v2297 = vrot.slane %v2295, 5
      %v2298 = vsel %vm289, %v2293, %v2297
      %v2299 = vshrl.u32 %v2154, 16
      %v2301 = vrot.slane %v2299, 4
      %v2302 = vor.u32 %v2301, %v2297
      %v2303 = vrot.slane %v2302, 4
      %v2305 = vshll.u32 %v2155, 16
      %v2307 = vrot.slane %v2305, 5
      %v2308 = vsel %vm289, %v2303, %v2307
      %v2310 = vshrl.u32 %v2156, 16
      %v2312 = vrot.slane %v2310, 4
      %v2313 = vshll.u32 %v2156, 16
      %v2315 = vrot.slane %v2313, 5
      %v2316 = vor.u32 %v2312, %v2315
      %v2317 = vrot.slane %v2316, 4
      %v2319 = vshll.u32 %v2157, 16
      %v2321 = vrot.slane %v2319, 5
      %v2322 = vsel %vm289, %v2317, %v2321
      %v2323 = vshrl.u32 %v2157, 16
      %v2325 = vrot.slane %v2323, 4
      %v2326 = vor.u32 %v2325, %v2321
      %v2327 = vrot.slane %v2326, 4
      %v2329 = vshll.u32 %v2158, 16
      %v2331 = vrot.slane %v2329, 5
      %v2332 = vsel %vm289, %v2327, %v2331
      %v2334 = vshrl.u32 %v2159, 16
      %v2336 = vrot.slane %v2334, 4
      %v2337 = vshll.u32 %v2159, 16
      %v2339 = vrot.slane %v2337, 5
      %v2340 = vor.u32 %v2336, %v2339
      %v2341 = vrot.slane %v2340, 4
      %v2343 = vshll.u32 %v2160, 16
      %v2345 = vrot.slane %v2343, 5
      %v2346 = vsel %vm289, %v2341, %v2345
      %v2347 = vshrl.u32 %v2160, 16
      %v2349 = vrot.slane %v2347, 4
      %v2350 = vor.u32 %v2349, %v2345
      %v2351 = vrot.slane %v2350, 4
      %v2353 = vshll.u32 %v2161, 16
      %v2355 = vrot.slane %v2353, 5
      %v2356 = vsel %vm289, %v2351, %v2355
      %v2358 = vshrl.u32 %v2162, 16
      %v2360 = vrot.slane %v2358, 4
      %v2361 = vshll.u32 %v2162, 16
      %v2363 = vrot.slane %v2361, 5
      %v2364 = vor.u32 %v2360, %v2363
      %v2365 = vrot.slane %v2364, 4
      %v2367 = vshll.u32 %v2163, 16
      %v2369 = vrot.slane %v2367, 5
      %v2370 = vsel %vm289, %v2365, %v2369
      %v2371 = vshrl.u32 %v2163, 16
      %v2373 = vrot.slane %v2371, 4
      %v2374 = vor.u32 %v2373, %v2369
      %v2375 = vrot.slane %v2374, 4
      %v2377 = vshll.u32 %v2164, 16
      %v2379 = vrot.slane %v2377, 5
      %v2380 = vsel %vm289, %v2375, %v2379
      %v2382 = vshrl.u32 %v2165, 16
      %v2384 = vrot.slane %v2382, 4
      %v2385 = vshll.u32 %v2165, 16
      %v2387 = vrot.slane %v2385, 5
      %v2388 = vor.u32 %v2384, %v2387
      %v2389 = vrot.slane %v2388, 4
      %v2391 = vshll.u32 %v2166, 16
      %v2393 = vrot.slane %v2391, 5
      %v2394 = vsel %vm289, %v2389, %v2393
      %v2395 = vshrl.u32 %v2166, 16
      %v2397 = vrot.slane %v2395, 4
      %v2398 = vor.u32 %v2397, %v2393
      %v2399 = vrot.slane %v2398, 4
      %v2401 = vshll.u32 %v2167, 16
      %v2403 = vrot.slane %v2401, 5
      %v2404 = vsel %vm289, %v2399, %v2403
      %v2406 = vshrl.u32 %v2168, 16
      %v2408 = vrot.slane %v2406, 4
      %v2409 = vshll.u32 %v2168, 16
      %v2411 = vrot.slane %v2409, 5
      %v2412 = vor.u32 %v2408, %v2411
      %v2413 = vrot.slane %v2412, 4
      %v2415 = vshll.u32 %v2169, 16
      %v2417 = vrot.slane %v2415, 5
      %v2418 = vsel %vm289, %v2413, %v2417
      %v2419 = vshrl.u32 %v2169, 16
      %v2421 = vrot.slane %v2419, 4
      %v2422 = vor.u32 %v2421, %v2417
      %v2423 = vrot.slane %v2422, 4
      %v2425 = vshll.u32 %v2170, 16
      %v2427 = vrot.slane %v2425, 5
      %v2428 = vsel %vm289, %v2423, %v2427
      %v2430 = vshrl.u32 %v2171, 16
      %v2432 = vrot.slane %v2430, 4
      %v2433 = vshll.u32 %v2171, 16
      %v2435 = vrot.slane %v2433, 5
      %v2436 = vor.u32 %v2432, %v2435
      %v2437 = vrot.slane %v2436, 4
      %v2439 = vshll.u32 %v2172, 16
      %v2441 = vrot.slane %v2439, 5
      %v2442 = vsel %vm289, %v2437, %v2441
      %v2443 = vshrl.u32 %v2172, 16
      %v2445 = vrot.slane %v2443, 4
      %v2446 = vor.u32 %v2445, %v2441
      %v2447 = vrot.slane %v2446, 4
      %v2449 = vshll.u32 %v2173, 16
      %v2451 = vrot.slane %v2449, 5
      %v2452 = vsel %vm289, %v2447, %v2451
      %v2454 = vshrl.u32 %v2174, 16
      %v2456 = vrot.slane %v2454, 4
      %v2457 = vshll.u32 %v2174, 16
      %v2459 = vrot.slane %v2457, 5
      %v2460 = vor.u32 %v2456, %v2459
      %v2461 = vrot.slane %v2460, 4
      %v2463 = vshll.u32 %v2175, 16
      %v2465 = vrot.slane %v2463, 5
      %v2466 = vsel %vm289, %v2461, %v2465
      %v2467 = vshrl.u32 %v2175, 16
      %v2469 = vrot.slane %v2467, 4
      %v2470 = vor.u32 %v2469, %v2465
      %v2471 = vrot.slane %v2470, 4
      %v2473 = vshll.u32 %v2176, 16
      %v2475 = vrot.slane %v2473, 5
      %v2476 = vsel %vm289, %v2471, %v2475
      %v2478 = vshrl.u32 %v2177, 16
      %v2480 = vrot.slane %v2478, 4
      %v2481 = vshll.u32 %v2177, 16
      %v2483 = vrot.slane %v2481, 5
      %v2484 = vor.u32 %v2480, %v2483
      %v2485 = vrot.slane %v2484, 4
      %v2487 = vshll.u32 %v2178, 16
      %v2489 = vrot.slane %v2487, 5
      %v2490 = vsel %vm289, %v2485, %v2489
      %v2491 = vshrl.u32 %v2178, 16
      %v2493 = vrot.slane %v2491, 4
      %v2494 = vor.u32 %v2493, %v2489
      %v2495 = vrot.slane %v2494, 4
      %v2497 = vshll.u32 %v2179, 16
      %v2499 = vrot.slane %v2497, 5
      %v2500 = vsel %vm289, %v2495, %v2499
      %v2502 = vshrl.u32 %v2180, 16
      %v2504 = vrot.slane %v2502, 4
      %v2505 = vshll.u32 %v2180, 16
      %v2507 = vrot.slane %v2505, 5
      %v2508 = vor.u32 %v2504, %v2507
      %v2509 = vrot.slane %v2508, 4
      %v2511 = vshll.u32 %v2181, 16
      %v2513 = vrot.slane %v2511, 5
      %v2514 = vsel %vm289, %v2509, %v2513
      %v2515 = vshrl.u32 %v2181, 16
      %v2517 = vrot.slane %v2515, 4
      %v2518 = vor.u32 %v2517, %v2513
      %v2519 = vrot.slane %v2518, 4
      %v2521 = vshll.u32 %v2182, 16
      %v2523 = vrot.slane %v2521, 5
      %v2524 = vsel %vm289, %v2519, %v2523
      %v2526 = vshrl.u32 %v2183, 16
      %v2528 = vrot.slane %v2526, 4
      %v2529 = vshll.u32 %v2183, 16
      %v2531 = vrot.slane %v2529, 5
      %v2532 = vor.u32 %v2528, %v2531
      %v2533 = vrot.slane %v2532, 4
      %v2535 = vshll.u32 %v2184, 16
      %v2537 = vrot.slane %v2535, 5
      %v2538 = vsel %vm289, %v2533, %v2537
      %v2539 = vshrl.u32 %v2184, 16
      %v2541 = vrot.slane %v2539, 4
      %v2542 = vor.u32 %v2541, %v2537
      %v2543 = vrot.slane %v2542, 4
      %v2545 = vshll.u32 %v2185, 16
      %v2547 = vrot.slane %v2545, 5
      %v2548 = vsel %vm289, %v2543, %v2547
      %v2550 = vshrl.u32 %v2186, 16
      %v2552 = vrot.slane %v2550, 4
      %v2553 = vshll.u32 %v2186, 16
      %v2555 = vrot.slane %v2553, 5
      %v2556 = vor.u32 %v2552, %v2555
      %v2557 = vrot.slane %v2556, 4
      %v2559 = vshll.u32 %v2187, 16
      %v2561 = vrot.slane %v2559, 5
      %v2562 = vsel %vm289, %v2557, %v2561
      %v2563 = vshrl.u32 %v2187, 16
      %v2565 = vrot.slane %v2563, 4
      %v2566 = vor.u32 %v2565, %v2561
      %v2567 = vrot.slane %v2566, 4
      %v2569 = vshll.u32 %v2188, 16
      %v2571 = vrot.slane %v2569, 5
      %v2572 = vsel %vm289, %v2567, %v2571
      %s2573 = scalar_lea.vmem %s210, 256
      %v2574 = vld [vmem:[%s2573] sm:$0xf]
      %v2575 = vld [vmem:[%s2573 + $0x4] sm:$0xf]
      %v2576 = vld [vmem:[%s2573 + $0x8] sm:$0xf]
      %v2577 = vld [vmem:[%s2573 + $0xc] sm:$0xf]
      %v2578 = vld [vmem:[%s2573 + $0x10] sm:$0xf]
      %v2579 = vld [vmem:[%s2573 + $0x14] sm:$0xf]
      %v2580 = vld [vmem:[%s2573 + $0x18] sm:$0xf]
      %v2581 = vld [vmem:[%s2573 + $0x1c] sm:$0xf]
      %v2582 = vld [vmem:[%s2573 + $0x20] sm:$0xf]
      %v2583 = vld [vmem:[%s2573 + $0x24] sm:$0xf]
      %v2584 = vld [vmem:[%s2573 + $0x28] sm:$0xf]
      %v2585 = vld [vmem:[%s2573 + $0x2c] sm:$0xf]
      %v2586 = vld [vmem:[%s2573 + $0x30] sm:$0xf]
      %v2587 = vld [vmem:[%s2573 + $0x34] sm:$0xf]
      %v2588 = vld [vmem:[%s2573 + $0x38] sm:$0xf]
      %v2589 = vld [vmem:[%s2573 + $0x3c] sm:$0xf]
      %v2590 = vunpack.c.l.b16 %v2202
      %v2591 = vunpack.c.l.b16 %v2212
      %v2592 = vunpack.c.l.b16 %v2226
      %v2593 = vunpack.c.l.b16 %v2236
      %v2594 = vunpack.c.l.b16 %v2250
      %v2595 = vunpack.c.l.b16 %v2260
      %v2596 = vunpack.c.l.b16 %v2274
      %v2597 = vunpack.c.l.b16 %v2284
      %v2598 = vunpack.c.l.b16 %v2298
      %v2599 = vunpack.c.l.b16 %v2308
      %v2600 = vunpack.c.l.b16 %v2322
      %v2601 = vunpack.c.l.b16 %v2332
      %v2602 = vunpack.c.l.b16 %v2346
      %v2603 = vunpack.c.l.b16 %v2356
      %v2604 = vunpack.c.l.b16 %v2370
      %v2605 = vunpack.c.l.b16 %v2380
      %v2606 = vunpack.c.l.b16 %v2394
      %v2607 = vunpack.c.l.b16 %v2404
      %v2608 = vunpack.c.l.b16 %v2418
      %v2609 = vunpack.c.l.b16 %v2428
      %v2610 = vunpack.c.l.b16 %v2442
      %v2611 = vunpack.c.l.b16 %v2452
      %v2612 = vunpack.c.l.b16 %v2466
      %v2613 = vunpack.c.l.b16 %v2476
      %v2614 = vunpack.c.l.b16 %v2490
      %v2615 = vunpack.c.l.b16 %v2500
      %v2616 = vunpack.c.l.b16 %v2514
      %v2617 = vunpack.c.l.b16 %v2524
      %v2618 = vunpack.c.l.b16 %v2538
      %v2619 = vunpack.c.l.b16 %v2548
      %v2620 = vunpack.c.l.b16 %v2562
      %v2621 = vunpack.c.l.b16 %v2572
      %v2622 = vpack.c.b16 %v2591, %v2590
      %v2623 = vpack.c.b16 %v2593, %v2592
      %v2624 = vpack.c.b16 %v2595, %v2594
      %v2625 = vpack.c.b16 %v2597, %v2596
      %v2626 = vpack.c.b16 %v2599, %v2598
      %v2627 = vpack.c.b16 %v2601, %v2600
      %v2628 = vpack.c.b16 %v2603, %v2602
      %v2629 = vpack.c.b16 %v2605, %v2604
      %v2630 = vpack.c.b16 %v2607, %v2606
      %v2631 = vpack.c.b16 %v2609, %v2608
      %v2632 = vpack.c.b16 %v2611, %v2610
      %v2633 = vpack.c.b16 %v2613, %v2612
      %v2634 = vpack.c.b16 %v2615, %v2614
      %v2635 = vpack.c.b16 %v2617, %v2616
      %v2636 = vpack.c.b16 %v2619, %v2618
      %v2637 = vpack.c.b16 %v2621, %v2620
      %v2670 = vunpack.c.l.b16 %v2574
      %v2671 = vunpack.c.l.b16 %v2575
      %v2672 = vunpack.c.l.b16 %v2576
      %v2673 = vunpack.c.l.b16 %v2577
      %v2674 = vunpack.c.l.b16 %v2578
      %v2675 = vunpack.c.l.b16 %v2579
      %v2676 = vunpack.c.l.b16 %v2580
      %v2677 = vunpack.c.l.b16 %v2581
      %v2678 = vunpack.c.l.b16 %v2582
      %v2679 = vunpack.c.l.b16 %v2583
      %v2680 = vunpack.c.l.b16 %v2584
      %v2681 = vunpack.c.l.b16 %v2585
      %v2682 = vunpack.c.l.b16 %v2586
      %v2683 = vunpack.c.l.b16 %v2587
      %v2684 = vunpack.c.l.b16 %v2588
      %v2685 = vunpack.c.l.b16 %v2589
      %v2686 = vpack.c.b16 %v2671, %v2670
      %v2687 = vpack.c.b16 %v2673, %v2672
      %v2688 = vpack.c.b16 %v2675, %v2674
      %v2689 = vpack.c.b16 %v2677, %v2676
      %v2690 = vpack.c.b16 %v2679, %v2678
      %v2691 = vpack.c.b16 %v2681, %v2680
      %v2692 = vpack.c.b16 %v2683, %v2682
      %v2693 = vpack.c.b16 %v2685, %v2684
      %2702 = vmatprep.subr.bf16.mxu0 0
      %2703 = vmatpush1.bf16.msra.mxu0 %v2686
      %2704 = vmatprep.subr.bf16.mxu0 0
      %2705 = vmatpush1.bf16.msra.mxu0 %v2687
      %2706 = vmatprep.subr.bf16.mxu0 0
      %2707 = vmatpush1.bf16.msra.mxu0 %v2688
      %2708 = vmatprep.subr.bf16.mxu0 0
      %2709 = vmatpush1.bf16.msra.mxu0 %v2689
      %2710 = vmatprep.subr.bf16.mxu0 0
      %2711 = vmatpush1.bf16.msra.mxu0 %v2690
      %2712 = vmatprep.subr.bf16.mxu0 0
      %2713 = vmatpush1.bf16.msra.mxu0 %v2691
      %2714 = vmatprep.subr.bf16.mxu0 0
      %2715 = vmatpush1.bf16.msra.mxu0 %v2692
      %2716 = vmatprep.subr.bf16.mxu0 0
      %2717 = vmatpush1.bf16.msra.mxu0 %v2693
      %2718 = vmatprep.subr.bf16.mxu0 0
      %2719 = vmatpush1.bf16.msra.mxu0 0
      %2720 = vmatprep.subr.bf16.mxu0 0
      %2721 = vmatpush1.bf16.msra.mxu0 0
      %2722 = vmatprep.subr.bf16.mxu0 0
      %2723 = vmatpush1.bf16.msra.mxu0 0
      %2724 = vmatprep.subr.bf16.mxu0 0
      %2725 = vmatpush1.bf16.msra.mxu0 0
      %2726 = vmatprep.subr.bf16.mxu0 0
      %2727 = vmatpush1.bf16.msra.mxu0 0
      %2728 = vmatprep.subr.bf16.mxu0 0
      %2729 = vmatpush1.bf16.msra.mxu0 0
      %2730 = vmatprep.subr.bf16.mxu0 0
      %2731 = vmatpush1.bf16.msra.mxu0 0
      %2732 = vmatprep.subr.bf16.mxu0 0
      %2733 = vmatpush1.bf16.msra.mxu0 0
      %2734 = vmatprep.mubr.bf16.mxu0 0
      %2735 = vmatmul.mubr.bf16.gmra.mrb[0].mxu0 %v2622
      %v2736 = vpop.f32.mrb[0].mxu0
      %v2737 = vadd.f32 0.0, %v2736
      %v2738 = vpop.f32.mrb[0].mxu0
      %v2739 = vpop.f32.mrb[0].mxu0
      %v2740 = vadd.f32 0.0, %v2739
      %v2741 = vpop.f32.mrb[0].mxu0
      %2742 = vmatprep.mubr.bf16.mxu0 0
      %2743 = vmatmul.mubr.bf16.gmra.mrb[0].mxu0 %v2623
      %v2744 = vpop.f32.mrb[0].mxu0
      %v2745 = vadd.f32 0.0, %v2744
      %v2746 = vpop.f32.mrb[0].mxu0
      %v2747 = vpop.f32.mrb[0].mxu0
      %v2748 = vadd.f32 0.0, %v2747
      %v2749 = vpop.f32.mrb[0].mxu0
      %2750 = vmatprep.mubr.bf16.mxu0 0
      %2751 = vmatmul.mubr.bf16.gmra.mrb[0].mxu0 %v2624
      %v2752 = vpop.f32.mrb[0].mxu0
      %v2753 = vadd.f32 0.0, %v2752
      %v2754 = vpop.f32.mrb[0].mxu0
      %v2755 = vpop.f32.mrb[0].mxu0
      %v2756 = vadd.f32 0.0, %v2755
      %v2757 = vpop.f32.mrb[0].mxu0
      %2758 = vmatprep.mubr.bf16.mxu0 0
      %2759 = vmatmul.mubr.bf16.gmra.mrb[0].mxu0 %v2625
      %v2760 = vpop.f32.mrb[0].mxu0
      %v2761 = vadd.f32 0.0, %v2760
      %v2762 = vpop.f32.mrb[0].mxu0
      %v2763 = vpop.f32.mrb[0].mxu0
      %v2764 = vadd.f32 0.0, %v2763
      %v2765 = vpop.f32.mrb[0].mxu0
      %2766 = vmatprep.mubr.bf16.mxu0 0
      %2767 = vmatmul.mubr.bf16.gmra.mrb[0].mxu0 %v2626
      %v2768 = vpop.f32.mrb[0].mxu0
      %v2769 = vadd.f32 0.0, %v2768
      %v2770 = vpop.f32.mrb[0].mxu0
      %v2771 = vpop.f32.mrb[0].mxu0
      %v2772 = vadd.f32 0.0, %v2771
      %v2773 = vpop.f32.mrb[0].mxu0
      %2774 = vmatprep.mubr.bf16.mxu0 0
      %2775 = vmatmul.mubr.bf16.gmra.mrb[0].mxu0 %v2627
      %v2776 = vpop.f32.mrb[0].mxu0
      %v2777 = vadd.f32 0.0, %v2776
      %v2778 = vpop.f32.mrb[0].mxu0
      %v2779 = vpop.f32.mrb[0].mxu0
      %v2780 = vadd.f32 0.0, %v2779
      %v2781 = vpop.f32.mrb[0].mxu0
      %2782 = vmatprep.mubr.bf16.mxu0 0
      %2783 = vmatmul.mubr.bf16.gmra.mrb[0].mxu0 %v2628
      %v2784 = vpop.f32.mrb[0].mxu0
      %v2785 = vadd.f32 0.0, %v2784
      %v2786 = vpop.f32.mrb[0].mxu0
      %v2787 = vpop.f32.mrb[0].mxu0
      %v2788 = vadd.f32 0.0, %v2787
      %v2789 = vpop.f32.mrb[0].mxu0
      %2790 = vmatprep.mubr.bf16.mxu0 0
      %2791 = vmatmul.mubr.bf16.gmra.mrb[0].mxu0 %v2629
      %v2792 = vpop.f32.mrb[0].mxu0
      %v2793 = vadd.f32 0.0, %v2792
      %v2794 = vpop.f32.mrb[0].mxu0
      %v2795 = vpop.f32.mrb[0].mxu0
      %v2796 = vadd.f32 0.0, %v2795
      %v2797 = vpop.f32.mrb[0].mxu0
      %2798 = vmatprep.mubr.bf16.mxu0 0
      %2799 = vmatmul.mubr.bf16.gmra.mrb[0].mxu0 %v2630
      %v2800 = vpop.f32.mrb[0].mxu0
      %v2801 = vadd.f32 0.0, %v2800
      %v2802 = vpop.f32.mrb[0].mxu0
      %v2803 = vpop.f32.mrb[0].mxu0
      %v2804 = vadd.f32 0.0, %v2803
      %v2805 = vpop.f32.mrb[0].mxu0
      %2806 = vmatprep.mubr.bf16.mxu0 0
      %2807 = vmatmul.mubr.bf16.gmra.mrb[0].mxu0 %v2631
      %v2808 = vpop.f32.mrb[0].mxu0
      %v2809 = vadd.f32 0.0, %v2808
      %v2810 = vpop.f32.mrb[0].mxu0
      %v2811 = vpop.f32.mrb[0].mxu0
      %v2812 = vadd.f32 0.0, %v2811
      %v2813 = vpop.f32.mrb[0].mxu0
      %2814 = vmatprep.mubr.bf16.mxu0 0
      %2815 = vmatmul.mubr.bf16.gmra.mrb[0].mxu0 %v2632
      %v2816 = vpop.f32.mrb[0].mxu0
      %v2817 = vadd.f32 0.0, %v2816
      %v2818 = vpop.f32.mrb[0].mxu0
      %v2819 = vpop.f32.mrb[0].mxu0
      %v2820 = vadd.f32 0.0, %v2819
      %v2821 = vpop.f32.mrb[0].mxu0
      %2822 = vmatprep.mubr.bf16.mxu0 0
      %2823 = vmatmul.mubr.bf16.gmra.mrb[0].mxu0 %v2633
      %v2824 = vpop.f32.mrb[0].mxu0
      %v2825 = vadd.f32 0.0, %v2824
      %v2826 = vpop.f32.mrb[0].mxu0
      %v2827 = vpop.f32.mrb[0].mxu0
      %v2828 = vadd.f32 0.0, %v2827
      %v2829 = vpop.f32.mrb[0].mxu0
      %2830 = vmatprep.mubr.bf16.mxu0 0
      %2831 = vmatmul.mubr.bf16.gmra.mrb[0].mxu0 %v2634
      %v2832 = vpop.f32.mrb[0].mxu0
      %v2833 = vadd.f32 0.0, %v2832
      %v2834 = vpop.f32.mrb[0].mxu0
      %v2835 = vpop.f32.mrb[0].mxu0
      %v2836 = vadd.f32 0.0, %v2835
      %v2837 = vpop.f32.mrb[0].mxu0
      %2838 = vmatprep.mubr.bf16.mxu0 0
      %2839 = vmatmul.mubr.bf16.gmra.mrb[0].mxu0 %v2635
      %v2840 = vpop.f32.mrb[0].mxu0
      %v2841 = vadd.f32 0.0, %v2840
      %v2842 = vpop.f32.mrb[0].mxu0
      %v2843 = vpop.f32.mrb[0].mxu0
      %v2844 = vadd.f32 0.0, %v2843
      %v2845 = vpop.f32.mrb[0].mxu0
      %2846 = vmatprep.mubr.bf16.mxu0 0
      %2847 = vmatmul.mubr.bf16.gmra.mrb[0].mxu0 %v2636
      %v2848 = vpop.f32.mrb[0].mxu0
      %v2849 = vadd.f32 0.0, %v2848
      %v2850 = vpop.f32.mrb[0].mxu0
      %v2851 = vpop.f32.mrb[0].mxu0
      %v2852 = vadd.f32 0.0, %v2851
      %v2853 = vpop.f32.mrb[0].mxu0
      %2854 = vmatprep.mubr.bf16.mxu0 0
      %2855 = vmatmul.mubr.bf16.gmra.mrb[0].mxu0 %v2637
      %v2856 = vpop.f32.mrb[0].mxu0
      %v2857 = vadd.f32 0.0, %v2856
      %v2858 = vpop.f32.mrb[0].mxu0
      %v2859 = vpop.f32.mrb[0].mxu0
      %v2860 = vadd.f32 0.0, %v2859
      %v2861 = vpop.f32.mrb[0].mxu0
      %2862 = vdwg.mxu0
      %v2863 = vadd.f32 %v2109, %v2737
      %v2864 = vadd.f32 %v2110, %v2740
      %v2865 = vadd.f32 %v2111, %v2745
      %v2866 = vadd.f32 %v2112, %v2748
      %v2867 = vadd.f32 %v2113, %v2753
      %v2868 = vadd.f32 %v2114, %v2756
      %v2869 = vadd.f32 %v2115, %v2761
      %v2870 = vadd.f32 %v2116, %v2764
      %v2871 = vadd.f32 %v2117, %v2769
      %v2872 = vadd.f32 %v2118, %v2772
      %v2873 = vadd.f32 %v2119, %v2777
      %v2874 = vadd.f32 %v2120, %v2780
      %v2875 = vadd.f32 %v2121, %v2785
      %v2876 = vadd.f32 %v2122, %v2788
      %v2877 = vadd.f32 %v2123, %v2793
      %v2878 = vadd.f32 %v2124, %v2796
      %v2879 = vadd.f32 %v2125, %v2801
      %v2880 = vadd.f32 %v2126, %v2804
      %v2881 = vadd.f32 %v2127, %v2809
      %v2882 = vadd.f32 %v2128, %v2812
      %v2883 = vadd.f32 %v2129, %v2817
      %v2884 = vadd.f32 %v2130, %v2820
      %v2885 = vadd.f32 %v2131, %v2825
      %v2886 = vadd.f32 %v2132, %v2828
      %v2887 = vadd.f32 %v2133, %v2833
      %v2888 = vadd.f32 %v2134, %v2836
      %v2889 = vadd.f32 %v2135, %v2841
      %v2890 = vadd.f32 %v2136, %v2844
      %v2891 = vadd.f32 %v2137, %v2849
      %v2892 = vadd.f32 %v2138, %v2852
      %v2893 = vadd.f32 %v2139, %v2857
      %v2894 = vadd.f32 %v2140, %v2860
      %v2895 = vld [vmem:[%s1754] sm:$0xe]
      %v2896 = vld [vmem:[%s1754 + $0xc] sm:$0xe]
      %v2897 = vld [vmem:[%s1754 + $0x18] sm:$0xe]
      %v2898 = vld [vmem:[%s1754 + $0x24] sm:$0xe]
      %v2899 = vld [vmem:[%s1754 + $0x30] sm:$0xe]
      %v2900 = vld [vmem:[%s1754 + $0x3c] sm:$0xe]
      %v2901 = vld [vmem:[%s1754 + $0x48] sm:$0xe]
      %v2902 = vld [vmem:[%s1754 + $0x54] sm:$0xe]
      %v2903 = vld [vmem:[%s1754 + $0x60] sm:$0xe]
      %v2904 = vld [vmem:[%s1754 + $0x6c] sm:$0xe]
      %v2905 = vld [vmem:[%s1754 + $0x78] sm:$0xe]
      %v2906 = vld [vmem:[%s1754 + $0x84] sm:$0xe]
      %v2907 = vld [vmem:[%s1754 + $0x90] sm:$0xe]
      %v2908 = vld [vmem:[%s1754 + $0x9c] sm:$0xe]
      %v2909 = vld [vmem:[%s1754 + $0xa8] sm:$0xe]
      %v2910 = vld [vmem:[%s1754 + $0xb4] sm:$0xe]
      %v2959 = vrot.slane %v2895, 5
      %v2960 = vrot.slane %v2959, 4
      %v2961 = vrot.slane %v2142, 5
      %v2962 = vsel %vm1319, %v2960, %v2961
      %v2963 = vrot.slane %v2961, 4
      %v2964 = vrot.slane %v2143, 5
      %v2965 = vsel %vm1319, %v2963, %v2964
      %v2966 = vrot.slane %v2896, 5
      %v2967 = vrot.slane %v2966, 4
      %v2968 = vrot.slane %v2145, 5
      %v2969 = vsel %vm1319, %v2967, %v2968
      %v2970 = vrot.slane %v2968, 4
      %v2971 = vrot.slane %v2146, 5
      %v2972 = vsel %vm1319, %v2970, %v2971
      %v2973 = vrot.slane %v2897, 5
      %v2974 = vrot.slane %v2973, 4
      %v2975 = vrot.slane %v2148, 5
      %v2976 = vsel %vm1319, %v2974, %v2975
      %v2977 = vrot.slane %v2975, 4
      %v2978 = vrot.slane %v2149, 5
      %v2979 = vsel %vm1319, %v2977, %v2978
      %v2980 = vrot.slane %v2898, 5
      %v2981 = vrot.slane %v2980, 4
      %v2982 = vrot.slane %v2151, 5
      %v2983 = vsel %vm1319, %v2981, %v2982
      %v2984 = vrot.slane %v2982, 4
      %v2985 = vrot.slane %v2152, 5
      %v2986 = vsel %vm1319, %v2984, %v2985
      %v2987 = vrot.slane %v2899, 5
      %v2988 = vrot.slane %v2987, 4
      %v2989 = vrot.slane %v2154, 5
      %v2990 = vsel %vm1319, %v2988, %v2989
      %v2991 = vrot.slane %v2989, 4
      %v2992 = vrot.slane %v2155, 5
      %v2993 = vsel %vm1319, %v2991, %v2992
      %v2994 = vrot.slane %v2900, 5
      %v2995 = vrot.slane %v2994, 4
      %v2996 = vrot.slane %v2157, 5
      %v2997 = vsel %vm1319, %v2995, %v2996
      %v2998 = vrot.slane %v2996, 4
      %v2999 = vrot.slane %v2158, 5
      %v3000 = vsel %vm1319, %v2998, %v2999
      %v3001 = vrot.slane %v2901, 5
      %v3002 = vrot.slane %v3001, 4
      %v3003 = vrot.slane %v2160, 5
      %v3004 = vsel %vm1319, %v3002, %v3003
      %v3005 = vrot.slane %v3003, 4
      %v3006 = vrot.slane %v2161, 5
      %v3007 = vsel %vm1319, %v3005, %v3006
      %v3008 = vrot.slane %v2902, 5
      %v3009 = vrot.slane %v3008, 4
      %v3010 = vrot.slane %v2163, 5
      %v3011 = vsel %vm1319, %v3009, %v3010
      %v3012 = vrot.slane %v3010, 4
      %v3013 = vrot.slane %v2164, 5
      %v3014 = vsel %vm1319, %v3012, %v3013
      %v3015 = vrot.slane %v2903, 5
      %v3016 = vrot.slane %v3015, 4
      %v3017 = vrot.slane %v2166, 5
      %v3018 = vsel %vm1319, %v3016, %v3017
      %v3019 = vrot.slane %v3017, 4
      %v3020 = vrot.slane %v2167, 5
      %v3021 = vsel %vm1319, %v3019, %v3020
      %v3022 = vrot.slane %v2904, 5
      %v3023 = vrot.slane %v3022, 4
      %v3024 = vrot.slane %v2169, 5
      %v3025 = vsel %vm1319, %v3023, %v3024
      %v3026 = vrot.slane %v3024, 4
      %v3027 = vrot.slane %v2170, 5
      %v3028 = vsel %vm1319, %v3026, %v3027
      %v3029 = vrot.slane %v2905, 5
      %v3030 = vrot.slane %v3029, 4
      %v3031 = vrot.slane %v2172, 5
      %v3032 = vsel %vm1319, %v3030, %v3031
      %v3033 = vrot.slane %v3031, 4
      %v3034 = vrot.slane %v2173, 5
      %v3035 = vsel %vm1319, %v3033, %v3034
      %v3036 = vrot.slane %v2906, 5
      %v3037 = vrot.slane %v3036, 4
      %v3038 = vrot.slane %v2175, 5
      %v3039 = vsel %vm1319, %v3037, %v3038
      %v3040 = vrot.slane %v3038, 4
      %v3041 = vrot.slane %v2176, 5
      %v3042 = vsel %vm1319, %v3040, %v3041
      %v3043 = vrot.slane %v2907, 5
      %v3044 = vrot.slane %v3043, 4
      %v3045 = vrot.slane %v2178, 5
      %v3046 = vsel %vm1319, %v3044, %v3045
      %v3047 = vrot.slane %v3045, 4
      %v3048 = vrot.slane %v2179, 5
      %v3049 = vsel %vm1319, %v3047, %v3048
      %v3050 = vrot.slane %v2908, 5
      %v3051 = vrot.slane %v3050, 4
      %v3052 = vrot.slane %v2181, 5
      %v3053 = vsel %vm1319, %v3051, %v3052
      %v3054 = vrot.slane %v3052, 4
      %v3055 = vrot.slane %v2182, 5
      %v3056 = vsel %vm1319, %v3054, %v3055
      %v3057 = vrot.slane %v2909, 5
      %v3058 = vrot.slane %v3057, 4
      %v3059 = vrot.slane %v2184, 5
      %v3060 = vsel %vm1319, %v3058, %v3059
      %v3061 = vrot.slane %v3059, 4
      %v3062 = vrot.slane %v2185, 5
      %v3063 = vsel %vm1319, %v3061, %v3062
      %v3064 = vrot.slane %v2910, 5
      %v3065 = vrot.slane %v3064, 4
      %v3066 = vrot.slane %v2187, 5
      %v3067 = vsel %vm1319, %v3065, %v3066
      %v3068 = vrot.slane %v3066, 4
      %v3069 = vrot.slane %v2188, 5
      %v3070 = vsel %vm1319, %v3068, %v3069
      %s3071 = scalar_lea.vmem %s210, 320
      %v3072 = vld [vmem:[%s3071] sm:$0xf]
      %v3073 = vld [vmem:[%s3071 + $0x4] sm:$0xf]
      %v3074 = vld [vmem:[%s3071 + $0x8] sm:$0xf]
      %v3075 = vld [vmem:[%s3071 + $0xc] sm:$0xf]
      %v3076 = vld [vmem:[%s3071 + $0x10] sm:$0xf]
      %v3077 = vld [vmem:[%s3071 + $0x14] sm:$0xf]
      %v3078 = vld [vmem:[%s3071 + $0x18] sm:$0xf]
      %v3079 = vld [vmem:[%s3071 + $0x1c] sm:$0xf]
      %v3080 = vld [vmem:[%s3071 + $0x20] sm:$0xf]
      %v3081 = vld [vmem:[%s3071 + $0x24] sm:$0xf]
      %v3082 = vld [vmem:[%s3071 + $0x28] sm:$0xf]
      %v3083 = vld [vmem:[%s3071 + $0x2c] sm:$0xf]
      %v3084 = vld [vmem:[%s3071 + $0x30] sm:$0xf]
      %v3085 = vld [vmem:[%s3071 + $0x34] sm:$0xf]
      %v3086 = vld [vmem:[%s3071 + $0x38] sm:$0xf]
      %v3087 = vld [vmem:[%s3071 + $0x3c] sm:$0xf]
      %v3088 = vunpack.c.l.b16 %v2962
      %v3089 = vunpack.c.l.b16 %v2965
      %v3090 = vunpack.c.l.b16 %v2969
      %v3091 = vunpack.c.l.b16 %v2972
      %v3092 = vunpack.c.l.b16 %v2976
      %v3093 = vunpack.c.l.b16 %v2979
      %v3094 = vunpack.c.l.b16 %v2983
      %v3095 = vunpack.c.l.b16 %v2986
      %v3096 = vunpack.c.l.b16 %v2990
      %v3097 = vunpack.c.l.b16 %v2993
      %v3098 = vunpack.c.l.b16 %v2997
      %v3099 = vunpack.c.l.b16 %v3000
      %v3100 = vunpack.c.l.b16 %v3004
      %v3101 = vunpack.c.l.b16 %v3007
      %v3102 = vunpack.c.l.b16 %v3011
      %v3103 = vunpack.c.l.b16 %v3014
      %v3104 = vunpack.c.l.b16 %v3018
      %v3105 = vunpack.c.l.b16 %v3021
      %v3106 = vunpack.c.l.b16 %v3025
      %v3107 = vunpack.c.l.b16 %v3028
      %v3108 = vunpack.c.l.b16 %v3032
      %v3109 = vunpack.c.l.b16 %v3035
      %v3110 = vunpack.c.l.b16 %v3039
      %v3111 = vunpack.c.l.b16 %v3042
      %v3112 = vunpack.c.l.b16 %v3046
      %v3113 = vunpack.c.l.b16 %v3049
      %v3114 = vunpack.c.l.b16 %v3053
      %v3115 = vunpack.c.l.b16 %v3056
      %v3116 = vunpack.c.l.b16 %v3060
      %v3117 = vunpack.c.l.b16 %v3063
      %v3118 = vunpack.c.l.b16 %v3067
      %v3119 = vunpack.c.l.b16 %v3070
      %v3120 = vpack.c.b16 %v3089, %v3088
      %v3121 = vpack.c.b16 %v3091, %v3090
      %v3122 = vpack.c.b16 %v3093, %v3092
      %v3123 = vpack.c.b16 %v3095, %v3094
      %v3124 = vpack.c.b16 %v3097, %v3096
      %v3125 = vpack.c.b16 %v3099, %v3098
      %v3126 = vpack.c.b16 %v3101, %v3100
      %v3127 = vpack.c.b16 %v3103, %v3102
      %v3128 = vpack.c.b16 %v3105, %v3104
      %v3129 = vpack.c.b16 %v3107, %v3106
      %v3130 = vpack.c.b16 %v3109, %v3108
      %v3131 = vpack.c.b16 %v3111, %v3110
      %v3132 = vpack.c.b16 %v3113, %v3112
      %v3133 = vpack.c.b16 %v3115, %v3114
      %v3134 = vpack.c.b16 %v3117, %v3116
      %v3135 = vpack.c.b16 %v3119, %v3118
      %v3168 = vunpack.c.l.b16 %v3072
      %v3169 = vunpack.c.l.b16 %v3073
      %v3170 = vunpack.c.l.b16 %v3074
      %v3171 = vunpack.c.l.b16 %v3075
      %v3172 = vunpack.c.l.b16 %v3076
      %v3173 = vunpack.c.l.b16 %v3077
      %v3174 = vunpack.c.l.b16 %v3078
      %v3175 = vunpack.c.l.b16 %v3079
      %v3176 = vunpack.c.l.b16 %v3080
      %v3177 = vunpack.c.l.b16 %v3081
      %v3178 = vunpack.c.l.b16 %v3082
      %v3179 = vunpack.c.l.b16 %v3083
      %v3180 = vunpack.c.l.b16 %v3084
      %v3181 = vunpack.c.l.b16 %v3085
      %v3182 = vunpack.c.l.b16 %v3086
      %v3183 = vunpack.c.l.b16 %v3087
      %v3184 = vpack.c.b16 %v3169, %v3168
      %v3185 = vpack.c.b16 %v3171, %v3170
      %v3186 = vpack.c.b16 %v3173, %v3172
      %v3187 = vpack.c.b16 %v3175, %v3174
      %v3188 = vpack.c.b16 %v3177, %v3176
      %v3189 = vpack.c.b16 %v3179, %v3178
      %v3190 = vpack.c.b16 %v3181, %v3180
      %v3191 = vpack.c.b16 %v3183, %v3182
      %3200 = vmatprep.subr.bf16.mxu0 0
      %3201 = vmatpush1.bf16.msra.mxu0 %v3184
      %3202 = vmatprep.subr.bf16.mxu0 0
      %3203 = vmatpush1.bf16.msra.mxu0 %v3185
      %3204 = vmatprep.subr.bf16.mxu0 0
      %3205 = vmatpush1.bf16.msra.mxu0 %v3186
      %3206 = vmatprep.subr.bf16.mxu0 0
      %3207 = vmatpush1.bf16.msra.mxu0 %v3187
      %3208 = vmatprep.subr.bf16.mxu0 0
      %3209 = vmatpush1.bf16.msra.mxu0 %v3188
      %3210 = vmatprep.subr.bf16.mxu0 0
      %3211 = vmatpush1.bf16.msra.mxu0 %v3189
      %3212 = vmatprep.subr.bf16.mxu0 0
      %3213 = vmatpush1.bf16.msra.mxu0 %v3190
      %3214 = vmatprep.subr.bf16.mxu0 0
      %3215 = vmatpush1.bf16.msra.mxu0 %v3191
      %3216 = vmatprep.subr.bf16.mxu0 0
      %3217 = vmatpush1.bf16.msra.mxu0 0
      %3218 = vmatprep.subr.bf16.mxu0 0
      %3219 = vmatpush1.bf16.msra.mxu0 0
      %3220 = vmatprep.subr.bf16.mxu0 0
      %3221 = vmatpush1.bf16.msra.mxu0 0
      %3222 = vmatprep.subr.bf16.mxu0 0
      %3223 = vmatpush1.bf16.msra.mxu0 0
      %3224 = vmatprep.subr.bf16.mxu0 0
      %3225 = vmatpush1.bf16.msra.mxu0 0
      %3226 = vmatprep.subr.bf16.mxu0 0
      %3227 = vmatpush1.bf16.msra.mxu0 0
      %3228 = vmatprep.subr.bf16.mxu0 0
      %3229 = vmatpush1.bf16.msra.mxu0 0
      %3230 = vmatprep.subr.bf16.mxu0 0
      %3231 = vmatpush1.bf16.msra.mxu0 0
      %3232 = vmatprep.mubr.bf16.mxu0 0
      %3233 = vmatmul.mubr.bf16.gmra.mrb[0].mxu0 %v3120
      %v3234 = vpop.f32.mrb[0].mxu0
      %v3235 = vadd.f32 0.0, %v3234
      %v3236 = vpop.f32.mrb[0].mxu0
      %v3237 = vpop.f32.mrb[0].mxu0
      %v3238 = vadd.f32 0.0, %v3237
      %v3239 = vpop.f32.mrb[0].mxu0
      %3240 = vmatprep.mubr.bf16.mxu0 0
      %3241 = vmatmul.mubr.bf16.gmra.mrb[0].mxu0 %v3121
      %v3242 = vpop.f32.mrb[0].mxu0
      %v3243 = vadd.f32 0.0, %v3242
      %v3244 = vpop.f32.mrb[0].mxu0
      %v3245 = vpop.f32.mrb[0].mxu0
      %v3246 = vadd.f32 0.0, %v3245
      %v3247 = vpop.f32.mrb[0].mxu0
      %3248 = vmatprep.mubr.bf16.mxu0 0
      %3249 = vmatmul.mubr.bf16.gmra.mrb[0].mxu0 %v3122
      %v3250 = vpop.f32.mrb[0].mxu0
      %v3251 = vadd.f32 0.0, %v3250
      %v3252 = vpop.f32.mrb[0].mxu0
      %v3253 = vpop.f32.mrb[0].mxu0
      %v3254 = vadd.f32 0.0, %v3253
      %v3255 = vpop.f32.mrb[0].mxu0
      %3256 = vmatprep.mubr.bf16.mxu0 0
      %3257 = vmatmul.mubr.bf16.gmra.mrb[0].mxu0 %v3123
      %v3258 = vpop.f32.mrb[0].mxu0
      %v3259 = vadd.f32 0.0, %v3258
      %v3260 = vpop.f32.mrb[0].mxu0
      %v3261 = vpop.f32.mrb[0].mxu0
      %v3262 = vadd.f32 0.0, %v3261
      %v3263 = vpop.f32.mrb[0].mxu0
      %3264 = vmatprep.mubr.bf16.mxu0 0
      %3265 = vmatmul.mubr.bf16.gmra.mrb[0].mxu0 %v3124
      %v3266 = vpop.f32.mrb[0].mxu0
      %v3267 = vadd.f32 0.0, %v3266
      %v3268 = vpop.f32.mrb[0].mxu0
      %v3269 = vpop.f32.mrb[0].mxu0
      %v3270 = vadd.f32 0.0, %v3269
      %v3271 = vpop.f32.mrb[0].mxu0
      %3272 = vmatprep.mubr.bf16.mxu0 0
      %3273 = vmatmul.mubr.bf16.gmra.mrb[0].mxu0 %v3125
      %v3274 = vpop.f32.mrb[0].mxu0
      %v3275 = vadd.f32 0.0, %v3274
      %v3276 = vpop.f32.mrb[0].mxu0
      %v3277 = vpop.f32.mrb[0].mxu0
      %v3278 = vadd.f32 0.0, %v3277
      %v3279 = vpop.f32.mrb[0].mxu0
      %3280 = vmatprep.mubr.bf16.mxu0 0
      %3281 = vmatmul.mubr.bf16.gmra.mrb[0].mxu0 %v3126
      %v3282 = vpop.f32.mrb[0].mxu0
      %v3283 = vadd.f32 0.0, %v3282
      %v3284 = vpop.f32.mrb[0].mxu0
      %v3285 = vpop.f32.mrb[0].mxu0
      %v3286 = vadd.f32 0.0, %v3285
      %v3287 = vpop.f32.mrb[0].mxu0
      %3288 = vmatprep.mubr.bf16.mxu0 0
      %3289 = vmatmul.mubr.bf16.gmra.mrb[0].mxu0 %v3127
      %v3290 = vpop.f32.mrb[0].mxu0
      %v3291 = vadd.f32 0.0, %v3290
      %v3292 = vpop.f32.mrb[0].mxu0
      %v3293 = vpop.f32.mrb[0].mxu0
      %v3294 = vadd.f32 0.0, %v3293
      %v3295 = vpop.f32.mrb[0].mxu0
      %3296 = vmatprep.mubr.bf16.mxu0 0
      %3297 = vmatmul.mubr.bf16.gmra.mrb[0].mxu0 %v3128
      %v3298 = vpop.f32.mrb[0].mxu0
      %v3299 = vadd.f32 0.0, %v3298
      %v3300 = vpop.f32.mrb[0].mxu0
      %v3301 = vpop.f32.mrb[0].mxu0
      %v3302 = vadd.f32 0.0, %v3301
      %v3303 = vpop.f32.mrb[0].mxu0
      %3304 = vmatprep.mubr.bf16.mxu0 0
      %3305 = vmatmul.mubr.bf16.gmra.mrb[0].mxu0 %v3129
      %v3306 = vpop.f32.mrb[0].mxu0
      %v3307 = vadd.f32 0.0, %v3306
      %v3308 = vpop.f32.mrb[0].mxu0
      %v3309 = vpop.f32.mrb[0].mxu0
      %v3310 = vadd.f32 0.0, %v3309
      %v3311 = vpop.f32.mrb[0].mxu0
      %3312 = vmatprep.mubr.bf16.mxu0 0
      %3313 = vmatmul.mubr.bf16.gmra.mrb[0].mxu0 %v3130
      %v3314 = vpop.f32.mrb[0].mxu0
      %v3315 = vadd.f32 0.0, %v3314
      %v3316 = vpop.f32.mrb[0].mxu0
      %v3317 = vpop.f32.mrb[0].mxu0
      %v3318 = vadd.f32 0.0, %v3317
      %v3319 = vpop.f32.mrb[0].mxu0
      %3320 = vmatprep.mubr.bf16.mxu0 0
      %3321 = vmatmul.mubr.bf16.gmra.mrb[0].mxu0 %v3131
      %v3322 = vpop.f32.mrb[0].mxu0
      %v3323 = vadd.f32 0.0, %v3322
      %v3324 = vpop.f32.mrb[0].mxu0
      %v3325 = vpop.f32.mrb[0].mxu0
      %v3326 = vadd.f32 0.0, %v3325
      %v3327 = vpop.f32.mrb[0].mxu0
      %3328 = vmatprep.mubr.bf16.mxu0 0
      %3329 = vmatmul.mubr.bf16.gmra.mrb[0].mxu0 %v3132
      %v3330 = vpop.f32.mrb[0].mxu0
      %v3331 = vadd.f32 0.0, %v3330
      %v3332 = vpop.f32.mrb[0].mxu0
      %v3333 = vpop.f32.mrb[0].mxu0
      %v3334 = vadd.f32 0.0, %v3333
      %v3335 = vpop.f32.mrb[0].mxu0
      %3336 = vmatprep.mubr.bf16.mxu0 0
      %3337 = vmatmul.mubr.bf16.gmra.mrb[0].mxu0 %v3133
      %v3338 = vpop.f32.mrb[0].mxu0
      %v3339 = vadd.f32 0.0, %v3338
      %v3340 = vpop.f32.mrb[0].mxu0
      %v3341 = vpop.f32.mrb[0].mxu0
      %v3342 = vadd.f32 0.0, %v3341
      %v3343 = vpop.f32.mrb[0].mxu0
      %3344 = vmatprep.mubr.bf16.mxu0 0
      %3345 = vmatmul.mubr.bf16.gmra.mrb[0].mxu0 %v3134
      %v3346 = vpop.f32.mrb[0].mxu0
      %v3347 = vadd.f32 0.0, %v3346
      %v3348 = vpop.f32.mrb[0].mxu0
      %v3349 = vpop.f32.mrb[0].mxu0
      %v3350 = vadd.f32 0.0, %v3349
      %v3351 = vpop.f32.mrb[0].mxu0
      %3352 = vmatprep.mubr.bf16.mxu0 0
      %3353 = vmatmul.mubr.bf16.gmra.mrb[0].mxu0 %v3135
      %v3354 = vpop.f32.mrb[0].mxu0
      %v3355 = vadd.f32 0.0, %v3354
      %v3356 = vpop.f32.mrb[0].mxu0
      %v3357 = vpop.f32.mrb[0].mxu0
      %v3358 = vadd.f32 0.0, %v3357
      %v3359 = vpop.f32.mrb[0].mxu0
      %3360 = vdwg.mxu0
      %v3361 = vadd.f32 %v2863, %v3235
      %v3362 = vadd.f32 %v2864, %v3238
      %v3363 = vadd.f32 %v2865, %v3243
      %v3364 = vadd.f32 %v2866, %v3246
      %v3365 = vadd.f32 %v2867, %v3251
      %v3366 = vadd.f32 %v2868, %v3254
      %v3367 = vadd.f32 %v2869, %v3259
      %v3368 = vadd.f32 %v2870, %v3262
      %v3369 = vadd.f32 %v2871, %v3267
      %v3370 = vadd.f32 %v2872, %v3270
      %v3371 = vadd.f32 %v2873, %v3275
      %v3372 = vadd.f32 %v2874, %v3278
      %v3373 = vadd.f32 %v2875, %v3283
      %v3374 = vadd.f32 %v2876, %v3286
      %v3375 = vadd.f32 %v2877, %v3291
      %v3376 = vadd.f32 %v2878, %v3294
      %v3377 = vadd.f32 %v2879, %v3299
      %v3378 = vadd.f32 %v2880, %v3302
      %v3379 = vadd.f32 %v2881, %v3307
      %v3380 = vadd.f32 %v2882, %v3310
      %v3381 = vadd.f32 %v2883, %v3315
      %v3382 = vadd.f32 %v2884, %v3318
      %v3383 = vadd.f32 %v2885, %v3323
      %v3384 = vadd.f32 %v2886, %v3326
      %v3385 = vadd.f32 %v2887, %v3331
      %v3386 = vadd.f32 %v2888, %v3334
      %v3387 = vadd.f32 %v2889, %v3339
      %v3388 = vadd.f32 %v2890, %v3342
      %v3389 = vadd.f32 %v2891, %v3347
      %v3390 = vadd.f32 %v2892, %v3350
      %v3391 = vadd.f32 %v2893, %v3355
      %v3392 = vadd.f32 %v2894, %v3358
      %s3393 = scalar_lea.vmem %s206, 24
      %v3394 = vld [vmem:[%s3393] sm:$0xf]
      %v3395 = vld [vmem:[%s3393 + $0x4] sm:$0xf]
      %v3396 = vld [vmem:[%s3393 + $0xc] sm:$0xf]
      %v3397 = vld [vmem:[%s3393 + $0x10] sm:$0xf]
      %v3398 = vld [vmem:[%s3393 + $0x18] sm:$0xf]
      %v3399 = vld [vmem:[%s3393 + $0x1c] sm:$0xf]
      %v3400 = vld [vmem:[%s3393 + $0x24] sm:$0xf]
      %v3401 = vld [vmem:[%s3393 + $0x28] sm:$0xf]
      %v3402 = vld [vmem:[%s3393 + $0x30] sm:$0xf]
      %v3403 = vld [vmem:[%s3393 + $0x34] sm:$0xf]
      %v3404 = vld [vmem:[%s3393 + $0x3c] sm:$0xf]
      %v3405 = vld [vmem:[%s3393 + $0x40] sm:$0xf]
      %v3406 = vld [vmem:[%s3393 + $0x48] sm:$0xf]
      %v3407 = vld [vmem:[%s3393 + $0x4c] sm:$0xf]
      %v3408 = vld [vmem:[%s3393 + $0x54] sm:$0xf]
      %v3409 = vld [vmem:[%s3393 + $0x58] sm:$0xf]
      %v3410 = vld [vmem:[%s3393 + $0x60] sm:$0xf]
      %v3411 = vld [vmem:[%s3393 + $0x64] sm:$0xf]
      %v3412 = vld [vmem:[%s3393 + $0x6c] sm:$0xf]
      %v3413 = vld [vmem:[%s3393 + $0x70] sm:$0xf]
      %v3414 = vld [vmem:[%s3393 + $0x78] sm:$0xf]
      %v3415 = vld [vmem:[%s3393 + $0x7c] sm:$0xf]
      %v3416 = vld [vmem:[%s3393 + $0x84] sm:$0xf]
      %v3417 = vld [vmem:[%s3393 + $0x88] sm:$0xf]
      %v3418 = vld [vmem:[%s3393 + $0x90] sm:$0xf]
      %v3419 = vld [vmem:[%s3393 + $0x94] sm:$0xf]
      %v3420 = vld [vmem:[%s3393 + $0x9c] sm:$0xf]
      %v3421 = vld [vmem:[%s3393 + $0xa0] sm:$0xf]
      %v3422 = vld [vmem:[%s3393 + $0xa8] sm:$0xf]
      %v3423 = vld [vmem:[%s3393 + $0xac] sm:$0xf]
      %v3424 = vld [vmem:[%s3393 + $0xb4] sm:$0xf]
      %v3425 = vld [vmem:[%s3393 + $0xb8] sm:$0xf]
      %s3426 = scalar_lea.vmem %s210, 384
      %v3427 = vld [vmem:[%s3426] sm:$0xf]
      %v3428 = vld [vmem:[%s3426 + $0x4] sm:$0xf]
      %v3429 = vld [vmem:[%s3426 + $0x8] sm:$0xf]
      %v3430 = vld [vmem:[%s3426 + $0xc] sm:$0xf]
      %v3431 = vld [vmem:[%s3426 + $0x10] sm:$0xf]
      %v3432 = vld [vmem:[%s3426 + $0x14] sm:$0xf]
      %v3433 = vld [vmem:[%s3426 + $0x18] sm:$0xf]
      %v3434 = vld [vmem:[%s3426 + $0x1c] sm:$0xf]
      %v3435 = vld [vmem:[%s3426 + $0x20] sm:$0xf]
      %v3436 = vld [vmem:[%s3426 + $0x24] sm:$0xf]
      %v3437 = vld [vmem:[%s3426 + $0x28] sm:$0xf]
      %v3438 = vld [vmem:[%s3426 + $0x2c] sm:$0xf]
      %v3439 = vld [vmem:[%s3426 + $0x30] sm:$0xf]
      %v3440 = vld [vmem:[%s3426 + $0x34] sm:$0xf]
      %v3441 = vld [vmem:[%s3426 + $0x38] sm:$0xf]
      %v3442 = vld [vmem:[%s3426 + $0x3c] sm:$0xf]
      %v3475 = vunpack.c.l.b16 %v3394
      %v3476 = vunpack.c.l.b16 %v3395
      %v3477 = vunpack.c.l.b16 %v3396
      %v3478 = vunpack.c.l.b16 %v3397
      %v3479 = vunpack.c.l.b16 %v3398
      %v3480 = vunpack.c.l.b16 %v3399
      %v3481 = vunpack.c.l.b16 %v3400
      %v3482 = vunpack.c.l.b16 %v3401
      %v3483 = vunpack.c.l.b16 %v3402
      %v3484 = vunpack.c.l.b16 %v3403
      %v3485 = vunpack.c.l.b16 %v3404
      %v3486 = vunpack.c.l.b16 %v3405
      %v3487 = vunpack.c.l.b16 %v3406
      %v3488 = vunpack.c.l.b16 %v3407
      %v3489 = vunpack.c.l.b16 %v3408
      %v3490 = vunpack.c.l.b16 %v3409
      %v3491 = vunpack.c.l.b16 %v3410
      %v3492 = vunpack.c.l.b16 %v3411
      %v3493 = vunpack.c.l.b16 %v3412
      %v3494 = vunpack.c.l.b16 %v3413
      %v3495 = vunpack.c.l.b16 %v3414
      %v3496 = vunpack.c.l.b16 %v3415
      %v3497 = vunpack.c.l.b16 %v3416
      %v3498 = vunpack.c.l.b16 %v3417
      %v3499 = vunpack.c.l.b16 %v3418
      %v3500 = vunpack.c.l.b16 %v3419
      %v3501 = vunpack.c.l.b16 %v3420
      %v3502 = vunpack.c.l.b16 %v3421
      %v3503 = vunpack.c.l.b16 %v3422
      %v3504 = vunpack.c.l.b16 %v3423
      %v3505 = vunpack.c.l.b16 %v3424
      %v3506 = vunpack.c.l.b16 %v3425
      %v3507 = vpack.c.b16 %v3476, %v3475
      %v3508 = vpack.c.b16 %v3478, %v3477
      %v3509 = vpack.c.b16 %v3480, %v3479
      %v3510 = vpack.c.b16 %v3482, %v3481
      %v3511 = vpack.c.b16 %v3484, %v3483
      %v3512 = vpack.c.b16 %v3486, %v3485
      %v3513 = vpack.c.b16 %v3488, %v3487
      %v3514 = vpack.c.b16 %v3490, %v3489
      %v3515 = vpack.c.b16 %v3492, %v3491
      %v3516 = vpack.c.b16 %v3494, %v3493
      %v3517 = vpack.c.b16 %v3496, %v3495
      %v3518 = vpack.c.b16 %v3498, %v3497
      %v3519 = vpack.c.b16 %v3500, %v3499
      %v3520 = vpack.c.b16 %v3502, %v3501
      %v3521 = vpack.c.b16 %v3504, %v3503
      %v3522 = vpack.c.b16 %v3506, %v3505
      %v3555 = vunpack.c.l.b16 %v3427
      %v3556 = vunpack.c.l.b16 %v3428
      %v3557 = vunpack.c.l.b16 %v3429
      %v3558 = vunpack.c.l.b16 %v3430
      %v3559 = vunpack.c.l.b16 %v3431
      %v3560 = vunpack.c.l.b16 %v3432
      %v3561 = vunpack.c.l.b16 %v3433
      %v3562 = vunpack.c.l.b16 %v3434
      %v3563 = vunpack.c.l.b16 %v3435
      %v3564 = vunpack.c.l.b16 %v3436
      %v3565 = vunpack.c.l.b16 %v3437
      %v3566 = vunpack.c.l.b16 %v3438
      %v3567 = vunpack.c.l.b16 %v3439
      %v3568 = vunpack.c.l.b16 %v3440
      %v3569 = vunpack.c.l.b16 %v3441
      %v3570 = vunpack.c.l.b16 %v3442
      %v3571 = vpack.c.b16 %v3556, %v3555
      %v3572 = vpack.c.b16 %v3558, %v3557
      %v3573 = vpack.c.b16 %v3560, %v3559
      %v3574 = vpack.c.b16 %v3562, %v3561
      %v3575 = vpack.c.b16 %v3564, %v3563
      %v3576 = vpack.c.b16 %v3566, %v3565
      %v3577 = vpack.c.b16 %v3568, %v3567
      %v3578 = vpack.c.b16 %v3570, %v3569
      %3587 = vmatprep.subr.bf16.mxu0 0
      %3588 = vmatpush1.bf16.msra.mxu0 %v3571
      %3589 = vmatprep.subr.bf16.mxu0 0
      %3590 = vmatpush1.bf16.msra.mxu0 %v3572
      %3591 = vmatprep.subr.bf16.mxu0 0
      %3592 = vmatpush1.bf16.msra.mxu0 %v3573
      %3593 = vmatprep.subr.bf16.mxu0 0
      %3594 = vmatpush1.bf16.msra.mxu0 %v3574
      %3595 = vmatprep.subr.bf16.mxu0 0
      %3596 = vmatpush1.bf16.msra.mxu0 %v3575
      %3597 = vmatprep.subr.bf16.mxu0 0
      %3598 = vmatpush1.bf16.msra.mxu0 %v3576
      %3599 = vmatprep.subr.bf16.mxu0 0
      %3600 = vmatpush1.bf16.msra.mxu0 %v3577
      %3601 = vmatprep.subr.bf16.mxu0 0
      %3602 = vmatpush1.bf16.msra.mxu0 %v3578
      %3603 = vmatprep.subr.bf16.mxu0 0
      %3604 = vmatpush1.bf16.msra.mxu0 0
      %3605 = vmatprep.subr.bf16.mxu0 0
      %3606 = vmatpush1.bf16.msra.mxu0 0
      %3607 = vmatprep.subr.bf16.mxu0 0
      %3608 = vmatpush1.bf16.msra.mxu0 0
      %3609 = vmatprep.subr.bf16.mxu0 0
      %3610 = vmatpush1.bf16.msra.mxu0 0
      %3611 = vmatprep.subr.bf16.mxu0 0
      %3612 = vmatpush1.bf16.msra.mxu0 0
      %3613 = vmatprep.subr.bf16.mxu0 0
      %3614 = vmatpush1.bf16.msra.mxu0 0
      %3615 = vmatprep.subr.bf16.mxu0 0
      %3616 = vmatpush1.bf16.msra.mxu0 0
      %3617 = vmatprep.subr.bf16.mxu0 0
      %3618 = vmatpush1.bf16.msra.mxu0 0
      %3619 = vmatprep.mubr.bf16.mxu0 0
      %3620 = vmatmul.mubr.bf16.gmra.mrb[0].mxu0 %v3507
      %v3621 = vpop.f32.mrb[0].mxu0
      %v3622 = vadd.f32 0.0, %v3621
      %v3623 = vpop.f32.mrb[0].mxu0
      %v3624 = vpop.f32.mrb[0].mxu0
      %v3625 = vadd.f32 0.0, %v3624
      %v3626 = vpop.f32.mrb[0].mxu0
      %3627 = vmatprep.mubr.bf16.mxu0 0
      %3628 = vmatmul.mubr.bf16.gmra.mrb[0].mxu0 %v3508
      %v3629 = vpop.f32.mrb[0].mxu0
      %v3630 = vadd.f32 0.0, %v3629
      %v3631 = vpop.f32.mrb[0].mxu0
      %v3632 = vpop.f32.mrb[0].mxu0
      %v3633 = vadd.f32 0.0, %v3632
      %v3634 = vpop.f32.mrb[0].mxu0
      %3635 = vmatprep.mubr.bf16.mxu0 0
      %3636 = vmatmul.mubr.bf16.gmra.mrb[0].mxu0 %v3509
      %v3637 = vpop.f32.mrb[0].mxu0
      %v3638 = vadd.f32 0.0, %v3637
      %v3639 = vpop.f32.mrb[0].mxu0
      %v3640 = vpop.f32.mrb[0].mxu0
      %v3641 = vadd.f32 0.0, %v3640
      %v3642 = vpop.f32.mrb[0].mxu0
      %3643 = vmatprep.mubr.bf16.mxu0 0
      %3644 = vmatmul.mubr.bf16.gmra.mrb[0].mxu0 %v3510
      %v3645 = vpop.f32.mrb[0].mxu0
      %v3646 = vadd.f32 0.0, %v3645
      %v3647 = vpop.f32.mrb[0].mxu0
      %v3648 = vpop.f32.mrb[0].mxu0
      %v3649 = vadd.f32 0.0, %v3648
      %v3650 = vpop.f32.mrb[0].mxu0
      %3651 = vmatprep.mubr.bf16.mxu0 0
      %3652 = vmatmul.mubr.bf16.gmra.mrb[0].mxu0 %v3511
      %v3653 = vpop.f32.mrb[0].mxu0
      %v3654 = vadd.f32 0.0, %v3653
      %v3655 = vpop.f32.mrb[0].mxu0
      %v3656 = vpop.f32.mrb[0].mxu0
      %v3657 = vadd.f32 0.0, %v3656
      %v3658 = vpop.f32.mrb[0].mxu0
      %3659 = vmatprep.mubr.bf16.mxu0 0
      %3660 = vmatmul.mubr.bf16.gmra.mrb[0].mxu0 %v3512
      %v3661 = vpop.f32.mrb[0].mxu0
      %v3662 = vadd.f32 0.0, %v3661
      %v3663 = vpop.f32.mrb[0].mxu0
      %v3664 = vpop.f32.mrb[0].mxu0
      %v3665 = vadd.f32 0.0, %v3664
      %v3666 = vpop.f32.mrb[0].mxu0
      %3667 = vmatprep.mubr.bf16.mxu0 0
      %3668 = vmatmul.mubr.bf16.gmra.mrb[0].mxu0 %v3513
      %v3669 = vpop.f32.mrb[0].mxu0
      %v3670 = vadd.f32 0.0, %v3669
      %v3671 = vpop.f32.mrb[0].mxu0
      %v3672 = vpop.f32.mrb[0].mxu0
      %v3673 = vadd.f32 0.0, %v3672
      %v3674 = vpop.f32.mrb[0].mxu0
      %3675 = vmatprep.mubr.bf16.mxu0 0
      %3676 = vmatmul.mubr.bf16.gmra.mrb[0].mxu0 %v3514
      %v3677 = vpop.f32.mrb[0].mxu0
      %v3678 = vadd.f32 0.0, %v3677
      %v3679 = vpop.f32.mrb[0].mxu0
      %v3680 = vpop.f32.mrb[0].mxu0
      %v3681 = vadd.f32 0.0, %v3680
      %v3682 = vpop.f32.mrb[0].mxu0
      %3683 = vmatprep.mubr.bf16.mxu0 0
      %3684 = vmatmul.mubr.bf16.gmra.mrb[0].mxu0 %v3515
      %v3685 = vpop.f32.mrb[0].mxu0
      %v3686 = vadd.f32 0.0, %v3685
      %v3687 = vpop.f32.mrb[0].mxu0
      %v3688 = vpop.f32.mrb[0].mxu0
      %v3689 = vadd.f32 0.0, %v3688
      %v3690 = vpop.f32.mrb[0].mxu0
      %3691 = vmatprep.mubr.bf16.mxu0 0
      %3692 = vmatmul.mubr.bf16.gmra.mrb[0].mxu0 %v3516
      %v3693 = vpop.f32.mrb[0].mxu0
      %v3694 = vadd.f32 0.0, %v3693
      %v3695 = vpop.f32.mrb[0].mxu0
      %v3696 = vpop.f32.mrb[0].mxu0
      %v3697 = vadd.f32 0.0, %v3696
      %v3698 = vpop.f32.mrb[0].mxu0
      %3699 = vmatprep.mubr.bf16.mxu0 0
      %3700 = vmatmul.mubr.bf16.gmra.mrb[0].mxu0 %v3517
      %v3701 = vpop.f32.mrb[0].mxu0
      %v3702 = vadd.f32 0.0, %v3701
      %v3703 = vpop.f32.mrb[0].mxu0
      %v3704 = vpop.f32.mrb[0].mxu0
      %v3705 = vadd.f32 0.0, %v3704
      %v3706 = vpop.f32.mrb[0].mxu0
      %3707 = vmatprep.mubr.bf16.mxu0 0
      %3708 = vmatmul.mubr.bf16.gmra.mrb[0].mxu0 %v3518
      %v3709 = vpop.f32.mrb[0].mxu0
      %v3710 = vadd.f32 0.0, %v3709
      %v3711 = vpop.f32.mrb[0].mxu0
      %v3712 = vpop.f32.mrb[0].mxu0
      %v3713 = vadd.f32 0.0, %v3712
      %v3714 = vpop.f32.mrb[0].mxu0
      %3715 = vmatprep.mubr.bf16.mxu0 0
      %3716 = vmatmul.mubr.bf16.gmra.mrb[0].mxu0 %v3519
      %v3717 = vpop.f32.mrb[0].mxu0
      %v3718 = vadd.f32 0.0, %v3717
      %v3719 = vpop.f32.mrb[0].mxu0
      %v3720 = vpop.f32.mrb[0].mxu0
      %v3721 = vadd.f32 0.0, %v3720
      %v3722 = vpop.f32.mrb[0].mxu0
      %3723 = vmatprep.mubr.bf16.mxu0 0
      %3724 = vmatmul.mubr.bf16.gmra.mrb[0].mxu0 %v3520
      %v3725 = vpop.f32.mrb[0].mxu0
      %v3726 = vadd.f32 0.0, %v3725
      %v3727 = vpop.f32.mrb[0].mxu0
      %v3728 = vpop.f32.mrb[0].mxu0
      %v3729 = vadd.f32 0.0, %v3728
      %v3730 = vpop.f32.mrb[0].mxu0
      %3731 = vmatprep.mubr.bf16.mxu0 0
      %3732 = vmatmul.mubr.bf16.gmra.mrb[0].mxu0 %v3521
      %v3733 = vpop.f32.mrb[0].mxu0
      %v3734 = vadd.f32 0.0, %v3733
      %v3735 = vpop.f32.mrb[0].mxu0
      %v3736 = vpop.f32.mrb[0].mxu0
      %v3737 = vadd.f32 0.0, %v3736
      %v3738 = vpop.f32.mrb[0].mxu0
      %3739 = vmatprep.mubr.bf16.mxu0 0
      %3740 = vmatmul.mubr.bf16.gmra.mrb[0].mxu0 %v3522
      %v3741 = vpop.f32.mrb[0].mxu0
      %v3742 = vadd.f32 0.0, %v3741
      %v3743 = vpop.f32.mrb[0].mxu0
      %v3744 = vpop.f32.mrb[0].mxu0
      %v3745 = vadd.f32 0.0, %v3744
      %v3746 = vpop.f32.mrb[0].mxu0
      %3747 = vdwg.mxu0
      %v3748 = vadd.f32 %v3361, %v3622
      %v3749 = vadd.f32 %v3362, %v3625
      %v3750 = vadd.f32 %v3363, %v3630
      %v3751 = vadd.f32 %v3364, %v3633
      %v3752 = vadd.f32 %v3365, %v3638
      %v3753 = vadd.f32 %v3366, %v3641
      %v3754 = vadd.f32 %v3367, %v3646
      %v3755 = vadd.f32 %v3368, %v3649
      %v3756 = vadd.f32 %v3369, %v3654
      %v3757 = vadd.f32 %v3370, %v3657
      %v3758 = vadd.f32 %v3371, %v3662
      %v3759 = vadd.f32 %v3372, %v3665
      %v3760 = vadd.f32 %v3373, %v3670
      %v3761 = vadd.f32 %v3374, %v3673
      %v3762 = vadd.f32 %v3375, %v3678
      %v3763 = vadd.f32 %v3376, %v3681
      %v3764 = vadd.f32 %v3377, %v3686
      %v3765 = vadd.f32 %v3378, %v3689
      %v3766 = vadd.f32 %v3379, %v3694
      %v3767 = vadd.f32 %v3380, %v3697
      %v3768 = vadd.f32 %v3381, %v3702
      %v3769 = vadd.f32 %v3382, %v3705
      %v3770 = vadd.f32 %v3383, %v3710
      %v3771 = vadd.f32 %v3384, %v3713
      %v3772 = vadd.f32 %v3385, %v3718
      %v3773 = vadd.f32 %v3386, %v3721
      %v3774 = vadd.f32 %v3387, %v3726
      %v3775 = vadd.f32 %v3388, %v3729
      %v3776 = vadd.f32 %v3389, %v3734
      %v3777 = vadd.f32 %v3390, %v3737
      %v3778 = vadd.f32 %v3391, %v3742
      %v3779 = vadd.f32 %v3392, %v3745
      %v3780 = vld [vmem:[%s3393] sm:$0xf]
      %v3781 = vld [vmem:[%s3393 + $0x4] sm:$0xf]
      %v3782 = vld [vmem:[%s3393 + $0x8] sm:$0x1]
      %v3783 = vld [vmem:[%s3393 + $0xc] sm:$0xf]
      %v3784 = vld [vmem:[%s3393 + $0x10] sm:$0xf]
      %v3785 = vld [vmem:[%s3393 + $0x14] sm:$0x1]
      %v3786 = vld [vmem:[%s3393 + $0x18] sm:$0xf]
      %v3787 = vld [vmem:[%s3393 + $0x1c] sm:$0xf]
      %v3788 = vld [vmem:[%s3393 + $0x20] sm:$0x1]
      %v3789 = vld [vmem:[%s3393 + $0x24] sm:$0xf]
      %v3790 = vld [vmem:[%s3393 + $0x28] sm:$0xf]
      %v3791 = vld [vmem:[%s3393 + $0x2c] sm:$0x1]
      %v3792 = vld [vmem:[%s3393 + $0x30] sm:$0xf]
      %v3793 = vld [vmem:[%s3393 + $0x34] sm:$0xf]
      %v3794 = vld [vmem:[%s3393 + $0x38] sm:$0x1]
      %v3795 = vld [vmem:[%s3393 + $0x3c] sm:$0xf]
      %v3796 = vld [vmem:[%s3393 + $0x40] sm:$0xf]
      %v3797 = vld [vmem:[%s3393 + $0x44] sm:$0x1]
      %v3798 = vld [vmem:[%s3393 + $0x48] sm:$0xf]
      %v3799 = vld [vmem:[%s3393 + $0x4c] sm:$0xf]
      %v3800 = vld [vmem:[%s3393 + $0x50] sm:$0x1]
      %v3801 = vld [vmem:[%s3393 + $0x54] sm:$0xf]
      %v3802 = vld [vmem:[%s3393 + $0x58] sm:$0xf]
      %v3803 = vld [vmem:[%s3393 + $0x5c] sm:$0x1]
      %v3804 = vld [vmem:[%s3393 + $0x60] sm:$0xf]
      %v3805 = vld [vmem:[%s3393 + $0x64] sm:$0xf]
      %v3806 = vld [vmem:[%s3393 + $0x68] sm:$0x1]
      %v3807 = vld [vmem:[%s3393 + $0x6c] sm:$0xf]
      %v3808 = vld [vmem:[%s3393 + $0x70] sm:$0xf]
      %v3809 = vld [vmem:[%s3393 + $0x74] sm:$0x1]
      %v3810 = vld [vmem:[%s3393 + $0x78] sm:$0xf]
      %v3811 = vld [vmem:[%s3393 + $0x7c] sm:$0xf]
      %v3812 = vld [vmem:[%s3393 + $0x80] sm:$0x1]
      %v3813 = vld [vmem:[%s3393 + $0x84] sm:$0xf]
      %v3814 = vld [vmem:[%s3393 + $0x88] sm:$0xf]
      %v3815 = vld [vmem:[%s3393 + $0x8c] sm:$0x1]
      %v3816 = vld [vmem:[%s3393 + $0x90] sm:$0xf]
      %v3817 = vld [vmem:[%s3393 + $0x94] sm:$0xf]
      %v3818 = vld [vmem:[%s3393 + $0x98] sm:$0x1]
      %v3819 = vld [vmem:[%s3393 + $0x9c] sm:$0xf]
      %v3820 = vld [vmem:[%s3393 + $0xa0] sm:$0xf]
      %v3821 = vld [vmem:[%s3393 + $0xa4] sm:$0x1]
      %v3822 = vld [vmem:[%s3393 + $0xa8] sm:$0xf]
      %v3823 = vld [vmem:[%s3393 + $0xac] sm:$0xf]
      %v3824 = vld [vmem:[%s3393 + $0xb0] sm:$0x1]
      %v3825 = vld [vmem:[%s3393 + $0xb4] sm:$0xf]
      %v3826 = vld [vmem:[%s3393 + $0xb8] sm:$0xf]
      %v3827 = vld [vmem:[%s3393 + $0xbc] sm:$0x1]
      %v3829 = vshrl.u32 %v3780, 16
      %v3831 = vrot.slane %v3829, 4
      %v3832 = vshll.u32 %v3780, 16
      %v3834 = vrot.slane %v3832, 5
      %v3835 = vor.u32 %v3831, %v3834
      %v3836 = vrot.slane %v3835, 4
      %v3838 = vshll.u32 %v3781, 16
      %v3840 = vrot.slane %v3838, 5
      %v3841 = vsel %vm289, %v3836, %v3840
      %v3842 = vshrl.u32 %v3781, 16
      %v3844 = vrot.slane %v3842, 4
      %v3845 = vor.u32 %v3844, %v3840
      %v3846 = vrot.slane %v3845, 4
      %v3848 = vshll.u32 %v3782, 16
      %v3850 = vrot.slane %v3848, 5
      %v3851 = vsel %vm289, %v3846, %v3850
      %v3853 = vshrl.u32 %v3783, 16
      %v3855 = vrot.slane %v3853, 4
      %v3856 = vshll.u32 %v3783, 16
      %v3858 = vrot.slane %v3856, 5
      %v3859 = vor.u32 %v3855, %v3858
      %v3860 = vrot.slane %v3859, 4
      %v3862 = vshll.u32 %v3784, 16
      %v3864 = vrot.slane %v3862, 5
      %v3865 = vsel %vm289, %v3860, %v3864
      %v3866 = vshrl.u32 %v3784, 16
      %v3868 = vrot.slane %v3866, 4
      %v3869 = vor.u32 %v3868, %v3864
      %v3870 = vrot.slane %v3869, 4
      %v3872 = vshll.u32 %v3785, 16
      %v3874 = vrot.slane %v3872, 5
      %v3875 = vsel %vm289, %v3870, %v3874
      %v3877 = vshrl.u32 %v3786, 16
      %v3879 = vrot.slane %v3877, 4
      %v3880 = vshll.u32 %v3786, 16
      %v3882 = vrot.slane %v3880, 5
      %v3883 = vor.u32 %v3879, %v3882
      %v3884 = vrot.slane %v3883, 4
      %v3886 = vshll.u32 %v3787, 16
      %v3888 = vrot.slane %v3886, 5
      %v3889 = vsel %vm289, %v3884, %v3888
      %v3890 = vshrl.u32 %v3787, 16
      %v3892 = vrot.slane %v3890, 4
      %v3893 = vor.u32 %v3892, %v3888
      %v3894 = vrot.slane %v3893, 4
      %v3896 = vshll.u32 %v3788, 16
      %v3898 = vrot.slane %v3896, 5
      %v3899 = vsel %vm289, %v3894, %v3898
      %v3901 = vshrl.u32 %v3789, 16
      %v3903 = vrot.slane %v3901, 4
      %v3904 = vshll.u32 %v3789, 16
      %v3906 = vrot.slane %v3904, 5
      %v3907 = vor.u32 %v3903, %v3906
      %v3908 = vrot.slane %v3907, 4
      %v3910 = vshll.u32 %v3790, 16
      %v3912 = vrot.slane %v3910, 5
      %v3913 = vsel %vm289, %v3908, %v3912
      %v3914 = vshrl.u32 %v3790, 16
      %v3916 = vrot.slane %v3914, 4
      %v3917 = vor.u32 %v3916, %v3912
      %v3918 = vrot.slane %v3917, 4
      %v3920 = vshll.u32 %v3791, 16
      %v3922 = vrot.slane %v3920, 5
      %v3923 = vsel %vm289, %v3918, %v3922
      %v3925 = vshrl.u32 %v3792, 16
      %v3927 = vrot.slane %v3925, 4
      %v3928 = vshll.u32 %v3792, 16
      %v3930 = vrot.slane %v3928, 5
      %v3931 = vor.u32 %v3927, %v3930
      %v3932 = vrot.slane %v3931, 4
      %v3934 = vshll.u32 %v3793, 16
      %v3936 = vrot.slane %v3934, 5
      %v3937 = vsel %vm289, %v3932, %v3936
      %v3938 = vshrl.u32 %v3793, 16
      %v3940 = vrot.slane %v3938, 4
      %v3941 = vor.u32 %v3940, %v3936
      %v3942 = vrot.slane %v3941, 4
      %v3944 = vshll.u32 %v3794, 16
      %v3946 = vrot.slane %v3944, 5
      %v3947 = vsel %vm289, %v3942, %v3946
      %v3949 = vshrl.u32 %v3795, 16
      %v3951 = vrot.slane %v3949, 4
      %v3952 = vshll.u32 %v3795, 16
      %v3954 = vrot.slane %v3952, 5
      %v3955 = vor.u32 %v3951, %v3954
      %v3956 = vrot.slane %v3955, 4
      %v3958 = vshll.u32 %v3796, 16
      %v3960 = vrot.slane %v3958, 5
      %v3961 = vsel %vm289, %v3956, %v3960
      %v3962 = vshrl.u32 %v3796, 16
      %v3964 = vrot.slane %v3962, 4
      %v3965 = vor.u32 %v3964, %v3960
      %v3966 = vrot.slane %v3965, 4
      %v3968 = vshll.u32 %v3797, 16
      %v3970 = vrot.slane %v3968, 5
      %v3971 = vsel %vm289, %v3966, %v3970
      %v3973 = vshrl.u32 %v3798, 16
      %v3975 = vrot.slane %v3973, 4
      %v3976 = vshll.u32 %v3798, 16
      %v3978 = vrot.slane %v3976, 5
      %v3979 = vor.u32 %v3975, %v3978
      %v3980 = vrot.slane %v3979, 4
      %v3982 = vshll.u32 %v3799, 16
      %v3984 = vrot.slane %v3982, 5
      %v3985 = vsel %vm289, %v3980, %v3984
      %v3986 = vshrl.u32 %v3799, 16
      %v3988 = vrot.slane %v3986, 4
      %v3989 = vor.u32 %v3988, %v3984
      %v3990 = vrot.slane %v3989, 4
      %v3992 = vshll.u32 %v3800, 16
      %v3994 = vrot.slane %v3992, 5
      %v3995 = vsel %vm289, %v3990, %v3994
      %v3997 = vshrl.u32 %v3801, 16
      %v3999 = vrot.slane %v3997, 4
      %v4000 = vshll.u32 %v3801, 16
      %v4002 = vrot.slane %v4000, 5
      %v4003 = vor.u32 %v3999, %v4002
      %v4004 = vrot.slane %v4003, 4
      %v4006 = vshll.u32 %v3802, 16
      %v4008 = vrot.slane %v4006, 5
      %v4009 = vsel %vm289, %v4004, %v4008
      %v4010 = vshrl.u32 %v3802, 16
      %v4012 = vrot.slane %v4010, 4
      %v4013 = vor.u32 %v4012, %v4008
      %v4014 = vrot.slane %v4013, 4
      %v4016 = vshll.u32 %v3803, 16
      %v4018 = vrot.slane %v4016, 5
      %v4019 = vsel %vm289, %v4014, %v4018
      %v4021 = vshrl.u32 %v3804, 16
      %v4023 = vrot.slane %v4021, 4
      %v4024 = vshll.u32 %v3804, 16
      %v4026 = vrot.slane %v4024, 5
      %v4027 = vor.u32 %v4023, %v4026
      %v4028 = vrot.slane %v4027, 4
      %v4030 = vshll.u32 %v3805, 16
      %v4032 = vrot.slane %v4030, 5
      %v4033 = vsel %vm289, %v4028, %v4032
      %v4034 = vshrl.u32 %v3805, 16
      %v4036 = vrot.slane %v4034, 4
      %v4037 = vor.u32 %v4036, %v4032
      %v4038 = vrot.slane %v4037, 4
      %v4040 = vshll.u32 %v3806, 16
      %v4042 = vrot.slane %v4040, 5
      %v4043 = vsel %vm289, %v4038, %v4042
      %v4045 = vshrl.u32 %v3807, 16
      %v4047 = vrot.slane %v4045, 4
      %v4048 = vshll.u32 %v3807, 16
      %v4050 = vrot.slane %v4048, 5
      %v4051 = vor.u32 %v4047, %v4050
      %v4052 = vrot.slane %v4051, 4
      %v4054 = vshll.u32 %v3808, 16
      %v4056 = vrot.slane %v4054, 5
      %v4057 = vsel %vm289, %v4052, %v4056
      %v4058 = vshrl.u32 %v3808, 16
      %v4060 = vrot.slane %v4058, 4
      %v4061 = vor.u32 %v4060, %v4056
      %v4062 = vrot.slane %v4061, 4
      %v4064 = vshll.u32 %v3809, 16
      %v4066 = vrot.slane %v4064, 5
      %v4067 = vsel %vm289, %v4062, %v4066
      %v4069 = vshrl.u32 %v3810, 16
      %v4071 = vrot.slane %v4069, 4
      %v4072 = vshll.u32 %v3810, 16
      %v4074 = vrot.slane %v4072, 5
      %v4075 = vor.u32 %v4071, %v4074
      %v4076 = vrot.slane %v4075, 4
      %v4078 = vshll.u32 %v3811, 16
      %v4080 = vrot.slane %v4078, 5
      %v4081 = vsel %vm289, %v4076, %v4080
      %v4082 = vshrl.u32 %v3811, 16
      %v4084 = vrot.slane %v4082, 4
      %v4085 = vor.u32 %v4084, %v4080
      %v4086 = vrot.slane %v4085, 4
      %v4088 = vshll.u32 %v3812, 16
      %v4090 = vrot.slane %v4088, 5
      %v4091 = vsel %vm289, %v4086, %v4090
      %v4093 = vshrl.u32 %v3813, 16
      %v4095 = vrot.slane %v4093, 4
      %v4096 = vshll.u32 %v3813, 16
      %v4098 = vrot.slane %v4096, 5
      %v4099 = vor.u32 %v4095, %v4098
      %v4100 = vrot.slane %v4099, 4
      %v4102 = vshll.u32 %v3814, 16
      %v4104 = vrot.slane %v4102, 5
      %v4105 = vsel %vm289, %v4100, %v4104
      %v4106 = vshrl.u32 %v3814, 16
      %v4108 = vrot.slane %v4106, 4
      %v4109 = vor.u32 %v4108, %v4104
      %v4110 = vrot.slane %v4109, 4
      %v4112 = vshll.u32 %v3815, 16
      %v4114 = vrot.slane %v4112, 5
      %v4115 = vsel %vm289, %v4110, %v4114
      %v4117 = vshrl.u32 %v3816, 16
      %v4119 = vrot.slane %v4117, 4
      %v4120 = vshll.u32 %v3816, 16
      %v4122 = vrot.slane %v4120, 5
      %v4123 = vor.u32 %v4119, %v4122
      %v4124 = vrot.slane %v4123, 4
      %v4126 = vshll.u32 %v3817, 16
      %v4128 = vrot.slane %v4126, 5
      %v4129 = vsel %vm289, %v4124, %v4128
      %v4130 = vshrl.u32 %v3817, 16
      %v4132 = vrot.slane %v4130, 4
      %v4133 = vor.u32 %v4132, %v4128
      %v4134 = vrot.slane %v4133, 4
      %v4136 = vshll.u32 %v3818, 16
      %v4138 = vrot.slane %v4136, 5
      %v4139 = vsel %vm289, %v4134, %v4138
      %v4141 = vshrl.u32 %v3819, 16
      %v4143 = vrot.slane %v4141, 4
      %v4144 = vshll.u32 %v3819, 16
      %v4146 = vrot.slane %v4144, 5
      %v4147 = vor.u32 %v4143, %v4146
      %v4148 = vrot.slane %v4147, 4
      %v4150 = vshll.u32 %v3820, 16
      %v4152 = vrot.slane %v4150, 5
      %v4153 = vsel %vm289, %v4148, %v4152
      %v4154 = vshrl.u32 %v3820, 16
      %v4156 = vrot.slane %v4154, 4
      %v4157 = vor.u32 %v4156, %v4152
      %v4158 = vrot.slane %v4157, 4
      %v4160 = vshll.u32 %v3821, 16
      %v4162 = vrot.slane %v4160, 5
      %v4163 = vsel %vm289, %v4158, %v4162
      %v4165 = vshrl.u32 %v3822, 16
      %v4167 = vrot.slane %v4165, 4
      %v4168 = vshll.u32 %v3822, 16
      %v4170 = vrot.slane %v4168, 5
      %v4171 = vor.u32 %v4167, %v4170
      %v4172 = vrot.slane %v4171, 4
      %v4174 = vshll.u32 %v3823, 16
      %v4176 = vrot.slane %v4174, 5
      %v4177 = vsel %vm289, %v4172, %v4176
      %v4178 = vshrl.u32 %v3823, 16
      %v4180 = vrot.slane %v4178, 4
      %v4181 = vor.u32 %v4180, %v4176
      %v4182 = vrot.slane %v4181, 4
      %v4184 = vshll.u32 %v3824, 16
      %v4186 = vrot.slane %v4184, 5
      %v4187 = vsel %vm289, %v4182, %v4186
      %v4189 = vshrl.u32 %v3825, 16
      %v4191 = vrot.slane %v4189, 4
      %v4192 = vshll.u32 %v3825, 16
      %v4194 = vrot.slane %v4192, 5
      %v4195 = vor.u32 %v4191, %v4194
      %v4196 = vrot.slane %v4195, 4
      %v4198 = vshll.u32 %v3826, 16
      %v4200 = vrot.slane %v4198, 5
      %v4201 = vsel %vm289, %v4196, %v4200
      %v4202 = vshrl.u32 %v3826, 16
      %v4204 = vrot.slane %v4202, 4
      %v4205 = vor.u32 %v4204, %v4200
      %v4206 = vrot.slane %v4205, 4
      %v4208 = vshll.u32 %v3827, 16
      %v4210 = vrot.slane %v4208, 5
      %v4211 = vsel %vm289, %v4206, %v4210
      %s4212 = scalar_lea.vmem %s210, 448
      %v4213 = vld [vmem:[%s4212] sm:$0xf]
      %v4214 = vld [vmem:[%s4212 + $0x4] sm:$0xf]
      %v4215 = vld [vmem:[%s4212 + $0x8] sm:$0xf]
      %v4216 = vld [vmem:[%s4212 + $0xc] sm:$0xf]
      %v4217 = vld [vmem:[%s4212 + $0x10] sm:$0xf]
      %v4218 = vld [vmem:[%s4212 + $0x14] sm:$0xf]
      %v4219 = vld [vmem:[%s4212 + $0x18] sm:$0xf]
      %v4220 = vld [vmem:[%s4212 + $0x1c] sm:$0xf]
      %v4221 = vld [vmem:[%s4212 + $0x20] sm:$0xf]
      %v4222 = vld [vmem:[%s4212 + $0x24] sm:$0xf]
      %v4223 = vld [vmem:[%s4212 + $0x28] sm:$0xf]
      %v4224 = vld [vmem:[%s4212 + $0x2c] sm:$0xf]
      %v4225 = vld [vmem:[%s4212 + $0x30] sm:$0xf]
      %v4226 = vld [vmem:[%s4212 + $0x34] sm:$0xf]
      %v4227 = vld [vmem:[%s4212 + $0x38] sm:$0xf]
      %v4228 = vld [vmem:[%s4212 + $0x3c] sm:$0xf]
      %v4229 = vunpack.c.l.b16 %v3841
      %v4230 = vunpack.c.l.b16 %v3851
      %v4231 = vunpack.c.l.b16 %v3865
      %v4232 = vunpack.c.l.b16 %v3875
      %v4233 = vunpack.c.l.b16 %v3889
      %v4234 = vunpack.c.l.b16 %v3899
      %v4235 = vunpack.c.l.b16 %v3913
      %v4236 = vunpack.c.l.b16 %v3923
      %v4237 = vunpack.c.l.b16 %v3937
      %v4238 = vunpack.c.l.b16 %v3947
      %v4239 = vunpack.c.l.b16 %v3961
      %v4240 = vunpack.c.l.b16 %v3971
      %v4241 = vunpack.c.l.b16 %v3985
      %v4242 = vunpack.c.l.b16 %v3995
      %v4243 = vunpack.c.l.b16 %v4009
      %v4244 = vunpack.c.l.b16 %v4019
      %v4245 = vunpack.c.l.b16 %v4033
      %v4246 = vunpack.c.l.b16 %v4043
      %v4247 = vunpack.c.l.b16 %v4057
      %v4248 = vunpack.c.l.b16 %v4067
      %v4249 = vunpack.c.l.b16 %v4081
      %v4250 = vunpack.c.l.b16 %v4091
      %v4251 = vunpack.c.l.b16 %v4105
      %v4252 = vunpack.c.l.b16 %v4115
      %v4253 = vunpack.c.l.b16 %v4129
      %v4254 = vunpack.c.l.b16 %v4139
      %v4255 = vunpack.c.l.b16 %v4153
      %v4256 = vunpack.c.l.b16 %v4163
      %v4257 = vunpack.c.l.b16 %v4177
      %v4258 = vunpack.c.l.b16 %v4187
      %v4259 = vunpack.c.l.b16 %v4201
      %v4260 = vunpack.c.l.b16 %v4211
      %v4261 = vpack.c.b16 %v4230, %v4229
      %v4262 = vpack.c.b16 %v4232, %v4231
      %v4263 = vpack.c.b16 %v4234, %v4233
      %v4264 = vpack.c.b16 %v4236, %v4235
      %v4265 = vpack.c.b16 %v4238, %v4237
      %v4266 = vpack.c.b16 %v4240, %v4239
      %v4267 = vpack.c.b16 %v4242, %v4241
      %v4268 = vpack.c.b16 %v4244, %v4243
      %v4269 = vpack.c.b16 %v4246, %v4245
      %v4270 = vpack.c.b16 %v4248, %v4247
      %v4271 = vpack.c.b16 %v4250, %v4249
      %v4272 = vpack.c.b16 %v4252, %v4251
      %v4273 = vpack.c.b16 %v4254, %v4253
      %v4274 = vpack.c.b16 %v4256, %v4255
      %v4275 = vpack.c.b16 %v4258, %v4257
      %v4276 = vpack.c.b16 %v4260, %v4259
      %v4309 = vunpack.c.l.b16 %v4213
      %v4310 = vunpack.c.l.b16 %v4214
      %v4311 = vunpack.c.l.b16 %v4215
      %v4312 = vunpack.c.l.b16 %v4216
      %v4313 = vunpack.c.l.b16 %v4217
      %v4314 = vunpack.c.l.b16 %v4218
      %v4315 = vunpack.c.l.b16 %v4219
      %v4316 = vunpack.c.l.b16 %v4220
      %v4317 = vunpack.c.l.b16 %v4221
      %v4318 = vunpack.c.l.b16 %v4222
      %v4319 = vunpack.c.l.b16 %v4223
      %v4320 = vunpack.c.l.b16 %v4224
      %v4321 = vunpack.c.l.b16 %v4225
      %v4322 = vunpack.c.l.b16 %v4226
      %v4323 = vunpack.c.l.b16 %v4227
      %v4324 = vunpack.c.l.b16 %v4228
      %v4325 = vpack.c.b16 %v4310, %v4309
      %v4326 = vpack.c.b16 %v4312, %v4311
      %v4327 = vpack.c.b16 %v4314, %v4313
      %v4328 = vpack.c.b16 %v4316, %v4315
      %v4329 = vpack.c.b16 %v4318, %v4317
      %v4330 = vpack.c.b16 %v4320, %v4319
      %v4331 = vpack.c.b16 %v4322, %v4321
      %v4332 = vpack.c.b16 %v4324, %v4323
      %4341 = vmatprep.subr.bf16.mxu0 0
      %4342 = vmatpush1.bf16.msra.mxu0 %v4325
      %4343 = vmatprep.subr.bf16.mxu0 0
      %4344 = vmatpush1.bf16.msra.mxu0 %v4326
      %4345 = vmatprep.subr.bf16.mxu0 0
      %4346 = vmatpush1.bf16.msra.mxu0 %v4327
      %4347 = vmatprep.subr.bf16.mxu0 0
      %4348 = vmatpush1.bf16.msra.mxu0 %v4328
      %4349 = vmatprep.subr.bf16.mxu0 0
      %4350 = vmatpush1.bf16.msra.mxu0 %v4329
      %4351 = vmatprep.subr.bf16.mxu0 0
      %4352 = vmatpush1.bf16.msra.mxu0 %v4330
      %4353 = vmatprep.subr.bf16.mxu0 0
      %4354 = vmatpush1.bf16.msra.mxu0 %v4331
      %4355 = vmatprep.subr.bf16.mxu0 0
      %4356 = vmatpush1.bf16.msra.mxu0 %v4332
      %4357 = vmatprep.subr.bf16.mxu0 0
      %4358 = vmatpush1.bf16.msra.mxu0 0
      %4359 = vmatprep.subr.bf16.mxu0 0
      %4360 = vmatpush1.bf16.msra.mxu0 0
      %4361 = vmatprep.subr.bf16.mxu0 0
      %4362 = vmatpush1.bf16.msra.mxu0 0
      %4363 = vmatprep.subr.bf16.mxu0 0
      %4364 = vmatpush1.bf16.msra.mxu0 0
      %4365 = vmatprep.subr.bf16.mxu0 0
      %4366 = vmatpush1.bf16.msra.mxu0 0
      %4367 = vmatprep.subr.bf16.mxu0 0
      %4368 = vmatpush1.bf16.msra.mxu0 0
      %4369 = vmatprep.subr.bf16.mxu0 0
      %4370 = vmatpush1.bf16.msra.mxu0 0
      %4371 = vmatprep.subr.bf16.mxu0 0
      %4372 = vmatpush1.bf16.msra.mxu0 0
      %4373 = vmatprep.mubr.bf16.mxu0 0
      %4374 = vmatmul.mubr.bf16.gmra.mrb[0].mxu0 %v4261
      %v4375 = vpop.f32.mrb[0].mxu0
      %v4376 = vadd.f32 0.0, %v4375
      %v4377 = vpop.f32.mrb[0].mxu0
      %v4378 = vpop.f32.mrb[0].mxu0
      %v4379 = vadd.f32 0.0, %v4378
      %v4380 = vpop.f32.mrb[0].mxu0
      %4381 = vmatprep.mubr.bf16.mxu0 0
      %4382 = vmatmul.mubr.bf16.gmra.mrb[0].mxu0 %v4262
      %v4383 = vpop.f32.mrb[0].mxu0
      %v4384 = vadd.f32 0.0, %v4383
      %v4385 = vpop.f32.mrb[0].mxu0
      %v4386 = vpop.f32.mrb[0].mxu0
      %v4387 = vadd.f32 0.0, %v4386
      %v4388 = vpop.f32.mrb[0].mxu0
      %4389 = vmatprep.mubr.bf16.mxu0 0
      %4390 = vmatmul.mubr.bf16.gmra.mrb[0].mxu0 %v4263
      %v4391 = vpop.f32.mrb[0].mxu0
      %v4392 = vadd.f32 0.0, %v4391
      %v4393 = vpop.f32.mrb[0].mxu0
      %v4394 = vpop.f32.mrb[0].mxu0
      %v4395 = vadd.f32 0.0, %v4394
      %v4396 = vpop.f32.mrb[0].mxu0
      %4397 = vmatprep.mubr.bf16.mxu0 0
      %4398 = vmatmul.mubr.bf16.gmra.mrb[0].mxu0 %v4264
      %v4399 = vpop.f32.mrb[0].mxu0
      %v4400 = vadd.f32 0.0, %v4399
      %v4401 = vpop.f32.mrb[0].mxu0
      %v4402 = vpop.f32.mrb[0].mxu0
      %v4403 = vadd.f32 0.0, %v4402
      %v4404 = vpop.f32.mrb[0].mxu0
      %4405 = vmatprep.mubr.bf16.mxu0 0
      %4406 = vmatmul.mubr.bf16.gmra.mrb[0].mxu0 %v4265
      %v4407 = vpop.f32.mrb[0].mxu0
      %v4408 = vadd.f32 0.0, %v4407
      %v4409 = vpop.f32.mrb[0].mxu0
      %v4410 = vpop.f32.mrb[0].mxu0
      %v4411 = vadd.f32 0.0, %v4410
      %v4412 = vpop.f32.mrb[0].mxu0
      %4413 = vmatprep.mubr.bf16.mxu0 0
      %4414 = vmatmul.mubr.bf16.gmra.mrb[0].mxu0 %v4266
      %v4415 = vpop.f32.mrb[0].mxu0
      %v4416 = vadd.f32 0.0, %v4415
      %v4417 = vpop.f32.mrb[0].mxu0
      %v4418 = vpop.f32.mrb[0].mxu0
      %v4419 = vadd.f32 0.0, %v4418
      %v4420 = vpop.f32.mrb[0].mxu0
      %4421 = vmatprep.mubr.bf16.mxu0 0
      %4422 = vmatmul.mubr.bf16.gmra.mrb[0].mxu0 %v4267
      %v4423 = vpop.f32.mrb[0].mxu0
      %v4424 = vadd.f32 0.0, %v4423
      %v4425 = vpop.f32.mrb[0].mxu0
      %v4426 = vpop.f32.mrb[0].mxu0
      %v4427 = vadd.f32 0.0, %v4426
      %v4428 = vpop.f32.mrb[0].mxu0
      %4429 = vmatprep.mubr.bf16.mxu0 0
      %4430 = vmatmul.mubr.bf16.gmra.mrb[0].mxu0 %v4268
      %v4431 = vpop.f32.mrb[0].mxu0
      %v4432 = vadd.f32 0.0, %v4431
      %v4433 = vpop.f32.mrb[0].mxu0
      %v4434 = vpop.f32.mrb[0].mxu0
      %v4435 = vadd.f32 0.0, %v4434
      %v4436 = vpop.f32.mrb[0].mxu0
      %4437 = vmatprep.mubr.bf16.mxu0 0
      %4438 = vmatmul.mubr.bf16.gmra.mrb[0].mxu0 %v4269
      %v4439 = vpop.f32.mrb[0].mxu0
      %v4440 = vadd.f32 0.0, %v4439
      %v4441 = vpop.f32.mrb[0].mxu0
      %v4442 = vpop.f32.mrb[0].mxu0
      %v4443 = vadd.f32 0.0, %v4442
      %v4444 = vpop.f32.mrb[0].mxu0
      %4445 = vmatprep.mubr.bf16.mxu0 0
      %4446 = vmatmul.mubr.bf16.gmra.mrb[0].mxu0 %v4270
      %v4447 = vpop.f32.mrb[0].mxu0
      %v4448 = vadd.f32 0.0, %v4447
      %v4449 = vpop.f32.mrb[0].mxu0
      %v4450 = vpop.f32.mrb[0].mxu0
      %v4451 = vadd.f32 0.0, %v4450
      %v4452 = vpop.f32.mrb[0].mxu0
      %4453 = vmatprep.mubr.bf16.mxu0 0
      %4454 = vmatmul.mubr.bf16.gmra.mrb[0].mxu0 %v4271
      %v4455 = vpop.f32.mrb[0].mxu0
      %v4456 = vadd.f32 0.0, %v4455
      %v4457 = vpop.f32.mrb[0].mxu0
      %v4458 = vpop.f32.mrb[0].mxu0
      %v4459 = vadd.f32 0.0, %v4458
      %v4460 = vpop.f32.mrb[0].mxu0
      %4461 = vmatprep.mubr.bf16.mxu0 0
      %4462 = vmatmul.mubr.bf16.gmra.mrb[0].mxu0 %v4272
      %v4463 = vpop.f32.mrb[0].mxu0
      %v4464 = vadd.f32 0.0, %v4463
      %v4465 = vpop.f32.mrb[0].mxu0
      %v4466 = vpop.f32.mrb[0].mxu0
      %v4467 = vadd.f32 0.0, %v4466
      %v4468 = vpop.f32.mrb[0].mxu0
      %4469 = vmatprep.mubr.bf16.mxu0 0
      %4470 = vmatmul.mubr.bf16.gmra.mrb[0].mxu0 %v4273
      %v4471 = vpop.f32.mrb[0].mxu0
      %v4472 = vadd.f32 0.0, %v4471
      %v4473 = vpop.f32.mrb[0].mxu0
      %v4474 = vpop.f32.mrb[0].mxu0
      %v4475 = vadd.f32 0.0, %v4474
      %v4476 = vpop.f32.mrb[0].mxu0
      %4477 = vmatprep.mubr.bf16.mxu0 0
      %4478 = vmatmul.mubr.bf16.gmra.mrb[0].mxu0 %v4274
      %v4479 = vpop.f32.mrb[0].mxu0
      %v4480 = vadd.f32 0.0, %v4479
      %v4481 = vpop.f32.mrb[0].mxu0
      %v4482 = vpop.f32.mrb[0].mxu0
      %v4483 = vadd.f32 0.0, %v4482
      %v4484 = vpop.f32.mrb[0].mxu0
      %4485 = vmatprep.mubr.bf16.mxu0 0
      %4486 = vmatmul.mubr.bf16.gmra.mrb[0].mxu0 %v4275
      %v4487 = vpop.f32.mrb[0].mxu0
      %v4488 = vadd.f32 0.0, %v4487
      %v4489 = vpop.f32.mrb[0].mxu0
      %v4490 = vpop.f32.mrb[0].mxu0
      %v4491 = vadd.f32 0.0, %v4490
      %v4492 = vpop.f32.mrb[0].mxu0
      %4493 = vmatprep.mubr.bf16.mxu0 0
      %4494 = vmatmul.mubr.bf16.gmra.mrb[0].mxu0 %v4276
      %v4495 = vpop.f32.mrb[0].mxu0
      %v4496 = vadd.f32 0.0, %v4495
      %v4497 = vpop.f32.mrb[0].mxu0
      %v4498 = vpop.f32.mrb[0].mxu0
      %v4499 = vadd.f32 0.0, %v4498
      %v4500 = vpop.f32.mrb[0].mxu0
      %4501 = vdwg.mxu0
      %v4502 = vadd.f32 %v3748, %v4376
      %v4503 = vadd.f32 %v3749, %v4379
      %v4504 = vadd.f32 %v3750, %v4384
      %v4505 = vadd.f32 %v3751, %v4387
      %v4506 = vadd.f32 %v3752, %v4392
      %v4507 = vadd.f32 %v3753, %v4395
      %v4508 = vadd.f32 %v3754, %v4400
      %v4509 = vadd.f32 %v3755, %v4403
      %v4510 = vadd.f32 %v3756, %v4408
      %v4511 = vadd.f32 %v3757, %v4411
      %v4512 = vadd.f32 %v3758, %v4416
      %v4513 = vadd.f32 %v3759, %v4419
      %v4514 = vadd.f32 %v3760, %v4424
      %v4515 = vadd.f32 %v3761, %v4427
      %v4516 = vadd.f32 %v3762, %v4432
      %v4517 = vadd.f32 %v3763, %v4435
      %v4518 = vadd.f32 %v3764, %v4440
      %v4519 = vadd.f32 %v3765, %v4443
      %v4520 = vadd.f32 %v3766, %v4448
      %v4521 = vadd.f32 %v3767, %v4451
      %v4522 = vadd.f32 %v3768, %v4456
      %v4523 = vadd.f32 %v3769, %v4459
      %v4524 = vadd.f32 %v3770, %v4464
      %v4525 = vadd.f32 %v3771, %v4467
      %v4526 = vadd.f32 %v3772, %v4472
      %v4527 = vadd.f32 %v3773, %v4475
      %v4528 = vadd.f32 %v3774, %v4480
      %v4529 = vadd.f32 %v3775, %v4483
      %v4530 = vadd.f32 %v3776, %v4488
      %v4531 = vadd.f32 %v3777, %v4491
      %v4532 = vadd.f32 %v3778, %v4496
      %v4533 = vadd.f32 %v3779, %v4499
      %v4534 = vld [vmem:[%s3393] sm:$0xe]
      %v4535 = vld [vmem:[%s3393 + $0xc] sm:$0xe]
      %v4536 = vld [vmem:[%s3393 + $0x18] sm:$0xe]
      %v4537 = vld [vmem:[%s3393 + $0x24] sm:$0xe]
      %v4538 = vld [vmem:[%s3393 + $0x30] sm:$0xe]
      %v4539 = vld [vmem:[%s3393 + $0x3c] sm:$0xe]
      %v4540 = vld [vmem:[%s3393 + $0x48] sm:$0xe]
      %v4541 = vld [vmem:[%s3393 + $0x54] sm:$0xe]
      %v4542 = vld [vmem:[%s3393 + $0x60] sm:$0xe]
      %v4543 = vld [vmem:[%s3393 + $0x6c] sm:$0xe]
      %v4544 = vld [vmem:[%s3393 + $0x78] sm:$0xe]
      %v4545 = vld [vmem:[%s3393 + $0x84] sm:$0xe]
      %v4546 = vld [vmem:[%s3393 + $0x90] sm:$0xe]
      %v4547 = vld [vmem:[%s3393 + $0x9c] sm:$0xe]
      %v4548 = vld [vmem:[%s3393 + $0xa8] sm:$0xe]
      %v4549 = vld [vmem:[%s3393 + $0xb4] sm:$0xe]
      %v4598 = vrot.slane %v4534, 5
      %v4599 = vrot.slane %v4598, 4
      %v4600 = vrot.slane %v3781, 5
      %v4601 = vsel %vm1319, %v4599, %v4600
      %v4602 = vrot.slane %v4600, 4
      %v4603 = vrot.slane %v3782, 5
      %v4604 = vsel %vm1319, %v4602, %v4603
      %v4605 = vrot.slane %v4535, 5
      %v4606 = vrot.slane %v4605, 4
      %v4607 = vrot.slane %v3784, 5
      %v4608 = vsel %vm1319, %v4606, %v4607
      %v4609 = vrot.slane %v4607, 4
      %v4610 = vrot.slane %v3785, 5
      %v4611 = vsel %vm1319, %v4609, %v4610
      %v4612 = vrot.slane %v4536, 5
      %v4613 = vrot.slane %v4612, 4
      %v4614 = vrot.slane %v3787, 5
      %v4615 = vsel %vm1319, %v4613, %v4614
      %v4616 = vrot.slane %v4614, 4
      %v4617 = vrot.slane %v3788, 5
      %v4618 = vsel %vm1319, %v4616, %v4617
      %v4619 = vrot.slane %v4537, 5
      %v4620 = vrot.slane %v4619, 4
      %v4621 = vrot.slane %v3790, 5
      %v4622 = vsel %vm1319, %v4620, %v4621
      %v4623 = vrot.slane %v4621, 4
      %v4624 = vrot.slane %v3791, 5
      %v4625 = vsel %vm1319, %v4623, %v4624
      %v4626 = vrot.slane %v4538, 5
      %v4627 = vrot.slane %v4626, 4
      %v4628 = vrot.slane %v3793, 5
      %v4629 = vsel %vm1319, %v4627, %v4628
      %v4630 = vrot.slane %v4628, 4
      %v4631 = vrot.slane %v3794, 5
      %v4632 = vsel %vm1319, %v4630, %v4631
      %v4633 = vrot.slane %v4539, 5
      %v4634 = vrot.slane %v4633, 4
      %v4635 = vrot.slane %v3796, 5
      %v4636 = vsel %vm1319, %v4634, %v4635
      %v4637 = vrot.slane %v4635, 4
      %v4638 = vrot.slane %v3797, 5
      %v4639 = vsel %vm1319, %v4637, %v4638
      %v4640 = vrot.slane %v4540, 5
      %v4641 = vrot.slane %v4640, 4
      %v4642 = vrot.slane %v3799, 5
      %v4643 = vsel %vm1319, %v4641, %v4642
      %v4644 = vrot.slane %v4642, 4
      %v4645 = vrot.slane %v3800, 5
      %v4646 = vsel %vm1319, %v4644, %v4645
      %v4647 = vrot.slane %v4541, 5
      %v4648 = vrot.slane %v4647, 4
      %v4649 = vrot.slane %v3802, 5
      %v4650 = vsel %vm1319, %v4648, %v4649
      %v4651 = vrot.slane %v4649, 4
      %v4652 = vrot.slane %v3803, 5
      %v4653 = vsel %vm1319, %v4651, %v4652
      %v4654 = vrot.slane %v4542, 5
      %v4655 = vrot.slane %v4654, 4
      %v4656 = vrot.slane %v3805, 5
      %v4657 = vsel %vm1319, %v4655, %v4656
      %v4658 = vrot.slane %v4656, 4
      %v4659 = vrot.slane %v3806, 5
      %v4660 = vsel %vm1319, %v4658, %v4659
      %v4661 = vrot.slane %v4543, 5
      %v4662 = vrot.slane %v4661, 4
      %v4663 = vrot.slane %v3808, 5
      %v4664 = vsel %vm1319, %v4662, %v4663
      %v4665 = vrot.slane %v4663, 4
      %v4666 = vrot.slane %v3809, 5
      %v4667 = vsel %vm1319, %v4665, %v4666
      %v4668 = vrot.slane %v4544, 5
      %v4669 = vrot.slane %v4668, 4
      %v4670 = vrot.slane %v3811, 5
      %v4671 = vsel %vm1319, %v4669, %v4670
      %v4672 = vrot.slane %v4670, 4
      %v4673 = vrot.slane %v3812, 5
      %v4674 = vsel %vm1319, %v4672, %v4673
      %v4675 = vrot.slane %v4545, 5
      %v4676 = vrot.slane %v4675, 4
      %v4677 = vrot.slane %v3814, 5
      %v4678 = vsel %vm1319, %v4676, %v4677
      %v4679 = vrot.slane %v4677, 4
      %v4680 = vrot.slane %v3815, 5
      %v4681 = vsel %vm1319, %v4679, %v4680
      %v4682 = vrot.slane %v4546, 5
      %v4683 = vrot.slane %v4682, 4
      %v4684 = vrot.slane %v3817, 5
      %v4685 = vsel %vm1319, %v4683, %v4684
      %v4686 = vrot.slane %v4684, 4
      %v4687 = vrot.slane %v3818, 5
      %v4688 = vsel %vm1319, %v4686, %v4687
      %v4689 = vrot.slane %v4547, 5
      %v4690 = vrot.slane %v4689, 4
      %v4691 = vrot.slane %v3820, 5
      %v4692 = vsel %vm1319, %v4690, %v4691
      %v4693 = vrot.slane %v4691, 4
      %v4694 = vrot.slane %v3821, 5
      %v4695 = vsel %vm1319, %v4693, %v4694
      %v4696 = vrot.slane %v4548, 5
      %v4697 = vrot.slane %v4696, 4
      %v4698 = vrot.slane %v3823, 5
      %v4699 = vsel %vm1319, %v4697, %v4698
      %v4700 = vrot.slane %v4698, 4
      %v4701 = vrot.slane %v3824, 5
      %v4702 = vsel %vm1319, %v4700, %v4701
      %v4703 = vrot.slane %v4549, 5
      %v4704 = vrot.slane %v4703, 4
      %v4705 = vrot.slane %v3826, 5
      %v4706 = vsel %vm1319, %v4704, %v4705
      %v4707 = vrot.slane %v4705, 4
      %v4708 = vrot.slane %v3827, 5
      %v4709 = vsel %vm1319, %v4707, %v4708
      %s4710 = scalar_lea.vmem %s210, 512
      %v4711 = vld [vmem:[%s4710] sm:$0xf]
      %v4712 = vld [vmem:[%s4710 + $0x4] sm:$0xf]
      %v4713 = vld [vmem:[%s4710 + $0x8] sm:$0xf]
      %v4714 = vld [vmem:[%s4710 + $0xc] sm:$0xf]
      %v4715 = vld [vmem:[%s4710 + $0x10] sm:$0xf]
      %v4716 = vld [vmem:[%s4710 + $0x14] sm:$0xf]
      %v4717 = vld [vmem:[%s4710 + $0x18] sm:$0xf]
      %v4718 = vld [vmem:[%s4710 + $0x1c] sm:$0xf]
      %v4719 = vld [vmem:[%s4710 + $0x20] sm:$0xf]
      %v4720 = vld [vmem:[%s4710 + $0x24] sm:$0xf]
      %v4721 = vld [vmem:[%s4710 + $0x28] sm:$0xf]
      %v4722 = vld [vmem:[%s4710 + $0x2c] sm:$0xf]
      %v4723 = vld [vmem:[%s4710 + $0x30] sm:$0xf]
      %v4724 = vld [vmem:[%s4710 + $0x34] sm:$0xf]
      %v4725 = vld [vmem:[%s4710 + $0x38] sm:$0xf]
      %v4726 = vld [vmem:[%s4710 + $0x3c] sm:$0xf]
      %v4727 = vunpack.c.l.b16 %v4601
      %v4728 = vunpack.c.l.b16 %v4604
      %v4729 = vunpack.c.l.b16 %v4608
      %v4730 = vunpack.c.l.b16 %v4611
      %v4731 = vunpack.c.l.b16 %v4615
      %v4732 = vunpack.c.l.b16 %v4618
      %v4733 = vunpack.c.l.b16 %v4622
      %v4734 = vunpack.c.l.b16 %v4625
      %v4735 = vunpack.c.l.b16 %v4629
      %v4736 = vunpack.c.l.b16 %v4632
      %v4737 = vunpack.c.l.b16 %v4636
      %v4738 = vunpack.c.l.b16 %v4639
      %v4739 = vunpack.c.l.b16 %v4643
      %v4740 = vunpack.c.l.b16 %v4646
      %v4741 = vunpack.c.l.b16 %v4650
      %v4742 = vunpack.c.l.b16 %v4653
      %v4743 = vunpack.c.l.b16 %v4657
      %v4744 = vunpack.c.l.b16 %v4660
      %v4745 = vunpack.c.l.b16 %v4664
      %v4746 = vunpack.c.l.b16 %v4667
      %v4747 = vunpack.c.l.b16 %v4671
      %v4748 = vunpack.c.l.b16 %v4674
      %v4749 = vunpack.c.l.b16 %v4678
      %v4750 = vunpack.c.l.b16 %v4681
      %v4751 = vunpack.c.l.b16 %v4685
      %v4752 = vunpack.c.l.b16 %v4688
      %v4753 = vunpack.c.l.b16 %v4692
      %v4754 = vunpack.c.l.b16 %v4695
      %v4755 = vunpack.c.l.b16 %v4699
      %v4756 = vunpack.c.l.b16 %v4702
      %v4757 = vunpack.c.l.b16 %v4706
      %v4758 = vunpack.c.l.b16 %v4709
      %v4759 = vpack.c.b16 %v4728, %v4727
      %v4760 = vpack.c.b16 %v4730, %v4729
      %v4761 = vpack.c.b16 %v4732, %v4731
      %v4762 = vpack.c.b16 %v4734, %v4733
      %v4763 = vpack.c.b16 %v4736, %v4735
      %v4764 = vpack.c.b16 %v4738, %v4737
      %v4765 = vpack.c.b16 %v4740, %v4739
      %v4766 = vpack.c.b16 %v4742, %v4741
      %v4767 = vpack.c.b16 %v4744, %v4743
      %v4768 = vpack.c.b16 %v4746, %v4745
      %v4769 = vpack.c.b16 %v4748, %v4747
      %v4770 = vpack.c.b16 %v4750, %v4749
      %v4771 = vpack.c.b16 %v4752, %v4751
      %v4772 = vpack.c.b16 %v4754, %v4753
      %v4773 = vpack.c.b16 %v4756, %v4755
      %v4774 = vpack.c.b16 %v4758, %v4757
      %v4807 = vunpack.c.l.b16 %v4711
      %v4808 = vunpack.c.l.b16 %v4712
      %v4809 = vunpack.c.l.b16 %v4713
      %v4810 = vunpack.c.l.b16 %v4714
      %v4811 = vunpack.c.l.b16 %v4715
      %v4812 = vunpack.c.l.b16 %v4716
      %v4813 = vunpack.c.l.b16 %v4717
      %v4814 = vunpack.c.l.b16 %v4718
      %v4815 = vunpack.c.l.b16 %v4719
      %v4816 = vunpack.c.l.b16 %v4720
      %v4817 = vunpack.c.l.b16 %v4721
      %v4818 = vunpack.c.l.b16 %v4722
      %v4819 = vunpack.c.l.b16 %v4723
      %v4820 = vunpack.c.l.b16 %v4724
      %v4821 = vunpack.c.l.b16 %v4725
      %v4822 = vunpack.c.l.b16 %v4726
      %v4823 = vpack.c.b16 %v4808, %v4807
      %v4824 = vpack.c.b16 %v4810, %v4809
      %v4825 = vpack.c.b16 %v4812, %v4811
      %v4826 = vpack.c.b16 %v4814, %v4813
      %v4827 = vpack.c.b16 %v4816, %v4815
      %v4828 = vpack.c.b16 %v4818, %v4817
      %v4829 = vpack.c.b16 %v4820, %v4819
      %v4830 = vpack.c.b16 %v4822, %v4821
      %4839 = vmatprep.subr.bf16.mxu0 0
      %4840 = vmatpush1.bf16.msra.mxu0 %v4823
      %4841 = vmatprep.subr.bf16.mxu0 0
      %4842 = vmatpush1.bf16.msra.mxu0 %v4824
      %4843 = vmatprep.subr.bf16.mxu0 0
      %4844 = vmatpush1.bf16.msra.mxu0 %v4825
      %4845 = vmatprep.subr.bf16.mxu0 0
      %4846 = vmatpush1.bf16.msra.mxu0 %v4826
      %4847 = vmatprep.subr.bf16.mxu0 0
      %4848 = vmatpush1.bf16.msra.mxu0 %v4827
      %4849 = vmatprep.subr.bf16.mxu0 0
      %4850 = vmatpush1.bf16.msra.mxu0 %v4828
      %4851 = vmatprep.subr.bf16.mxu0 0
      %4852 = vmatpush1.bf16.msra.mxu0 %v4829
      %4853 = vmatprep.subr.bf16.mxu0 0
      %4854 = vmatpush1.bf16.msra.mxu0 %v4830
      %4855 = vmatprep.subr.bf16.mxu0 0
      %4856 = vmatpush1.bf16.msra.mxu0 0
      %4857 = vmatprep.subr.bf16.mxu0 0
      %4858 = vmatpush1.bf16.msra.mxu0 0
      %4859 = vmatprep.subr.bf16.mxu0 0
      %4860 = vmatpush1.bf16.msra.mxu0 0
      %4861 = vmatprep.subr.bf16.mxu0 0
      %4862 = vmatpush1.bf16.msra.mxu0 0
      %4863 = vmatprep.subr.bf16.mxu0 0
      %4864 = vmatpush1.bf16.msra.mxu0 0
      %4865 = vmatprep.subr.bf16.mxu0 0
      %4866 = vmatpush1.bf16.msra.mxu0 0
      %4867 = vmatprep.subr.bf16.mxu0 0
      %4868 = vmatpush1.bf16.msra.mxu0 0
      %4869 = vmatprep.subr.bf16.mxu0 0
      %4870 = vmatpush1.bf16.msra.mxu0 0
      %4871 = vmatprep.mubr.bf16.mxu0 0
      %4872 = vmatmul.mubr.bf16.gmra.mrb[0].mxu0 %v4759
      %v4873 = vpop.f32.mrb[0].mxu0
      %v4874 = vadd.f32 0.0, %v4873
      %v4875 = vpop.f32.mrb[0].mxu0
      %v4876 = vpop.f32.mrb[0].mxu0
      %v4877 = vadd.f32 0.0, %v4876
      %v4878 = vpop.f32.mrb[0].mxu0
      %4879 = vmatprep.mubr.bf16.mxu0 0
      %4880 = vmatmul.mubr.bf16.gmra.mrb[0].mxu0 %v4760
      %v4881 = vpop.f32.mrb[0].mxu0
      %v4882 = vadd.f32 0.0, %v4881
      %v4883 = vpop.f32.mrb[0].mxu0
      %v4884 = vpop.f32.mrb[0].mxu0
      %v4885 = vadd.f32 0.0, %v4884
      %v4886 = vpop.f32.mrb[0].mxu0
      %4887 = vmatprep.mubr.bf16.mxu0 0
      %4888 = vmatmul.mubr.bf16.gmra.mrb[0].mxu0 %v4761
      %v4889 = vpop.f32.mrb[0].mxu0
      %v4890 = vadd.f32 0.0, %v4889
      %v4891 = vpop.f32.mrb[0].mxu0
      %v4892 = vpop.f32.mrb[0].mxu0
      %v4893 = vadd.f32 0.0, %v4892
      %v4894 = vpop.f32.mrb[0].mxu0
      %4895 = vmatprep.mubr.bf16.mxu0 0
      %4896 = vmatmul.mubr.bf16.gmra.mrb[0].mxu0 %v4762
      %v4897 = vpop.f32.mrb[0].mxu0
      %v4898 = vadd.f32 0.0, %v4897
      %v4899 = vpop.f32.mrb[0].mxu0
      %v4900 = vpop.f32.mrb[0].mxu0
      %v4901 = vadd.f32 0.0, %v4900
      %v4902 = vpop.f32.mrb[0].mxu0
      %4903 = vmatprep.mubr.bf16.mxu0 0
      %4904 = vmatmul.mubr.bf16.gmra.mrb[0].mxu0 %v4763
      %v4905 = vpop.f32.mrb[0].mxu0
      %v4906 = vadd.f32 0.0, %v4905
      %v4907 = vpop.f32.mrb[0].mxu0
      %v4908 = vpop.f32.mrb[0].mxu0
      %v4909 = vadd.f32 0.0, %v4908
      %v4910 = vpop.f32.mrb[0].mxu0
      %4911 = vmatprep.mubr.bf16.mxu0 0
      %4912 = vmatmul.mubr.bf16.gmra.mrb[0].mxu0 %v4764
      %v4913 = vpop.f32.mrb[0].mxu0
      %v4914 = vadd.f32 0.0, %v4913
      %v4915 = vpop.f32.mrb[0].mxu0
      %v4916 = vpop.f32.mrb[0].mxu0
      %v4917 = vadd.f32 0.0, %v4916
      %v4918 = vpop.f32.mrb[0].mxu0
      %4919 = vmatprep.mubr.bf16.mxu0 0
      %4920 = vmatmul.mubr.bf16.gmra.mrb[0].mxu0 %v4765
      %v4921 = vpop.f32.mrb[0].mxu0
      %v4922 = vadd.f32 0.0, %v4921
      %v4923 = vpop.f32.mrb[0].mxu0
      %v4924 = vpop.f32.mrb[0].mxu0
      %v4925 = vadd.f32 0.0, %v4924
      %v4926 = vpop.f32.mrb[0].mxu0
      %4927 = vmatprep.mubr.bf16.mxu0 0
      %4928 = vmatmul.mubr.bf16.gmra.mrb[0].mxu0 %v4766
      %v4929 = vpop.f32.mrb[0].mxu0
      %v4930 = vadd.f32 0.0, %v4929
      %v4931 = vpop.f32.mrb[0].mxu0
      %v4932 = vpop.f32.mrb[0].mxu0
      %v4933 = vadd.f32 0.0, %v4932
      %v4934 = vpop.f32.mrb[0].mxu0
      %4935 = vmatprep.mubr.bf16.mxu0 0
      %4936 = vmatmul.mubr.bf16.gmra.mrb[0].mxu0 %v4767
      %v4937 = vpop.f32.mrb[0].mxu0
      %v4938 = vadd.f32 0.0, %v4937
      %v4939 = vpop.f32.mrb[0].mxu0
      %v4940 = vpop.f32.mrb[0].mxu0
      %v4941 = vadd.f32 0.0, %v4940
      %v4942 = vpop.f32.mrb[0].mxu0
      %4943 = vmatprep.mubr.bf16.mxu0 0
      %4944 = vmatmul.mubr.bf16.gmra.mrb[0].mxu0 %v4768
      %v4945 = vpop.f32.mrb[0].mxu0
      %v4946 = vadd.f32 0.0, %v4945
      %v4947 = vpop.f32.mrb[0].mxu0
      %v4948 = vpop.f32.mrb[0].mxu0
      %v4949 = vadd.f32 0.0, %v4948
      %v4950 = vpop.f32.mrb[0].mxu0
      %4951 = vmatprep.mubr.bf16.mxu0 0
      %4952 = vmatmul.mubr.bf16.gmra.mrb[0].mxu0 %v4769
      %v4953 = vpop.f32.mrb[0].mxu0
      %v4954 = vadd.f32 0.0, %v4953
      %v4955 = vpop.f32.mrb[0].mxu0
      %v4956 = vpop.f32.mrb[0].mxu0
      %v4957 = vadd.f32 0.0, %v4956
      %v4958 = vpop.f32.mrb[0].mxu0
      %4959 = vmatprep.mubr.bf16.mxu0 0
      %4960 = vmatmul.mubr.bf16.gmra.mrb[0].mxu0 %v4770
      %v4961 = vpop.f32.mrb[0].mxu0
      %v4962 = vadd.f32 0.0, %v4961
      %v4963 = vpop.f32.mrb[0].mxu0
      %v4964 = vpop.f32.mrb[0].mxu0
      %v4965 = vadd.f32 0.0, %v4964
      %v4966 = vpop.f32.mrb[0].mxu0
      %4967 = vmatprep.mubr.bf16.mxu0 0
      %4968 = vmatmul.mubr.bf16.gmra.mrb[0].mxu0 %v4771
      %v4969 = vpop.f32.mrb[0].mxu0
      %v4970 = vadd.f32 0.0, %v4969
      %v4971 = vpop.f32.mrb[0].mxu0
      %v4972 = vpop.f32.mrb[0].mxu0
      %v4973 = vadd.f32 0.0, %v4972
      %v4974 = vpop.f32.mrb[0].mxu0
      %4975 = vmatprep.mubr.bf16.mxu0 0
      %4976 = vmatmul.mubr.bf16.gmra.mrb[0].mxu0 %v4772
      %v4977 = vpop.f32.mrb[0].mxu0
      %v4978 = vadd.f32 0.0, %v4977
      %v4979 = vpop.f32.mrb[0].mxu0
      %v4980 = vpop.f32.mrb[0].mxu0
      %v4981 = vadd.f32 0.0, %v4980
      %v4982 = vpop.f32.mrb[0].mxu0
      %4983 = vmatprep.mubr.bf16.mxu0 0
      %4984 = vmatmul.mubr.bf16.gmra.mrb[0].mxu0 %v4773
      %v4985 = vpop.f32.mrb[0].mxu0
      %v4986 = vadd.f32 0.0, %v4985
      %v4987 = vpop.f32.mrb[0].mxu0
      %v4988 = vpop.f32.mrb[0].mxu0
      %v4989 = vadd.f32 0.0, %v4988
      %v4990 = vpop.f32.mrb[0].mxu0
      %4991 = vmatprep.mubr.bf16.mxu0 0
      %4992 = vmatmul.mubr.bf16.gmra.mrb[0].mxu0 %v4774
      %v4993 = vpop.f32.mrb[0].mxu0
      %v4994 = vadd.f32 0.0, %v4993
      %v4995 = vpop.f32.mrb[0].mxu0
      %v4996 = vpop.f32.mrb[0].mxu0
      %v4997 = vadd.f32 0.0, %v4996
      %v4998 = vpop.f32.mrb[0].mxu0
      %4999 = vdwg.mxu0
      %v5000 = vadd.f32 %v4502, %v4874
      %v5001 = vadd.f32 %v4503, %v4877
      %v5002 = vadd.f32 %v4504, %v4882
      %v5003 = vadd.f32 %v4505, %v4885
      %v5004 = vadd.f32 %v4506, %v4890
      %v5005 = vadd.f32 %v4507, %v4893
      %v5006 = vadd.f32 %v4508, %v4898
      %v5007 = vadd.f32 %v4509, %v4901
      %v5008 = vadd.f32 %v4510, %v4906
      %v5009 = vadd.f32 %v4511, %v4909
      %v5010 = vadd.f32 %v4512, %v4914
      %v5011 = vadd.f32 %v4513, %v4917
      %v5012 = vadd.f32 %v4514, %v4922
      %v5013 = vadd.f32 %v4515, %v4925
      %v5014 = vadd.f32 %v4516, %v4930
      %v5015 = vadd.f32 %v4517, %v4933
      %v5016 = vadd.f32 %v4518, %v4938
      %v5017 = vadd.f32 %v4519, %v4941
      %v5018 = vadd.f32 %v4520, %v4946
      %v5019 = vadd.f32 %v4521, %v4949
      %v5020 = vadd.f32 %v4522, %v4954
      %v5021 = vadd.f32 %v4523, %v4957
      %v5022 = vadd.f32 %v4524, %v4962
      %v5023 = vadd.f32 %v4525, %v4965
      %v5024 = vadd.f32 %v4526, %v4970
      %v5025 = vadd.f32 %v4527, %v4973
      %v5026 = vadd.f32 %v4528, %v4978
      %v5027 = vadd.f32 %v4529, %v4981
      %v5028 = vadd.f32 %v4530, %v4986
      %v5029 = vadd.f32 %v4531, %v4989
      %v5030 = vadd.f32 %v4532, %v4994
      %v5031 = vadd.f32 %v4533, %v4997
      %v5032 = vld [vmem:[%s213] sm:$0x1]
      %v5034 = vlaneseq
      %v5035 = vshrl.u32 %v5034, 7
      %v5036 = vsub.s32 0, %v5035
      %v5037 = vrot.slane %v5032, %v5036
      %v5039 = vadd.f32 %v5000, %v5037
      %v5040 = vadd.f32 %v5001, %v5037
      %v5041 = vadd.f32 %v5002, %v5037
      %v5042 = vadd.f32 %v5003, %v5037
      %v5043 = vadd.f32 %v5004, %v5037
      %v5044 = vadd.f32 %v5005, %v5037
      %v5045 = vadd.f32 %v5006, %v5037
      %v5046 = vadd.f32 %v5007, %v5037
      %v5047 = vadd.f32 %v5008, %v5037
      %v5048 = vadd.f32 %v5009, %v5037
      %v5049 = vadd.f32 %v5010, %v5037
      %v5050 = vadd.f32 %v5011, %v5037
      %v5051 = vadd.f32 %v5012, %v5037
      %v5052 = vadd.f32 %v5013, %v5037
      %v5053 = vadd.f32 %v5014, %v5037
      %v5054 = vadd.f32 %v5015, %v5037
      %v5055 = vadd.f32 %v5016, %v5037
      %v5056 = vadd.f32 %v5017, %v5037
      %v5057 = vadd.f32 %v5018, %v5037
      %v5058 = vadd.f32 %v5019, %v5037
      %v5059 = vadd.f32 %v5020, %v5037
      %v5060 = vadd.f32 %v5021, %v5037
      %v5061 = vadd.f32 %v5022, %v5037
      %v5062 = vadd.f32 %v5023, %v5037
      %v5063 = vadd.f32 %v5024, %v5037
      %v5064 = vadd.f32 %v5025, %v5037
      %v5065 = vadd.f32 %v5026, %v5037
      %v5066 = vadd.f32 %v5027, %v5037
      %v5067 = vadd.f32 %v5028, %v5037
      %v5068 = vadd.f32 %v5029, %v5037
      %v5069 = vadd.f32 %v5030, %v5037
      %v5070 = vadd.f32 %v5031, %v5037
      %v5071 = vmax.f32 %v5039, 0.0
      %v5072 = vmax.f32 %v5040, 0.0
      %v5073 = vmax.f32 %v5041, 0.0
      %v5074 = vmax.f32 %v5042, 0.0
      %v5075 = vmax.f32 %v5043, 0.0
      %v5076 = vmax.f32 %v5044, 0.0
      %v5077 = vmax.f32 %v5045, 0.0
      %v5078 = vmax.f32 %v5046, 0.0
      %v5079 = vmax.f32 %v5047, 0.0
      %v5080 = vmax.f32 %v5048, 0.0
      %v5081 = vmax.f32 %v5049, 0.0
      %v5082 = vmax.f32 %v5050, 0.0
      %v5083 = vmax.f32 %v5051, 0.0
      %v5084 = vmax.f32 %v5052, 0.0
      %v5085 = vmax.f32 %v5053, 0.0
      %v5086 = vmax.f32 %v5054, 0.0
      %v5087 = vmax.f32 %v5055, 0.0
      %v5088 = vmax.f32 %v5056, 0.0
      %v5089 = vmax.f32 %v5057, 0.0
      %v5090 = vmax.f32 %v5058, 0.0
      %v5091 = vmax.f32 %v5059, 0.0
      %v5092 = vmax.f32 %v5060, 0.0
      %v5093 = vmax.f32 %v5061, 0.0
      %v5094 = vmax.f32 %v5062, 0.0
      %v5095 = vmax.f32 %v5063, 0.0
      %v5096 = vmax.f32 %v5064, 0.0
      %v5097 = vmax.f32 %v5065, 0.0
      %v5098 = vmax.f32 %v5066, 0.0
      %v5099 = vmax.f32 %v5067, 0.0
      %v5100 = vmax.f32 %v5068, 0.0
      %v5101 = vmax.f32 %v5069, 0.0
      %v5102 = vmax.f32 %v5070, 0.0
      %v5103 = vpack.c.bf16 %v5072, %v5071
      %v5104 = vpack.c.bf16 %v5074, %v5073
      %v5105 = vpack.c.bf16 %v5076, %v5075
      %v5106 = vpack.c.bf16 %v5078, %v5077
      %v5107 = vpack.c.bf16 %v5080, %v5079
      %v5108 = vpack.c.bf16 %v5082, %v5081
      %v5109 = vpack.c.bf16 %v5084, %v5083
      %v5110 = vpack.c.bf16 %v5086, %v5085
      %v5111 = vpack.c.bf16 %v5088, %v5087
      %v5112 = vpack.c.bf16 %v5090, %v5089
      %v5113 = vpack.c.bf16 %v5092, %v5091
      %v5114 = vpack.c.bf16 %v5094, %v5093
      %v5115 = vpack.c.bf16 %v5096, %v5095
      %v5116 = vpack.c.bf16 %v5098, %v5097
      %v5117 = vpack.c.bf16 %v5100, %v5099
      %v5118 = vpack.c.bf16 %v5102, %v5101
      %v5135 = vunpack.c.l.b16 %v5103
      %v5136 = vunpack.c.h.b16 %v5103
      %v5137 = vunpack.c.l.b16 %v5104
      %v5138 = vunpack.c.h.b16 %v5104
      %v5139 = vunpack.c.l.b16 %v5105
      %v5140 = vunpack.c.h.b16 %v5105
      %v5141 = vunpack.c.l.b16 %v5106
      %v5142 = vunpack.c.h.b16 %v5106
      %v5143 = vunpack.c.l.b16 %v5107
      %v5144 = vunpack.c.h.b16 %v5107
      %v5145 = vunpack.c.l.b16 %v5108
      %v5146 = vunpack.c.h.b16 %v5108
      %v5147 = vunpack.c.l.b16 %v5109
      %v5148 = vunpack.c.h.b16 %v5109
      %v5149 = vunpack.c.l.b16 %v5110
      %v5150 = vunpack.c.h.b16 %v5110
      %v5151 = vunpack.c.l.b16 %v5111
      %v5152 = vunpack.c.h.b16 %v5111
      %v5153 = vunpack.c.l.b16 %v5112
      %v5154 = vunpack.c.h.b16 %v5112
      %v5155 = vunpack.c.l.b16 %v5113
      %v5156 = vunpack.c.h.b16 %v5113
      %v5157 = vunpack.c.l.b16 %v5114
      %v5158 = vunpack.c.h.b16 %v5114
      %v5159 = vunpack.c.l.b16 %v5115
      %v5160 = vunpack.c.h.b16 %v5115
      %v5161 = vunpack.c.l.b16 %v5116
      %v5162 = vunpack.c.h.b16 %v5116
      %v5163 = vunpack.c.l.b16 %v5117
      %v5164 = vunpack.c.h.b16 %v5117
      %v5165 = vunpack.c.l.b16 %v5118
      %v5166 = vunpack.c.h.b16 %v5118
      %v5167 = vpack.c.b16 %v5135, %v5135
      %v5168 = vpack.c.b16 %v5136, %v5136
      %v5169 = vpack.c.b16 %v5137, %v5137
      %v5170 = vpack.c.b16 %v5138, %v5138
      %v5171 = vpack.c.b16 %v5139, %v5139
      %v5172 = vpack.c.b16 %v5140, %v5140
      %v5173 = vpack.c.b16 %v5141, %v5141
      %v5174 = vpack.c.b16 %v5142, %v5142
      %v5175 = vpack.c.b16 %v5143, %v5143
      %v5176 = vpack.c.b16 %v5144, %v5144
      %v5177 = vpack.c.b16 %v5145, %v5145
      %v5178 = vpack.c.b16 %v5146, %v5146
      %v5179 = vpack.c.b16 %v5147, %v5147
      %v5180 = vpack.c.b16 %v5148, %v5148
      %v5181 = vpack.c.b16 %v5149, %v5149
      %v5182 = vpack.c.b16 %v5150, %v5150
      %v5183 = vpack.c.b16 %v5151, %v5151
      %v5184 = vpack.c.b16 %v5152, %v5152
      %v5185 = vpack.c.b16 %v5153, %v5153
      %v5186 = vpack.c.b16 %v5154, %v5154
      %v5187 = vpack.c.b16 %v5155, %v5155
      %v5188 = vpack.c.b16 %v5156, %v5156
      %v5189 = vpack.c.b16 %v5157, %v5157
      %v5190 = vpack.c.b16 %v5158, %v5158
      %v5191 = vpack.c.b16 %v5159, %v5159
      %v5192 = vpack.c.b16 %v5160, %v5160
      %v5193 = vpack.c.b16 %v5161, %v5161
      %v5194 = vpack.c.b16 %v5162, %v5162
      %v5195 = vpack.c.b16 %v5163, %v5163
      %v5196 = vpack.c.b16 %v5164, %v5164
      %v5197 = vpack.c.b16 %v5165, %v5165
      %v5198 = vpack.c.b16 %v5166, %v5166
      %5231 = vst [vmem:[%s221] sm:$0xf] %v5167
      %5232 = vst [vmem:[%s221 + $0x4] sm:$0xf] %v5168
      %5233 = vst [vmem:[%s221 + $0x8] sm:$0xf] %v5169
      %5234 = vst [vmem:[%s221 + $0xc] sm:$0xf] %v5170
      %5235 = vst [vmem:[%s221 + $0x10] sm:$0xf] %v5171
      %5236 = vst [vmem:[%s221 + $0x14] sm:$0xf] %v5172
      %5237 = vst [vmem:[%s221 + $0x18] sm:$0xf] %v5173
      %5238 = vst [vmem:[%s221 + $0x1c] sm:$0xf] %v5174
      %5239 = vst [vmem:[%s221 + $0x20] sm:$0xf] %v5175
      %5240 = vst [vmem:[%s221 + $0x24] sm:$0xf] %v5176
      %5241 = vst [vmem:[%s221 + $0x28] sm:$0xf] %v5177
      %5242 = vst [vmem:[%s221 + $0x2c] sm:$0xf] %v5178
      %5243 = vst [vmem:[%s221 + $0x30] sm:$0xf] %v5179
      %5244 = vst [vmem:[%s221 + $0x34] sm:$0xf] %v5180
      %5245 = vst [vmem:[%s221 + $0x38] sm:$0xf] %v5181
      %5246 = vst [vmem:[%s221 + $0x3c] sm:$0xf] %v5182
      %5247 = vst [vmem:[%s221 + $0x40] sm:$0xf] %v5183
      %5248 = vst [vmem:[%s221 + $0x44] sm:$0xf] %v5184
      %5249 = vst [vmem:[%s221 + $0x48] sm:$0xf] %v5185
      %5250 = vst [vmem:[%s221 + $0x4c] sm:$0xf] %v5186
      %5251 = vst [vmem:[%s221 + $0x50] sm:$0xf] %v5187
      %5252 = vst [vmem:[%s221 + $0x54] sm:$0xf] %v5188
      %5253 = vst [vmem:[%s221 + $0x58] sm:$0xf] %v5189
      %5254 = vst [vmem:[%s221 + $0x5c] sm:$0xf] %v5190
      %5255 = vst [vmem:[%s221 + $0x60] sm:$0xf] %v5191
      %5256 = vst [vmem:[%s221 + $0x64] sm:$0xf] %v5192
      %5257 = vst [vmem:[%s221 + $0x68] sm:$0xf] %v5193
      %5258 = vst [vmem:[%s221 + $0x6c] sm:$0xf] %v5194
      %5259 = vst [vmem:[%s221 + $0x70] sm:$0xf] %v5195
      %5260 = vst [vmem:[%s221 + $0x74] sm:$0xf] %v5196
      %5261 = vst [vmem:[%s221 + $0x78] sm:$0xf] %v5197
      %5262 = vst [vmem:[%s221 + $0x7c] sm:$0xf] %v5198
      %p5263 = scmp.lt.s32.totalorder %s18, 1
      %s5264 = scalar_select %p5263, %s18, 1
      %p5265 = scmp.lt.s32.totalorder %s19, 0
      %s5266 = scalar_select %p5265, %s19, 0
      %s5267 = smul.addr %s5264, 32
      %s5268 = sadd.s32 %s5266, %s5267
      %s5269 = smul.addr %s5268, 4
      %s5270 = scalar_lea.vmem %s3, %s5269
      // Predicated region
      $region33: #{resblock_forward.6} parent=31 // pred_check
        %p5271 = pneg %p124
      $region34: #{resblock_forward.6} parent=31 // pred_check_branch
        %5273 = sbr.rel (%p5271) target = $region36
      $region35: #{resblock_forward.6} parent=31 // pred_region
        _
      $region36: #{resblock_forward.6} parent=31 // pred_fallthru
        _
    $region32: #{resblock_forward.6} parent=5 // pred_fallthru
      _
    %p5274 = scmp.le.s32.totalorder 2, %s9
    // Predicated region
    $region37: #{resblock_forward.6} parent=5 // pred_check
      %p5275 = pneg %p5274
    $region38: #{resblock_forward.6} parent=5 // pred_check_branch
      %5277 = sbr.rel (%p5275) target = $region40
    $region39: #{resblock_forward.6} parent=5 // pred_region
      %s5278 = ssub.s32 %s9, 2
      // Predicated region
      $region41: #{resblock_forward.6} parent=39 // pred_check
        %p5279 = pneg %p130
      $region42: #{resblock_forward.6} parent=39 // pred_check_branch
        %5281 = sbr.rel (%p5279) target = $region44
      $region43: #{resblock_forward.6} parent=39 // pred_region
        %p5282 = scmp.lt.s32.totalorder %s20, 1
        %s5283 = scalar_select %p5282, %s20, 1
        %p5284 = scmp.lt.s32.totalorder %s21, 0
        %s5285 = scalar_select %p5284, %s21, 0
        %s5286 = smul.addr %s5283, 32
        %s5287 = sadd.s32 %s5285, %s5286
        %s5288 = smul.addr %s5287, 4
        %s5289 = scalar_lea.vmem %s3, %s5288
      $region44: #{resblock_forward.6} parent=39 // pred_fallthru
        _
    $region40: #{resblock_forward.6} parent=5 // pred_fallthru
      _
  $region6: #{resblock_forward.6} parent=0 // loop_footer
    %s13 = sadd.s32 1, %s9
  $region7: #{resblock_forward.6} parent=0 // loop_footer_branch
    %8 = sbr.rel target = $region3
  $region8: #{resblock_forward.6} parent=0 // loop_exit
    _

</llo_original>
